<compile_context>
chip_gen: v5e
topology: v5e:2x2
jax: 0.10.0
libtpu: 0.0.40
codegen_flags: <defaults>
</compile_context>

<pallas_src>
import functools
import math

import jax
import jax.numpy as jnp
from jax.experimental import pallas as pl
from jax.experimental.pallas import tpu as pltpu


def _fused_mha_kernel(scale, eps, B, N, A, blocks,
                      pn_ref, pt_ref, wpg_ref, wth_ref, mixT_ref, bz_ref,
                      out_ref,
                      projA_s, projB_s, thbd_s, gbd_s, y_s, m_s, d_s):
    """Single-invocation fused forward.

    pn_ref   : (B*N, K+1)       im2col patches + ones column (bias fold)
    pt_ref   : (K+1, B*N)       same patches, transposed
    wpg_ref  : (K+1, 2*HA)      fused [phi | g] projection weights (+bias row)
    wth_ref  : (HA, K+1)        theta projection weights (+bias column), transposed
    mixT_ref : (B*HA, Cin*Cin)  fused per-head Conv3d x final Conv2d mixing matrix
    bz_ref   : (1, Cin*Cin)     fused output bias row
    out_ref  : (N, Cin*Cin)     out[n, o*Cin + c] = z[o, c, n]
    """
    HA = blocks * A
    BN = blocks * N

    # --- projections for every batch, head and {theta, phi, g} -------------------
    # phi|g in (spatial, channel) orientation, theta in (channel, spatial), so the
    # block-diagonal operands below need no in-kernel transposes.
    projA_s[...] = jnp.dot(pn_ref[...], wpg_ref[...],
                           preferred_element_type=jnp.float32)          # (B*N, 2*HA)
    projB_s[...] = jnp.dot(wth_ref[...], pt_ref[...],
                           preferred_element_type=jnp.float32)          # (HA, B*N)

    # Block-diagonal operand buffers: zeroed once; every batch rewrites only the
    # diagonal blocks (same sparsity pattern each time), off-diagonals stay zero.
    thbd_s[...] = jnp.zeros((HA, BN), jnp.float32)
    gbd_s[...] = jnp.zeros((BN, HA), jnp.float32)

    # B is tiny (== A == C_in); the heavy per-head work below is already batched
    # into 512-lane tiles, and all bulky intermediates flow through VMEM scratch,
    # so a static unrolled loop keeps every slice offset static.
    for b in range(B):
        # Reload per-batch slices from VMEM (bounds the projections' live ranges).
        pa = projA_s[b * N:(b + 1) * N, :]                              # (N, 2*HA)
        tt = projB_s[:, b * N:(b + 1) * N]                              # (HA, N) = theta^T

        # InstanceNorm2d (affine=False) on phi: stats over the spatial axis.
        phr = pa[:, 0:HA]
        mu_p = jnp.mean(phr, axis=0, keepdims=True)
        var_p = jnp.mean((phr - mu_p) ** 2, axis=0, keepdims=True)
        ph = (phr - mu_p) * jax.lax.rsqrt(var_p + eps)                  # (N, HA)
        g = pa[:, HA:2 * HA]                                            # (N, HA), NOT normalized

        # InstanceNorm2d on theta (spatial axis = lanes here); fold 1/sqrt(A).
        mu_t = jnp.mean(tt, axis=1, keepdims=True)
        var_t = jnp.mean((tt - mu_t) ** 2, axis=1, keepdims=True)
        th_t = (tt - mu_t) * jax.lax.rsqrt(var_t + eps) * scale         # (HA, N)

        # Diagonal blocks of the block-diagonal operands (static slice stores).
        for h in range(blocks):
            thbd_s[h * A:(h + 1) * A, h * N:(h + 1) * N] = th_t[h * A:(h + 1) * A, :]
            gbd_s[h * N:(h + 1) * N, h * A:(h + 1) * A] = g[:, h * A:(h + 1) * A]

        # All heads' att^T in ONE 512-lane-wide matmul:
        #   attT[n, h*N + m] = <theta_h[:, m], phi_h[n, :]> / sqrt(A)
        attT = jnp.dot(ph, thbd_s[...],
                       preferred_element_type=jnp.float32)              # (N, BN)

        # Per-head *global* softmax over each head's N*N block (lane segment).
        cmax = jnp.max(attT, axis=0, keepdims=True)                     # (1, BN)
        for h in range(blocks):
            m_s[:, h * N:(h + 1) * N] = jnp.broadcast_to(
                jnp.max(cmax[:, h * N:(h + 1) * N], keepdims=True), (1, N))
        e = jnp.exp(attT - m_s[...])                                    # lane-dense EUP
        csum = jnp.sum(e, axis=0, keepdims=True)                        # (1, BN)
        for h in range(blocks):
            d_s[:, h * A:(h + 1) * A] = jnp.broadcast_to(
                jnp.sum(csum[:, h * N:(h + 1) * N], keepdims=True), (1, A))
        inv = pl.reciprocal(d_s[...], approx=True)                      # (1, HA), EUP slot

        # Value matmul batched over heads (contraction 512); per-head softmax
        # normalization applied to the small (N, HA) result, not the big map.
        #   yraw[n, h*A + a] = sum_m e[n, h*N + m] * g[m, h*A + a]
        yraw = jnp.dot(e, gbd_s[...],
                       preferred_element_type=jnp.float32)              # (N, HA)
        y_s[:, b * HA:(b + 1) * HA] = yraw * inv

    # Single post-loop mixing matmul (per-head Conv3d batch-mixing + final 1x1
    # Conv2d fused into mixT) + bias, written with ONE full-block store.
    out_ref[...] = (jnp.dot(y_s[...], mixT_ref[...],
                            preferred_element_type=jnp.float32) + bz_ref[...])


def downsampled_multihead_attention_2d(x, params, downsampling):
    B, C_in, H, W = x.shape
    d = downsampling
    blocks, A = params["b_theta"].shape
    # The PyTorch reference only runs when these hold:
    assert B == A, "reference module requires batch == att_features // blocks (unbatched Conv3d)"
    assert A == C_in, "reference module requires att_features // blocks == in_features (final Conv2d)"
    H_ds, W_ds = H // d, W // d
    N = H_ds * W_ds
    K = C_in * d * d
    HA = blocks * A
    P = jax.lax.Precision.HIGHEST

    # --- glue: im2col for the kernel=stride=d convolutions (floor spatial, like PyTorch).
    xp = x[:, :, :H_ds * d, :W_ds * d].reshape(B, C_in, H_ds, d, W_ds, d)
    patches = xp.transpose(0, 2, 4, 1, 3, 5).reshape(B * N, K).astype(jnp.float32)
    p_n = jnp.concatenate([patches, jnp.ones((B * N, 1), jnp.float32)], axis=1)   # (B*N, K+1)
    p_t = p_n.T                                                                   # (K+1, B*N)

    def wmat(w):                                    # (blocks, A, C_in, d, d) -> (K, HA)
        return w.reshape(HA, K).T.astype(jnp.float32)

    # [phi | g] weights with the bias as an extra row (folded into the matmul).
    w_pg = jnp.concatenate(
        [jnp.concatenate([wmat(params["w_phi"]), wmat(params["w_g"])], axis=1),
         jnp.concatenate([params["b_phi"].reshape(1, HA),
                          params["b_g"].reshape(1, HA)], axis=1).astype(jnp.float32)],
        axis=0)                                                                   # (K+1, 2*HA)
    # theta weights transposed, bias as an extra column (multiplies the ones row of p_t).
    w_th_t = jnp.concatenate(
        [params["w_theta"].reshape(HA, K).astype(jnp.float32),
         params["b_theta"].reshape(HA, 1).astype(jnp.float32)], axis=1)           # (HA, K+1)

    # --- fuse per-head Conv3d (unbatched -> mixes over batch) with the final 1x1 Conv2d:
    # mixT[b*HA + h*A + a, o*C_in + c] = Wf[c, h*A + a] * W3_h[o, b]
    wf = params["w_out"].reshape(C_in, blocks, A).astype(jnp.float32)             # [c, h, a]
    w3 = params["w_head_final"].reshape(blocks, C_in, A).astype(jnp.float32)      # [h, o, b]
    mixT = jnp.einsum("cha,hob->bhaoc", wf, w3).reshape(B * HA, C_in * C_in)
    bias_oc = (jnp.einsum("ho,ch->oc", params["b_head_final"].astype(jnp.float32),
                          wf.sum(axis=2), precision=P)
               + params["b_out"].astype(jnp.float32)[None, :])                    # [o, c]
    bz = bias_oc.reshape(1, C_in * C_in)

    kernel = functools.partial(_fused_mha_kernel, 1.0 / math.sqrt(A), 1e-5,
                               B, N, A, blocks)
    # Single gridless kernel invocation: the whole problem fits in < 300 KiB of VMEM
    # and is latency-bound, so grid/step overhead would only hurt (see v7x TODO above).
    out_t = pl.pallas_call(
        kernel,
        out_shape=jax.ShapeDtypeStruct((N, C_in * C_in), jnp.float32),
        scratch_shapes=[
            pltpu.VMEM((B * N, 2 * HA), jnp.float32),      # projA: [phi | g]
            pltpu.VMEM((HA, B * N), jnp.float32),          # projB: theta^T
            pltpu.VMEM((HA, blocks * N), jnp.float32),     # block-diag theta^T operand
            pltpu.VMEM((blocks * N, HA), jnp.float32),     # block-diag g operand
            pltpu.VMEM((N, B * HA), jnp.float32),          # Y for all batches/heads
            pltpu.VMEM((1, blocks * N), jnp.float32),      # per-head softmax max row
            pltpu.VMEM((1, HA), jnp.float32),              # per-head softmax denominators
        ],
    )(p_n, p_t, w_pg, w_th_t, mixT, bz)                                           # (N, C_in*C_in)
    # out_t[n, o*C_in + c] = z[o, c, n]  -> tiny transpose/reshape in XLA.
    return out_t.T.reshape(C_in, C_in, H_ds, W_ds)


def ref_forward(x, params, d):
    """Pure-JAX reference mirroring the PyTorch forward (for correctness check)."""
    P = jax.lax.Precision.HIGHEST
    B, C_in, H, W = x.shape
    blocks, A = params["b_theta"].shape

    def conv2d(x, w, b):
        y = jax.lax.conv_general_dilated(
            x, w, (d, d), "VALID",
            dimension_numbers=("NCHW", "OIHW", "NCHW"), precision=P)
        return y + b.reshape(1, -1, 1, 1)

    def inorm(y):
        mu = y.mean(axis=(2, 3), keepdims=True)
        var = ((y - mu) ** 2).mean(axis=(2, 3), keepdims=True)
        return (y - mu) / jnp.sqrt(var + 1e-5)

    head_outs = []
    for h in range(blocks):
        theta = inorm(conv2d(x, params["w_theta"][h], params["b_theta"][h]))
        phi = inorm(conv2d(x, params["w_phi"][h], params["b_phi"][h]))
        g = conv2d(x, params["w_g"][h], params["b_g"][h])
        _, _, Hd, Wd = theta.shape
        N = Hd * Wd
        theta_f = theta.reshape(B, A, N).transpose(0, 2, 1)          # (B, N, A)
        phi_f = phi.reshape(B, A, N)
        g_f = g.reshape(B, A, N)
        att = jnp.einsum("bna,bam->bnm", theta_f, phi_f, precision=P) / math.sqrt(A)
        att_map = jax.nn.softmax(att.reshape(B, N * N), axis=1).reshape(B, N, N)
        y = jnp.einsum("bam,bmn->ban", g_f, att_map, precision=P)    # (B, A, N)
        # Conv3d(A -> C_in, 1) on a 4-D tensor: unbatched, mixes over the batch axis.
        w3 = params["w_head_final"][h].reshape(C_in, A)
        out_h = (jnp.einsum("ob,ban->oan", w3, y, precision=P)
                 + params["b_head_final"][h].reshape(-1, 1, 1))
        head_outs.append(out_h.reshape(C_in, A, Hd, Wd))
    xcat = jnp.concatenate(head_outs, axis=1)                        # (C_in, blocks*A, Hd, Wd)
    wf = params["w_out"].reshape(C_in, blocks * A)
    z = (jnp.einsum("cq,oqhw->ochw", wf, xcat, precision=P)
         + params["b_out"].reshape(1, -1, 1, 1))
    return z


if __name__ == "__main__":
    key = jax.random.PRNGKey(0)
    in_features, blocks, d = 4, 8, 2
    att_features = in_features * blocks          # per-head features == in_features (ref constraint)
    A = att_features // blocks
    B, H, W = A, 16, 16                          # unbatched-Conv3d constraint: batch == per-head features

    ks = jax.random.split(key, 11)
    params = {
        "w_theta": 0.25 * jax.random.normal(ks[0], (blocks, A, in_features, d, d), jnp.float32),
        "b_theta": 0.1 * jax.random.normal(ks[1], (blocks, A), jnp.float32),
        "w_phi":   0.25 * jax.random.normal(ks[2], (blocks, A, in_features, d, d), jnp.float32),
        "b_phi":   0.1 * jax.random.normal(ks[3], (blocks, A), jnp.float32),
        "w_g":     0.25 * jax.random.normal(ks[4], (blocks, A, in_features, d, d), jnp.float32),
        "b_g":     0.1 * jax.random.normal(ks[5], (blocks, A), jnp.float32),
        "w_head_final": 0.25 * jax.random.normal(ks[6], (blocks, in_features, A, 1, 1, 1), jnp.float32),
        "b_head_final": 0.1 * jax.random.normal(ks[7], (blocks, in_features), jnp.float32),
        "w_out":   0.25 * jax.random.normal(ks[8], (in_features, in_features * blocks, 1, 1), jnp.float32),
        "b_out":   0.1 * jax.random.normal(ks[9], (in_features,), jnp.float32),
    }
    x = jax.random.normal(ks[10], (B, in_features, H, W), jnp.float32)

    fwd = jax.jit(functools.partial(downsampled_multihead_attention_2d, downsampling=d))
    out = jax.block_until_ready(fwd(x, params))

    ref = ref_forward(x, params, d)
    assert out.shape == (in_features, in_features, H // d, W // d), out.shape
    max_err = float(jnp.max(jnp.abs(out - ref)))
    assert jnp.allclose(out, ref, atol=2e-3, rtol=2e-3), max_err
    print("KERNEL_OK")
</pallas_src>

<mosaic_0001>
module attributes {stable_mosaic.version = 11 : i64} {
  func.func @_fused_mha_kernel(%arg0: memref<256x17xf32, #tpu.memory_space<vmem>>, %arg1: memref<17x256xf32, #tpu.memory_space<vmem>>, %arg2: memref<17x64xf32, #tpu.memory_space<vmem>>, %arg3: memref<32x17xf32, #tpu.memory_space<vmem>>, %arg4: memref<128x16xf32, #tpu.memory_space<vmem>>, %arg5: memref<1x16xf32, #tpu.memory_space<vmem>>, %arg6: memref<64x16xf32, #tpu.memory_space<vmem>>, %arg7: memref<256x64xf32, #tpu.memory_space<vmem>>, %arg8: memref<32x256xf32, #tpu.memory_space<vmem>>, %arg9: memref<32x512xf32, #tpu.memory_space<vmem>>, %arg10: memref<512x32xf32, #tpu.memory_space<vmem>>, %arg11: memref<64x128xf32, #tpu.memory_space<vmem>>, %arg12: memref<1x512xf32, #tpu.memory_space<vmem>>, %arg13: memref<1x32xf32, #tpu.memory_space<vmem>>) attributes {dimension_semantics = [], scalar_prefetch = 0 : i64, scratch_operands = 7 : i64, tpu.core_type = #tpu.core_type<tc>} {
    %c0 = arith.constant 0 : index
    %c0_0 = arith.constant 0 : index
    %0 = vector.load %arg0[%c0, %c0_0] : memref<256x17xf32, #tpu.memory_space<vmem>>, vector<256x17xf32>
    %c0_1 = arith.constant 0 : index
    %c0_2 = arith.constant 0 : index
    %1 = vector.load %arg2[%c0_1, %c0_2] : memref<17x64xf32, #tpu.memory_space<vmem>>, vector<17x64xf32>
    %cst = arith.constant dense<0.000000e+00> : vector<256x64xf32>
    %2 = tpu.matmul %0, %1, %cst {dimension_numbers = #tpu.dot_dimension_numbers<[1], [0], [0], [1], [0, 0, 1, 1], [], []>} : vector<256x17xf32>, vector<17x64xf32>, vector<256x64xf32> -> vector<256x64xf32>
    %c0_3 = arith.constant 0 : index
    %c0_4 = arith.constant 0 : index
    %3 = vector.load %arg7[%c0_3, %c0_4] : memref<256x64xf32, #tpu.memory_space<vmem>>, vector<256x64xf32>
    tpu.vector_store %arg7[%c0_3, %c0_4], %2 {strides = array<i32>} : memref<256x64xf32, #tpu.memory_space<vmem>>, vector<256x64xf32>,
    %c0_5 = arith.constant 0 : index
    %c0_6 = arith.constant 0 : index
    %4 = vector.load %arg3[%c0_5, %c0_6] : memref<32x17xf32, #tpu.memory_space<vmem>>, vector<32x17xf32>
    %c0_7 = arith.constant 0 : index
    %c0_8 = arith.constant 0 : index
    %5 = vector.load %arg1[%c0_7, %c0_8] : memref<17x256xf32, #tpu.memory_space<vmem>>, vector<17x256xf32>
    %cst_9 = arith.constant dense<0.000000e+00> : vector<32x256xf32>
    %6 = tpu.matmul %4, %5, %cst_9 {dimension_numbers = #tpu.dot_dimension_numbers<[1], [0], [0], [1], [0, 0, 1, 1], [], []>} : vector<32x17xf32>, vector<17x256xf32>, vector<32x256xf32> -> vector<32x256xf32>
    %c0_10 = arith.constant 0 : index
    %c0_11 = arith.constant 0 : index
    %7 = vector.load %arg8[%c0_10, %c0_11] : memref<32x256xf32, #tpu.memory_space<vmem>>, vector<32x256xf32>
    tpu.vector_store %arg8[%c0_10, %c0_11], %6 {strides = array<i32>} : memref<32x256xf32, #tpu.memory_space<vmem>>, vector<32x256xf32>,
    %cst_12 = arith.constant 0.000000e+00 : f32
    %8 = vector.broadcast %cst_12 : f32 to vector<32x512xf32>
    %c0_13 = arith.constant 0 : index
    %c0_14 = arith.constant 0 : index
    %9 = vector.load %arg9[%c0_13, %c0_14] : memref<32x512xf32, #tpu.memory_space<vmem>>, vector<32x512xf32>
    tpu.vector_store %arg9[%c0_13, %c0_14], %8 {strides = array<i32>} : memref<32x512xf32, #tpu.memory_space<vmem>>, vector<32x512xf32>,
    %cst_15 = arith.constant 0.000000e+00 : f32
    %10 = vector.broadcast %cst_15 : f32 to vector<512x32xf32>
    %c0_16 = arith.constant 0 : index
    %c0_17 = arith.constant 0 : index
    %11 = vector.load %arg10[%c0_16, %c0_17] : memref<512x32xf32, #tpu.memory_space<vmem>>, vector<512x32xf32>
    tpu.vector_store %arg10[%c0_16, %c0_17], %10 {strides = array<i32>} : memref<512x32xf32, #tpu.memory_space<vmem>>, vector<512x32xf32>,
    %c0_18 = arith.constant 0 : index
    %c0_19 = arith.constant 0 : index
    %12 = vector.load %arg7[%c0_18, %c0_19] : memref<256x64xf32, #tpu.memory_space<vmem>>, vector<64x64xf32>
    %c0_20 = arith.constant 0 : index
    %c0_21 = arith.constant 0 : index
    %13 = vector.load %arg8[%c0_20, %c0_21] : memref<32x256xf32, #tpu.memory_space<vmem>>, vector<32x64xf32>
    %14 = vector.extract_strided_slice %12 {offsets = [0, 0], sizes = [64, 32], strides = [1, 1]} : vector<64x64xf32> to vector<64x32xf32>
    %cst_22 = arith.constant dense<0.000000e+00> : vector<32xf32>
    %15 = vector.multi_reduction <add>, %14, %cst_22 [0] : vector<64x32xf32> to vector<32xf32>
    %16 = vector.shape_cast %15 : vector<32xf32> to vector<1x32xf32>
    %cst_23 = arith.constant 6.400000e+01 : f32
    %17 = vector.broadcast %cst_23 : f32 to vector<1x32xf32>
    %18 = arith.divf %16, %17 : vector<1x32xf32>
    %19 = vector.broadcast %18 : vector<1x32xf32> to vector<64x32xf32>
    %20 = arith.subf %14, %19 : vector<64x32xf32>
    %21 = arith.mulf %20, %20 : vector<64x32xf32>
    %cst_24 = arith.constant dense<0.000000e+00> : vector<32xf32>
    %22 = vector.multi_reduction <add>, %21, %cst_24 [0] : vector<64x32xf32> to vector<32xf32>
    %23 = vector.shape_cast %22 : vector<32xf32> to vector<1x32xf32>
    %cst_25 = arith.constant 6.400000e+01 : f32
    %24 = vector.broadcast %cst_25 : f32 to vector<1x32xf32>
    %25 = arith.divf %23, %24 : vector<1x32xf32>
    %26 = vector.broadcast %18 : vector<1x32xf32> to vector<64x32xf32>
    %27 = arith.subf %14, %26 : vector<64x32xf32>
    %cst_26 = arith.constant 9.99999974E-6 : f32
    %28 = vector.broadcast %cst_26 : f32 to vector<1x32xf32>
    %29 = arith.addf %25, %28 : vector<1x32xf32>
    %30 = math.rsqrt %29 : vector<1x32xf32>
    %31 = vector.broadcast %30 : vector<1x32xf32> to vector<64x32xf32>
    %32 = arith.mulf %27, %31 : vector<64x32xf32>
    %33 = vector.extract_strided_slice %12 {offsets = [0, 32], sizes = [64, 32], strides = [1, 1]} : vector<64x64xf32> to vector<64x32xf32>
    %cst_27 = arith.constant dense<0.000000e+00> : vector<32xf32>
    %34 = vector.multi_reduction <add>, %13, %cst_27 [1] : vector<32x64xf32> to vector<32xf32>
    %35 = vector.shape_cast %34 : vector<32xf32> to vector<32x1xf32>
    %cst_28 = arith.constant 6.400000e+01 : f32
    %36 = vector.broadcast %cst_28 : f32 to vector<32x1xf32>
    %37 = arith.divf %35, %36 : vector<32x1xf32>
    %38 = vector.broadcast %37 : vector<32x1xf32> to vector<32x64xf32>
    %39 = arith.subf %13, %38 : vector<32x64xf32>
    %40 = arith.mulf %39, %39 : vector<32x64xf32>
    %cst_29 = arith.constant dense<0.000000e+00> : vector<32xf32>
    %41 = vector.multi_reduction <add>, %40, %cst_29 [1] : vector<32x64xf32> to vector<32xf32>
    %42 = vector.shape_cast %41 : vector<32xf32> to vector<32x1xf32>
    %cst_30 = arith.constant 6.400000e+01 : f32
    %43 = vector.broadcast %cst_30 : f32 to vector<32x1xf32>
    %44 = arith.divf %42, %43 : vector<32x1xf32>
    %45 = vector.broadcast %37 : vector<32x1xf32> to vector<32x64xf32>
    %46 = arith.subf %13, %45 : vector<32x64xf32>
    %cst_31 = arith.constant 9.99999974E-6 : f32
    %47 = vector.broadcast %cst_31 : f32 to vector<32x1xf32>
    %48 = arith.addf %44, %47 : vector<32x1xf32>
    %49 = math.rsqrt %48 : vector<32x1xf32>
    %50 = vector.broadcast %49 : vector<32x1xf32> to vector<32x64xf32>
    %51 = arith.mulf %46, %50 : vector<32x64xf32>
    %cst_32 = arith.constant 5.000000e-01 : f32
    %52 = vector.broadcast %cst_32 : f32 to vector<32x64xf32>
    %53 = arith.mulf %51, %52 : vector<32x64xf32>
    %54 = vector.extract_strided_slice %53 {offsets = [0, 0], sizes = [4, 64], strides = [1, 1]} : vector<32x64xf32> to vector<4x64xf32>
    %c0_33 = arith.constant 0 : index
    %c0_34 = arith.constant 0 : index
    %55 = vector.load %arg9[%c0_33, %c0_34] : memref<32x512xf32, #tpu.memory_space<vmem>>, vector<4x64xf32>
    tpu.vector_store %arg9[%c0_33, %c0_34], %54 {strides = array<i32>} : memref<32x512xf32, #tpu.memory_space<vmem>>, vector<4x64xf32>,
    %56 = vector.extract_strided_slice %33 {offsets = [0, 0], sizes = [64, 4], strides = [1, 1]} : vector<64x32xf32> to vector<64x4xf32>
    %c0_35 = arith.constant 0 : index
    %c0_36 = arith.constant 0 : index
    %57 = vector.load %arg10[%c0_35, %c0_36] : memref<512x32xf32, #tpu.memory_space<vmem>>, vector<64x4xf32>
    tpu.vector_store %arg10[%c0_35, %c0_36], %56 {strides = array<i32>} : memref<512x32xf32, #tpu.memory_space<vmem>>, vector<64x4xf32>,
    %58 = vector.extract_strided_slice %53 {offsets = [4, 0], sizes = [4, 64], strides = [1, 1]} : vector<32x64xf32> to vector<4x64xf32>
    %c4 = arith.constant 4 : index
    %c64 = arith.constant 64 : index
    %59 = vector.load %arg9[%c4, %c64] : memref<32x512xf32, #tpu.memory_space<vmem>>, vector<4x64xf32>
    tpu.vector_store %arg9[%c4, %c64], %58 {strides = array<i32>} : memref<32x512xf32, #tpu.memory_space<vmem>>, vector<4x64xf32>,
    %60 = vector.extract_strided_slice %33 {offsets = [0, 4], sizes = [64, 4], strides = [1, 1]} : vector<64x32xf32> to vector<64x4xf32>
    %c64_37 = arith.constant 64 : index
    %c4_38 = arith.constant 4 : index
    %61 = vector.load %arg10[%c64_37, %c4_38] : memref<512x32xf32, #tpu.memory_space<vmem>>, vector<64x4xf32>
    tpu.vector_store %arg10[%c64_37, %c4_38], %60 {strides = array<i32>} : memref<512x32xf32, #tpu.memory_space<vmem>>, vector<64x4xf32>,
    %62 = vector.extract_strided_slice %53 {offsets = [8, 0], sizes = [4, 64], strides = [1, 1]} : vector<32x64xf32> to vector<4x64xf32>
    %c8 = arith.constant 8 : index
    %c128 = arith.constant 128 : index
    %63 = vector.load %arg9[%c8, %c128] : memref<32x512xf32, #tpu.memory_space<vmem>>, vector<4x64xf32>
    tpu.vector_store %arg9[%c8, %c128], %62 {strides = array<i32>} : memref<32x512xf32, #tpu.memory_space<vmem>>, vector<4x64xf32>,
    %64 = vector.extract_strided_slice %33 {offsets = [0, 8], sizes = [64, 4], strides = [1, 1]} : vector<64x32xf32> to vector<64x4xf32>
    %c128_39 = arith.constant 128 : index
    %c8_40 = arith.constant 8 : index
    %65 = vector.load %arg10[%c128_39, %c8_40] : memref<512x32xf32, #tpu.memory_space<vmem>>, vector<64x4xf32>
    tpu.vector_store %arg10[%c128_39, %c8_40], %64 {strides = array<i32>} : memref<512x32xf32, #tpu.memory_space<vmem>>, vector<64x4xf32>,
    %66 = vector.extract_strided_slice %53 {offsets = [12, 0], sizes = [4, 64], strides = [1, 1]} : vector<32x64xf32> to vector<4x64xf32>
    %c12 = arith.constant 12 : index
    %c192 = arith.constant 192 : index
    %67 = vector.load %arg9[%c12, %c192] : memref<32x512xf32, #tpu.memory_space<vmem>>, vector<4x64xf32>
    tpu.vector_store %arg9[%c12, %c192], %66 {strides = array<i32>} : memref<32x512xf32, #tpu.memory_space<vmem>>, vector<4x64xf32>,
    %68 = vector.extract_strided_slice %33 {offsets = [0, 12], sizes = [64, 4], strides = [1, 1]} : vector<64x32xf32> to vector<64x4xf32>
    %c192_41 = arith.constant 192 : index
    %c12_42 = arith.constant 12 : index
    %69 = vector.load %arg10[%c192_41, %c12_42] : memref<512x32xf32, #tpu.memory_space<vmem>>, vector<64x4xf32>
    tpu.vector_store %arg10[%c192_41, %c12_42], %68 {strides = array<i32>} : memref<512x32xf32, #tpu.memory_space<vmem>>, vector<64x4xf32>,
    %70 = vector.extract_strided_slice %53 {offsets = [16, 0], sizes = [4, 64], strides = [1, 1]} : vector<32x64xf32> to vector<4x64xf32>
    %c16 = arith.constant 16 : index
    %c256 = arith.constant 256 : index
    %71 = vector.load %arg9[%c16, %c256] : memref<32x512xf32, #tpu.memory_space<vmem>>, vector<4x64xf32>
    tpu.vector_store %arg9[%c16, %c256], %70 {strides = array<i32>} : memref<32x512xf32, #tpu.memory_space<vmem>>, vector<4x64xf32>,
    %72 = vector.extract_strided_slice %33 {offsets = [0, 16], sizes = [64, 4], strides = [1, 1]} : vector<64x32xf32> to vector<64x4xf32>
    %c256_43 = arith.constant 256 : index
    %c16_44 = arith.constant 16 : index
    %73 = vector.load %arg10[%c256_43, %c16_44] : memref<512x32xf32, #tpu.memory_space<vmem>>, vector<64x4xf32>
    tpu.vector_store %arg10[%c256_43, %c16_44], %72 {strides = array<i32>} : memref<512x32xf32, #tpu.memory_space<vmem>>, vector<64x4xf32>,
    %74 = vector.extract_strided_slice %53 {offsets = [20, 0], sizes = [4, 64], strides = [1, 1]} : vector<32x64xf32> to vector<4x64xf32>
    %c20 = arith.constant 20 : index
    %c320 = arith.constant 320 : index
    %75 = vector.load %arg9[%c20, %c320] : memref<32x512xf32, #tpu.memory_space<vmem>>, vector<4x64xf32>
    tpu.vector_store %arg9[%c20, %c320], %74 {strides = array<i32>} : memref<32x512xf32, #tpu.memory_space<vmem>>, vector<4x64xf32>,
    %76 = vector.extract_strided_slice %33 {offsets = [0, 20], sizes = [64, 4], strides = [1, 1]} : vector<64x32xf32> to vector<64x4xf32>
    %c320_45 = arith.constant 320 : index
    %c20_46 = arith.constant 20 : index
    %77 = vector.load %arg10[%c320_45, %c20_46] : memref<512x32xf32, #tpu.memory_space<vmem>>, vector<64x4xf32>
    tpu.vector_store %arg10[%c320_45, %c20_46], %76 {strides = array<i32>} : memref<512x32xf32, #tpu.memory_space<vmem>>, vector<64x4xf32>,
    %78 = vector.extract_strided_slice %53 {offsets = [24, 0], sizes = [4, 64], strides = [1, 1]} : vector<32x64xf32> to vector<4x64xf32>
    %c24 = arith.constant 24 : index
    %c384 = arith.constant 384 : index
    %79 = vector.load %arg9[%c24, %c384] : memref<32x512xf32, #tpu.memory_space<vmem>>, vector<4x64xf32>
    tpu.vector_store %arg9[%c24, %c384], %78 {strides = array<i32>} : memref<32x512xf32, #tpu.memory_space<vmem>>, vector<4x64xf32>,
    %80 = vector.extract_strided_slice %33 {offsets = [0, 24], sizes = [64, 4], strides = [1, 1]} : vector<64x32xf32> to vector<64x4xf32>
    %c384_47 = arith.constant 384 : index
    %c24_48 = arith.constant 24 : index
    %81 = vector.load %arg10[%c384_47, %c24_48] : memref<512x32xf32, #tpu.memory_space<vmem>>, vector<64x4xf32>
    tpu.vector_store %arg10[%c384_47, %c24_48], %80 {strides = array<i32>} : memref<512x32xf32, #tpu.memory_space<vmem>>, vector<64x4xf32>,
    %82 = vector.extract_strided_slice %53 {offsets = [28, 0], sizes = [4, 64], strides = [1, 1]} : vector<32x64xf32> to vector<4x64xf32>
    %c28 = arith.constant 28 : index
    %c448 = arith.constant 448 : index
    %83 = vector.load %arg9[%c28, %c448] : memref<32x512xf32, #tpu.memory_space<vmem>>, vector<4x64xf32>
    tpu.vector_store %arg9[%c28, %c448], %82 {strides = array<i32>} : memref<32x512xf32, #tpu.memory_space<vmem>>, vector<4x64xf32>,
    %84 = vector.extract_strided_slice %33 {offsets = [0, 28], sizes = [64, 4], strides = [1, 1]} : vector<64x32xf32> to vector<64x4xf32>
    %c448_49 = arith.constant 448 : index
    %c28_50 = arith.constant 28 : index
    %85 = vector.load %arg10[%c448_49, %c28_50] : memref<512x32xf32, #tpu.memory_space<vmem>>, vector<64x4xf32>
    tpu.vector_store %arg10[%c448_49, %c28_50], %84 {strides = array<i32>} : memref<512x32xf32, #tpu.memory_space<vmem>>, vector<64x4xf32>,
    %c0_51 = arith.constant 0 : index
    %c0_52 = arith.constant 0 : index
    %86 = vector.load %arg9[%c0_51, %c0_52] : memref<32x512xf32, #tpu.memory_space<vmem>>, vector<32x512xf32>
    %cst_53 = arith.constant dense<0.000000e+00> : vector<64x512xf32>
    %87 = tpu.matmul %32, %86, %cst_53 {dimension_numbers = #tpu.dot_dimension_numbers<[1], [0], [0], [1], [0, 0, 1, 1], [], []>} : vector<64x32xf32>, vector<32x512xf32>, vector<64x512xf32> -> vector<64x512xf32>
    %cst_54 = arith.constant dense<0xFF800000> : vector<512xf32>
    %88 = vector.multi_reduction <maximumf>, %87, %cst_54 [0] : vector<64x512xf32> to vector<512xf32>
    %89 = vector.shape_cast %88 : vector<512xf32> to vector<1x512xf32>
    %90 = vector.extract_strided_slice %89 {offsets = [0, 0], sizes = [1, 64], strides = [1, 1]} : vector<1x512xf32> to vector<1x64xf32>
    %91 = vector.shape_cast %90 : vector<1x64xf32> to vector<1x1x64xf32>
    %cst_55 = arith.constant dense<0xFF800000> : vector<1xf32>
    %92 = vector.multi_reduction <maximumf>, %91, %cst_55 [1, 2] : vector<1x1x64xf32> to vector<1xf32>
    %93 = vector.shape_cast %92 : vector<1xf32> to vector<1x1x1xf32>
    %94 = vector.extract %93[0, 0, 0] : f32 from vector<1x1x1xf32>
    %95 = vector.broadcast %94 : f32 to vector<1x1xf32>
    %96 = vector.shape_cast %95 : vector<1x1xf32> to vector<1x1xf32>
    %97 = vector.broadcast %96 : vector<1x1xf32> to vector<1x64xf32>
    %c0_56 = arith.constant 0 : index
    %c0_57 = arith.constant 0 : index
    %98 = vector.load %arg12[%c0_56, %c0_57] : memref<1x512xf32, #tpu.memory_space<vmem>>, vector<1x64xf32>
    tpu.vector_store %arg12[%c0_56, %c0_57], %97 {strides = array<i32>} : memref<1x512xf32, #tpu.memory_space<vmem>>, vector<1x64xf32>,
    %99 = vector.extract_strided_slice %89 {offsets = [0, 64], sizes = [1, 64], strides = [1, 1]} : vector<1x512xf32> to vector<1x64xf32>
    %100 = vector.shape_cast %99 : vector<1x64xf32> to vector<1x1x64xf32>
    %cst_58 = arith.constant dense<0xFF800000> : vector<1xf32>
    %101 = vector.multi_reduction <maximumf>, %100, %cst_58 [1, 2] : vector<1x1x64xf32> to vector<1xf32>
    %102 = vector.shape_cast %101 : vector<1xf32> to vector<1x1x1xf32>
    %103 = vector.extract %102[0, 0, 0] : f32 from vector<1x1x1xf32>
    %104 = vector.broadcast %103 : f32 to vector<1x1xf32>
    %105 = vector.shape_cast %104 : vector<1x1xf32> to vector<1x1xf32>
    %106 = vector.broadcast %105 : vector<1x1xf32> to vector<1x64xf32>
    %c0_59 = arith.constant 0 : index
    %c64_60 = arith.constant 64 : index
    %107 = vector.load %arg12[%c0_59, %c64_60] : memref<1x512xf32, #tpu.memory_space<vmem>>, vector<1x64xf32>
    tpu.vector_store %arg12[%c0_59, %c64_60], %106 {strides = array<i32>} : memref<1x512xf32, #tpu.memory_space<vmem>>, vector<1x64xf32>,
    %108 = vector.extract_strided_slice %89 {offsets = [0, 128], sizes = [1, 64], strides = [1, 1]} : vector<1x512xf32> to vector<1x64xf32>
    %109 = vector.shape_cast %108 : vector<1x64xf32> to vector<1x1x64xf32>
    %cst_61 = arith.constant dense<0xFF800000> : vector<1xf32>
    %110 = vector.multi_reduction <maximumf>, %109, %cst_61 [1, 2] : vector<1x1x64xf32> to vector<1xf32>
    %111 = vector.shape_cast %110 : vector<1xf32> to vector<1x1x1xf32>
    %112 = vector.extract %111[0, 0, 0] : f32 from vector<1x1x1xf32>
    %113 = vector.broadcast %112 : f32 to vector<1x1xf32>
    %114 = vector.shape_cast %113 : vector<1x1xf32> to vector<1x1xf32>
    %115 = vector.broadcast %114 : vector<1x1xf32> to vector<1x64xf32>
    %c0_62 = arith.constant 0 : index
    %c128_63 = arith.constant 128 : index
    %116 = vector.load %arg12[%c0_62, %c128_63] : memref<1x512xf32, #tpu.memory_space<vmem>>, vector<1x64xf32>
    tpu.vector_store %arg12[%c0_62, %c128_63], %115 {strides = array<i32>} : memref<1x512xf32, #tpu.memory_space<vmem>>, vector<1x64xf32>,
    %117 = vector.extract_strided_slice %89 {offsets = [0, 192], sizes = [1, 64], strides = [1, 1]} : vector<1x512xf32> to vector<1x64xf32>
    %118 = vector.shape_cast %117 : vector<1x64xf32> to vector<1x1x64xf32>
    %cst_64 = arith.constant dense<0xFF800000> : vector<1xf32>
    %119 = vector.multi_reduction <maximumf>, %118, %cst_64 [1, 2] : vector<1x1x64xf32> to vector<1xf32>
    %120 = vector.shape_cast %119 : vector<1xf32> to vector<1x1x1xf32>
    %121 = vector.extract %120[0, 0, 0] : f32 from vector<1x1x1xf32>
    %122 = vector.broadcast %121 : f32 to vector<1x1xf32>
    %123 = vector.shape_cast %122 : vector<1x1xf32> to vector<1x1xf32>
    %124 = vector.broadcast %123 : vector<1x1xf32> to vector<1x64xf32>
    %c0_65 = arith.constant 0 : index
    %c192_66 = arith.constant 192 : index
    %125 = vector.load %arg12[%c0_65, %c192_66] : memref<1x512xf32, #tpu.memory_space<vmem>>, vector<1x64xf32>
    tpu.vector_store %arg12[%c0_65, %c192_66], %124 {strides = array<i32>} : memref<1x512xf32, #tpu.memory_space<vmem>>, vector<1x64xf32>,
    %126 = vector.extract_strided_slice %89 {offsets = [0, 256], sizes = [1, 64], strides = [1, 1]} : vector<1x512xf32> to vector<1x64xf32>
    %127 = vector.shape_cast %126 : vector<1x64xf32> to vector<1x1x64xf32>
    %cst_67 = arith.constant dense<0xFF800000> : vector<1xf32>
    %128 = vector.multi_reduction <maximumf>, %127, %cst_67 [1, 2] : vector<1x1x64xf32> to vector<1xf32>
    %129 = vector.shape_cast %128 : vector<1xf32> to vector<1x1x1xf32>
    %130 = vector.extract %129[0, 0, 0] : f32 from vector<1x1x1xf32>
    %131 = vector.broadcast %130 : f32 to vector<1x1xf32>
    %132 = vector.shape_cast %131 : vector<1x1xf32> to vector<1x1xf32>
    %133 = vector.broadcast %132 : vector<1x1xf32> to vector<1x64xf32>
    %c0_68 = arith.constant 0 : index
    %c256_69 = arith.constant 256 : index
    %134 = vector.load %arg12[%c0_68, %c256_69] : memref<1x512xf32, #tpu.memory_space<vmem>>, vector<1x64xf32>
    tpu.vector_store %arg12[%c0_68, %c256_69], %133 {strides = array<i32>} : memref<1x512xf32, #tpu.memory_space<vmem>>, vector<1x64xf32>,
    %135 = vector.extract_strided_slice %89 {offsets = [0, 320], sizes = [1, 64], strides = [1, 1]} : vector<1x512xf32> to vector<1x64xf32>
    %136 = vector.shape_cast %135 : vector<1x64xf32> to vector<1x1x64xf32>
    %cst_70 = arith.constant dense<0xFF800000> : vector<1xf32>
    %137 = vector.multi_reduction <maximumf>, %136, %cst_70 [1, 2] : vector<1x1x64xf32> to vector<1xf32>
    %138 = vector.shape_cast %137 : vector<1xf32> to vector<1x1x1xf32>
    %139 = vector.extract %138[0, 0, 0] : f32 from vector<1x1x1xf32>
    %140 = vector.broadcast %139 : f32 to vector<1x1xf32>
    %141 = vector.shape_cast %140 : vector<1x1xf32> to vector<1x1xf32>
    %142 = vector.broadcast %141 : vector<1x1xf32> to vector<1x64xf32>
    %c0_71 = arith.constant 0 : index
    %c320_72 = arith.constant 320 : index
    %143 = vector.load %arg12[%c0_71, %c320_72] : memref<1x512xf32, #tpu.memory_space<vmem>>, vector<1x64xf32>
    tpu.vector_store %arg12[%c0_71, %c320_72], %142 {strides = array<i32>} : memref<1x512xf32, #tpu.memory_space<vmem>>, vector<1x64xf32>,
    %144 = vector.extract_strided_slice %89 {offsets = [0, 384], sizes = [1, 64], strides = [1, 1]} : vector<1x512xf32> to vector<1x64xf32>
    %145 = vector.shape_cast %144 : vector<1x64xf32> to vector<1x1x64xf32>
    %cst_73 = arith.constant dense<0xFF800000> : vector<1xf32>
    %146 = vector.multi_reduction <maximumf>, %145, %cst_73 [1, 2] : vector<1x1x64xf32> to vector<1xf32>
    %147 = vector.shape_cast %146 : vector<1xf32> to vector<1x1x1xf32>
    %148 = vector.extract %147[0, 0, 0] : f32 from vector<1x1x1xf32>
    %149 = vector.broadcast %148 : f32 to vector<1x1xf32>
    %150 = vector.shape_cast %149 : vector<1x1xf32> to vector<1x1xf32>
    %151 = vector.broadcast %150 : vector<1x1xf32> to vector<1x64xf32>
    %c0_74 = arith.constant 0 : index
    %c384_75 = arith.constant 384 : index
    %152 = vector.load %arg12[%c0_74, %c384_75] : memref<1x512xf32, #tpu.memory_space<vmem>>, vector<1x64xf32>
    tpu.vector_store %arg12[%c0_74, %c384_75], %151 {strides = array<i32>} : memref<1x512xf32, #tpu.memory_space<vmem>>, vector<1x64xf32>,
    %153 = vector.extract_strided_slice %89 {offsets = [0, 448], sizes = [1, 64], strides = [1, 1]} : vector<1x512xf32> to vector<1x64xf32>
    %154 = vector.shape_cast %153 : vector<1x64xf32> to vector<1x1x64xf32>
    %cst_76 = arith.constant dense<0xFF800000> : vector<1xf32>
    %155 = vector.multi_reduction <maximumf>, %154, %cst_76 [1, 2] : vector<1x1x64xf32> to vector<1xf32>
    %156 = vector.shape_cast %155 : vector<1xf32> to vector<1x1x1xf32>
    %157 = vector.extract %156[0, 0, 0] : f32 from vector<1x1x1xf32>
    %158 = vector.broadcast %157 : f32 to vector<1x1xf32>
    %159 = vector.shape_cast %158 : vector<1x1xf32> to vector<1x1xf32>
    %160 = vector.broadcast %159 : vector<1x1xf32> to vector<1x64xf32>
    %c0_77 = arith.constant 0 : index
    %c448_78 = arith.constant 448 : index
    %161 = vector.load %arg12[%c0_77, %c448_78] : memref<1x512xf32, #tpu.memory_space<vmem>>, vector<1x64xf32>
    tpu.vector_store %arg12[%c0_77, %c448_78], %160 {strides = array<i32>} : memref<1x512xf32, #tpu.memory_space<vmem>>, vector<1x64xf32>,
    %c0_79 = arith.constant 0 : index
    %c0_80 = arith.constant 0 : index
    %162 = vector.load %arg12[%c0_79, %c0_80] : memref<1x512xf32, #tpu.memory_space<vmem>>, vector<1x512xf32>
    %163 = vector.broadcast %162 : vector<1x512xf32> to vector<64x512xf32>
    %164 = arith.subf %87, %163 : vector<64x512xf32>
    %165 = math.exp %164 : vector<64x512xf32>
    %cst_81 = arith.constant dense<0.000000e+00> : vector<512xf32>
    %166 = vector.multi_reduction <add>, %165, %cst_81 [0] : vector<64x512xf32> to vector<512xf32>
    %167 = vector.shape_cast %166 : vector<512xf32> to vector<1x512xf32>
    %168 = vector.extract_strided_slice %167 {offsets = [0, 0], sizes = [1, 64], strides = [1, 1]} : vector<1x512xf32> to vector<1x64xf32>
    %169 = vector.shape_cast %168 : vector<1x64xf32> to vector<1x1x64xf32>
    %cst_82 = arith.constant dense<0.000000e+00> : vector<1xf32>
    %170 = vector.multi_reduction <add>, %169, %cst_82 [1, 2] : vector<1x1x64xf32> to vector<1xf32>
    %171 = vector.shape_cast %170 : vector<1xf32> to vector<1x1x1xf32>
    %172 = vector.extract %171[0, 0, 0] : f32 from vector<1x1x1xf32>
    %173 = vector.broadcast %172 : f32 to vector<1x1xf32>
    %174 = vector.shape_cast %173 : vector<1x1xf32> to vector<1x1xf32>
    %175 = vector.broadcast %174 : vector<1x1xf32> to vector<1x4xf32>
    %c0_83 = arith.constant 0 : index
    %c0_84 = arith.constant 0 : index
    %176 = vector.load %arg13[%c0_83, %c0_84] : memref<1x32xf32, #tpu.memory_space<vmem>>, vector<1x4xf32>
    tpu.vector_store %arg13[%c0_83, %c0_84], %175 {strides = array<i32>} : memref<1x32xf32, #tpu.memory_space<vmem>>, vector<1x4xf32>,
    %177 = vector.extract_strided_slice %167 {offsets = [0, 64], sizes = [1, 64], strides = [1, 1]} : vector<1x512xf32> to vector<1x64xf32>
    %178 = vector.shape_cast %177 : vector<1x64xf32> to vector<1x1x64xf32>
    %cst_85 = arith.constant dense<0.000000e+00> : vector<1xf32>
    %179 = vector.multi_reduction <add>, %178, %cst_85 [1, 2] : vector<1x1x64xf32> to vector<1xf32>
    %180 = vector.shape_cast %179 : vector<1xf32> to vector<1x1x1xf32>
    %181 = vector.extract %180[0, 0, 0] : f32 from vector<1x1x1xf32>
    %182 = vector.broadcast %181 : f32 to vector<1x1xf32>
    %183 = vector.shape_cast %182 : vector<1x1xf32> to vector<1x1xf32>
    %184 = vector.broadcast %183 : vector<1x1xf32> to vector<1x4xf32>
    %c0_86 = arith.constant 0 : index
    %c4_87 = arith.constant 4 : index
    %185 = vector.load %arg13[%c0_86, %c4_87] : memref<1x32xf32, #tpu.memory_space<vmem>>, vector<1x4xf32>
    tpu.vector_store %arg13[%c0_86, %c4_87], %184 {strides = array<i32>} : memref<1x32xf32, #tpu.memory_space<vmem>>, vector<1x4xf32>,
    %186 = vector.extract_strided_slice %167 {offsets = [0, 128], sizes = [1, 64], strides = [1, 1]} : vector<1x512xf32> to vector<1x64xf32>
    %187 = vector.shape_cast %186 : vector<1x64xf32> to vector<1x1x64xf32>
    %cst_88 = arith.constant dense<0.000000e+00> : vector<1xf32>
    %188 = vector.multi_reduction <add>, %187, %cst_88 [1, 2] : vector<1x1x64xf32> to vector<1xf32>
    %189 = vector.shape_cast %188 : vector<1xf32> to vector<1x1x1xf32>
    %190 = vector.extract %189[0, 0, 0] : f32 from vector<1x1x1xf32>
    %191 = vector.broadcast %190 : f32 to vector<1x1xf32>
    %192 = vector.shape_cast %191 : vector<1x1xf32> to vector<1x1xf32>
    %193 = vector.broadcast %192 : vector<1x1xf32> to vector<1x4xf32>
    %c0_89 = arith.constant 0 : index
    %c8_90 = arith.constant 8 : index
    %194 = vector.load %arg13[%c0_89, %c8_90] : memref<1x32xf32, #tpu.memory_space<vmem>>, vector<1x4xf32>
    tpu.vector_store %arg13[%c0_89, %c8_90], %193 {strides = array<i32>} : memref<1x32xf32, #tpu.memory_space<vmem>>, vector<1x4xf32>,
    %195 = vector.extract_strided_slice %167 {offsets = [0, 192], sizes = [1, 64], strides = [1, 1]} : vector<1x512xf32> to vector<1x64xf32>
    %196 = vector.shape_cast %195 : vector<1x64xf32> to vector<1x1x64xf32>
    %cst_91 = arith.constant dense<0.000000e+00> : vector<1xf32>
    %197 = vector.multi_reduction <add>, %196, %cst_91 [1, 2] : vector<1x1x64xf32> to vector<1xf32>
    %198 = vector.shape_cast %197 : vector<1xf32> to vector<1x1x1xf32>
    %199 = vector.extract %198[0, 0, 0] : f32 from vector<1x1x1xf32>
    %200 = vector.broadcast %199 : f32 to vector<1x1xf32>
    %201 = vector.shape_cast %200 : vector<1x1xf32> to vector<1x1xf32>
    %202 = vector.broadcast %201 : vector<1x1xf32> to vector<1x4xf32>
    %c0_92 = arith.constant 0 : index
    %c12_93 = arith.constant 12 : index
    %203 = vector.load %arg13[%c0_92, %c12_93] : memref<1x32xf32, #tpu.memory_space<vmem>>, vector<1x4xf32>
    tpu.vector_store %arg13[%c0_92, %c12_93], %202 {strides = array<i32>} : memref<1x32xf32, #tpu.memory_space<vmem>>, vector<1x4xf32>,
    %204 = vector.extract_strided_slice %167 {offsets = [0, 256], sizes = [1, 64], strides = [1, 1]} : vector<1x512xf32> to vector<1x64xf32>
    %205 = vector.shape_cast %204 : vector<1x64xf32> to vector<1x1x64xf32>
    %cst_94 = arith.constant dense<0.000000e+00> : vector<1xf32>
    %206 = vector.multi_reduction <add>, %205, %cst_94 [1, 2] : vector<1x1x64xf32> to vector<1xf32>
    %207 = vector.shape_cast %206 : vector<1xf32> to vector<1x1x1xf32>
    %208 = vector.extract %207[0, 0, 0] : f32 from vector<1x1x1xf32>
    %209 = vector.broadcast %208 : f32 to vector<1x1xf32>
    %210 = vector.shape_cast %209 : vector<1x1xf32> to vector<1x1xf32>
    %211 = vector.broadcast %210 : vector<1x1xf32> to vector<1x4xf32>
    %c0_95 = arith.constant 0 : index
    %c16_96 = arith.constant 16 : index
    %212 = vector.load %arg13[%c0_95, %c16_96] : memref<1x32xf32, #tpu.memory_space<vmem>>, vector<1x4xf32>
    tpu.vector_store %arg13[%c0_95, %c16_96], %211 {strides = array<i32>} : memref<1x32xf32, #tpu.memory_space<vmem>>, vector<1x4xf32>,
    %213 = vector.extract_strided_slice %167 {offsets = [0, 320], sizes = [1, 64], strides = [1, 1]} : vector<1x512xf32> to vector<1x64xf32>
    %214 = vector.shape_cast %213 : vector<1x64xf32> to vector<1x1x64xf32>
    %cst_97 = arith.constant dense<0.000000e+00> : vector<1xf32>
    %215 = vector.multi_reduction <add>, %214, %cst_97 [1, 2] : vector<1x1x64xf32> to vector<1xf32>
    %216 = vector.shape_cast %215 : vector<1xf32> to vector<1x1x1xf32>
    %217 = vector.extract %216[0, 0, 0] : f32 from vector<1x1x1xf32>
    %218 = vector.broadcast %217 : f32 to vector<1x1xf32>
    %219 = vector.shape_cast %218 : vector<1x1xf32> to vector<1x1xf32>
    %220 = vector.broadcast %219 : vector<1x1xf32> to vector<1x4xf32>
    %c0_98 = arith.constant 0 : index
    %c20_99 = arith.constant 20 : index
    %221 = vector.load %arg13[%c0_98, %c20_99] : memref<1x32xf32, #tpu.memory_space<vmem>>, vector<1x4xf32>
    tpu.vector_store %arg13[%c0_98, %c20_99], %220 {strides = array<i32>} : memref<1x32xf32, #tpu.memory_space<vmem>>, vector<1x4xf32>,
    %222 = vector.extract_strided_slice %167 {offsets = [0, 384], sizes = [1, 64], strides = [1, 1]} : vector<1x512xf32> to vector<1x64xf32>
    %223 = vector.shape_cast %222 : vector<1x64xf32> to vector<1x1x64xf32>
    %cst_100 = arith.constant dense<0.000000e+00> : vector<1xf32>
    %224 = vector.multi_reduction <add>, %223, %cst_100 [1, 2] : vector<1x1x64xf32> to vector<1xf32>
    %225 = vector.shape_cast %224 : vector<1xf32> to vector<1x1x1xf32>
    %226 = vector.extract %225[0, 0, 0] : f32 from vector<1x1x1xf32>
    %227 = vector.broadcast %226 : f32 to vector<1x1xf32>
    %228 = vector.shape_cast %227 : vector<1x1xf32> to vector<1x1xf32>
    %229 = vector.broadcast %228 : vector<1x1xf32> to vector<1x4xf32>
    %c0_101 = arith.constant 0 : index
    %c24_102 = arith.constant 24 : index
    %230 = vector.load %arg13[%c0_101, %c24_102] : memref<1x32xf32, #tpu.memory_space<vmem>>, vector<1x4xf32>
    tpu.vector_store %arg13[%c0_101, %c24_102], %229 {strides = array<i32>} : memref<1x32xf32, #tpu.memory_space<vmem>>, vector<1x4xf32>,
    %231 = vector.extract_strided_slice %167 {offsets = [0, 448], sizes = [1, 64], strides = [1, 1]} : vector<1x512xf32> to vector<1x64xf32>
    %232 = vector.shape_cast %231 : vector<1x64xf32> to vector<1x1x64xf32>
    %cst_103 = arith.constant dense<0.000000e+00> : vector<1xf32>
    %233 = vector.multi_reduction <add>, %232, %cst_103 [1, 2] : vector<1x1x64xf32> to vector<1xf32>
    %234 = vector.shape_cast %233 : vector<1xf32> to vector<1x1x1xf32>
    %235 = vector.extract %234[0, 0, 0] : f32 from vector<1x1x1xf32>
    %236 = vector.broadcast %235 : f32 to vector<1x1xf32>
    %237 = vector.shape_cast %236 : vector<1x1xf32> to vector<1x1xf32>
    %238 = vector.broadcast %237 : vector<1x1xf32> to vector<1x4xf32>
    %c0_104 = arith.constant 0 : index
    %c28_105 = arith.constant 28 : index
    %239 = vector.load %arg13[%c0_104, %c28_105] : memref<1x32xf32, #tpu.memory_space<vmem>>, vector<1x4xf32>
    tpu.vector_store %arg13[%c0_104, %c28_105], %238 {strides = array<i32>} : memref<1x32xf32, #tpu.memory_space<vmem>>, vector<1x4xf32>,
    %c0_106 = arith.constant 0 : index
    %c0_107 = arith.constant 0 : index
    %240 = vector.load %arg13[%c0_106, %c0_107] : memref<1x32xf32, #tpu.memory_space<vmem>>, vector<1x32xf32>
    %241 = tpu.reciprocal %240 {approx = true} : vector<1x32xf32> -> vector<1x32xf32>
    %c0_108 = arith.constant 0 : index
    %c0_109 = arith.constant 0 : index
    %242 = vector.load %arg10[%c0_108, %c0_109] : memref<512x32xf32, #tpu.memory_space<vmem>>, vector<512x32xf32>
    %cst_110 = arith.constant dense<0.000000e+00> : vector<64x32xf32>
    %243 = tpu.matmul %165, %242, %cst_110 {dimension_numbers = #tpu.dot_dimension_numbers<[1], [0], [0], [1], [0, 0, 1, 1], [], []>} : vector<64x512xf32>, vector<512x32xf32>, vector<64x32xf32> -> vector<64x32xf32>
    %244 = vector.broadcast %241 : vector<1x32xf32> to vector<64x32xf32>
    %245 = arith.mulf %243, %244 : vector<64x32xf32>
    %c0_111 = arith.constant 0 : index
    %c0_112 = arith.constant 0 : index
    %246 = vector.load %arg11[%c0_111, %c0_112] : memref<64x128xf32, #tpu.memory_space<vmem>>, vector<64x32xf32>
    tpu.vector_store %arg11[%c0_111, %c0_112], %245 {strides = array<i32>} : memref<64x128xf32, #tpu.memory_space<vmem>>, vector<64x32xf32>,
    %c64_113 = arith.constant 64 : index
    %c0_114 = arith.constant 0 : index
    %247 = vector.load %arg7[%c64_113, %c0_114] : memref<256x64xf32, #tpu.memory_space<vmem>>, vector<64x64xf32>
    %c0_115 = arith.constant 0 : index
    %c64_116 = arith.constant 64 : index
    %248 = vector.load %arg8[%c0_115, %c64_116] : memref<32x256xf32, #tpu.memory_space<vmem>>, vector<32x64xf32>
    %249 = vector.extract_strided_slice %247 {offsets = [0, 0], sizes = [64, 32], strides = [1, 1]} : vector<64x64xf32> to vector<64x32xf32>
    %cst_117 = arith.constant dense<0.000000e+00> : vector<32xf32>
    %250 = vector.multi_reduction <add>, %249, %cst_117 [0] : vector<64x32xf32> to vector<32xf32>
    %251 = vector.shape_cast %250 : vector<32xf32> to vector<1x32xf32>
    %cst_118 = arith.constant 6.400000e+01 : f32
    %252 = vector.broadcast %cst_118 : f32 to vector<1x32xf32>
    %253 = arith.divf %251, %252 : vector<1x32xf32>
    %254 = vector.broadcast %253 : vector<1x32xf32> to vector<64x32xf32>
    %255 = arith.subf %249, %254 : vector<64x32xf32>
    %256 = arith.mulf %255, %255 : vector<64x32xf32>
    %cst_119 = arith.constant dense<0.000000e+00> : vector<32xf32>
    %257 = vector.multi_reduction <add>, %256, %cst_119 [0] : vector<64x32xf32> to vector<32xf32>
    %258 = vector.shape_cast %257 : vector<32xf32> to vector<1x32xf32>
    %cst_120 = arith.constant 6.400000e+01 : f32
    %259 = vector.broadcast %cst_120 : f32 to vector<1x32xf32>
    %260 = arith.divf %258, %259 : vector<1x32xf32>
    %261 = vector.broadcast %253 : vector<1x32xf32> to vector<64x32xf32>
    %262 = arith.subf %249, %261 : vector<64x32xf32>
    %cst_121 = arith.constant 9.99999974E-6 : f32
    %263 = vector.broadcast %cst_121 : f32 to vector<1x32xf32>
    %264 = arith.addf %260, %263 : vector<1x32xf32>
    %265 = math.rsqrt %264 : vector<1x32xf32>
    %266 = vector.broadcast %265 : vector<1x32xf32> to vector<64x32xf32>
    %267 = arith.mulf %262, %266 : vector<64x32xf32>
    %268 = vector.extract_strided_slice %247 {offsets = [0, 32], sizes = [64, 32], strides = [1, 1]} : vector<64x64xf32> to vector<64x32xf32>
    %cst_122 = arith.constant dense<0.000000e+00> : vector<32xf32>
    %269 = vector.multi_reduction <add>, %248, %cst_122 [1] : vector<32x64xf32> to vector<32xf32>
    %270 = vector.shape_cast %269 : vector<32xf32> to vector<32x1xf32>
    %cst_123 = arith.constant 6.400000e+01 : f32
    %271 = vector.broadcast %cst_123 : f32 to vector<32x1xf32>
    %272 = arith.divf %270, %271 : vector<32x1xf32>
    %273 = vector.broadcast %272 : vector<32x1xf32> to vector<32x64xf32>
    %274 = arith.subf %248, %273 : vector<32x64xf32>
    %275 = arith.mulf %274, %274 : vector<32x64xf32>
    %cst_124 = arith.constant dense<0.000000e+00> : vector<32xf32>
    %276 = vector.multi_reduction <add>, %275, %cst_124 [1] : vector<32x64xf32> to vector<32xf32>
    %277 = vector.shape_cast %276 : vector<32xf32> to vector<32x1xf32>
    %cst_125 = arith.constant 6.400000e+01 : f32
    %278 = vector.broadcast %cst_125 : f32 to vector<32x1xf32>
    %279 = arith.divf %277, %278 : vector<32x1xf32>
    %280 = vector.broadcast %272 : vector<32x1xf32> to vector<32x64xf32>
    %281 = arith.subf %248, %280 : vector<32x64xf32>
    %cst_126 = arith.constant 9.99999974E-6 : f32
    %282 = vector.broadcast %cst_126 : f32 to vector<32x1xf32>
    %283 = arith.addf %279, %282 : vector<32x1xf32>
    %284 = math.rsqrt %283 : vector<32x1xf32>
    %285 = vector.broadcast %284 : vector<32x1xf32> to vector<32x64xf32>
    %286 = arith.mulf %281, %285 : vector<32x64xf32>
    %cst_127 = arith.constant 5.000000e-01 : f32
    %287 = vector.broadcast %cst_127 : f32 to vector<32x64xf32>
    %288 = arith.mulf %286, %287 : vector<32x64xf32>
    %289 = vector.extract_strided_slice %288 {offsets = [0, 0], sizes = [4, 64], strides = [1, 1]} : vector<32x64xf32> to vector<4x64xf32>
    %c0_128 = arith.constant 0 : index
    %c0_129 = arith.constant 0 : index
    %290 = vector.load %arg9[%c0_128, %c0_129] : memref<32x512xf32, #tpu.memory_space<vmem>>, vector<4x64xf32>
    tpu.vector_store %arg9[%c0_128, %c0_129], %289 {strides = array<i32>} : memref<32x512xf32, #tpu.memory_space<vmem>>, vector<4x64xf32>,
    %291 = vector.extract_strided_slice %268 {offsets = [0, 0], sizes = [64, 4], strides = [1, 1]} : vector<64x32xf32> to vector<64x4xf32>
    %c0_130 = arith.constant 0 : index
    %c0_131 = arith.constant 0 : index
    %292 = vector.load %arg10[%c0_130, %c0_131] : memref<512x32xf32, #tpu.memory_space<vmem>>, vector<64x4xf32>
    tpu.vector_store %arg10[%c0_130, %c0_131], %291 {strides = array<i32>} : memref<512x32xf32, #tpu.memory_space<vmem>>, vector<64x4xf32>,
    %293 = vector.extract_strided_slice %288 {offsets = [4, 0], sizes = [4, 64], strides = [1, 1]} : vector<32x64xf32> to vector<4x64xf32>
    %c4_132 = arith.constant 4 : index
    %c64_133 = arith.constant 64 : index
    %294 = vector.load %arg9[%c4_132, %c64_133] : memref<32x512xf32, #tpu.memory_space<vmem>>, vector<4x64xf32>
    tpu.vector_store %arg9[%c4_132, %c64_133], %293 {strides = array<i32>} : memref<32x512xf32, #tpu.memory_space<vmem>>, vector<4x64xf32>,
    %295 = vector.extract_strided_slice %268 {offsets = [0, 4], sizes = [64, 4], strides = [1, 1]} : vector<64x32xf32> to vector<64x4xf32>
    %c64_134 = arith.constant 64 : index
    %c4_135 = arith.constant 4 : index
    %296 = vector.load %arg10[%c64_134, %c4_135] : memref<512x32xf32, #tpu.memory_space<vmem>>, vector<64x4xf32>
    tpu.vector_store %arg10[%c64_134, %c4_135], %295 {strides = array<i32>} : memref<512x32xf32, #tpu.memory_space<vmem>>, vector<64x4xf32>,
    %297 = vector.extract_strided_slice %288 {offsets = [8, 0], sizes = [4, 64], strides = [1, 1]} : vector<32x64xf32> to vector<4x64xf32>
    %c8_136 = arith.constant 8 : index
    %c128_137 = arith.constant 128 : index
    %298 = vector.load %arg9[%c8_136, %c128_137] : memref<32x512xf32, #tpu.memory_space<vmem>>, vector<4x64xf32>
    tpu.vector_store %arg9[%c8_136, %c128_137], %297 {strides = array<i32>} : memref<32x512xf32, #tpu.memory_space<vmem>>, vector<4x64xf32>,
    %299 = vector.extract_strided_slice %268 {offsets = [0, 8], sizes = [64, 4], strides = [1, 1]} : vector<64x32xf32> to vector<64x4xf32>
    %c128_138 = arith.constant 128 : index
    %c8_139 = arith.constant 8 : index
    %300 = vector.load %arg10[%c128_138, %c8_139] : memref<512x32xf32, #tpu.memory_space<vmem>>, vector<64x4xf32>
    tpu.vector_store %arg10[%c128_138, %c8_139], %299 {strides = array<i32>} : memref<512x32xf32, #tpu.memory_space<vmem>>, vector<64x4xf32>,
    %301 = vector.extract_strided_slice %288 {offsets = [12, 0], sizes = [4, 64], strides = [1, 1]} : vector<32x64xf32> to vector<4x64xf32>
    %c12_140 = arith.constant 12 : index
    %c192_141 = arith.constant 192 : index
    %302 = vector.load %arg9[%c12_140, %c192_141] : memref<32x512xf32, #tpu.memory_space<vmem>>, vector<4x64xf32>
    tpu.vector_store %arg9[%c12_140, %c192_141], %301 {strides = array<i32>} : memref<32x512xf32, #tpu.memory_space<vmem>>, vector<4x64xf32>,
    %303 = vector.extract_strided_slice %268 {offsets = [0, 12], sizes = [64, 4], strides = [1, 1]} : vector<64x32xf32> to vector<64x4xf32>
    %c192_142 = arith.constant 192 : index
    %c12_143 = arith.constant 12 : index
    %304 = vector.load %arg10[%c192_142, %c12_143] : memref<512x32xf32, #tpu.memory_space<vmem>>, vector<64x4xf32>
    tpu.vector_store %arg10[%c192_142, %c12_143], %303 {strides = array<i32>} : memref<512x32xf32, #tpu.memory_space<vmem>>, vector<64x4xf32>,
    %305 = vector.extract_strided_slice %288 {offsets = [16, 0], sizes = [4, 64], strides = [1, 1]} : vector<32x64xf32> to vector<4x64xf32>
    %c16_144 = arith.constant 16 : index
    %c256_145 = arith.constant 256 : index
    %306 = vector.load %arg9[%c16_144, %c256_145] : memref<32x512xf32, #tpu.memory_space<vmem>>, vector<4x64xf32>
    tpu.vector_store %arg9[%c16_144, %c256_145], %305 {strides = array<i32>} : memref<32x512xf32, #tpu.memory_space<vmem>>, vector<4x64xf32>,
    %307 = vector.extract_strided_slice %268 {offsets = [0, 16], sizes = [64, 4], strides = [1, 1]} : vector<64x32xf32> to vector<64x4xf32>
    %c256_146 = arith.constant 256 : index
    %c16_147 = arith.constant 16 : index
    %308 = vector.load %arg10[%c256_146, %c16_147] : memref<512x32xf32, #tpu.memory_space<vmem>>, vector<64x4xf32>
    tpu.vector_store %arg10[%c256_146, %c16_147], %307 {strides = array<i32>} : memref<512x32xf32, #tpu.memory_space<vmem>>, vector<64x4xf32>,
    %309 = vector.extract_strided_slice %288 {offsets = [20, 0], sizes = [4, 64], strides = [1, 1]} : vector<32x64xf32> to vector<4x64xf32>
    %c20_148 = arith.constant 20 : index
    %c320_149 = arith.constant 320 : index
    %310 = vector.load %arg9[%c20_148, %c320_149] : memref<32x512xf32, #tpu.memory_space<vmem>>, vector<4x64xf32>
    tpu.vector_store %arg9[%c20_148, %c320_149], %309 {strides = array<i32>} : memref<32x512xf32, #tpu.memory_space<vmem>>, vector<4x64xf32>,
    %311 = vector.extract_strided_slice %268 {offsets = [0, 20], sizes = [64, 4], strides = [1, 1]} : vector<64x32xf32> to vector<64x4xf32>
    %c320_150 = arith.constant 320 : index
    %c20_151 = arith.constant 20 : index
    %312 = vector.load %arg10[%c320_150, %c20_151] : memref<512x32xf32, #tpu.memory_space<vmem>>, vector<64x4xf32>
    tpu.vector_store %arg10[%c320_150, %c20_151], %311 {strides = array<i32>} : memref<512x32xf32, #tpu.memory_space<vmem>>, vector<64x4xf32>,
    %313 = vector.extract_strided_slice %288 {offsets = [24, 0], sizes = [4, 64], strides = [1, 1]} : vector<32x64xf32> to vector<4x64xf32>
    %c24_152 = arith.constant 24 : index
    %c384_153 = arith.constant 384 : index
    %314 = vector.load %arg9[%c24_152, %c384_153] : memref<32x512xf32, #tpu.memory_space<vmem>>, vector<4x64xf32>
    tpu.vector_store %arg9[%c24_152, %c384_153], %313 {strides = array<i32>} : memref<32x512xf32, #tpu.memory_space<vmem>>, vector<4x64xf32>,
    %315 = vector.extract_strided_slice %268 {offsets = [0, 24], sizes = [64, 4], strides = [1, 1]} : vector<64x32xf32> to vector<64x4xf32>
    %c384_154 = arith.constant 384 : index
    %c24_155 = arith.constant 24 : index
    %316 = vector.load %arg10[%c384_154, %c24_155] : memref<512x32xf32, #tpu.memory_space<vmem>>, vector<64x4xf32>
    tpu.vector_store %arg10[%c384_154, %c24_155], %315 {strides = array<i32>} : memref<512x32xf32, #tpu.memory_space<vmem>>, vector<64x4xf32>,
    %317 = vector.extract_strided_slice %288 {offsets = [28, 0], sizes = [4, 64], strides = [1, 1]} : vector<32x64xf32> to vector<4x64xf32>
    %c28_156 = arith.constant 28 : index
    %c448_157 = arith.constant 448 : index
    %318 = vector.load %arg9[%c28_156, %c448_157] : memref<32x512xf32, #tpu.memory_space<vmem>>, vector<4x64xf32>
    tpu.vector_store %arg9[%c28_156, %c448_157], %317 {strides = array<i32>} : memref<32x512xf32, #tpu.memory_space<vmem>>, vector<4x64xf32>,
    %319 = vector.extract_strided_slice %268 {offsets = [0, 28], sizes = [64, 4], strides = [1, 1]} : vector<64x32xf32> to vector<64x4xf32>
    %c448_158 = arith.constant 448 : index
    %c28_159 = arith.constant 28 : index
    %320 = vector.load %arg10[%c448_158, %c28_159] : memref<512x32xf32, #tpu.memory_space<vmem>>, vector<64x4xf32>
    tpu.vector_store %arg10[%c448_158, %c28_159], %319 {strides = array<i32>} : memref<512x32xf32, #tpu.memory_space<vmem>>, vector<64x4xf32>,
    %c0_160 = arith.constant 0 : index
    %c0_161 = arith.constant 0 : index
    %321 = vector.load %arg9[%c0_160, %c0_161] : memref<32x512xf32, #tpu.memory_space<vmem>>, vector<32x512xf32>
    %cst_162 = arith.constant dense<0.000000e+00> : vector<64x512xf32>
    %322 = tpu.matmul %267, %321, %cst_162 {dimension_numbers = #tpu.dot_dimension_numbers<[1], [0], [0], [1], [0, 0, 1, 1], [], []>} : vector<64x32xf32>, vector<32x512xf32>, vector<64x512xf32> -> vector<64x512xf32>
    %cst_163 = arith.constant dense<0xFF800000> : vector<512xf32>
    %323 = vector.multi_reduction <maximumf>, %322, %cst_163 [0] : vector<64x512xf32> to vector<512xf32>
    %324 = vector.shape_cast %323 : vector<512xf32> to vector<1x512xf32>
    %325 = vector.extract_strided_slice %324 {offsets = [0, 0], sizes = [1, 64], strides = [1, 1]} : vector<1x512xf32> to vector<1x64xf32>
    %326 = vector.shape_cast %325 : vector<1x64xf32> to vector<1x1x64xf32>
    %cst_164 = arith.constant dense<0xFF800000> : vector<1xf32>
    %327 = vector.multi_reduction <maximumf>, %326, %cst_164 [1, 2] : vector<1x1x64xf32> to vector<1xf32>
    %328 = vector.shape_cast %327 : vector<1xf32> to vector<1x1x1xf32>
    %329 = vector.extract %328[0, 0, 0] : f32 from vector<1x1x1xf32>
    %330 = vector.broadcast %329 : f32 to vector<1x1xf32>
    %331 = vector.shape_cast %330 : vector<1x1xf32> to vector<1x1xf32>
    %332 = vector.broadcast %331 : vector<1x1xf32> to vector<1x64xf32>
    %c0_165 = arith.constant 0 : index
    %c0_166 = arith.constant 0 : index
    %333 = vector.load %arg12[%c0_165, %c0_166] : memref<1x512xf32, #tpu.memory_space<vmem>>, vector<1x64xf32>
    tpu.vector_store %arg12[%c0_165, %c0_166], %332 {strides = array<i32>} : memref<1x512xf32, #tpu.memory_space<vmem>>, vector<1x64xf32>,
    %334 = vector.extract_strided_slice %324 {offsets = [0, 64], sizes = [1, 64], strides = [1, 1]} : vector<1x512xf32> to vector<1x64xf32>
    %335 = vector.shape_cast %334 : vector<1x64xf32> to vector<1x1x64xf32>
    %cst_167 = arith.constant dense<0xFF800000> : vector<1xf32>
    %336 = vector.multi_reduction <maximumf>, %335, %cst_167 [1, 2] : vector<1x1x64xf32> to vector<1xf32>
    %337 = vector.shape_cast %336 : vector<1xf32> to vector<1x1x1xf32>
    %338 = vector.extract %337[0, 0, 0] : f32 from vector<1x1x1xf32>
    %339 = vector.broadcast %338 : f32 to vector<1x1xf32>
    %340 = vector.shape_cast %339 : vector<1x1xf32> to vector<1x1xf32>
    %341 = vector.broadcast %340 : vector<1x1xf32> to vector<1x64xf32>
    %c0_168 = arith.constant 0 : index
    %c64_169 = arith.constant 64 : index
    %342 = vector.load %arg12[%c0_168, %c64_169] : memref<1x512xf32, #tpu.memory_space<vmem>>, vector<1x64xf32>
    tpu.vector_store %arg12[%c0_168, %c64_169], %341 {strides = array<i32>} : memref<1x512xf32, #tpu.memory_space<vmem>>, vector<1x64xf32>,
    %343 = vector.extract_strided_slice %324 {offsets = [0, 128], sizes = [1, 64], strides = [1, 1]} : vector<1x512xf32> to vector<1x64xf32>
    %344 = vector.shape_cast %343 : vector<1x64xf32> to vector<1x1x64xf32>
    %cst_170 = arith.constant dense<0xFF800000> : vector<1xf32>
    %345 = vector.multi_reduction <maximumf>, %344, %cst_170 [1, 2] : vector<1x1x64xf32> to vector<1xf32>
    %346 = vector.shape_cast %345 : vector<1xf32> to vector<1x1x1xf32>
    %347 = vector.extract %346[0, 0, 0] : f32 from vector<1x1x1xf32>
    %348 = vector.broadcast %347 : f32 to vector<1x1xf32>
    %349 = vector.shape_cast %348 : vector<1x1xf32> to vector<1x1xf32>
    %350 = vector.broadcast %349 : vector<1x1xf32> to vector<1x64xf32>
    %c0_171 = arith.constant 0 : index
    %c128_172 = arith.constant 128 : index
    %351 = vector.load %arg12[%c0_171, %c128_172] : memref<1x512xf32, #tpu.memory_space<vmem>>, vector<1x64xf32>
    tpu.vector_store %arg12[%c0_171, %c128_172], %350 {strides = array<i32>} : memref<1x512xf32, #tpu.memory_space<vmem>>, vector<1x64xf32>,
    %352 = vector.extract_strided_slice %324 {offsets = [0, 192], sizes = [1, 64], strides = [1, 1]} : vector<1x512xf32> to vector<1x64xf32>
    %353 = vector.shape_cast %352 : vector<1x64xf32> to vector<1x1x64xf32>
    %cst_173 = arith.constant dense<0xFF800000> : vector<1xf32>
    %354 = vector.multi_reduction <maximumf>, %353, %cst_173 [1, 2] : vector<1x1x64xf32> to vector<1xf32>
    %355 = vector.shape_cast %354 : vector<1xf32> to vector<1x1x1xf32>
    %356 = vector.extract %355[0, 0, 0] : f32 from vector<1x1x1xf32>
    %357 = vector.broadcast %356 : f32 to vector<1x1xf32>
    %358 = vector.shape_cast %357 : vector<1x1xf32> to vector<1x1xf32>
    %359 = vector.broadcast %358 : vector<1x1xf32> to vector<1x64xf32>
    %c0_174 = arith.constant 0 : index
    %c192_175 = arith.constant 192 : index
    %360 = vector.load %arg12[%c0_174, %c192_175] : memref<1x512xf32, #tpu.memory_space<vmem>>, vector<1x64xf32>
    tpu.vector_store %arg12[%c0_174, %c192_175], %359 {strides = array<i32>} : memref<1x512xf32, #tpu.memory_space<vmem>>, vector<1x64xf32>,
    %361 = vector.extract_strided_slice %324 {offsets = [0, 256], sizes = [1, 64], strides = [1, 1]} : vector<1x512xf32> to vector<1x64xf32>
    %362 = vector.shape_cast %361 : vector<1x64xf32> to vector<1x1x64xf32>
    %cst_176 = arith.constant dense<0xFF800000> : vector<1xf32>
    %363 = vector.multi_reduction <maximumf>, %362, %cst_176 [1, 2] : vector<1x1x64xf32> to vector<1xf32>
    %364 = vector.shape_cast %363 : vector<1xf32> to vector<1x1x1xf32>
    %365 = vector.extract %364[0, 0, 0] : f32 from vector<1x1x1xf32>
    %366 = vector.broadcast %365 : f32 to vector<1x1xf32>
    %367 = vector.shape_cast %366 : vector<1x1xf32> to vector<1x1xf32>
    %368 = vector.broadcast %367 : vector<1x1xf32> to vector<1x64xf32>
    %c0_177 = arith.constant 0 : index
    %c256_178 = arith.constant 256 : index
    %369 = vector.load %arg12[%c0_177, %c256_178] : memref<1x512xf32, #tpu.memory_space<vmem>>, vector<1x64xf32>
    tpu.vector_store %arg12[%c0_177, %c256_178], %368 {strides = array<i32>} : memref<1x512xf32, #tpu.memory_space<vmem>>, vector<1x64xf32>,
    %370 = vector.extract_strided_slice %324 {offsets = [0, 320], sizes = [1, 64], strides = [1, 1]} : vector<1x512xf32> to vector<1x64xf32>
    %371 = vector.shape_cast %370 : vector<1x64xf32> to vector<1x1x64xf32>
    %cst_179 = arith.constant dense<0xFF800000> : vector<1xf32>
    %372 = vector.multi_reduction <maximumf>, %371, %cst_179 [1, 2] : vector<1x1x64xf32> to vector<1xf32>
    %373 = vector.shape_cast %372 : vector<1xf32> to vector<1x1x1xf32>
    %374 = vector.extract %373[0, 0, 0] : f32 from vector<1x1x1xf32>
    %375 = vector.broadcast %374 : f32 to vector<1x1xf32>
    %376 = vector.shape_cast %375 : vector<1x1xf32> to vector<1x1xf32>
    %377 = vector.broadcast %376 : vector<1x1xf32> to vector<1x64xf32>
    %c0_180 = arith.constant 0 : index
    %c320_181 = arith.constant 320 : index
    %378 = vector.load %arg12[%c0_180, %c320_181] : memref<1x512xf32, #tpu.memory_space<vmem>>, vector<1x64xf32>
    tpu.vector_store %arg12[%c0_180, %c320_181], %377 {strides = array<i32>} : memref<1x512xf32, #tpu.memory_space<vmem>>, vector<1x64xf32>,
    %379 = vector.extract_strided_slice %324 {offsets = [0, 384], sizes = [1, 64], strides = [1, 1]} : vector<1x512xf32> to vector<1x64xf32>
    %380 = vector.shape_cast %379 : vector<1x64xf32> to vector<1x1x64xf32>
    %cst_182 = arith.constant dense<0xFF800000> : vector<1xf32>
    %381 = vector.multi_reduction <maximumf>, %380, %cst_182 [1, 2] : vector<1x1x64xf32> to vector<1xf32>
    %382 = vector.shape_cast %381 : vector<1xf32> to vector<1x1x1xf32>
    %383 = vector.extract %382[0, 0, 0] : f32 from vector<1x1x1xf32>
    %384 = vector.broadcast %383 : f32 to vector<1x1xf32>
    %385 = vector.shape_cast %384 : vector<1x1xf32> to vector<1x1xf32>
    %386 = vector.broadcast %385 : vector<1x1xf32> to vector<1x64xf32>
    %c0_183 = arith.constant 0 : index
    %c384_184 = arith.constant 384 : index
    %387 = vector.load %arg12[%c0_183, %c384_184] : memref<1x512xf32, #tpu.memory_space<vmem>>, vector<1x64xf32>
    tpu.vector_store %arg12[%c0_183, %c384_184], %386 {strides = array<i32>} : memref<1x512xf32, #tpu.memory_space<vmem>>, vector<1x64xf32>,
    %388 = vector.extract_strided_slice %324 {offsets = [0, 448], sizes = [1, 64], strides = [1, 1]} : vector<1x512xf32> to vector<1x64xf32>
    %389 = vector.shape_cast %388 : vector<1x64xf32> to vector<1x1x64xf32>
    %cst_185 = arith.constant dense<0xFF800000> : vector<1xf32>
    %390 = vector.multi_reduction <maximumf>, %389, %cst_185 [1, 2] : vector<1x1x64xf32> to vector<1xf32>
    %391 = vector.shape_cast %390 : vector<1xf32> to vector<1x1x1xf32>
    %392 = vector.extract %391[0, 0, 0] : f32 from vector<1x1x1xf32>
    %393 = vector.broadcast %392 : f32 to vector<1x1xf32>
    %394 = vector.shape_cast %393 : vector<1x1xf32> to vector<1x1xf32>
    %395 = vector.broadcast %394 : vector<1x1xf32> to vector<1x64xf32>
    %c0_186 = arith.constant 0 : index
    %c448_187 = arith.constant 448 : index
    %396 = vector.load %arg12[%c0_186, %c448_187] : memref<1x512xf32, #tpu.memory_space<vmem>>, vector<1x64xf32>
    tpu.vector_store %arg12[%c0_186, %c448_187], %395 {strides = array<i32>} : memref<1x512xf32, #tpu.memory_space<vmem>>, vector<1x64xf32>,
    %c0_188 = arith.constant 0 : index
    %c0_189 = arith.constant 0 : index
    %397 = vector.load %arg12[%c0_188, %c0_189] : memref<1x512xf32, #tpu.memory_space<vmem>>, vector<1x512xf32>
    %398 = vector.broadcast %397 : vector<1x512xf32> to vector<64x512xf32>
    %399 = arith.subf %322, %398 : vector<64x512xf32>
    %400 = math.exp %399 : vector<64x512xf32>
    %cst_190 = arith.constant dense<0.000000e+00> : vector<512xf32>
    %401 = vector.multi_reduction <add>, %400, %cst_190 [0] : vector<64x512xf32> to vector<512xf32>
    %402 = vector.shape_cast %401 : vector<512xf32> to vector<1x512xf32>
    %403 = vector.extract_strided_slice %402 {offsets = [0, 0], sizes = [1, 64], strides = [1, 1]} : vector<1x512xf32> to vector<1x64xf32>
    %404 = vector.shape_cast %403 : vector<1x64xf32> to vector<1x1x64xf32>
    %cst_191 = arith.constant dense<0.000000e+00> : vector<1xf32>
    %405 = vector.multi_reduction <add>, %404, %cst_191 [1, 2] : vector<1x1x64xf32> to vector<1xf32>
    %406 = vector.shape_cast %405 : vector<1xf32> to vector<1x1x1xf32>
    %407 = vector.extract %406[0, 0, 0] : f32 from vector<1x1x1xf32>
    %408 = vector.broadcast %407 : f32 to vector<1x1xf32>
    %409 = vector.shape_cast %408 : vector<1x1xf32> to vector<1x1xf32>
    %410 = vector.broadcast %409 : vector<1x1xf32> to vector<1x4xf32>
    %c0_192 = arith.constant 0 : index
    %c0_193 = arith.constant 0 : index
    %411 = vector.load %arg13[%c0_192, %c0_193] : memref<1x32xf32, #tpu.memory_space<vmem>>, vector<1x4xf32>
    tpu.vector_store %arg13[%c0_192, %c0_193], %410 {strides = array<i32>} : memref<1x32xf32, #tpu.memory_space<vmem>>, vector<1x4xf32>,
    %412 = vector.extract_strided_slice %402 {offsets = [0, 64], sizes = [1, 64], strides = [1, 1]} : vector<1x512xf32> to vector<1x64xf32>
    %413 = vector.shape_cast %412 : vector<1x64xf32> to vector<1x1x64xf32>
    %cst_194 = arith.constant dense<0.000000e+00> : vector<1xf32>
    %414 = vector.multi_reduction <add>, %413, %cst_194 [1, 2] : vector<1x1x64xf32> to vector<1xf32>
    %415 = vector.shape_cast %414 : vector<1xf32> to vector<1x1x1xf32>
    %416 = vector.extract %415[0, 0, 0] : f32 from vector<1x1x1xf32>
    %417 = vector.broadcast %416 : f32 to vector<1x1xf32>
    %418 = vector.shape_cast %417 : vector<1x1xf32> to vector<1x1xf32>
    %419 = vector.broadcast %418 : vector<1x1xf32> to vector<1x4xf32>
    %c0_195 = arith.constant 0 : index
    %c4_196 = arith.constant 4 : index
    %420 = vector.load %arg13[%c0_195, %c4_196] : memref<1x32xf32, #tpu.memory_space<vmem>>, vector<1x4xf32>
    tpu.vector_store %arg13[%c0_195, %c4_196], %419 {strides = array<i32>} : memref<1x32xf32, #tpu.memory_space<vmem>>, vector<1x4xf32>,
    %421 = vector.extract_strided_slice %402 {offsets = [0, 128], sizes = [1, 64], strides = [1, 1]} : vector<1x512xf32> to vector<1x64xf32>
    %422 = vector.shape_cast %421 : vector<1x64xf32> to vector<1x1x64xf32>
    %cst_197 = arith.constant dense<0.000000e+00> : vector<1xf32>
    %423 = vector.multi_reduction <add>, %422, %cst_197 [1, 2] : vector<1x1x64xf32> to vector<1xf32>
    %424 = vector.shape_cast %423 : vector<1xf32> to vector<1x1x1xf32>
    %425 = vector.extract %424[0, 0, 0] : f32 from vector<1x1x1xf32>
    %426 = vector.broadcast %425 : f32 to vector<1x1xf32>
    %427 = vector.shape_cast %426 : vector<1x1xf32> to vector<1x1xf32>
    %428 = vector.broadcast %427 : vector<1x1xf32> to vector<1x4xf32>
    %c0_198 = arith.constant 0 : index
    %c8_199 = arith.constant 8 : index
    %429 = vector.load %arg13[%c0_198, %c8_199] : memref<1x32xf32, #tpu.memory_space<vmem>>, vector<1x4xf32>
    tpu.vector_store %arg13[%c0_198, %c8_199], %428 {strides = array<i32>} : memref<1x32xf32, #tpu.memory_space<vmem>>, vector<1x4xf32>,
    %430 = vector.extract_strided_slice %402 {offsets = [0, 192], sizes = [1, 64], strides = [1, 1]} : vector<1x512xf32> to vector<1x64xf32>
    %431 = vector.shape_cast %430 : vector<1x64xf32> to vector<1x1x64xf32>
    %cst_200 = arith.constant dense<0.000000e+00> : vector<1xf32>
    %432 = vector.multi_reduction <add>, %431, %cst_200 [1, 2] : vector<1x1x64xf32> to vector<1xf32>
    %433 = vector.shape_cast %432 : vector<1xf32> to vector<1x1x1xf32>
    %434 = vector.extract %433[0, 0, 0] : f32 from vector<1x1x1xf32>
    %435 = vector.broadcast %434 : f32 to vector<1x1xf32>
    %436 = vector.shape_cast %435 : vector<1x1xf32> to vector<1x1xf32>
    %437 = vector.broadcast %436 : vector<1x1xf32> to vector<1x4xf32>
    %c0_201 = arith.constant 0 : index
    %c12_202 = arith.constant 12 : index
    %438 = vector.load %arg13[%c0_201, %c12_202] : memref<1x32xf32, #tpu.memory_space<vmem>>, vector<1x4xf32>
    tpu.vector_store %arg13[%c0_201, %c12_202], %437 {strides = array<i32>} : memref<1x32xf32, #tpu.memory_space<vmem>>, vector<1x4xf32>,
    %439 = vector.extract_strided_slice %402 {offsets = [0, 256], sizes = [1, 64], strides = [1, 1]} : vector<1x512xf32> to vector<1x64xf32>
    %440 = vector.shape_cast %439 : vector<1x64xf32> to vector<1x1x64xf32>
    %cst_203 = arith.constant dense<0.000000e+00> : vector<1xf32>
    %441 = vector.multi_reduction <add>, %440, %cst_203 [1, 2] : vector<1x1x64xf32> to vector<1xf32>
    %442 = vector.shape_cast %441 : vector<1xf32> to vector<1x1x1xf32>
    %443 = vector.extract %442[0, 0, 0] : f32 from vector<1x1x1xf32>
    %444 = vector.broadcast %443 : f32 to vector<1x1xf32>
    %445 = vector.shape_cast %444 : vector<1x1xf32> to vector<1x1xf32>
    %446 = vector.broadcast %445 : vector<1x1xf32> to vector<1x4xf32>
    %c0_204 = arith.constant 0 : index
    %c16_205 = arith.constant 16 : index
    %447 = vector.load %arg13[%c0_204, %c16_205] : memref<1x32xf32, #tpu.memory_space<vmem>>, vector<1x4xf32>
    tpu.vector_store %arg13[%c0_204, %c16_205], %446 {strides = array<i32>} : memref<1x32xf32, #tpu.memory_space<vmem>>, vector<1x4xf32>,
    %448 = vector.extract_strided_slice %402 {offsets = [0, 320], sizes = [1, 64], strides = [1, 1]} : vector<1x512xf32> to vector<1x64xf32>
    %449 = vector.shape_cast %448 : vector<1x64xf32> to vector<1x1x64xf32>
    %cst_206 = arith.constant dense<0.000000e+00> : vector<1xf32>
    %450 = vector.multi_reduction <add>, %449, %cst_206 [1, 2] : vector<1x1x64xf32> to vector<1xf32>
    %451 = vector.shape_cast %450 : vector<1xf32> to vector<1x1x1xf32>
    %452 = vector.extract %451[0, 0, 0] : f32 from vector<1x1x1xf32>
    %453 = vector.broadcast %452 : f32 to vector<1x1xf32>
    %454 = vector.shape_cast %453 : vector<1x1xf32> to vector<1x1xf32>
    %455 = vector.broadcast %454 : vector<1x1xf32> to vector<1x4xf32>
    %c0_207 = arith.constant 0 : index
    %c20_208 = arith.constant 20 : index
    %456 = vector.load %arg13[%c0_207, %c20_208] : memref<1x32xf32, #tpu.memory_space<vmem>>, vector<1x4xf32>
    tpu.vector_store %arg13[%c0_207, %c20_208], %455 {strides = array<i32>} : memref<1x32xf32, #tpu.memory_space<vmem>>, vector<1x4xf32>,
    %457 = vector.extract_strided_slice %402 {offsets = [0, 384], sizes = [1, 64], strides = [1, 1]} : vector<1x512xf32> to vector<1x64xf32>
    %458 = vector.shape_cast %457 : vector<1x64xf32> to vector<1x1x64xf32>
    %cst_209 = arith.constant dense<0.000000e+00> : vector<1xf32>
    %459 = vector.multi_reduction <add>, %458, %cst_209 [1, 2] : vector<1x1x64xf32> to vector<1xf32>
    %460 = vector.shape_cast %459 : vector<1xf32> to vector<1x1x1xf32>
    %461 = vector.extract %460[0, 0, 0] : f32 from vector<1x1x1xf32>
    %462 = vector.broadcast %461 : f32 to vector<1x1xf32>
    %463 = vector.shape_cast %462 : vector<1x1xf32> to vector<1x1xf32>
    %464 = vector.broadcast %463 : vector<1x1xf32> to vector<1x4xf32>
    %c0_210 = arith.constant 0 : index
    %c24_211 = arith.constant 24 : index
    %465 = vector.load %arg13[%c0_210, %c24_211] : memref<1x32xf32, #tpu.memory_space<vmem>>, vector<1x4xf32>
    tpu.vector_store %arg13[%c0_210, %c24_211], %464 {strides = array<i32>} : memref<1x32xf32, #tpu.memory_space<vmem>>, vector<1x4xf32>,
    %466 = vector.extract_strided_slice %402 {offsets = [0, 448], sizes = [1, 64], strides = [1, 1]} : vector<1x512xf32> to vector<1x64xf32>
    %467 = vector.shape_cast %466 : vector<1x64xf32> to vector<1x1x64xf32>
    %cst_212 = arith.constant dense<0.000000e+00> : vector<1xf32>
    %468 = vector.multi_reduction <add>, %467, %cst_212 [1, 2] : vector<1x1x64xf32> to vector<1xf32>
    %469 = vector.shape_cast %468 : vector<1xf32> to vector<1x1x1xf32>
    %470 = vector.extract %469[0, 0, 0] : f32 from vector<1x1x1xf32>
    %471 = vector.broadcast %470 : f32 to vector<1x1xf32>
    %472 = vector.shape_cast %471 : vector<1x1xf32> to vector<1x1xf32>
    %473 = vector.broadcast %472 : vector<1x1xf32> to vector<1x4xf32>
    %c0_213 = arith.constant 0 : index
    %c28_214 = arith.constant 28 : index
    %474 = vector.load %arg13[%c0_213, %c28_214] : memref<1x32xf32, #tpu.memory_space<vmem>>, vector<1x4xf32>
    tpu.vector_store %arg13[%c0_213, %c28_214], %473 {strides = array<i32>} : memref<1x32xf32, #tpu.memory_space<vmem>>, vector<1x4xf32>,
    %c0_215 = arith.constant 0 : index
    %c0_216 = arith.constant 0 : index
    %475 = vector.load %arg13[%c0_215, %c0_216] : memref<1x32xf32, #tpu.memory_space<vmem>>, vector<1x32xf32>
    %476 = tpu.reciprocal %475 {approx = true} : vector<1x32xf32> -> vector<1x32xf32>
    %c0_217 = arith.constant 0 : index
    %c0_218 = arith.constant 0 : index
    %477 = vector.load %arg10[%c0_217, %c0_218] : memref<512x32xf32, #tpu.memory_space<vmem>>, vector<512x32xf32>
    %cst_219 = arith.constant dense<0.000000e+00> : vector<64x32xf32>
    %478 = tpu.matmul %400, %477, %cst_219 {dimension_numbers = #tpu.dot_dimension_numbers<[1], [0], [0], [1], [0, 0, 1, 1], [], []>} : vector<64x512xf32>, vector<512x32xf32>, vector<64x32xf32> -> vector<64x32xf32>
    %479 = vector.broadcast %476 : vector<1x32xf32> to vector<64x32xf32>
    %480 = arith.mulf %478, %479 : vector<64x32xf32>
    %c0_220 = arith.constant 0 : index
    %c32 = arith.constant 32 : index
    %481 = vector.load %arg11[%c0_220, %c32] : memref<64x128xf32, #tpu.memory_space<vmem>>, vector<64x32xf32>
    tpu.vector_store %arg11[%c0_220, %c32], %480 {strides = array<i32>} : memref<64x128xf32, #tpu.memory_space<vmem>>, vector<64x32xf32>,
    %c128_221 = arith.constant 128 : index
    %c0_222 = arith.constant 0 : index
    %482 = vector.load %arg7[%c128_221, %c0_222] : memref<256x64xf32, #tpu.memory_space<vmem>>, vector<64x64xf32>
    %c0_223 = arith.constant 0 : index
    %c128_224 = arith.constant 128 : index
    %483 = vector.load %arg8[%c0_223, %c128_224] : memref<32x256xf32, #tpu.memory_space<vmem>>, vector<32x64xf32>
    %484 = vector.extract_strided_slice %482 {offsets = [0, 0], sizes = [64, 32], strides = [1, 1]} : vector<64x64xf32> to vector<64x32xf32>
    %cst_225 = arith.constant dense<0.000000e+00> : vector<32xf32>
    %485 = vector.multi_reduction <add>, %484, %cst_225 [0] : vector<64x32xf32> to vector<32xf32>
    %486 = vector.shape_cast %485 : vector<32xf32> to vector<1x32xf32>
    %cst_226 = arith.constant 6.400000e+01 : f32
    %487 = vector.broadcast %cst_226 : f32 to vector<1x32xf32>
    %488 = arith.divf %486, %487 : vector<1x32xf32>
    %489 = vector.broadcast %488 : vector<1x32xf32> to vector<64x32xf32>
    %490 = arith.subf %484, %489 : vector<64x32xf32>
    %491 = arith.mulf %490, %490 : vector<64x32xf32>
    %cst_227 = arith.constant dense<0.000000e+00> : vector<32xf32>
    %492 = vector.multi_reduction <add>, %491, %cst_227 [0] : vector<64x32xf32> to vector<32xf32>
    %493 = vector.shape_cast %492 : vector<32xf32> to vector<1x32xf32>
    %cst_228 = arith.constant 6.400000e+01 : f32
    %494 = vector.broadcast %cst_228 : f32 to vector<1x32xf32>
    %495 = arith.divf %493, %494 : vector<1x32xf32>
    %496 = vector.broadcast %488 : vector<1x32xf32> to vector<64x32xf32>
    %497 = arith.subf %484, %496 : vector<64x32xf32>
    %cst_229 = arith.constant 9.99999974E-6 : f32
    %498 = vector.broadcast %cst_229 : f32 to vector<1x32xf32>
    %499 = arith.addf %495, %498 : vector<1x32xf32>
    %500 = math.rsqrt %499 : vector<1x32xf32>
    %501 = vector.broadcast %500 : vector<1x32xf32> to vector<64x32xf32>
    %502 = arith.mulf %497, %501 : vector<64x32xf32>
    %503 = vector.extract_strided_slice %482 {offsets = [0, 32], sizes = [64, 32], strides = [1, 1]} : vector<64x64xf32> to vector<64x32xf32>
    %cst_230 = arith.constant dense<0.000000e+00> : vector<32xf32>
    %504 = vector.multi_reduction <add>, %483, %cst_230 [1] : vector<32x64xf32> to vector<32xf32>
    %505 = vector.shape_cast %504 : vector<32xf32> to vector<32x1xf32>
    %cst_231 = arith.constant 6.400000e+01 : f32
    %506 = vector.broadcast %cst_231 : f32 to vector<32x1xf32>
    %507 = arith.divf %505, %506 : vector<32x1xf32>
    %508 = vector.broadcast %507 : vector<32x1xf32> to vector<32x64xf32>
    %509 = arith.subf %483, %508 : vector<32x64xf32>
    %510 = arith.mulf %509, %509 : vector<32x64xf32>
    %cst_232 = arith.constant dense<0.000000e+00> : vector<32xf32>
    %511 = vector.multi_reduction <add>, %510, %cst_232 [1] : vector<32x64xf32> to vector<32xf32>
    %512 = vector.shape_cast %511 : vector<32xf32> to vector<32x1xf32>
    %cst_233 = arith.constant 6.400000e+01 : f32
    %513 = vector.broadcast %cst_233 : f32 to vector<32x1xf32>
    %514 = arith.divf %512, %513 : vector<32x1xf32>
    %515 = vector.broadcast %507 : vector<32x1xf32> to vector<32x64xf32>
    %516 = arith.subf %483, %515 : vector<32x64xf32>
    %cst_234 = arith.constant 9.99999974E-6 : f32
    %517 = vector.broadcast %cst_234 : f32 to vector<32x1xf32>
    %518 = arith.addf %514, %517 : vector<32x1xf32>
    %519 = math.rsqrt %518 : vector<32x1xf32>
    %520 = vector.broadcast %519 : vector<32x1xf32> to vector<32x64xf32>
    %521 = arith.mulf %516, %520 : vector<32x64xf32>
    %cst_235 = arith.constant 5.000000e-01 : f32
    %522 = vector.broadcast %cst_235 : f32 to vector<32x64xf32>
    %523 = arith.mulf %521, %522 : vector<32x64xf32>
    %524 = vector.extract_strided_slice %523 {offsets = [0, 0], sizes = [4, 64], strides = [1, 1]} : vector<32x64xf32> to vector<4x64xf32>
    %c0_236 = arith.constant 0 : index
    %c0_237 = arith.constant 0 : index
    %525 = vector.load %arg9[%c0_236, %c0_237] : memref<32x512xf32, #tpu.memory_space<vmem>>, vector<4x64xf32>
    tpu.vector_store %arg9[%c0_236, %c0_237], %524 {strides = array<i32>} : memref<32x512xf32, #tpu.memory_space<vmem>>, vector<4x64xf32>,
    %526 = vector.extract_strided_slice %503 {offsets = [0, 0], sizes = [64, 4], strides = [1, 1]} : vector<64x32xf32> to vector<64x4xf32>
    %c0_238 = arith.constant 0 : index
    %c0_239 = arith.constant 0 : index
    %527 = vector.load %arg10[%c0_238, %c0_239] : memref<512x32xf32, #tpu.memory_space<vmem>>, vector<64x4xf32>
    tpu.vector_store %arg10[%c0_238, %c0_239], %526 {strides = array<i32>} : memref<512x32xf32, #tpu.memory_space<vmem>>, vector<64x4xf32>,
    %528 = vector.extract_strided_slice %523 {offsets = [4, 0], sizes = [4, 64], strides = [1, 1]} : vector<32x64xf32> to vector<4x64xf32>
    %c4_240 = arith.constant 4 : index
    %c64_241 = arith.constant 64 : index
    %529 = vector.load %arg9[%c4_240, %c64_241] : memref<32x512xf32, #tpu.memory_space<vmem>>, vector<4x64xf32>
    tpu.vector_store %arg9[%c4_240, %c64_241], %528 {strides = array<i32>} : memref<32x512xf32, #tpu.memory_space<vmem>>, vector<4x64xf32>,
    %530 = vector.extract_strided_slice %503 {offsets = [0, 4], sizes = [64, 4], strides = [1, 1]} : vector<64x32xf32> to vector<64x4xf32>
    %c64_242 = arith.constant 64 : index
    %c4_243 = arith.constant 4 : index
    %531 = vector.load %arg10[%c64_242, %c4_243] : memref<512x32xf32, #tpu.memory_space<vmem>>, vector<64x4xf32>
    tpu.vector_store %arg10[%c64_242, %c4_243], %530 {strides = array<i32>} : memref<512x32xf32, #tpu.memory_space<vmem>>, vector<64x4xf32>,
    %532 = vector.extract_strided_slice %523 {offsets = [8, 0], sizes = [4, 64], strides = [1, 1]} : vector<32x64xf32> to vector<4x64xf32>
    %c8_244 = arith.constant 8 : index
    %c128_245 = arith.constant 128 : index
    %533 = vector.load %arg9[%c8_244, %c128_245] : memref<32x512xf32, #tpu.memory_space<vmem>>, vector<4x64xf32>
    tpu.vector_store %arg9[%c8_244, %c128_245], %532 {strides = array<i32>} : memref<32x512xf32, #tpu.memory_space<vmem>>, vector<4x64xf32>,
    %534 = vector.extract_strided_slice %503 {offsets = [0, 8], sizes = [64, 4], strides = [1, 1]} : vector<64x32xf32> to vector<64x4xf32>
    %c128_246 = arith.constant 128 : index
    %c8_247 = arith.constant 8 : index
    %535 = vector.load %arg10[%c128_246, %c8_247] : memref<512x32xf32, #tpu.memory_space<vmem>>, vector<64x4xf32>
    tpu.vector_store %arg10[%c128_246, %c8_247], %534 {strides = array<i32>} : memref<512x32xf32, #tpu.memory_space<vmem>>, vector<64x4xf32>,
    %536 = vector.extract_strided_slice %523 {offsets = [12, 0], sizes = [4, 64], strides = [1, 1]} : vector<32x64xf32> to vector<4x64xf32>
    %c12_248 = arith.constant 12 : index
    %c192_249 = arith.constant 192 : index
    %537 = vector.load %arg9[%c12_248, %c192_249] : memref<32x512xf32, #tpu.memory_space<vmem>>, vector<4x64xf32>
    tpu.vector_store %arg9[%c12_248, %c192_249], %536 {strides = array<i32>} : memref<32x512xf32, #tpu.memory_space<vmem>>, vector<4x64xf32>,
    %538 = vector.extract_strided_slice %503 {offsets = [0, 12], sizes = [64, 4], strides = [1, 1]} : vector<64x32xf32> to vector<64x4xf32>
    %c192_250 = arith.constant 192 : index
    %c12_251 = arith.constant 12 : index
    %539 = vector.load %arg10[%c192_250, %c12_251] : memref<512x32xf32, #tpu.memory_space<vmem>>, vector<64x4xf32>
    tpu.vector_store %arg10[%c192_250, %c12_251], %538 {strides = array<i32>} : memref<512x32xf32, #tpu.memory_space<vmem>>, vector<64x4xf32>,
    %540 = vector.extract_strided_slice %523 {offsets = [16, 0], sizes = [4, 64], strides = [1, 1]} : vector<32x64xf32> to vector<4x64xf32>
    %c16_252 = arith.constant 16 : index
    %c256_253 = arith.constant 256 : index
    %541 = vector.load %arg9[%c16_252, %c256_253] : memref<32x512xf32, #tpu.memory_space<vmem>>, vector<4x64xf32>
    tpu.vector_store %arg9[%c16_252, %c256_253], %540 {strides = array<i32>} : memref<32x512xf32, #tpu.memory_space<vmem>>, vector<4x64xf32>,
    %542 = vector.extract_strided_slice %503 {offsets = [0, 16], sizes = [64, 4], strides = [1, 1]} : vector<64x32xf32> to vector<64x4xf32>
    %c256_254 = arith.constant 256 : index
    %c16_255 = arith.constant 16 : index
    %543 = vector.load %arg10[%c256_254, %c16_255] : memref<512x32xf32, #tpu.memory_space<vmem>>, vector<64x4xf32>
    tpu.vector_store %arg10[%c256_254, %c16_255], %542 {strides = array<i32>} : memref<512x32xf32, #tpu.memory_space<vmem>>, vector<64x4xf32>,
    %544 = vector.extract_strided_slice %523 {offsets = [20, 0], sizes = [4, 64], strides = [1, 1]} : vector<32x64xf32> to vector<4x64xf32>
    %c20_256 = arith.constant 20 : index
    %c320_257 = arith.constant 320 : index
    %545 = vector.load %arg9[%c20_256, %c320_257] : memref<32x512xf32, #tpu.memory_space<vmem>>, vector<4x64xf32>
    tpu.vector_store %arg9[%c20_256, %c320_257], %544 {strides = array<i32>} : memref<32x512xf32, #tpu.memory_space<vmem>>, vector<4x64xf32>,
    %546 = vector.extract_strided_slice %503 {offsets = [0, 20], sizes = [64, 4], strides = [1, 1]} : vector<64x32xf32> to vector<64x4xf32>
    %c320_258 = arith.constant 320 : index
    %c20_259 = arith.constant 20 : index
    %547 = vector.load %arg10[%c320_258, %c20_259] : memref<512x32xf32, #tpu.memory_space<vmem>>, vector<64x4xf32>
    tpu.vector_store %arg10[%c320_258, %c20_259], %546 {strides = array<i32>} : memref<512x32xf32, #tpu.memory_space<vmem>>, vector<64x4xf32>,
    %548 = vector.extract_strided_slice %523 {offsets = [24, 0], sizes = [4, 64], strides = [1, 1]} : vector<32x64xf32> to vector<4x64xf32>
    %c24_260 = arith.constant 24 : index
    %c384_261 = arith.constant 384 : index
    %549 = vector.load %arg9[%c24_260, %c384_261] : memref<32x512xf32, #tpu.memory_space<vmem>>, vector<4x64xf32>
    tpu.vector_store %arg9[%c24_260, %c384_261], %548 {strides = array<i32>} : memref<32x512xf32, #tpu.memory_space<vmem>>, vector<4x64xf32>,
    %550 = vector.extract_strided_slice %503 {offsets = [0, 24], sizes = [64, 4], strides = [1, 1]} : vector<64x32xf32> to vector<64x4xf32>
    %c384_262 = arith.constant 384 : index
    %c24_263 = arith.constant 24 : index
    %551 = vector.load %arg10[%c384_262, %c24_263] : memref<512x32xf32, #tpu.memory_space<vmem>>, vector<64x4xf32>
    tpu.vector_store %arg10[%c384_262, %c24_263], %550 {strides = array<i32>} : memref<512x32xf32, #tpu.memory_space<vmem>>, vector<64x4xf32>,
    %552 = vector.extract_strided_slice %523 {offsets = [28, 0], sizes = [4, 64], strides = [1, 1]} : vector<32x64xf32> to vector<4x64xf32>
    %c28_264 = arith.constant 28 : index
    %c448_265 = arith.constant 448 : index
    %553 = vector.load %arg9[%c28_264, %c448_265] : memref<32x512xf32, #tpu.memory_space<vmem>>, vector<4x64xf32>
    tpu.vector_store %arg9[%c28_264, %c448_265], %552 {strides = array<i32>} : memref<32x512xf32, #tpu.memory_space<vmem>>, vector<4x64xf32>,
    %554 = vector.extract_strided_slice %503 {offsets = [0, 28], sizes = [64, 4], strides = [1, 1]} : vector<64x32xf32> to vector<64x4xf32>
    %c448_266 = arith.constant 448 : index
    %c28_267 = arith.constant 28 : index
    %555 = vector.load %arg10[%c448_266, %c28_267] : memref<512x32xf32, #tpu.memory_space<vmem>>, vector<64x4xf32>
    tpu.vector_store %arg10[%c448_266, %c28_267], %554 {strides = array<i32>} : memref<512x32xf32, #tpu.memory_space<vmem>>, vector<64x4xf32>,
    %c0_268 = arith.constant 0 : index
    %c0_269 = arith.constant 0 : index
    %556 = vector.load %arg9[%c0_268, %c0_269] : memref<32x512xf32, #tpu.memory_space<vmem>>, vector<32x512xf32>
    %cst_270 = arith.constant dense<0.000000e+00> : vector<64x512xf32>
    %557 = tpu.matmul %502, %556, %cst_270 {dimension_numbers = #tpu.dot_dimension_numbers<[1], [0], [0], [1], [0, 0, 1, 1], [], []>} : vector<64x32xf32>, vector<32x512xf32>, vector<64x512xf32> -> vector<64x512xf32>
    %cst_271 = arith.constant dense<0xFF800000> : vector<512xf32>
    %558 = vector.multi_reduction <maximumf>, %557, %cst_271 [0] : vector<64x512xf32> to vector<512xf32>
    %559 = vector.shape_cast %558 : vector<512xf32> to vector<1x512xf32>
    %560 = vector.extract_strided_slice %559 {offsets = [0, 0], sizes = [1, 64], strides = [1, 1]} : vector<1x512xf32> to vector<1x64xf32>
    %561 = vector.shape_cast %560 : vector<1x64xf32> to vector<1x1x64xf32>
    %cst_272 = arith.constant dense<0xFF800000> : vector<1xf32>
    %562 = vector.multi_reduction <maximumf>, %561, %cst_272 [1, 2] : vector<1x1x64xf32> to vector<1xf32>
    %563 = vector.shape_cast %562 : vector<1xf32> to vector<1x1x1xf32>
    %564 = vector.extract %563[0, 0, 0] : f32 from vector<1x1x1xf32>
    %565 = vector.broadcast %564 : f32 to vector<1x1xf32>
    %566 = vector.shape_cast %565 : vector<1x1xf32> to vector<1x1xf32>
    %567 = vector.broadcast %566 : vector<1x1xf32> to vector<1x64xf32>
    %c0_273 = arith.constant 0 : index
    %c0_274 = arith.constant 0 : index
    %568 = vector.load %arg12[%c0_273, %c0_274] : memref<1x512xf32, #tpu.memory_space<vmem>>, vector<1x64xf32>
    tpu.vector_store %arg12[%c0_273, %c0_274], %567 {strides = array<i32>} : memref<1x512xf32, #tpu.memory_space<vmem>>, vector<1x64xf32>,
    %569 = vector.extract_strided_slice %559 {offsets = [0, 64], sizes = [1, 64], strides = [1, 1]} : vector<1x512xf32> to vector<1x64xf32>
    %570 = vector.shape_cast %569 : vector<1x64xf32> to vector<1x1x64xf32>
    %cst_275 = arith.constant dense<0xFF800000> : vector<1xf32>
    %571 = vector.multi_reduction <maximumf>, %570, %cst_275 [1, 2] : vector<1x1x64xf32> to vector<1xf32>
    %572 = vector.shape_cast %571 : vector<1xf32> to vector<1x1x1xf32>
    %573 = vector.extract %572[0, 0, 0] : f32 from vector<1x1x1xf32>
    %574 = vector.broadcast %573 : f32 to vector<1x1xf32>
    %575 = vector.shape_cast %574 : vector<1x1xf32> to vector<1x1xf32>
    %576 = vector.broadcast %575 : vector<1x1xf32> to vector<1x64xf32>
    %c0_276 = arith.constant 0 : index
    %c64_277 = arith.constant 64 : index
    %577 = vector.load %arg12[%c0_276, %c64_277] : memref<1x512xf32, #tpu.memory_space<vmem>>, vector<1x64xf32>
    tpu.vector_store %arg12[%c0_276, %c64_277], %576 {strides = array<i32>} : memref<1x512xf32, #tpu.memory_space<vmem>>, vector<1x64xf32>,
    %578 = vector.extract_strided_slice %559 {offsets = [0, 128], sizes = [1, 64], strides = [1, 1]} : vector<1x512xf32> to vector<1x64xf32>
    %579 = vector.shape_cast %578 : vector<1x64xf32> to vector<1x1x64xf32>
    %cst_278 = arith.constant dense<0xFF800000> : vector<1xf32>
    %580 = vector.multi_reduction <maximumf>, %579, %cst_278 [1, 2] : vector<1x1x64xf32> to vector<1xf32>
    %581 = vector.shape_cast %580 : vector<1xf32> to vector<1x1x1xf32>
    %582 = vector.extract %581[0, 0, 0] : f32 from vector<1x1x1xf32>
    %583 = vector.broadcast %582 : f32 to vector<1x1xf32>
    %584 = vector.shape_cast %583 : vector<1x1xf32> to vector<1x1xf32>
    %585 = vector.broadcast %584 : vector<1x1xf32> to vector<1x64xf32>
    %c0_279 = arith.constant 0 : index
    %c128_280 = arith.constant 128 : index
    %586 = vector.load %arg12[%c0_279, %c128_280] : memref<1x512xf32, #tpu.memory_space<vmem>>, vector<1x64xf32>
    tpu.vector_store %arg12[%c0_279, %c128_280], %585 {strides = array<i32>} : memref<1x512xf32, #tpu.memory_space<vmem>>, vector<1x64xf32>,
    %587 = vector.extract_strided_slice %559 {offsets = [0, 192], sizes = [1, 64], strides = [1, 1]} : vector<1x512xf32> to vector<1x64xf32>
    %588 = vector.shape_cast %587 : vector<1x64xf32> to vector<1x1x64xf32>
    %cst_281 = arith.constant dense<0xFF800000> : vector<1xf32>
    %589 = vector.multi_reduction <maximumf>, %588, %cst_281 [1, 2] : vector<1x1x64xf32> to vector<1xf32>
    %590 = vector.shape_cast %589 : vector<1xf32> to vector<1x1x1xf32>
    %591 = vector.extract %590[0, 0, 0] : f32 from vector<1x1x1xf32>
    %592 = vector.broadcast %591 : f32 to vector<1x1xf32>
    %593 = vector.shape_cast %592 : vector<1x1xf32> to vector<1x1xf32>
    %594 = vector.broadcast %593 : vector<1x1xf32> to vector<1x64xf32>
    %c0_282 = arith.constant 0 : index
    %c192_283 = arith.constant 192 : index
    %595 = vector.load %arg12[%c0_282, %c192_283] : memref<1x512xf32, #tpu.memory_space<vmem>>, vector<1x64xf32>
    tpu.vector_store %arg12[%c0_282, %c192_283], %594 {strides = array<i32>} : memref<1x512xf32, #tpu.memory_space<vmem>>, vector<1x64xf32>,
    %596 = vector.extract_strided_slice %559 {offsets = [0, 256], sizes = [1, 64], strides = [1, 1]} : vector<1x512xf32> to vector<1x64xf32>
    %597 = vector.shape_cast %596 : vector<1x64xf32> to vector<1x1x64xf32>
    %cst_284 = arith.constant dense<0xFF800000> : vector<1xf32>
    %598 = vector.multi_reduction <maximumf>, %597, %cst_284 [1, 2] : vector<1x1x64xf32> to vector<1xf32>
    %599 = vector.shape_cast %598 : vector<1xf32> to vector<1x1x1xf32>
    %600 = vector.extract %599[0, 0, 0] : f32 from vector<1x1x1xf32>
    %601 = vector.broadcast %600 : f32 to vector<1x1xf32>
    %602 = vector.shape_cast %601 : vector<1x1xf32> to vector<1x1xf32>
    %603 = vector.broadcast %602 : vector<1x1xf32> to vector<1x64xf32>
    %c0_285 = arith.constant 0 : index
    %c256_286 = arith.constant 256 : index
    %604 = vector.load %arg12[%c0_285, %c256_286] : memref<1x512xf32, #tpu.memory_space<vmem>>, vector<1x64xf32>
    tpu.vector_store %arg12[%c0_285, %c256_286], %603 {strides = array<i32>} : memref<1x512xf32, #tpu.memory_space<vmem>>, vector<1x64xf32>,
    %605 = vector.extract_strided_slice %559 {offsets = [0, 320], sizes = [1, 64], strides = [1, 1]} : vector<1x512xf32> to vector<1x64xf32>
    %606 = vector.shape_cast %605 : vector<1x64xf32> to vector<1x1x64xf32>
    %cst_287 = arith.constant dense<0xFF800000> : vector<1xf32>
    %607 = vector.multi_reduction <maximumf>, %606, %cst_287 [1, 2] : vector<1x1x64xf32> to vector<1xf32>
    %608 = vector.shape_cast %607 : vector<1xf32> to vector<1x1x1xf32>
    %609 = vector.extract %608[0, 0, 0] : f32 from vector<1x1x1xf32>
    %610 = vector.broadcast %609 : f32 to vector<1x1xf32>
    %611 = vector.shape_cast %610 : vector<1x1xf32> to vector<1x1xf32>
    %612 = vector.broadcast %611 : vector<1x1xf32> to vector<1x64xf32>
    %c0_288 = arith.constant 0 : index
    %c320_289 = arith.constant 320 : index
    %613 = vector.load %arg12[%c0_288, %c320_289] : memref<1x512xf32, #tpu.memory_space<vmem>>, vector<1x64xf32>
    tpu.vector_store %arg12[%c0_288, %c320_289], %612 {strides = array<i32>} : memref<1x512xf32, #tpu.memory_space<vmem>>, vector<1x64xf32>,
    %614 = vector.extract_strided_slice %559 {offsets = [0, 384], sizes = [1, 64], strides = [1, 1]} : vector<1x512xf32> to vector<1x64xf32>
    %615 = vector.shape_cast %614 : vector<1x64xf32> to vector<1x1x64xf32>
    %cst_290 = arith.constant dense<0xFF800000> : vector<1xf32>
    %616 = vector.multi_reduction <maximumf>, %615, %cst_290 [1, 2] : vector<1x1x64xf32> to vector<1xf32>
    %617 = vector.shape_cast %616 : vector<1xf32> to vector<1x1x1xf32>
    %618 = vector.extract %617[0, 0, 0] : f32 from vector<1x1x1xf32>
    %619 = vector.broadcast %618 : f32 to vector<1x1xf32>
    %620 = vector.shape_cast %619 : vector<1x1xf32> to vector<1x1xf32>
    %621 = vector.broadcast %620 : vector<1x1xf32> to vector<1x64xf32>
    %c0_291 = arith.constant 0 : index
    %c384_292 = arith.constant 384 : index
    %622 = vector.load %arg12[%c0_291, %c384_292] : memref<1x512xf32, #tpu.memory_space<vmem>>, vector<1x64xf32>
    tpu.vector_store %arg12[%c0_291, %c384_292], %621 {strides = array<i32>} : memref<1x512xf32, #tpu.memory_space<vmem>>, vector<1x64xf32>,
    %623 = vector.extract_strided_slice %559 {offsets = [0, 448], sizes = [1, 64], strides = [1, 1]} : vector<1x512xf32> to vector<1x64xf32>
    %624 = vector.shape_cast %623 : vector<1x64xf32> to vector<1x1x64xf32>
    %cst_293 = arith.constant dense<0xFF800000> : vector<1xf32>
    %625 = vector.multi_reduction <maximumf>, %624, %cst_293 [1, 2] : vector<1x1x64xf32> to vector<1xf32>
    %626 = vector.shape_cast %625 : vector<1xf32> to vector<1x1x1xf32>
    %627 = vector.extract %626[0, 0, 0] : f32 from vector<1x1x1xf32>
    %628 = vector.broadcast %627 : f32 to vector<1x1xf32>
    %629 = vector.shape_cast %628 : vector<1x1xf32> to vector<1x1xf32>
    %630 = vector.broadcast %629 : vector<1x1xf32> to vector<1x64xf32>
    %c0_294 = arith.constant 0 : index
    %c448_295 = arith.constant 448 : index
    %631 = vector.load %arg12[%c0_294, %c448_295] : memref<1x512xf32, #tpu.memory_space<vmem>>, vector<1x64xf32>
    tpu.vector_store %arg12[%c0_294, %c448_295], %630 {strides = array<i32>} : memref<1x512xf32, #tpu.memory_space<vmem>>, vector<1x64xf32>,
    %c0_296 = arith.constant 0 : index
    %c0_297 = arith.constant 0 : index
    %632 = vector.load %arg12[%c0_296, %c0_297] : memref<1x512xf32, #tpu.memory_space<vmem>>, vector<1x512xf32>
    %633 = vector.broadcast %632 : vector<1x512xf32> to vector<64x512xf32>
    %634 = arith.subf %557, %633 : vector<64x512xf32>
    %635 = math.exp %634 : vector<64x512xf32>
    %cst_298 = arith.constant dense<0.000000e+00> : vector<512xf32>
    %636 = vector.multi_reduction <add>, %635, %cst_298 [0] : vector<64x512xf32> to vector<512xf32>
    %637 = vector.shape_cast %636 : vector<512xf32> to vector<1x512xf32>
    %638 = vector.extract_strided_slice %637 {offsets = [0, 0], sizes = [1, 64], strides = [1, 1]} : vector<1x512xf32> to vector<1x64xf32>
    %639 = vector.shape_cast %638 : vector<1x64xf32> to vector<1x1x64xf32>
    %cst_299 = arith.constant dense<0.000000e+00> : vector<1xf32>
    %640 = vector.multi_reduction <add>, %639, %cst_299 [1, 2] : vector<1x1x64xf32> to vector<1xf32>
    %641 = vector.shape_cast %640 : vector<1xf32> to vector<1x1x1xf32>
    %642 = vector.extract %641[0, 0, 0] : f32 from vector<1x1x1xf32>
    %643 = vector.broadcast %642 : f32 to vector<1x1xf32>
    %644 = vector.shape_cast %643 : vector<1x1xf32> to vector<1x1xf32>
    %645 = vector.broadcast %644 : vector<1x1xf32> to vector<1x4xf32>
    %c0_300 = arith.constant 0 : index
    %c0_301 = arith.constant 0 : index
    %646 = vector.load %arg13[%c0_300, %c0_301] : memref<1x32xf32, #tpu.memory_space<vmem>>, vector<1x4xf32>
    tpu.vector_store %arg13[%c0_300, %c0_301], %645 {strides = array<i32>} : memref<1x32xf32, #tpu.memory_space<vmem>>, vector<1x4xf32>,
    %647 = vector.extract_strided_slice %637 {offsets = [0, 64], sizes = [1, 64], strides = [1, 1]} : vector<1x512xf32> to vector<1x64xf32>
    %648 = vector.shape_cast %647 : vector<1x64xf32> to vector<1x1x64xf32>
    %cst_302 = arith.constant dense<0.000000e+00> : vector<1xf32>
    %649 = vector.multi_reduction <add>, %648, %cst_302 [1, 2] : vector<1x1x64xf32> to vector<1xf32>
    %650 = vector.shape_cast %649 : vector<1xf32> to vector<1x1x1xf32>
    %651 = vector.extract %650[0, 0, 0] : f32 from vector<1x1x1xf32>
    %652 = vector.broadcast %651 : f32 to vector<1x1xf32>
    %653 = vector.shape_cast %652 : vector<1x1xf32> to vector<1x1xf32>
    %654 = vector.broadcast %653 : vector<1x1xf32> to vector<1x4xf32>
    %c0_303 = arith.constant 0 : index
    %c4_304 = arith.constant 4 : index
    %655 = vector.load %arg13[%c0_303, %c4_304] : memref<1x32xf32, #tpu.memory_space<vmem>>, vector<1x4xf32>
    tpu.vector_store %arg13[%c0_303, %c4_304], %654 {strides = array<i32>} : memref<1x32xf32, #tpu.memory_space<vmem>>, vector<1x4xf32>,
    %656 = vector.extract_strided_slice %637 {offsets = [0, 128], sizes = [1, 64], strides = [1, 1]} : vector<1x512xf32> to vector<1x64xf32>
    %657 = vector.shape_cast %656 : vector<1x64xf32> to vector<1x1x64xf32>
    %cst_305 = arith.constant dense<0.000000e+00> : vector<1xf32>
    %658 = vector.multi_reduction <add>, %657, %cst_305 [1, 2] : vector<1x1x64xf32> to vector<1xf32>
    %659 = vector.shape_cast %658 : vector<1xf32> to vector<1x1x1xf32>
    %660 = vector.extract %659[0, 0, 0] : f32 from vector<1x1x1xf32>
    %661 = vector.broadcast %660 : f32 to vector<1x1xf32>
    %662 = vector.shape_cast %661 : vector<1x1xf32> to vector<1x1xf32>
    %663 = vector.broadcast %662 : vector<1x1xf32> to vector<1x4xf32>
    %c0_306 = arith.constant 0 : index
    %c8_307 = arith.constant 8 : index
    %664 = vector.load %arg13[%c0_306, %c8_307] : memref<1x32xf32, #tpu.memory_space<vmem>>, vector<1x4xf32>
    tpu.vector_store %arg13[%c0_306, %c8_307], %663 {strides = array<i32>} : memref<1x32xf32, #tpu.memory_space<vmem>>, vector<1x4xf32>,
    %665 = vector.extract_strided_slice %637 {offsets = [0, 192], sizes = [1, 64], strides = [1, 1]} : vector<1x512xf32> to vector<1x64xf32>
    %666 = vector.shape_cast %665 : vector<1x64xf32> to vector<1x1x64xf32>
    %cst_308 = arith.constant dense<0.000000e+00> : vector<1xf32>
    %667 = vector.multi_reduction <add>, %666, %cst_308 [1, 2] : vector<1x1x64xf32> to vector<1xf32>
    %668 = vector.shape_cast %667 : vector<1xf32> to vector<1x1x1xf32>
    %669 = vector.extract %668[0, 0, 0] : f32 from vector<1x1x1xf32>
    %670 = vector.broadcast %669 : f32 to vector<1x1xf32>
    %671 = vector.shape_cast %670 : vector<1x1xf32> to vector<1x1xf32>
    %672 = vector.broadcast %671 : vector<1x1xf32> to vector<1x4xf32>
    %c0_309 = arith.constant 0 : index
    %c12_310 = arith.constant 12 : index
    %673 = vector.load %arg13[%c0_309, %c12_310] : memref<1x32xf32, #tpu.memory_space<vmem>>, vector<1x4xf32>
    tpu.vector_store %arg13[%c0_309, %c12_310], %672 {strides = array<i32>} : memref<1x32xf32, #tpu.memory_space<vmem>>, vector<1x4xf32>,
    %674 = vector.extract_strided_slice %637 {offsets = [0, 256], sizes = [1, 64], strides = [1, 1]} : vector<1x512xf32> to vector<1x64xf32>
    %675 = vector.shape_cast %674 : vector<1x64xf32> to vector<1x1x64xf32>
    %cst_311 = arith.constant dense<0.000000e+00> : vector<1xf32>
    %676 = vector.multi_reduction <add>, %675, %cst_311 [1, 2] : vector<1x1x64xf32> to vector<1xf32>
    %677 = vector.shape_cast %676 : vector<1xf32> to vector<1x1x1xf32>
    %678 = vector.extract %677[0, 0, 0] : f32 from vector<1x1x1xf32>
    %679 = vector.broadcast %678 : f32 to vector<1x1xf32>
    %680 = vector.shape_cast %679 : vector<1x1xf32> to vector<1x1xf32>
    %681 = vector.broadcast %680 : vector<1x1xf32> to vector<1x4xf32>
    %c0_312 = arith.constant 0 : index
    %c16_313 = arith.constant 16 : index
    %682 = vector.load %arg13[%c0_312, %c16_313] : memref<1x32xf32, #tpu.memory_space<vmem>>, vector<1x4xf32>
    tpu.vector_store %arg13[%c0_312, %c16_313], %681 {strides = array<i32>} : memref<1x32xf32, #tpu.memory_space<vmem>>, vector<1x4xf32>,
    %683 = vector.extract_strided_slice %637 {offsets = [0, 320], sizes = [1, 64], strides = [1, 1]} : vector<1x512xf32> to vector<1x64xf32>
    %684 = vector.shape_cast %683 : vector<1x64xf32> to vector<1x1x64xf32>
    %cst_314 = arith.constant dense<0.000000e+00> : vector<1xf32>
    %685 = vector.multi_reduction <add>, %684, %cst_314 [1, 2] : vector<1x1x64xf32> to vector<1xf32>
    %686 = vector.shape_cast %685 : vector<1xf32> to vector<1x1x1xf32>
    %687 = vector.extract %686[0, 0, 0] : f32 from vector<1x1x1xf32>
    %688 = vector.broadcast %687 : f32 to vector<1x1xf32>
    %689 = vector.shape_cast %688 : vector<1x1xf32> to vector<1x1xf32>
    %690 = vector.broadcast %689 : vector<1x1xf32> to vector<1x4xf32>
    %c0_315 = arith.constant 0 : index
    %c20_316 = arith.constant 20 : index
    %691 = vector.load %arg13[%c0_315, %c20_316] : memref<1x32xf32, #tpu.memory_space<vmem>>, vector<1x4xf32>
    tpu.vector_store %arg13[%c0_315, %c20_316], %690 {strides = array<i32>} : memref<1x32xf32, #tpu.memory_space<vmem>>, vector<1x4xf32>,
    %692 = vector.extract_strided_slice %637 {offsets = [0, 384], sizes = [1, 64], strides = [1, 1]} : vector<1x512xf32> to vector<1x64xf32>
    %693 = vector.shape_cast %692 : vector<1x64xf32> to vector<1x1x64xf32>
    %cst_317 = arith.constant dense<0.000000e+00> : vector<1xf32>
    %694 = vector.multi_reduction <add>, %693, %cst_317 [1, 2] : vector<1x1x64xf32> to vector<1xf32>
    %695 = vector.shape_cast %694 : vector<1xf32> to vector<1x1x1xf32>
    %696 = vector.extract %695[0, 0, 0] : f32 from vector<1x1x1xf32>
    %697 = vector.broadcast %696 : f32 to vector<1x1xf32>
    %698 = vector.shape_cast %697 : vector<1x1xf32> to vector<1x1xf32>
    %699 = vector.broadcast %698 : vector<1x1xf32> to vector<1x4xf32>
    %c0_318 = arith.constant 0 : index
    %c24_319 = arith.constant 24 : index
    %700 = vector.load %arg13[%c0_318, %c24_319] : memref<1x32xf32, #tpu.memory_space<vmem>>, vector<1x4xf32>
    tpu.vector_store %arg13[%c0_318, %c24_319], %699 {strides = array<i32>} : memref<1x32xf32, #tpu.memory_space<vmem>>, vector<1x4xf32>,
    %701 = vector.extract_strided_slice %637 {offsets = [0, 448], sizes = [1, 64], strides = [1, 1]} : vector<1x512xf32> to vector<1x64xf32>
    %702 = vector.shape_cast %701 : vector<1x64xf32> to vector<1x1x64xf32>
    %cst_320 = arith.constant dense<0.000000e+00> : vector<1xf32>
    %703 = vector.multi_reduction <add>, %702, %cst_320 [1, 2] : vector<1x1x64xf32> to vector<1xf32>
    %704 = vector.shape_cast %703 : vector<1xf32> to vector<1x1x1xf32>
    %705 = vector.extract %704[0, 0, 0] : f32 from vector<1x1x1xf32>
    %706 = vector.broadcast %705 : f32 to vector<1x1xf32>
    %707 = vector.shape_cast %706 : vector<1x1xf32> to vector<1x1xf32>
    %708 = vector.broadcast %707 : vector<1x1xf32> to vector<1x4xf32>
    %c0_321 = arith.constant 0 : index
    %c28_322 = arith.constant 28 : index
    %709 = vector.load %arg13[%c0_321, %c28_322] : memref<1x32xf32, #tpu.memory_space<vmem>>, vector<1x4xf32>
    tpu.vector_store %arg13[%c0_321, %c28_322], %708 {strides = array<i32>} : memref<1x32xf32, #tpu.memory_space<vmem>>, vector<1x4xf32>,
    %c0_323 = arith.constant 0 : index
    %c0_324 = arith.constant 0 : index
    %710 = vector.load %arg13[%c0_323, %c0_324] : memref<1x32xf32, #tpu.memory_space<vmem>>, vector<1x32xf32>
    %711 = tpu.reciprocal %710 {approx = true} : vector<1x32xf32> -> vector<1x32xf32>
    %c0_325 = arith.constant 0 : index
    %c0_326 = arith.constant 0 : index
    %712 = vector.load %arg10[%c0_325, %c0_326] : memref<512x32xf32, #tpu.memory_space<vmem>>, vector<512x32xf32>
    %cst_327 = arith.constant dense<0.000000e+00> : vector<64x32xf32>
    %713 = tpu.matmul %635, %712, %cst_327 {dimension_numbers = #tpu.dot_dimension_numbers<[1], [0], [0], [1], [0, 0, 1, 1], [], []>} : vector<64x512xf32>, vector<512x32xf32>, vector<64x32xf32> -> vector<64x32xf32>
    %714 = vector.broadcast %711 : vector<1x32xf32> to vector<64x32xf32>
    %715 = arith.mulf %713, %714 : vector<64x32xf32>
    %c0_328 = arith.constant 0 : index
    %c64_329 = arith.constant 64 : index
    %716 = vector.load %arg11[%c0_328, %c64_329] : memref<64x128xf32, #tpu.memory_space<vmem>>, vector<64x32xf32>
    tpu.vector_store %arg11[%c0_328, %c64_329], %715 {strides = array<i32>} : memref<64x128xf32, #tpu.memory_space<vmem>>, vector<64x32xf32>,
    %c192_330 = arith.constant 192 : index
    %c0_331 = arith.constant 0 : index
    %717 = vector.load %arg7[%c192_330, %c0_331] : memref<256x64xf32, #tpu.memory_space<vmem>>, vector<64x64xf32>
    %c0_332 = arith.constant 0 : index
    %c192_333 = arith.constant 192 : index
    %718 = vector.load %arg8[%c0_332, %c192_333] : memref<32x256xf32, #tpu.memory_space<vmem>>, vector<32x64xf32>
    %719 = vector.extract_strided_slice %717 {offsets = [0, 0], sizes = [64, 32], strides = [1, 1]} : vector<64x64xf32> to vector<64x32xf32>
    %cst_334 = arith.constant dense<0.000000e+00> : vector<32xf32>
    %720 = vector.multi_reduction <add>, %719, %cst_334 [0] : vector<64x32xf32> to vector<32xf32>
    %721 = vector.shape_cast %720 : vector<32xf32> to vector<1x32xf32>
    %cst_335 = arith.constant 6.400000e+01 : f32
    %722 = vector.broadcast %cst_335 : f32 to vector<1x32xf32>
    %723 = arith.divf %721, %722 : vector<1x32xf32>
    %724 = vector.broadcast %723 : vector<1x32xf32> to vector<64x32xf32>
    %725 = arith.subf %719, %724 : vector<64x32xf32>
    %726 = arith.mulf %725, %725 : vector<64x32xf32>
    %cst_336 = arith.constant dense<0.000000e+00> : vector<32xf32>
    %727 = vector.multi_reduction <add>, %726, %cst_336 [0] : vector<64x32xf32> to vector<32xf32>
    %728 = vector.shape_cast %727 : vector<32xf32> to vector<1x32xf32>
    %cst_337 = arith.constant 6.400000e+01 : f32
    %729 = vector.broadcast %cst_337 : f32 to vector<1x32xf32>
    %730 = arith.divf %728, %729 : vector<1x32xf32>
    %731 = vector.broadcast %723 : vector<1x32xf32> to vector<64x32xf32>
    %732 = arith.subf %719, %731 : vector<64x32xf32>
    %cst_338 = arith.constant 9.99999974E-6 : f32
    %733 = vector.broadcast %cst_338 : f32 to vector<1x32xf32>
    %734 = arith.addf %730, %733 : vector<1x32xf32>
    %735 = math.rsqrt %734 : vector<1x32xf32>
    %736 = vector.broadcast %735 : vector<1x32xf32> to vector<64x32xf32>
    %737 = arith.mulf %732, %736 : vector<64x32xf32>
    %738 = vector.extract_strided_slice %717 {offsets = [0, 32], sizes = [64, 32], strides = [1, 1]} : vector<64x64xf32> to vector<64x32xf32>
    %cst_339 = arith.constant dense<0.000000e+00> : vector<32xf32>
    %739 = vector.multi_reduction <add>, %718, %cst_339 [1] : vector<32x64xf32> to vector<32xf32>
    %740 = vector.shape_cast %739 : vector<32xf32> to vector<32x1xf32>
    %cst_340 = arith.constant 6.400000e+01 : f32
    %741 = vector.broadcast %cst_340 : f32 to vector<32x1xf32>
    %742 = arith.divf %740, %741 : vector<32x1xf32>
    %743 = vector.broadcast %742 : vector<32x1xf32> to vector<32x64xf32>
    %744 = arith.subf %718, %743 : vector<32x64xf32>
    %745 = arith.mulf %744, %744 : vector<32x64xf32>
    %cst_341 = arith.constant dense<0.000000e+00> : vector<32xf32>
    %746 = vector.multi_reduction <add>, %745, %cst_341 [1] : vector<32x64xf32> to vector<32xf32>
    %747 = vector.shape_cast %746 : vector<32xf32> to vector<32x1xf32>
    %cst_342 = arith.constant 6.400000e+01 : f32
    %748 = vector.broadcast %cst_342 : f32 to vector<32x1xf32>
    %749 = arith.divf %747, %748 : vector<32x1xf32>
    %750 = vector.broadcast %742 : vector<32x1xf32> to vector<32x64xf32>
    %751 = arith.subf %718, %750 : vector<32x64xf32>
    %cst_343 = arith.constant 9.99999974E-6 : f32
    %752 = vector.broadcast %cst_343 : f32 to vector<32x1xf32>
    %753 = arith.addf %749, %752 : vector<32x1xf32>
    %754 = math.rsqrt %753 : vector<32x1xf32>
    %755 = vector.broadcast %754 : vector<32x1xf32> to vector<32x64xf32>
    %756 = arith.mulf %751, %755 : vector<32x64xf32>
    %cst_344 = arith.constant 5.000000e-01 : f32
    %757 = vector.broadcast %cst_344 : f32 to vector<32x64xf32>
    %758 = arith.mulf %756, %757 : vector<32x64xf32>
    %759 = vector.extract_strided_slice %758 {offsets = [0, 0], sizes = [4, 64], strides = [1, 1]} : vector<32x64xf32> to vector<4x64xf32>
    %c0_345 = arith.constant 0 : index
    %c0_346 = arith.constant 0 : index
    %760 = vector.load %arg9[%c0_345, %c0_346] : memref<32x512xf32, #tpu.memory_space<vmem>>, vector<4x64xf32>
    tpu.vector_store %arg9[%c0_345, %c0_346], %759 {strides = array<i32>} : memref<32x512xf32, #tpu.memory_space<vmem>>, vector<4x64xf32>,
    %761 = vector.extract_strided_slice %738 {offsets = [0, 0], sizes = [64, 4], strides = [1, 1]} : vector<64x32xf32> to vector<64x4xf32>
    %c0_347 = arith.constant 0 : index
    %c0_348 = arith.constant 0 : index
    %762 = vector.load %arg10[%c0_347, %c0_348] : memref<512x32xf32, #tpu.memory_space<vmem>>, vector<64x4xf32>
    tpu.vector_store %arg10[%c0_347, %c0_348], %761 {strides = array<i32>} : memref<512x32xf32, #tpu.memory_space<vmem>>, vector<64x4xf32>,
    %763 = vector.extract_strided_slice %758 {offsets = [4, 0], sizes = [4, 64], strides = [1, 1]} : vector<32x64xf32> to vector<4x64xf32>
    %c4_349 = arith.constant 4 : index
    %c64_350 = arith.constant 64 : index
    %764 = vector.load %arg9[%c4_349, %c64_350] : memref<32x512xf32, #tpu.memory_space<vmem>>, vector<4x64xf32>
    tpu.vector_store %arg9[%c4_349, %c64_350], %763 {strides = array<i32>} : memref<32x512xf32, #tpu.memory_space<vmem>>, vector<4x64xf32>,
    %765 = vector.extract_strided_slice %738 {offsets = [0, 4], sizes = [64, 4], strides = [1, 1]} : vector<64x32xf32> to vector<64x4xf32>
    %c64_351 = arith.constant 64 : index
    %c4_352 = arith.constant 4 : index
    %766 = vector.load %arg10[%c64_351, %c4_352] : memref<512x32xf32, #tpu.memory_space<vmem>>, vector<64x4xf32>
    tpu.vector_store %arg10[%c64_351, %c4_352], %765 {strides = array<i32>} : memref<512x32xf32, #tpu.memory_space<vmem>>, vector<64x4xf32>,
    %767 = vector.extract_strided_slice %758 {offsets = [8, 0], sizes = [4, 64], strides = [1, 1]} : vector<32x64xf32> to vector<4x64xf32>
    %c8_353 = arith.constant 8 : index
    %c128_354 = arith.constant 128 : index
    %768 = vector.load %arg9[%c8_353, %c128_354] : memref<32x512xf32, #tpu.memory_space<vmem>>, vector<4x64xf32>
    tpu.vector_store %arg9[%c8_353, %c128_354], %767 {strides = array<i32>} : memref<32x512xf32, #tpu.memory_space<vmem>>, vector<4x64xf32>,
    %769 = vector.extract_strided_slice %738 {offsets = [0, 8], sizes = [64, 4], strides = [1, 1]} : vector<64x32xf32> to vector<64x4xf32>
    %c128_355 = arith.constant 128 : index
    %c8_356 = arith.constant 8 : index
    %770 = vector.load %arg10[%c128_355, %c8_356] : memref<512x32xf32, #tpu.memory_space<vmem>>, vector<64x4xf32>
    tpu.vector_store %arg10[%c128_355, %c8_356], %769 {strides = array<i32>} : memref<512x32xf32, #tpu.memory_space<vmem>>, vector<64x4xf32>,
    %771 = vector.extract_strided_slice %758 {offsets = [12, 0], sizes = [4, 64], strides = [1, 1]} : vector<32x64xf32> to vector<4x64xf32>
    %c12_357 = arith.constant 12 : index
    %c192_358 = arith.constant 192 : index
    %772 = vector.load %arg9[%c12_357, %c192_358] : memref<32x512xf32, #tpu.memory_space<vmem>>, vector<4x64xf32>
    tpu.vector_store %arg9[%c12_357, %c192_358], %771 {strides = array<i32>} : memref<32x512xf32, #tpu.memory_space<vmem>>, vector<4x64xf32>,
    %773 = vector.extract_strided_slice %738 {offsets = [0, 12], sizes = [64, 4], strides = [1, 1]} : vector<64x32xf32> to vector<64x4xf32>
    %c192_359 = arith.constant 192 : index
    %c12_360 = arith.constant 12 : index
    %774 = vector.load %arg10[%c192_359, %c12_360] : memref<512x32xf32, #tpu.memory_space<vmem>>, vector<64x4xf32>
    tpu.vector_store %arg10[%c192_359, %c12_360], %773 {strides = array<i32>} : memref<512x32xf32, #tpu.memory_space<vmem>>, vector<64x4xf32>,
    %775 = vector.extract_strided_slice %758 {offsets = [16, 0], sizes = [4, 64], strides = [1, 1]} : vector<32x64xf32> to vector<4x64xf32>
    %c16_361 = arith.constant 16 : index
    %c256_362 = arith.constant 256 : index
    %776 = vector.load %arg9[%c16_361, %c256_362] : memref<32x512xf32, #tpu.memory_space<vmem>>, vector<4x64xf32>
    tpu.vector_store %arg9[%c16_361, %c256_362], %775 {strides = array<i32>} : memref<32x512xf32, #tpu.memory_space<vmem>>, vector<4x64xf32>,
    %777 = vector.extract_strided_slice %738 {offsets = [0, 16], sizes = [64, 4], strides = [1, 1]} : vector<64x32xf32> to vector<64x4xf32>
    %c256_363 = arith.constant 256 : index
    %c16_364 = arith.constant 16 : index
    %778 = vector.load %arg10[%c256_363, %c16_364] : memref<512x32xf32, #tpu.memory_space<vmem>>, vector<64x4xf32>
    tpu.vector_store %arg10[%c256_363, %c16_364], %777 {strides = array<i32>} : memref<512x32xf32, #tpu.memory_space<vmem>>, vector<64x4xf32>,
    %779 = vector.extract_strided_slice %758 {offsets = [20, 0], sizes = [4, 64], strides = [1, 1]} : vector<32x64xf32> to vector<4x64xf32>
    %c20_365 = arith.constant 20 : index
    %c320_366 = arith.constant 320 : index
    %780 = vector.load %arg9[%c20_365, %c320_366] : memref<32x512xf32, #tpu.memory_space<vmem>>, vector<4x64xf32>
    tpu.vector_store %arg9[%c20_365, %c320_366], %779 {strides = array<i32>} : memref<32x512xf32, #tpu.memory_space<vmem>>, vector<4x64xf32>,
    %781 = vector.extract_strided_slice %738 {offsets = [0, 20], sizes = [64, 4], strides = [1, 1]} : vector<64x32xf32> to vector<64x4xf32>
    %c320_367 = arith.constant 320 : index
    %c20_368 = arith.constant 20 : index
    %782 = vector.load %arg10[%c320_367, %c20_368] : memref<512x32xf32, #tpu.memory_space<vmem>>, vector<64x4xf32>
    tpu.vector_store %arg10[%c320_367, %c20_368], %781 {strides = array<i32>} : memref<512x32xf32, #tpu.memory_space<vmem>>, vector<64x4xf32>,
    %783 = vector.extract_strided_slice %758 {offsets = [24, 0], sizes = [4, 64], strides = [1, 1]} : vector<32x64xf32> to vector<4x64xf32>
    %c24_369 = arith.constant 24 : index
    %c384_370 = arith.constant 384 : index
    %784 = vector.load %arg9[%c24_369, %c384_370] : memref<32x512xf32, #tpu.memory_space<vmem>>, vector<4x64xf32>
    tpu.vector_store %arg9[%c24_369, %c384_370], %783 {strides = array<i32>} : memref<32x512xf32, #tpu.memory_space<vmem>>, vector<4x64xf32>,
    %785 = vector.extract_strided_slice %738 {offsets = [0, 24], sizes = [64, 4], strides = [1, 1]} : vector<64x32xf32> to vector<64x4xf32>
    %c384_371 = arith.constant 384 : index
    %c24_372 = arith.constant 24 : index
    %786 = vector.load %arg10[%c384_371, %c24_372] : memref<512x32xf32, #tpu.memory_space<vmem>>, vector<64x4xf32>
    tpu.vector_store %arg10[%c384_371, %c24_372], %785 {strides = array<i32>} : memref<512x32xf32, #tpu.memory_space<vmem>>, vector<64x4xf32>,
    %787 = vector.extract_strided_slice %758 {offsets = [28, 0], sizes = [4, 64], strides = [1, 1]} : vector<32x64xf32> to vector<4x64xf32>
    %c28_373 = arith.constant 28 : index
    %c448_374 = arith.constant 448 : index
    %788 = vector.load %arg9[%c28_373, %c448_374] : memref<32x512xf32, #tpu.memory_space<vmem>>, vector<4x64xf32>
    tpu.vector_store %arg9[%c28_373, %c448_374], %787 {strides = array<i32>} : memref<32x512xf32, #tpu.memory_space<vmem>>, vector<4x64xf32>,
    %789 = vector.extract_strided_slice %738 {offsets = [0, 28], sizes = [64, 4], strides = [1, 1]} : vector<64x32xf32> to vector<64x4xf32>
    %c448_375 = arith.constant 448 : index
    %c28_376 = arith.constant 28 : index
    %790 = vector.load %arg10[%c448_375, %c28_376] : memref<512x32xf32, #tpu.memory_space<vmem>>, vector<64x4xf32>
    tpu.vector_store %arg10[%c448_375, %c28_376], %789 {strides = array<i32>} : memref<512x32xf32, #tpu.memory_space<vmem>>, vector<64x4xf32>,
    %c0_377 = arith.constant 0 : index
    %c0_378 = arith.constant 0 : index
    %791 = vector.load %arg9[%c0_377, %c0_378] : memref<32x512xf32, #tpu.memory_space<vmem>>, vector<32x512xf32>
    %cst_379 = arith.constant dense<0.000000e+00> : vector<64x512xf32>
    %792 = tpu.matmul %737, %791, %cst_379 {dimension_numbers = #tpu.dot_dimension_numbers<[1], [0], [0], [1], [0, 0, 1, 1], [], []>} : vector<64x32xf32>, vector<32x512xf32>, vector<64x512xf32> -> vector<64x512xf32>
    %cst_380 = arith.constant dense<0xFF800000> : vector<512xf32>
    %793 = vector.multi_reduction <maximumf>, %792, %cst_380 [0] : vector<64x512xf32> to vector<512xf32>
    %794 = vector.shape_cast %793 : vector<512xf32> to vector<1x512xf32>
    %795 = vector.extract_strided_slice %794 {offsets = [0, 0], sizes = [1, 64], strides = [1, 1]} : vector<1x512xf32> to vector<1x64xf32>
    %796 = vector.shape_cast %795 : vector<1x64xf32> to vector<1x1x64xf32>
    %cst_381 = arith.constant dense<0xFF800000> : vector<1xf32>
    %797 = vector.multi_reduction <maximumf>, %796, %cst_381 [1, 2] : vector<1x1x64xf32> to vector<1xf32>
    %798 = vector.shape_cast %797 : vector<1xf32> to vector<1x1x1xf32>
    %799 = vector.extract %798[0, 0, 0] : f32 from vector<1x1x1xf32>
    %800 = vector.broadcast %799 : f32 to vector<1x1xf32>
    %801 = vector.shape_cast %800 : vector<1x1xf32> to vector<1x1xf32>
    %802 = vector.broadcast %801 : vector<1x1xf32> to vector<1x64xf32>
    %c0_382 = arith.constant 0 : index
    %c0_383 = arith.constant 0 : index
    %803 = vector.load %arg12[%c0_382, %c0_383] : memref<1x512xf32, #tpu.memory_space<vmem>>, vector<1x64xf32>
    tpu.vector_store %arg12[%c0_382, %c0_383], %802 {strides = array<i32>} : memref<1x512xf32, #tpu.memory_space<vmem>>, vector<1x64xf32>,
    %804 = vector.extract_strided_slice %794 {offsets = [0, 64], sizes = [1, 64], strides = [1, 1]} : vector<1x512xf32> to vector<1x64xf32>
    %805 = vector.shape_cast %804 : vector<1x64xf32> to vector<1x1x64xf32>
    %cst_384 = arith.constant dense<0xFF800000> : vector<1xf32>
    %806 = vector.multi_reduction <maximumf>, %805, %cst_384 [1, 2] : vector<1x1x64xf32> to vector<1xf32>
    %807 = vector.shape_cast %806 : vector<1xf32> to vector<1x1x1xf32>
    %808 = vector.extract %807[0, 0, 0] : f32 from vector<1x1x1xf32>
    %809 = vector.broadcast %808 : f32 to vector<1x1xf32>
    %810 = vector.shape_cast %809 : vector<1x1xf32> to vector<1x1xf32>
    %811 = vector.broadcast %810 : vector<1x1xf32> to vector<1x64xf32>
    %c0_385 = arith.constant 0 : index
    %c64_386 = arith.constant 64 : index
    %812 = vector.load %arg12[%c0_385, %c64_386] : memref<1x512xf32, #tpu.memory_space<vmem>>, vector<1x64xf32>
    tpu.vector_store %arg12[%c0_385, %c64_386], %811 {strides = array<i32>} : memref<1x512xf32, #tpu.memory_space<vmem>>, vector<1x64xf32>,
    %813 = vector.extract_strided_slice %794 {offsets = [0, 128], sizes = [1, 64], strides = [1, 1]} : vector<1x512xf32> to vector<1x64xf32>
    %814 = vector.shape_cast %813 : vector<1x64xf32> to vector<1x1x64xf32>
    %cst_387 = arith.constant dense<0xFF800000> : vector<1xf32>
    %815 = vector.multi_reduction <maximumf>, %814, %cst_387 [1, 2] : vector<1x1x64xf32> to vector<1xf32>
    %816 = vector.shape_cast %815 : vector<1xf32> to vector<1x1x1xf32>
    %817 = vector.extract %816[0, 0, 0] : f32 from vector<1x1x1xf32>
    %818 = vector.broadcast %817 : f32 to vector<1x1xf32>
    %819 = vector.shape_cast %818 : vector<1x1xf32> to vector<1x1xf32>
    %820 = vector.broadcast %819 : vector<1x1xf32> to vector<1x64xf32>
    %c0_388 = arith.constant 0 : index
    %c128_389 = arith.constant 128 : index
    %821 = vector.load %arg12[%c0_388, %c128_389] : memref<1x512xf32, #tpu.memory_space<vmem>>, vector<1x64xf32>
    tpu.vector_store %arg12[%c0_388, %c128_389], %820 {strides = array<i32>} : memref<1x512xf32, #tpu.memory_space<vmem>>, vector<1x64xf32>,
    %822 = vector.extract_strided_slice %794 {offsets = [0, 192], sizes = [1, 64], strides = [1, 1]} : vector<1x512xf32> to vector<1x64xf32>
    %823 = vector.shape_cast %822 : vector<1x64xf32> to vector<1x1x64xf32>
    %cst_390 = arith.constant dense<0xFF800000> : vector<1xf32>
    %824 = vector.multi_reduction <maximumf>, %823, %cst_390 [1, 2] : vector<1x1x64xf32> to vector<1xf32>
    %825 = vector.shape_cast %824 : vector<1xf32> to vector<1x1x1xf32>
    %826 = vector.extract %825[0, 0, 0] : f32 from vector<1x1x1xf32>
    %827 = vector.broadcast %826 : f32 to vector<1x1xf32>
    %828 = vector.shape_cast %827 : vector<1x1xf32> to vector<1x1xf32>
    %829 = vector.broadcast %828 : vector<1x1xf32> to vector<1x64xf32>
    %c0_391 = arith.constant 0 : index
    %c192_392 = arith.constant 192 : index
    %830 = vector.load %arg12[%c0_391, %c192_392] : memref<1x512xf32, #tpu.memory_space<vmem>>, vector<1x64xf32>
    tpu.vector_store %arg12[%c0_391, %c192_392], %829 {strides = array<i32>} : memref<1x512xf32, #tpu.memory_space<vmem>>, vector<1x64xf32>,
    %831 = vector.extract_strided_slice %794 {offsets = [0, 256], sizes = [1, 64], strides = [1, 1]} : vector<1x512xf32> to vector<1x64xf32>
    %832 = vector.shape_cast %831 : vector<1x64xf32> to vector<1x1x64xf32>
    %cst_393 = arith.constant dense<0xFF800000> : vector<1xf32>
    %833 = vector.multi_reduction <maximumf>, %832, %cst_393 [1, 2] : vector<1x1x64xf32> to vector<1xf32>
    %834 = vector.shape_cast %833 : vector<1xf32> to vector<1x1x1xf32>
    %835 = vector.extract %834[0, 0, 0] : f32 from vector<1x1x1xf32>
    %836 = vector.broadcast %835 : f32 to vector<1x1xf32>
    %837 = vector.shape_cast %836 : vector<1x1xf32> to vector<1x1xf32>
    %838 = vector.broadcast %837 : vector<1x1xf32> to vector<1x64xf32>
    %c0_394 = arith.constant 0 : index
    %c256_395 = arith.constant 256 : index
    %839 = vector.load %arg12[%c0_394, %c256_395] : memref<1x512xf32, #tpu.memory_space<vmem>>, vector<1x64xf32>
    tpu.vector_store %arg12[%c0_394, %c256_395], %838 {strides = array<i32>} : memref<1x512xf32, #tpu.memory_space<vmem>>, vector<1x64xf32>,
    %840 = vector.extract_strided_slice %794 {offsets = [0, 320], sizes = [1, 64], strides = [1, 1]} : vector<1x512xf32> to vector<1x64xf32>
    %841 = vector.shape_cast %840 : vector<1x64xf32> to vector<1x1x64xf32>
    %cst_396 = arith.constant dense<0xFF800000> : vector<1xf32>
    %842 = vector.multi_reduction <maximumf>, %841, %cst_396 [1, 2] : vector<1x1x64xf32> to vector<1xf32>
    %843 = vector.shape_cast %842 : vector<1xf32> to vector<1x1x1xf32>
    %844 = vector.extract %843[0, 0, 0] : f32 from vector<1x1x1xf32>
    %845 = vector.broadcast %844 : f32 to vector<1x1xf32>
    %846 = vector.shape_cast %845 : vector<1x1xf32> to vector<1x1xf32>
    %847 = vector.broadcast %846 : vector<1x1xf32> to vector<1x64xf32>
    %c0_397 = arith.constant 0 : index
    %c320_398 = arith.constant 320 : index
    %848 = vector.load %arg12[%c0_397, %c320_398] : memref<1x512xf32, #tpu.memory_space<vmem>>, vector<1x64xf32>
    tpu.vector_store %arg12[%c0_397, %c320_398], %847 {strides = array<i32>} : memref<1x512xf32, #tpu.memory_space<vmem>>, vector<1x64xf32>,
    %849 = vector.extract_strided_slice %794 {offsets = [0, 384], sizes = [1, 64], strides = [1, 1]} : vector<1x512xf32> to vector<1x64xf32>
    %850 = vector.shape_cast %849 : vector<1x64xf32> to vector<1x1x64xf32>
    %cst_399 = arith.constant dense<0xFF800000> : vector<1xf32>
    %851 = vector.multi_reduction <maximumf>, %850, %cst_399 [1, 2] : vector<1x1x64xf32> to vector<1xf32>
    %852 = vector.shape_cast %851 : vector<1xf32> to vector<1x1x1xf32>
    %853 = vector.extract %852[0, 0, 0] : f32 from vector<1x1x1xf32>
    %854 = vector.broadcast %853 : f32 to vector<1x1xf32>
    %855 = vector.shape_cast %854 : vector<1x1xf32> to vector<1x1xf32>
    %856 = vector.broadcast %855 : vector<1x1xf32> to vector<1x64xf32>
    %c0_400 = arith.constant 0 : index
    %c384_401 = arith.constant 384 : index
    %857 = vector.load %arg12[%c0_400, %c384_401] : memref<1x512xf32, #tpu.memory_space<vmem>>, vector<1x64xf32>
    tpu.vector_store %arg12[%c0_400, %c384_401], %856 {strides = array<i32>} : memref<1x512xf32, #tpu.memory_space<vmem>>, vector<1x64xf32>,
    %858 = vector.extract_strided_slice %794 {offsets = [0, 448], sizes = [1, 64], strides = [1, 1]} : vector<1x512xf32> to vector<1x64xf32>
    %859 = vector.shape_cast %858 : vector<1x64xf32> to vector<1x1x64xf32>
    %cst_402 = arith.constant dense<0xFF800000> : vector<1xf32>
    %860 = vector.multi_reduction <maximumf>, %859, %cst_402 [1, 2] : vector<1x1x64xf32> to vector<1xf32>
    %861 = vector.shape_cast %860 : vector<1xf32> to vector<1x1x1xf32>
    %862 = vector.extract %861[0, 0, 0] : f32 from vector<1x1x1xf32>
    %863 = vector.broadcast %862 : f32 to vector<1x1xf32>
    %864 = vector.shape_cast %863 : vector<1x1xf32> to vector<1x1xf32>
    %865 = vector.broadcast %864 : vector<1x1xf32> to vector<1x64xf32>
    %c0_403 = arith.constant 0 : index
    %c448_404 = arith.constant 448 : index
    %866 = vector.load %arg12[%c0_403, %c448_404] : memref<1x512xf32, #tpu.memory_space<vmem>>, vector<1x64xf32>
    tpu.vector_store %arg12[%c0_403, %c448_404], %865 {strides = array<i32>} : memref<1x512xf32, #tpu.memory_space<vmem>>, vector<1x64xf32>,
    %c0_405 = arith.constant 0 : index
    %c0_406 = arith.constant 0 : index
    %867 = vector.load %arg12[%c0_405, %c0_406] : memref<1x512xf32, #tpu.memory_space<vmem>>, vector<1x512xf32>
    %868 = vector.broadcast %867 : vector<1x512xf32> to vector<64x512xf32>
    %869 = arith.subf %792, %868 : vector<64x512xf32>
    %870 = math.exp %869 : vector<64x512xf32>
    %cst_407 = arith.constant dense<0.000000e+00> : vector<512xf32>
    %871 = vector.multi_reduction <add>, %870, %cst_407 [0] : vector<64x512xf32> to vector<512xf32>
    %872 = vector.shape_cast %871 : vector<512xf32> to vector<1x512xf32>
    %873 = vector.extract_strided_slice %872 {offsets = [0, 0], sizes = [1, 64], strides = [1, 1]} : vector<1x512xf32> to vector<1x64xf32>
    %874 = vector.shape_cast %873 : vector<1x64xf32> to vector<1x1x64xf32>
    %cst_408 = arith.constant dense<0.000000e+00> : vector<1xf32>
    %875 = vector.multi_reduction <add>, %874, %cst_408 [1, 2] : vector<1x1x64xf32> to vector<1xf32>
    %876 = vector.shape_cast %875 : vector<1xf32> to vector<1x1x1xf32>
    %877 = vector.extract %876[0, 0, 0] : f32 from vector<1x1x1xf32>
    %878 = vector.broadcast %877 : f32 to vector<1x1xf32>
    %879 = vector.shape_cast %878 : vector<1x1xf32> to vector<1x1xf32>
    %880 = vector.broadcast %879 : vector<1x1xf32> to vector<1x4xf32>
    %c0_409 = arith.constant 0 : index
    %c0_410 = arith.constant 0 : index
    %881 = vector.load %arg13[%c0_409, %c0_410] : memref<1x32xf32, #tpu.memory_space<vmem>>, vector<1x4xf32>
    tpu.vector_store %arg13[%c0_409, %c0_410], %880 {strides = array<i32>} : memref<1x32xf32, #tpu.memory_space<vmem>>, vector<1x4xf32>,
    %882 = vector.extract_strided_slice %872 {offsets = [0, 64], sizes = [1, 64], strides = [1, 1]} : vector<1x512xf32> to vector<1x64xf32>
    %883 = vector.shape_cast %882 : vector<1x64xf32> to vector<1x1x64xf32>
    %cst_411 = arith.constant dense<0.000000e+00> : vector<1xf32>
    %884 = vector.multi_reduction <add>, %883, %cst_411 [1, 2] : vector<1x1x64xf32> to vector<1xf32>
    %885 = vector.shape_cast %884 : vector<1xf32> to vector<1x1x1xf32>
    %886 = vector.extract %885[0, 0, 0] : f32 from vector<1x1x1xf32>
    %887 = vector.broadcast %886 : f32 to vector<1x1xf32>
    %888 = vector.shape_cast %887 : vector<1x1xf32> to vector<1x1xf32>
    %889 = vector.broadcast %888 : vector<1x1xf32> to vector<1x4xf32>
    %c0_412 = arith.constant 0 : index
    %c4_413 = arith.constant 4 : index
    %890 = vector.load %arg13[%c0_412, %c4_413] : memref<1x32xf32, #tpu.memory_space<vmem>>, vector<1x4xf32>
    tpu.vector_store %arg13[%c0_412, %c4_413], %889 {strides = array<i32>} : memref<1x32xf32, #tpu.memory_space<vmem>>, vector<1x4xf32>,
    %891 = vector.extract_strided_slice %872 {offsets = [0, 128], sizes = [1, 64], strides = [1, 1]} : vector<1x512xf32> to vector<1x64xf32>
    %892 = vector.shape_cast %891 : vector<1x64xf32> to vector<1x1x64xf32>
    %cst_414 = arith.constant dense<0.000000e+00> : vector<1xf32>
    %893 = vector.multi_reduction <add>, %892, %cst_414 [1, 2] : vector<1x1x64xf32> to vector<1xf32>
    %894 = vector.shape_cast %893 : vector<1xf32> to vector<1x1x1xf32>
    %895 = vector.extract %894[0, 0, 0] : f32 from vector<1x1x1xf32>
    %896 = vector.broadcast %895 : f32 to vector<1x1xf32>
    %897 = vector.shape_cast %896 : vector<1x1xf32> to vector<1x1xf32>
    %898 = vector.broadcast %897 : vector<1x1xf32> to vector<1x4xf32>
    %c0_415 = arith.constant 0 : index
    %c8_416 = arith.constant 8 : index
    %899 = vector.load %arg13[%c0_415, %c8_416] : memref<1x32xf32, #tpu.memory_space<vmem>>, vector<1x4xf32>
    tpu.vector_store %arg13[%c0_415, %c8_416], %898 {strides = array<i32>} : memref<1x32xf32, #tpu.memory_space<vmem>>, vector<1x4xf32>,
    %900 = vector.extract_strided_slice %872 {offsets = [0, 192], sizes = [1, 64], strides = [1, 1]} : vector<1x512xf32> to vector<1x64xf32>
    %901 = vector.shape_cast %900 : vector<1x64xf32> to vector<1x1x64xf32>
    %cst_417 = arith.constant dense<0.000000e+00> : vector<1xf32>
    %902 = vector.multi_reduction <add>, %901, %cst_417 [1, 2] : vector<1x1x64xf32> to vector<1xf32>
    %903 = vector.shape_cast %902 : vector<1xf32> to vector<1x1x1xf32>
    %904 = vector.extract %903[0, 0, 0] : f32 from vector<1x1x1xf32>
    %905 = vector.broadcast %904 : f32 to vector<1x1xf32>
    %906 = vector.shape_cast %905 : vector<1x1xf32> to vector<1x1xf32>
    %907 = vector.broadcast %906 : vector<1x1xf32> to vector<1x4xf32>
    %c0_418 = arith.constant 0 : index
    %c12_419 = arith.constant 12 : index
    %908 = vector.load %arg13[%c0_418, %c12_419] : memref<1x32xf32, #tpu.memory_space<vmem>>, vector<1x4xf32>
    tpu.vector_store %arg13[%c0_418, %c12_419], %907 {strides = array<i32>} : memref<1x32xf32, #tpu.memory_space<vmem>>, vector<1x4xf32>,
    %909 = vector.extract_strided_slice %872 {offsets = [0, 256], sizes = [1, 64], strides = [1, 1]} : vector<1x512xf32> to vector<1x64xf32>
    %910 = vector.shape_cast %909 : vector<1x64xf32> to vector<1x1x64xf32>
    %cst_420 = arith.constant dense<0.000000e+00> : vector<1xf32>
    %911 = vector.multi_reduction <add>, %910, %cst_420 [1, 2] : vector<1x1x64xf32> to vector<1xf32>
    %912 = vector.shape_cast %911 : vector<1xf32> to vector<1x1x1xf32>
    %913 = vector.extract %912[0, 0, 0] : f32 from vector<1x1x1xf32>
    %914 = vector.broadcast %913 : f32 to vector<1x1xf32>
    %915 = vector.shape_cast %914 : vector<1x1xf32> to vector<1x1xf32>
    %916 = vector.broadcast %915 : vector<1x1xf32> to vector<1x4xf32>
    %c0_421 = arith.constant 0 : index
    %c16_422 = arith.constant 16 : index
    %917 = vector.load %arg13[%c0_421, %c16_422] : memref<1x32xf32, #tpu.memory_space<vmem>>, vector<1x4xf32>
    tpu.vector_store %arg13[%c0_421, %c16_422], %916 {strides = array<i32>} : memref<1x32xf32, #tpu.memory_space<vmem>>, vector<1x4xf32>,
    %918 = vector.extract_strided_slice %872 {offsets = [0, 320], sizes = [1, 64], strides = [1, 1]} : vector<1x512xf32> to vector<1x64xf32>
    %919 = vector.shape_cast %918 : vector<1x64xf32> to vector<1x1x64xf32>
    %cst_423 = arith.constant dense<0.000000e+00> : vector<1xf32>
    %920 = vector.multi_reduction <add>, %919, %cst_423 [1, 2] : vector<1x1x64xf32> to vector<1xf32>
    %921 = vector.shape_cast %920 : vector<1xf32> to vector<1x1x1xf32>
    %922 = vector.extract %921[0, 0, 0] : f32 from vector<1x1x1xf32>
    %923 = vector.broadcast %922 : f32 to vector<1x1xf32>
    %924 = vector.shape_cast %923 : vector<1x1xf32> to vector<1x1xf32>
    %925 = vector.broadcast %924 : vector<1x1xf32> to vector<1x4xf32>
    %c0_424 = arith.constant 0 : index
    %c20_425 = arith.constant 20 : index
    %926 = vector.load %arg13[%c0_424, %c20_425] : memref<1x32xf32, #tpu.memory_space<vmem>>, vector<1x4xf32>
    tpu.vector_store %arg13[%c0_424, %c20_425], %925 {strides = array<i32>} : memref<1x32xf32, #tpu.memory_space<vmem>>, vector<1x4xf32>,
    %927 = vector.extract_strided_slice %872 {offsets = [0, 384], sizes = [1, 64], strides = [1, 1]} : vector<1x512xf32> to vector<1x64xf32>
    %928 = vector.shape_cast %927 : vector<1x64xf32> to vector<1x1x64xf32>
    %cst_426 = arith.constant dense<0.000000e+00> : vector<1xf32>
    %929 = vector.multi_reduction <add>, %928, %cst_426 [1, 2] : vector<1x1x64xf32> to vector<1xf32>
    %930 = vector.shape_cast %929 : vector<1xf32> to vector<1x1x1xf32>
    %931 = vector.extract %930[0, 0, 0] : f32 from vector<1x1x1xf32>
    %932 = vector.broadcast %931 : f32 to vector<1x1xf32>
    %933 = vector.shape_cast %932 : vector<1x1xf32> to vector<1x1xf32>
    %934 = vector.broadcast %933 : vector<1x1xf32> to vector<1x4xf32>
    %c0_427 = arith.constant 0 : index
    %c24_428 = arith.constant 24 : index
    %935 = vector.load %arg13[%c0_427, %c24_428] : memref<1x32xf32, #tpu.memory_space<vmem>>, vector<1x4xf32>
    tpu.vector_store %arg13[%c0_427, %c24_428], %934 {strides = array<i32>} : memref<1x32xf32, #tpu.memory_space<vmem>>, vector<1x4xf32>,
    %936 = vector.extract_strided_slice %872 {offsets = [0, 448], sizes = [1, 64], strides = [1, 1]} : vector<1x512xf32> to vector<1x64xf32>
    %937 = vector.shape_cast %936 : vector<1x64xf32> to vector<1x1x64xf32>
    %cst_429 = arith.constant dense<0.000000e+00> : vector<1xf32>
    %938 = vector.multi_reduction <add>, %937, %cst_429 [1, 2] : vector<1x1x64xf32> to vector<1xf32>
    %939 = vector.shape_cast %938 : vector<1xf32> to vector<1x1x1xf32>
    %940 = vector.extract %939[0, 0, 0] : f32 from vector<1x1x1xf32>
    %941 = vector.broadcast %940 : f32 to vector<1x1xf32>
    %942 = vector.shape_cast %941 : vector<1x1xf32> to vector<1x1xf32>
    %943 = vector.broadcast %942 : vector<1x1xf32> to vector<1x4xf32>
    %c0_430 = arith.constant 0 : index
    %c28_431 = arith.constant 28 : index
    %944 = vector.load %arg13[%c0_430, %c28_431] : memref<1x32xf32, #tpu.memory_space<vmem>>, vector<1x4xf32>
    tpu.vector_store %arg13[%c0_430, %c28_431], %943 {strides = array<i32>} : memref<1x32xf32, #tpu.memory_space<vmem>>, vector<1x4xf32>,
    %c0_432 = arith.constant 0 : index
    %c0_433 = arith.constant 0 : index
    %945 = vector.load %arg13[%c0_432, %c0_433] : memref<1x32xf32, #tpu.memory_space<vmem>>, vector<1x32xf32>
    %946 = tpu.reciprocal %945 {approx = true} : vector<1x32xf32> -> vector<1x32xf32>
    %c0_434 = arith.constant 0 : index
    %c0_435 = arith.constant 0 : index
    %947 = vector.load %arg10[%c0_434, %c0_435] : memref<512x32xf32, #tpu.memory_space<vmem>>, vector<512x32xf32>
    %cst_436 = arith.constant dense<0.000000e+00> : vector<64x32xf32>
    %948 = tpu.matmul %870, %947, %cst_436 {dimension_numbers = #tpu.dot_dimension_numbers<[1], [0], [0], [1], [0, 0, 1, 1], [], []>} : vector<64x512xf32>, vector<512x32xf32>, vector<64x32xf32> -> vector<64x32xf32>
    %949 = vector.broadcast %946 : vector<1x32xf32> to vector<64x32xf32>
    %950 = arith.mulf %948, %949 : vector<64x32xf32>
    %c0_437 = arith.constant 0 : index
    %c96 = arith.constant 96 : index
    %951 = vector.load %arg11[%c0_437, %c96] : memref<64x128xf32, #tpu.memory_space<vmem>>, vector<64x32xf32>
    tpu.vector_store %arg11[%c0_437, %c96], %950 {strides = array<i32>} : memref<64x128xf32, #tpu.memory_space<vmem>>, vector<64x32xf32>,
    %c0_438 = arith.constant 0 : index
    %c0_439 = arith.constant 0 : index
    %952 = vector.load %arg11[%c0_438, %c0_439] : memref<64x128xf32, #tpu.memory_space<vmem>>, vector<64x128xf32>
    %c0_440 = arith.constant 0 : index
    %c0_441 = arith.constant 0 : index
    %953 = vector.load %arg4[%c0_440, %c0_441] : memref<128x16xf32, #tpu.memory_space<vmem>>, vector<128x16xf32>
    %cst_442 = arith.constant dense<0.000000e+00> : vector<64x16xf32>
    %954 = tpu.matmul %952, %953, %cst_442 {dimension_numbers = #tpu.dot_dimension_numbers<[1], [0], [0], [1], [0, 0, 1, 1], [], []>} : vector<64x128xf32>, vector<128x16xf32>, vector<64x16xf32> -> vector<64x16xf32>
    %c0_443 = arith.constant 0 : index
    %c0_444 = arith.constant 0 : index
    %955 = vector.load %arg5[%c0_443, %c0_444] : memref<1x16xf32, #tpu.memory_space<vmem>>, vector<1x16xf32>
    %956 = vector.broadcast %955 : vector<1x16xf32> to vector<64x16xf32>
    %957 = arith.addf %954, %956 : vector<64x16xf32>
    %c0_445 = arith.constant 0 : index
    %c0_446 = arith.constant 0 : index
    %958 = vector.load %arg6[%c0_445, %c0_446] : memref<64x16xf32, #tpu.memory_space<vmem>>, vector<64x16xf32>
    tpu.vector_store %arg6[%c0_445, %c0_446], %957 {strides = array<i32>} : memref<64x16xf32, #tpu.memory_space<vmem>>, vector<64x16xf32>,
    return
  }
}

</mosaic_0001>

<llo_original>
// kernel: downsampled_multihead_attention_2d.1
$region0: #{downsampled_multihead_attention_2d.1}
  #allocation0 [shape = 'u32[]', space=smem, size = 0x4, offset = 0x4, fixed_abs, tag = 'smem constant byte address 0x4 - core index']
  #allocation1 [shape = 'u32[72,128]{1,0:T(1,128)}', space=vmem, size = 0x9000, scoped, tag = 'internal scratch']
  #allocation2 [shape = 'f32[256,64]{1,0:T(8,128)}', space=vmem, size = 0x20000, scoped, tag = 'scratch operand']
  #allocation3 [shape = 'f32[32,256]{1,0:T(8,128)}', space=vmem, size = 0x8000, scoped, tag = 'scratch operand']
  #allocation4 [shape = 'f32[32,512]{1,0:T(8,128)}', space=vmem, size = 0x10000, scoped, tag = 'scratch operand']
  #allocation5 [shape = 'f32[512,32]{1,0:T(8,128)}', space=vmem, size = 0x40000, scoped, tag = 'scratch operand']
  #allocation6 [shape = 'f32[64,128]{1,0:T(8,128)}', space=vmem, size = 0x8000, scoped, tag = 'scratch operand']
  #allocation7 [shape = 'f32[1,512]{1,0:T(1,128)}', space=vmem, size = 0x800, scoped, tag = 'scratch operand']
  #allocation8 [shape = 'f32[1,32]{1,0:T(1,128)}', space=vmem, size = 0x200, scoped, tag = 'scratch operand']
  %s0 = inlined_call_operand.vmem [shape: f32[256,17], index: 0, kind: input, shape index: {}]
  %s1 = inlined_call_operand.vmem [shape: f32[17,256], index: 1, kind: input, shape index: {}]
  %s2 = inlined_call_operand.vmem [shape: f32[17,64], index: 2, kind: input, shape index: {}]
  %s3 = inlined_call_operand.vmem [shape: f32[32,17], index: 3, kind: input, shape index: {}]
  %s4 = inlined_call_operand.vmem [shape: f32[128,16], index: 4, kind: input, shape index: {}]
  %s5 = inlined_call_operand.vmem [shape: f32[1,16], index: 5, kind: input, shape index: {}]
  %s6 = inlined_call_operand.vmem [shape: f32[64,16], index: 6, kind: output, shape index: {}]
  %s7 = sld [smem:[#allocation0]]
  $region34: #{downsampled_multihead_attention_2d.1} parent=0
    _
  %s9 = ssub.s32 1, %s7
  %s10 = scalar_select 0, %s9, %s7
  // Predicated region
  $region2: #{downsampled_multihead_attention_2d.1} parent=0 // pred_check
    _
  $region3: #{downsampled_multihead_attention_2d.1} parent=0 // pred_check_branch
    %12 = sbr.rel (0) target = $region5
  $region4: #{downsampled_multihead_attention_2d.1} parent=0 // pred_region
    _
  $region5: #{downsampled_multihead_attention_2d.1} parent=0 // pred_fallthru
    _
  // Predicated region
  $region6: #{downsampled_multihead_attention_2d.1} parent=0 // pred_check
    _
  $region7: #{downsampled_multihead_attention_2d.1} parent=0 // pred_check_branch
    %14 = sbr.rel (0) target = $region9
  $region8: #{downsampled_multihead_attention_2d.1} parent=0 // pred_region
    _
  $region9: #{downsampled_multihead_attention_2d.1} parent=0 // pred_fallthru
    _
  // Predicated region
  $region10: #{downsampled_multihead_attention_2d.1} parent=0 // pred_check
    _
  $region11: #{downsampled_multihead_attention_2d.1} parent=0 // pred_check_branch
    %16 = sbr.rel (0) target = $region13
  $region12: #{downsampled_multihead_attention_2d.1} parent=0 // pred_region
    _
  $region13: #{downsampled_multihead_attention_2d.1} parent=0 // pred_fallthru
    _
  // Predicated region
  $region14: #{downsampled_multihead_attention_2d.1} parent=0 // pred_check
    _
  $region15: #{downsampled_multihead_attention_2d.1} parent=0 // pred_check_branch
    %18 = sbr.rel (0) target = $region17
  $region16: #{downsampled_multihead_attention_2d.1} parent=0 // pred_region
    _
  $region17: #{downsampled_multihead_attention_2d.1} parent=0 // pred_fallthru
    _
  // Predicated region
  $region18: #{downsampled_multihead_attention_2d.1} parent=0 // pred_check
    _
  $region19: #{downsampled_multihead_attention_2d.1} parent=0 // pred_check_branch
    %20 = sbr.rel (0) target = $region21
  $region20: #{downsampled_multihead_attention_2d.1} parent=0 // pred_region
    _
  $region21: #{downsampled_multihead_attention_2d.1} parent=0 // pred_fallthru
    _
  // Predicated region
  $region22: #{downsampled_multihead_attention_2d.1} parent=0 // pred_check
    _
  $region23: #{downsampled_multihead_attention_2d.1} parent=0 // pred_check_branch
    %22 = sbr.rel (0) target = $region25
  $region24: #{downsampled_multihead_attention_2d.1} parent=0 // pred_region
    _
  $region25: #{downsampled_multihead_attention_2d.1} parent=0 // pred_fallthru
    _
  %v23 = vld [vmem:[%s0] sm:$0xff]
  %v24 = vld [vmem:[%s0 + $0x8] sm:$0xff]
  %v25 = vld [vmem:[%s0 + $0x10] sm:$0xff]
  %v26 = vld [vmem:[%s0 + $0x18] sm:$0xff]
  %v27 = vld [vmem:[%s0 + $0x20] sm:$0xff]
  %v28 = vld [vmem:[%s0 + $0x28] sm:$0xff]
  %v29 = vld [vmem:[%s0 + $0x30] sm:$0xff]
  %v30 = vld [vmem:[%s0 + $0x38] sm:$0xff]
  %v31 = vld [vmem:[%s0 + $0x40] sm:$0xff]
  %v32 = vld [vmem:[%s0 + $0x48] sm:$0xff]
  %v33 = vld [vmem:[%s0 + $0x50] sm:$0xff]
  %v34 = vld [vmem:[%s0 + $0x58] sm:$0xff]
  %v35 = vld [vmem:[%s0 + $0x60] sm:$0xff]
  %v36 = vld [vmem:[%s0 + $0x68] sm:$0xff]
  %v37 = vld [vmem:[%s0 + $0x70] sm:$0xff]
  %v38 = vld [vmem:[%s0 + $0x78] sm:$0xff]
  %v39 = vld [vmem:[%s0 + $0x80] sm:$0xff]
  %v40 = vld [vmem:[%s0 + $0x88] sm:$0xff]
  %v41 = vld [vmem:[%s0 + $0x90] sm:$0xff]
  %v42 = vld [vmem:[%s0 + $0x98] sm:$0xff]
  %v43 = vld [vmem:[%s0 + $0xa0] sm:$0xff]
  %v44 = vld [vmem:[%s0 + $0xa8] sm:$0xff]
  %v45 = vld [vmem:[%s0 + $0xb0] sm:$0xff]
  %v46 = vld [vmem:[%s0 + $0xb8] sm:$0xff]
  %v47 = vld [vmem:[%s0 + $0xc0] sm:$0xff]
  %v48 = vld [vmem:[%s0 + $0xc8] sm:$0xff]
  %v49 = vld [vmem:[%s0 + $0xd0] sm:$0xff]
  %v50 = vld [vmem:[%s0 + $0xd8] sm:$0xff]
  %v51 = vld [vmem:[%s0 + $0xe0] sm:$0xff]
  %v52 = vld [vmem:[%s0 + $0xe8] sm:$0xff]
  %v53 = vld [vmem:[%s0 + $0xf0] sm:$0xff]
  %v54 = vld [vmem:[%s0 + $0xf8] sm:$0xff]
  %v55 = vld [vmem:[%s2] sm:$0xff]
  %v56 = vld [vmem:[%s2 + $0x8] sm:$0xff]
  %v57 = vld [vmem:[%s2 + $0x10] sm:$0x1]
  %vm58 = vcmask 138240
  %v60 = vsel %vm58, %v23, 0
  %v63 = vsel %vm58, %v24, 0
  %v66 = vsel %vm58, %v25, 0
  %v69 = vsel %vm58, %v26, 0
  %v72 = vsel %vm58, %v27, 0
  %v75 = vsel %vm58, %v28, 0
  %v78 = vsel %vm58, %v29, 0
  %v81 = vsel %vm58, %v30, 0
  %v84 = vsel %vm58, %v31, 0
  %v87 = vsel %vm58, %v32, 0
  %v90 = vsel %vm58, %v33, 0
  %v93 = vsel %vm58, %v34, 0
  %v96 = vsel %vm58, %v35, 0
  %v99 = vsel %vm58, %v36, 0
  %v102 = vsel %vm58, %v37, 0
  %v105 = vsel %vm58, %v38, 0
  %v108 = vsel %vm58, %v39, 0
  %v111 = vsel %vm58, %v40, 0
  %v114 = vsel %vm58, %v41, 0
  %v117 = vsel %vm58, %v42, 0
  %v120 = vsel %vm58, %v43, 0
  %v123 = vsel %vm58, %v44, 0
  %v126 = vsel %vm58, %v45, 0
  %v129 = vsel %vm58, %v46, 0
  %v132 = vsel %vm58, %v47, 0
  %v135 = vsel %vm58, %v48, 0
  %v138 = vsel %vm58, %v49, 0
  %v141 = vsel %vm58, %v50, 0
  %v144 = vsel %vm58, %v51, 0
  %v147 = vsel %vm58, %v52, 0
  %v150 = vsel %vm58, %v53, 0
  %v153 = vsel %vm58, %v54, 0
  %vm155 = vcmask 1040384
  %v157 = vsel %vm155, %v57, 0
  %159 = vmatpush.msra.mxu0 0.0
  %160 = vmatpush.msra.mxu0 0.0
  %161 = vmatpush.msra.mxu0 0.0
  %162 = vmatpush.msra.mxu0 0.0
  %163 = vmatpush.msra.mxu0 0.0
  %164 = vmatpush.msra.mxu0 0.0
  %165 = vmatpush.msra.mxu0 0.0
  %166 = vmatpush.msra.mxu0 0.0
  %167 = vmatpush.msra.mxu0 0.0
  %168 = vmatpush.msra.mxu0 0.0
  %169 = vmatpush.msra.mxu0 0.0
  %170 = vmatpush.msra.mxu0 0.0
  %171 = vmatpush.msra.mxu0 0.0
  %172 = vmatpush.msra.mxu0 %v157
  %173 = vmatpush.msra.mxu0 %v56
  %174 = vmatpush.msra.mxu0 %v55
  %175 = vmatmul.f32.gmra.mxu0 %v60
  %v176 = vpop.f32.mrf.mxu0
  %v177 = vadd.f32 0.0, %v176
  %178 = vmatmul.f32.gmra.mxu0 %v63
  %v179 = vpop.f32.mrf.mxu0
  %v180 = vadd.f32 0.0, %v179
  %181 = vmatmul.f32.gmra.mxu0 %v66
  %v182 = vpop.f32.mrf.mxu0
  %v183 = vadd.f32 0.0, %v182
  %184 = vmatmul.f32.gmra.mxu0 %v69
  %v185 = vpop.f32.mrf.mxu0
  %v186 = vadd.f32 0.0, %v185
  %187 = vmatmul.f32.gmra.mxu0 %v72
  %v188 = vpop.f32.mrf.mxu0
  %v189 = vadd.f32 0.0, %v188
  %190 = vmatmul.f32.gmra.mxu0 %v75
  %v191 = vpop.f32.mrf.mxu0
  %v192 = vadd.f32 0.0, %v191
  %193 = vmatmul.f32.gmra.mxu0 %v78
  %v194 = vpop.f32.mrf.mxu0
  %v195 = vadd.f32 0.0, %v194
  %196 = vmatmul.f32.gmra.mxu0 %v81
  %v197 = vpop.f32.mrf.mxu0
  %v198 = vadd.f32 0.0, %v197
  %199 = vmatmul.f32.gmra.mxu0 %v84
  %v200 = vpop.f32.mrf.mxu0
  %v201 = vadd.f32 0.0, %v200
  %202 = vmatmul.f32.gmra.mxu0 %v87
  %v203 = vpop.f32.mrf.mxu0
  %v204 = vadd.f32 0.0, %v203
  %205 = vmatmul.f32.gmra.mxu0 %v90
  %v206 = vpop.f32.mrf.mxu0
  %v207 = vadd.f32 0.0, %v206
  %208 = vmatmul.f32.gmra.mxu0 %v93
  %v209 = vpop.f32.mrf.mxu0
  %v210 = vadd.f32 0.0, %v209
  %211 = vmatmul.f32.gmra.mxu0 %v96
  %v212 = vpop.f32.mrf.mxu0
  %v213 = vadd.f32 0.0, %v212
  %214 = vmatmul.f32.gmra.mxu0 %v99
  %v215 = vpop.f32.mrf.mxu0
  %v216 = vadd.f32 0.0, %v215
  %217 = vmatmul.f32.gmra.mxu0 %v102
  %v218 = vpop.f32.mrf.mxu0
  %v219 = vadd.f32 0.0, %v218
  %220 = vmatmul.f32.gmra.mxu0 %v105
  %v221 = vpop.f32.mrf.mxu0
  %v222 = vadd.f32 0.0, %v221
  %223 = vmatmul.f32.gmra.mxu0 %v108
  %v224 = vpop.f32.mrf.mxu0
  %v225 = vadd.f32 0.0, %v224
  %226 = vmatmul.f32.gmra.mxu0 %v111
  %v227 = vpop.f32.mrf.mxu0
  %v228 = vadd.f32 0.0, %v227
  %229 = vmatmul.f32.gmra.mxu0 %v114
  %v230 = vpop.f32.mrf.mxu0
  %v231 = vadd.f32 0.0, %v230
  %232 = vmatmul.f32.gmra.mxu0 %v117
  %v233 = vpop.f32.mrf.mxu0
  %v234 = vadd.f32 0.0, %v233
  %235 = vmatmul.f32.gmra.mxu0 %v120
  %v236 = vpop.f32.mrf.mxu0
  %v237 = vadd.f32 0.0, %v236
  %238 = vmatmul.f32.gmra.mxu0 %v123
  %v239 = vpop.f32.mrf.mxu0
  %v240 = vadd.f32 0.0, %v239
  %241 = vmatmul.f32.gmra.mxu0 %v126
  %v242 = vpop.f32.mrf.mxu0
  %v243 = vadd.f32 0.0, %v242
  %244 = vmatmul.f32.gmra.mxu0 %v129
  %v245 = vpop.f32.mrf.mxu0
  %v246 = vadd.f32 0.0, %v245
  %247 = vmatmul.f32.gmra.mxu0 %v132
  %v248 = vpop.f32.mrf.mxu0
  %v249 = vadd.f32 0.0, %v248
  %250 = vmatmul.f32.gmra.mxu0 %v135
  %v251 = vpop.f32.mrf.mxu0
  %v252 = vadd.f32 0.0, %v251
  %253 = vmatmul.f32.gmra.mxu0 %v138
  %v254 = vpop.f32.mrf.mxu0
  %v255 = vadd.f32 0.0, %v254
  %256 = vmatmul.f32.gmra.mxu0 %v141
  %v257 = vpop.f32.mrf.mxu0
  %v258 = vadd.f32 0.0, %v257
  %259 = vmatmul.f32.gmra.mxu0 %v144
  %v260 = vpop.f32.mrf.mxu0
  %v261 = vadd.f32 0.0, %v260
  %262 = vmatmul.f32.gmra.mxu0 %v147
  %v263 = vpop.f32.mrf.mxu0
  %v264 = vadd.f32 0.0, %v263
  %265 = vmatmul.f32.gmra.mxu0 %v150
  %v266 = vpop.f32.mrf.mxu0
  %v267 = vadd.f32 0.0, %v266
  %268 = vmatmul.f32.gmra.mxu0 %v153
  %v269 = vpop.f32.mrf.mxu0
  %v270 = vadd.f32 0.0, %v269
  %271 = vdwg.mxu0
  %vm272 = vcmask 523264
  %273 = vst.msk [vmem:[#allocation2] sm:$0xff] %vm272, %v177
  %274 = vst.msk [vmem:[#allocation2 + $0x8] sm:$0xff] %vm272, %v180
  %275 = vst.msk [vmem:[#allocation2 + $0x10] sm:$0xff] %vm272, %v183
  %276 = vst.msk [vmem:[#allocation2 + $0x18] sm:$0xff] %vm272, %v186
  %277 = vst.msk [vmem:[#allocation2 + $0x20] sm:$0xff] %vm272, %v189
  %278 = vst.msk [vmem:[#allocation2 + $0x28] sm:$0xff] %vm272, %v192
  %279 = vst.msk [vmem:[#allocation2 + $0x30] sm:$0xff] %vm272, %v195
  %280 = vst.msk [vmem:[#allocation2 + $0x38] sm:$0xff] %vm272, %v198
  %281 = vst.msk [vmem:[#allocation2 + $0x40] sm:$0xff] %vm272, %v201
  %282 = vst.msk [vmem:[#allocation2 + $0x48] sm:$0xff] %vm272, %v204
  %283 = vst.msk [vmem:[#allocation2 + $0x50] sm:$0xff] %vm272, %v207
  %284 = vst.msk [vmem:[#allocation2 + $0x58] sm:$0xff] %vm272, %v210
  %285 = vst.msk [vmem:[#allocation2 + $0x60] sm:$0xff] %vm272, %v213
  %286 = vst.msk [vmem:[#allocation2 + $0x68] sm:$0xff] %vm272, %v216
  %287 = vst.msk [vmem:[#allocation2 + $0x70] sm:$0xff] %vm272, %v219
  %288 = vst.msk [vmem:[#allocation2 + $0x78] sm:$0xff] %vm272, %v222
  %289 = vst.msk [vmem:[#allocation2 + $0x80] sm:$0xff] %vm272, %v225
  %290 = vst.msk [vmem:[#allocation2 + $0x88] sm:$0xff] %vm272, %v228
  %291 = vst.msk [vmem:[#allocation2 + $0x90] sm:$0xff] %vm272, %v231
  %292 = vst.msk [vmem:[#allocation2 + $0x98] sm:$0xff] %vm272, %v234
  %293 = vst.msk [vmem:[#allocation2 + $0xa0] sm:$0xff] %vm272, %v237
  %294 = vst.msk [vmem:[#allocation2 + $0xa8] sm:$0xff] %vm272, %v240
  %295 = vst.msk [vmem:[#allocation2 + $0xb0] sm:$0xff] %vm272, %v243
  %296 = vst.msk [vmem:[#allocation2 + $0xb8] sm:$0xff] %vm272, %v246
  %297 = vst.msk [vmem:[#allocation2 + $0xc0] sm:$0xff] %vm272, %v249
  %298 = vst.msk [vmem:[#allocation2 + $0xc8] sm:$0xff] %vm272, %v252
  %299 = vst.msk [vmem:[#allocation2 + $0xd0] sm:$0xff] %vm272, %v255
  %300 = vst.msk [vmem:[#allocation2 + $0xd8] sm:$0xff] %vm272, %v258
  %301 = vst.msk [vmem:[#allocation2 + $0xe0] sm:$0xff] %vm272, %v261
  %302 = vst.msk [vmem:[#allocation2 + $0xe8] sm:$0xff] %vm272, %v264
  %303 = vst.msk [vmem:[#allocation2 + $0xf0] sm:$0xff] %vm272, %v267
  %304 = vst.msk [vmem:[#allocation2 + $0xf8] sm:$0xff] %vm272, %v270
  %v305 = vld [vmem:[%s3] sm:$0xff]
  %v306 = vld [vmem:[%s3 + $0x8] sm:$0xff]
  %v307 = vld [vmem:[%s3 + $0x10] sm:$0xff]
  %v308 = vld [vmem:[%s3 + $0x18] sm:$0xff]
  %v309 = vld [vmem:[%s1] sm:$0xff]
  %v310 = vld [vmem:[%s1 + $0x8] sm:$0xff]
  %v311 = vld [vmem:[%s1 + $0x10] sm:$0xff]
  %v312 = vld [vmem:[%s1 + $0x18] sm:$0xff]
  %v313 = vld [vmem:[%s1 + $0x20] sm:$0x1]
  %v314 = vld [vmem:[%s1 + $0x28] sm:$0x1]
  %v316 = vsel %vm58, %v305, 0
  %v319 = vsel %vm58, %v306, 0
  %v322 = vsel %vm58, %v307, 0
  %v325 = vsel %vm58, %v308, 0
  %v328 = vsel %vm155, %v313, 0
  %v331 = vsel %vm155, %v314, 0
  %333 = vmatpush.msra.mxu0 0.0
  %334 = vmatpush.msra.mxu0 0.0
  %335 = vmatpush.msra.mxu0 0.0
  %336 = vmatpush.msra.mxu0 0.0
  %337 = vmatpush.msra.mxu0 0.0
  %338 = vmatpush.msra.mxu0 0.0
  %339 = vmatpush.msra.mxu0 0.0
  %340 = vmatpush.msra.mxu0 0.0
  %341 = vmatpush.msra.mxu0 0.0
  %342 = vmatpush.msra.mxu0 0.0
  %343 = vmatpush.msra.mxu0 0.0
  %344 = vmatpush.msra.mxu0 0.0
  %345 = vmatpush.msra.mxu0 0.0
  %346 = vmatpush.msra.mxu0 %v328
  %347 = vmatpush.msra.mxu0 %v311
  %348 = vmatpush.msra.mxu0 %v309
  %349 = vmatmul.f32.gmra.mxu0 %v316
  %v350 = vpop.f32.mrf.mxu0
  %v351 = vadd.f32 0.0, %v350
  %352 = vmatmul.f32.gmra.mxu0 %v319
  %v353 = vpop.f32.mrf.mxu0
  %v354 = vadd.f32 0.0, %v353
  %355 = vmatmul.f32.gmra.mxu0 %v322
  %v356 = vpop.f32.mrf.mxu0
  %v357 = vadd.f32 0.0, %v356
  %358 = vmatmul.f32.gmra.mxu0 %v325
  %v359 = vpop.f32.mrf.mxu0
  %v360 = vadd.f32 0.0, %v359
  %361 = vdwg.mxu0
  %362 = vmatpush.msra.mxu0 0.0
  %363 = vmatpush.msra.mxu0 0.0
  %364 = vmatpush.msra.mxu0 0.0
  %365 = vmatpush.msra.mxu0 0.0
  %366 = vmatpush.msra.mxu0 0.0
  %367 = vmatpush.msra.mxu0 0.0
  %368 = vmatpush.msra.mxu0 0.0
  %369 = vmatpush.msra.mxu0 0.0
  %370 = vmatpush.msra.mxu0 0.0
  %371 = vmatpush.msra.mxu0 0.0
  %372 = vmatpush.msra.mxu0 0.0
  %373 = vmatpush.msra.mxu0 0.0
  %374 = vmatpush.msra.mxu0 0.0
  %375 = vmatpush.msra.mxu0 %v331
  %376 = vmatpush.msra.mxu0 %v312
  %377 = vmatpush.msra.mxu0 %v310
  %378 = vmatmul.f32.gmra.mxu0 %v316
  %v379 = vpop.f32.mrf.mxu0
  %v380 = vadd.f32 0.0, %v379
  %381 = vmatmul.f32.gmra.mxu0 %v319
  %v382 = vpop.f32.mrf.mxu0
  %v383 = vadd.f32 0.0, %v382
  %384 = vmatmul.f32.gmra.mxu0 %v322
  %v385 = vpop.f32.mrf.mxu0
  %v386 = vadd.f32 0.0, %v385
  %387 = vmatmul.f32.gmra.mxu0 %v325
  %v388 = vpop.f32.mrf.mxu0
  %v389 = vadd.f32 0.0, %v388
  %390 = vdwg.mxu0
  %391 = vst [vmem:[#allocation3] sm:$0xff] %v351
  %392 = vst [vmem:[#allocation3 + $0x8] sm:$0xff] %v380
  %393 = vst [vmem:[#allocation3 + $0x10] sm:$0xff] %v354
  %394 = vst [vmem:[#allocation3 + $0x18] sm:$0xff] %v383
  %395 = vst [vmem:[#allocation3 + $0x20] sm:$0xff] %v357
  %396 = vst [vmem:[#allocation3 + $0x28] sm:$0xff] %v386
  %397 = vst [vmem:[#allocation3 + $0x30] sm:$0xff] %v360
  %398 = vst [vmem:[#allocation3 + $0x38] sm:$0xff] %v389
  %399 = vst [vmem:[#allocation4] sm:$0xff] 0.0
  %400 = vst [vmem:[#allocation4 + $0x8] sm:$0xff] 0.0
  %401 = vst [vmem:[#allocation4 + $0x10] sm:$0xff] 0.0
  %402 = vst [vmem:[#allocation4 + $0x18] sm:$0xff] 0.0
  %403 = vst [vmem:[#allocation4 + $0x20] sm:$0xff] 0.0
  %404 = vst [vmem:[#allocation4 + $0x28] sm:$0xff] 0.0
  %405 = vst [vmem:[#allocation4 + $0x30] sm:$0xff] 0.0
  %406 = vst [vmem:[#allocation4 + $0x38] sm:$0xff] 0.0
  %407 = vst [vmem:[#allocation4 + $0x40] sm:$0xff] 0.0
  %408 = vst [vmem:[#allocation4 + $0x48] sm:$0xff] 0.0
  %409 = vst [vmem:[#allocation4 + $0x50] sm:$0xff] 0.0
  %410 = vst [vmem:[#allocation4 + $0x58] sm:$0xff] 0.0
  %411 = vst [vmem:[#allocation4 + $0x60] sm:$0xff] 0.0
  %412 = vst [vmem:[#allocation4 + $0x68] sm:$0xff] 0.0
  %413 = vst [vmem:[#allocation4 + $0x70] sm:$0xff] 0.0
  %414 = vst [vmem:[#allocation4 + $0x78] sm:$0xff] 0.0
  %vm415 = vcmask 261120
  %416 = vst.msk [vmem:[#allocation5] sm:$0xff] %vm415, 0.0
  %417 = vst.msk [vmem:[#allocation5 + $0x8] sm:$0xff] %vm415, 0.0
  %418 = vst.msk [vmem:[#allocation5 + $0x10] sm:$0xff] %vm415, 0.0
  %419 = vst.msk [vmem:[#allocation5 + $0x18] sm:$0xff] %vm415, 0.0
  %420 = vst.msk [vmem:[#allocation5 + $0x20] sm:$0xff] %vm415, 0.0
  %421 = vst.msk [vmem:[#allocation5 + $0x28] sm:$0xff] %vm415, 0.0
  %422 = vst.msk [vmem:[#allocation5 + $0x30] sm:$0xff] %vm415, 0.0
  %423 = vst.msk [vmem:[#allocation5 + $0x38] sm:$0xff] %vm415, 0.0
  %424 = vst.msk [vmem:[#allocation5 + $0x40] sm:$0xff] %vm415, 0.0
  %425 = vst.msk [vmem:[#allocation5 + $0x48] sm:$0xff] %vm415, 0.0
  %426 = vst.msk [vmem:[#allocation5 + $0x50] sm:$0xff] %vm415, 0.0
  %427 = vst.msk [vmem:[#allocation5 + $0x58] sm:$0xff] %vm415, 0.0
  %428 = vst.msk [vmem:[#allocation5 + $0x60] sm:$0xff] %vm415, 0.0
  %429 = vst.msk [vmem:[#allocation5 + $0x68] sm:$0xff] %vm415, 0.0
  %430 = vst.msk [vmem:[#allocation5 + $0x70] sm:$0xff] %vm415, 0.0
  %431 = vst.msk [vmem:[#allocation5 + $0x78] sm:$0xff] %vm415, 0.0
  %432 = vst.msk [vmem:[#allocation5 + $0x80] sm:$0xff] %vm415, 0.0
  %433 = vst.msk [vmem:[#allocation5 + $0x88] sm:$0xff] %vm415, 0.0
  %434 = vst.msk [vmem:[#allocation5 + $0x90] sm:$0xff] %vm415, 0.0
  %435 = vst.msk [vmem:[#allocation5 + $0x98] sm:$0xff] %vm415, 0.0
  %436 = vst.msk [vmem:[#allocation5 + $0xa0] sm:$0xff] %vm415, 0.0
  %437 = vst.msk [vmem:[#allocation5 + $0xa8] sm:$0xff] %vm415, 0.0
  %438 = vst.msk [vmem:[#allocation5 + $0xb0] sm:$0xff] %vm415, 0.0
  %439 = vst.msk [vmem:[#allocation5 + $0xb8] sm:$0xff] %vm415, 0.0
  %440 = vst.msk [vmem:[#allocation5 + $0xc0] sm:$0xff] %vm415, 0.0
  %441 = vst.msk [vmem:[#allocation5 + $0xc8] sm:$0xff] %vm415, 0.0
  %442 = vst.msk [vmem:[#allocation5 + $0xd0] sm:$0xff] %vm415, 0.0
  %443 = vst.msk [vmem:[#allocation5 + $0xd8] sm:$0xff] %vm415, 0.0
  %444 = vst.msk [vmem:[#allocation5 + $0xe0] sm:$0xff] %vm415, 0.0
  %445 = vst.msk [vmem:[#allocation5 + $0xe8] sm:$0xff] %vm415, 0.0
  %446 = vst.msk [vmem:[#allocation5 + $0xf0] sm:$0xff] %vm415, 0.0
  %447 = vst.msk [vmem:[#allocation5 + $0xf8] sm:$0xff] %vm415, 0.0
  %448 = vst.msk [vmem:[#allocation5 + $0x100] sm:$0xff] %vm415, 0.0
  %449 = vst.msk [vmem:[#allocation5 + $0x108] sm:$0xff] %vm415, 0.0
  %450 = vst.msk [vmem:[#allocation5 + $0x110] sm:$0xff] %vm415, 0.0
  %451 = vst.msk [vmem:[#allocation5 + $0x118] sm:$0xff] %vm415, 0.0
  %452 = vst.msk [vmem:[#allocation5 + $0x120] sm:$0xff] %vm415, 0.0
  %453 = vst.msk [vmem:[#allocation5 + $0x128] sm:$0xff] %vm415, 0.0
  %454 = vst.msk [vmem:[#allocation5 + $0x130] sm:$0xff] %vm415, 0.0
  %455 = vst.msk [vmem:[#allocation5 + $0x138] sm:$0xff] %vm415, 0.0
  %456 = vst.msk [vmem:[#allocation5 + $0x140] sm:$0xff] %vm415, 0.0
  %457 = vst.msk [vmem:[#allocation5 + $0x148] sm:$0xff] %vm415, 0.0
  %458 = vst.msk [vmem:[#allocation5 + $0x150] sm:$0xff] %vm415, 0.0
  %459 = vst.msk [vmem:[#allocation5 + $0x158] sm:$0xff] %vm415, 0.0
  %460 = vst.msk [vmem:[#allocation5 + $0x160] sm:$0xff] %vm415, 0.0
  %461 = vst.msk [vmem:[#allocation5 + $0x168] sm:$0xff] %vm415, 0.0
  %462 = vst.msk [vmem:[#allocation5 + $0x170] sm:$0xff] %vm415, 0.0
  %463 = vst.msk [vmem:[#allocation5 + $0x178] sm:$0xff] %vm415, 0.0
  %464 = vst.msk [vmem:[#allocation5 + $0x180] sm:$0xff] %vm415, 0.0
  %465 = vst.msk [vmem:[#allocation5 + $0x188] sm:$0xff] %vm415, 0.0
  %466 = vst.msk [vmem:[#allocation5 + $0x190] sm:$0xff] %vm415, 0.0
  %467 = vst.msk [vmem:[#allocation5 + $0x198] sm:$0xff] %vm415, 0.0
  %468 = vst.msk [vmem:[#allocation5 + $0x1a0] sm:$0xff] %vm415, 0.0
  %469 = vst.msk [vmem:[#allocation5 + $0x1a8] sm:$0xff] %vm415, 0.0
  %470 = vst.msk [vmem:[#allocation5 + $0x1b0] sm:$0xff] %vm415, 0.0
  %471 = vst.msk [vmem:[#allocation5 + $0x1b8] sm:$0xff] %vm415, 0.0
  %472 = vst.msk [vmem:[#allocation5 + $0x1c0] sm:$0xff] %vm415, 0.0
  %473 = vst.msk [vmem:[#allocation5 + $0x1c8] sm:$0xff] %vm415, 0.0
  %474 = vst.msk [vmem:[#allocation5 + $0x1d0] sm:$0xff] %vm415, 0.0
  %475 = vst.msk [vmem:[#allocation5 + $0x1d8] sm:$0xff] %vm415, 0.0
  %476 = vst.msk [vmem:[#allocation5 + $0x1e0] sm:$0xff] %vm415, 0.0
  %477 = vst.msk [vmem:[#allocation5 + $0x1e8] sm:$0xff] %vm415, 0.0
  %478 = vst.msk [vmem:[#allocation5 + $0x1f0] sm:$0xff] %vm415, 0.0
  %479 = vst.msk [vmem:[#allocation5 + $0x1f8] sm:$0xff] %vm415, 0.0
  %v480 = vld [vmem:[#allocation2] sm:$0xff]
  %v481 = vld [vmem:[#allocation2 + $0x8] sm:$0xff]
  %v482 = vld [vmem:[#allocation2 + $0x10] sm:$0xff]
  %v483 = vld [vmem:[#allocation2 + $0x18] sm:$0xff]
  %v484 = vld [vmem:[#allocation2 + $0x20] sm:$0xff]
  %v485 = vld [vmem:[#allocation2 + $0x28] sm:$0xff]
  %v486 = vld [vmem:[#allocation2 + $0x30] sm:$0xff]
  %v487 = vld [vmem:[#allocation2 + $0x38] sm:$0xff]
  %v488 = vld [vmem:[#allocation3] sm:$0xff]
  %v489 = vld [vmem:[#allocation3 + $0x10] sm:$0xff]
  %v490 = vld [vmem:[#allocation3 + $0x20] sm:$0xff]
  %v491 = vld [vmem:[#allocation3 + $0x30] sm:$0xff]
  %v492 = vsel %vm415, %v480, 0.0
  %v493 = vsel %vm415, %v481, 0.0
  %v494 = vadd.f32 %v492, %v493
  %v495 = vsel %vm415, %v482, 0.0
  %v496 = vadd.f32 %v494, %v495
  %v497 = vsel %vm415, %v483, 0.0
  %v498 = vadd.f32 %v496, %v497
  %v499 = vsel %vm415, %v484, 0.0
  %v500 = vadd.f32 %v498, %v499
  %v501 = vsel %vm415, %v485, 0.0
  %v502 = vadd.f32 %v500, %v501
  %v503 = vsel %vm415, %v486, 0.0
  %v504 = vadd.f32 %v502, %v503
  %v505 = vsel %vm415, %v487, 0.0
  %v506 = vadd.f32 %v504, %v505
  %v507 = vrot.slane %v506, 4
  %v508 = vadd.f32 %v506, %v507
  %v509 = vrot.slane %v508, 2
  %v510 = vadd.f32 %v508, %v509
  %v511 = vrot.slane %v510, 1
  %v512 = vadd.f32 %v510, %v511
  %v513 = vrcp.pop 64.0
  %v514 = vmul.f32 64.0, %v513
  %v515 = vsub.f32 1.0, %v514
  %v516 = vmul.f32 %v513, %v515
  %v517 = vadd.f32 %v513, %v516
  %vm518 = vweird.f32 %v513
  %v519 = vsel %vm518, %v513, %v517
  %v520 = vmul.f32 %v512, %v519
  %v521 = vsub.f32 %v480, %v520
  %v522 = vsub.f32 %v481, %v520
  %v523 = vsub.f32 %v482, %v520
  %v524 = vsub.f32 %v483, %v520
  %v525 = vsub.f32 %v484, %v520
  %v526 = vsub.f32 %v485, %v520
  %v527 = vsub.f32 %v486, %v520
  %v528 = vsub.f32 %v487, %v520
  %v529 = vmul.f32 %v521, %v521
  %v530 = vmul.f32 %v522, %v522
  %v531 = vmul.f32 %v523, %v523
  %v532 = vmul.f32 %v524, %v524
  %v533 = vmul.f32 %v525, %v525
  %v534 = vmul.f32 %v526, %v526
  %v535 = vmul.f32 %v527, %v527
  %v536 = vmul.f32 %v528, %v528
  %v537 = vsel %vm415, %v529, 0.0
  %v538 = vsel %vm415, %v530, 0.0
  %v539 = vadd.f32 %v537, %v538
  %v540 = vsel %vm415, %v531, 0.0
  %v541 = vadd.f32 %v539, %v540
  %v542 = vsel %vm415, %v532, 0.0
  %v543 = vadd.f32 %v541, %v542
  %v544 = vsel %vm415, %v533, 0.0
  %v545 = vadd.f32 %v543, %v544
  %v546 = vsel %vm415, %v534, 0.0
  %v547 = vadd.f32 %v545, %v546
  %v548 = vsel %vm415, %v535, 0.0
  %v549 = vadd.f32 %v547, %v548
  %v550 = vsel %vm415, %v536, 0.0
  %v551 = vadd.f32 %v549, %v550
  %v552 = vrot.slane %v551, 4
  %v553 = vadd.f32 %v551, %v552
  %v554 = vrot.slane %v553, 2
  %v555 = vadd.f32 %v553, %v554
  %v556 = vrot.slane %v555, 1
  %v557 = vadd.f32 %v555, %v556
  %v558 = vmul.f32 %v557, %v519
  %v559 = vadd.f32 %v558, 1e-05
  %v560 = vrsqrt.pop %v559
  %v561 = vmul.f32 %v560, %v559
  %v562 = vmul.f32 %v561, %v560
  %v563 = vmul.f32 0.5, %v562
  %v564 = vsub.f32 1.5, %v563
  %v565 = vmul.f32 %v560, %v564
  %vm566 = vweird.f32 %v559
  %vm567 = vweird.f32 %v560
  %vm568 = vmor %vm566, %vm567
  %v569 = vsel %vm568, %v560, %v565
  %v570 = vmul.f32 %v521, %v569
  %v571 = vmul.f32 %v522, %v569
  %v572 = vmul.f32 %v523, %v569
  %v573 = vmul.f32 %v524, %v569
  %v574 = vmul.f32 %v525, %v569
  %v575 = vmul.f32 %v526, %v569
  %v576 = vmul.f32 %v527, %v569
  %v577 = vmul.f32 %v528, %v569
  %v578 = vsel %vm272, %v488, 0.0
  %579 = vadd.xlane.f32.xlu0 %v578
  %v580 = vpop.xlane.xlu0 %579
  %v581 = vsel %vm272, %v489, 0.0
  %582 = vadd.xlane.f32.xlu0 %v581
  %v583 = vpop.xlane.xlu0 %582
  %v584 = vsel %vm272, %v490, 0.0
  %585 = vadd.xlane.f32.xlu0 %v584
  %v586 = vpop.xlane.xlu0 %585
  %v587 = vsel %vm272, %v491, 0.0
  %588 = vadd.xlane.f32.xlu0 %v587
  %v589 = vpop.xlane.xlu0 %588
  %v590 = vmul.f32 %v580, %v519
  %v591 = vmul.f32 %v583, %v519
  %v592 = vmul.f32 %v586, %v519
  %v593 = vmul.f32 %v589, %v519
  %v594 = vsub.f32 %v488, %v590
  %v595 = vsub.f32 %v489, %v591
  %v596 = vsub.f32 %v490, %v592
  %v597 = vsub.f32 %v491, %v593
  %v598 = vmul.f32 %v594, %v594
  %v599 = vmul.f32 %v595, %v595
  %v600 = vmul.f32 %v596, %v596
  %v601 = vmul.f32 %v597, %v597
  %v602 = vsel %vm272, %v598, 0.0
  %603 = vadd.xlane.f32.xlu0 %v602
  %v604 = vpop.xlane.xlu0 %603
  %v605 = vsel %vm272, %v599, 0.0
  %606 = vadd.xlane.f32.xlu0 %v605
  %v607 = vpop.xlane.xlu0 %606
  %v608 = vsel %vm272, %v600, 0.0
  %609 = vadd.xlane.f32.xlu0 %v608
  %v610 = vpop.xlane.xlu0 %609
  %v611 = vsel %vm272, %v601, 0.0
  %612 = vadd.xlane.f32.xlu0 %v611
  %v613 = vpop.xlane.xlu0 %612
  %v614 = vmul.f32 %v604, %v519
  %v615 = vmul.f32 %v607, %v519
  %v616 = vmul.f32 %v610, %v519
  %v617 = vmul.f32 %v613, %v519
  %v618 = vadd.f32 %v614, 1e-05
  %v619 = vadd.f32 %v615, 1e-05
  %v620 = vadd.f32 %v616, 1e-05
  %v621 = vadd.f32 %v617, 1e-05
  %v622 = vrsqrt.pop %v618
  %v623 = vmul.f32 %v622, %v618
  %v624 = vmul.f32 %v623, %v622
  %v625 = vmul.f32 0.5, %v624
  %v626 = vsub.f32 1.5, %v625
  %v627 = vmul.f32 %v622, %v626
  %vm628 = vweird.f32 %v618
  %vm629 = vweird.f32 %v622
  %vm630 = vmor %vm628, %vm629
  %v631 = vsel %vm630, %v622, %v627
  %v632 = vrsqrt.pop %v619
  %v633 = vmul.f32 %v632, %v619
  %v634 = vmul.f32 %v633, %v632
  %v635 = vmul.f32 0.5, %v634
  %v636 = vsub.f32 1.5, %v635
  %v637 = vmul.f32 %v632, %v636
  %vm638 = vweird.f32 %v619
  %vm639 = vweird.f32 %v632
  %vm640 = vmor %vm638, %vm639
  %v641 = vsel %vm640, %v632, %v637
  %v642 = vrsqrt.pop %v620
  %v643 = vmul.f32 %v642, %v620
  %v644 = vmul.f32 %v643, %v642
  %v645 = vmul.f32 0.5, %v644
  %v646 = vsub.f32 1.5, %v645
  %v647 = vmul.f32 %v642, %v646
  %vm648 = vweird.f32 %v620
  %vm649 = vweird.f32 %v642
  %vm650 = vmor %vm648, %vm649
  %v651 = vsel %vm650, %v642, %v647
  %v652 = vrsqrt.pop %v621
  %v653 = vmul.f32 %v652, %v621
  %v654 = vmul.f32 %v653, %v652
  %v655 = vmul.f32 0.5, %v654
  %v656 = vsub.f32 1.5, %v655
  %v657 = vmul.f32 %v652, %v656
  %vm658 = vweird.f32 %v621
  %vm659 = vweird.f32 %v652
  %vm660 = vmor %vm658, %vm659
  %v661 = vsel %vm660, %v652, %v657
  %v662 = vmul.f32 %v594, %v631
  %v663 = vmul.f32 %v595, %v641
  %v664 = vmul.f32 %v596, %v651
  %v665 = vmul.f32 %v597, %v661
  %v666 = vmul.f32 %v662, 0.5
  %v667 = vmul.f32 %v663, 0.5
  %v668 = vmul.f32 %v664, 0.5
  %v669 = vmul.f32 %v665, 0.5
  %vm670 = vcmask 519168
  %671 = vst.msk [vmem:[#allocation4] sm:$0xf] %vm670, %v666
  %680 = vrot.lane.b32.xlu0 %v480, 96
  %v681 = vpop.permute.xlu0 %680
  %682 = vrot.lane.b32.xlu0 %v481, 96
  %v683 = vpop.permute.xlu0 %682
  %684 = vrot.lane.b32.xlu0 %v482, 96
  %v685 = vpop.permute.xlu0 %684
  %686 = vrot.lane.b32.xlu0 %v483, 96
  %v687 = vpop.permute.xlu0 %686
  %688 = vrot.lane.b32.xlu0 %v484, 96
  %v689 = vpop.permute.xlu0 %688
  %690 = vrot.lane.b32.xlu0 %v485, 96
  %v691 = vpop.permute.xlu0 %690
  %692 = vrot.lane.b32.xlu0 %v486, 96
  %v693 = vpop.permute.xlu0 %692
  %694 = vrot.lane.b32.xlu0 %v487, 96
  %v695 = vpop.permute.xlu0 %694
  %vm704 = vcmask 31744
  %705 = vst.msk [vmem:[#allocation5] sm:$0xff] %vm704, %v681
  %706 = vst.msk [vmem:[#allocation5 + $0x8] sm:$0xff] %vm704, %v683
  %707 = vst.msk [vmem:[#allocation5 + $0x10] sm:$0xff] %vm704, %v685
  %708 = vst.msk [vmem:[#allocation5 + $0x18] sm:$0xff] %vm704, %v687
  %709 = vst.msk [vmem:[#allocation5 + $0x20] sm:$0xff] %vm704, %v689
  %710 = vst.msk [vmem:[#allocation5 + $0x28] sm:$0xff] %vm704, %v691
  %711 = vst.msk [vmem:[#allocation5 + $0x30] sm:$0xff] %vm704, %v693
  %712 = vst.msk [vmem:[#allocation5 + $0x38] sm:$0xff] %vm704, %v695
  %714 = vrot.lane.b32.xlu0 %v666, 64
  %v715 = vpop.permute.xlu0 %714
  %vm717 = vcmask 1048068
  %718 = vst.msk [vmem:[#allocation4] sm:$0xf0] %vm717, %v715
  %vm719 = vcmask 64544
  %720 = vst.msk [vmem:[#allocation5 + $0x40] sm:$0xff] %vm719, %v681
  %721 = vst.msk [vmem:[#allocation5 + $0x48] sm:$0xff] %vm719, %v683
  %722 = vst.msk [vmem:[#allocation5 + $0x50] sm:$0xff] %vm719, %v685
  %723 = vst.msk [vmem:[#allocation5 + $0x58] sm:$0xff] %vm719, %v687
  %724 = vst.msk [vmem:[#allocation5 + $0x60] sm:$0xff] %vm719, %v689
  %725 = vst.msk [vmem:[#allocation5 + $0x68] sm:$0xff] %vm719, %v691
  %726 = vst.msk [vmem:[#allocation5 + $0x70] sm:$0xff] %vm719, %v693
  %727 = vst.msk [vmem:[#allocation5 + $0x78] sm:$0xff] %vm719, %v695
  %728 = vst.msk [vmem:[#allocation4 + $0x28] sm:$0xf] %vm670, %v667
  %vm729 = vcmask 97344
  %730 = vst.msk [vmem:[#allocation5 + $0x80] sm:$0xff] %vm729, %v681
  %731 = vst.msk [vmem:[#allocation5 + $0x88] sm:$0xff] %vm729, %v683
  %732 = vst.msk [vmem:[#allocation5 + $0x90] sm:$0xff] %vm729, %v685
  %733 = vst.msk [vmem:[#allocation5 + $0x98] sm:$0xff] %vm729, %v687
  %734 = vst.msk [vmem:[#allocation5 + $0xa0] sm:$0xff] %vm729, %v689
  %735 = vst.msk [vmem:[#allocation5 + $0xa8] sm:$0xff] %vm729, %v691
  %736 = vst.msk [vmem:[#allocation5 + $0xb0] sm:$0xff] %vm729, %v693
  %737 = vst.msk [vmem:[#allocation5 + $0xb8] sm:$0xff] %vm729, %v695
  %739 = vrot.lane.b32.xlu0 %v667, 64
  %v740 = vpop.permute.xlu0 %739
  %742 = vst.msk [vmem:[#allocation4 + $0x28] sm:$0xf0] %vm717, %v740
  %vm743 = vcmask 130144
  %744 = vst.msk [vmem:[#allocation5 + $0xc0] sm:$0xff] %vm743, %v681
  %745 = vst.msk [vmem:[#allocation5 + $0xc8] sm:$0xff] %vm743, %v683
  %746 = vst.msk [vmem:[#allocation5 + $0xd0] sm:$0xff] %vm743, %v685
  %747 = vst.msk [vmem:[#allocation5 + $0xd8] sm:$0xff] %vm743, %v687
  %748 = vst.msk [vmem:[#allocation5 + $0xe0] sm:$0xff] %vm743, %v689
  %749 = vst.msk [vmem:[#allocation5 + $0xe8] sm:$0xff] %vm743, %v691
  %750 = vst.msk [vmem:[#allocation5 + $0xf0] sm:$0xff] %vm743, %v693
  %751 = vst.msk [vmem:[#allocation5 + $0xf8] sm:$0xff] %vm743, %v695
  %752 = vst.msk [vmem:[#allocation4 + $0x50] sm:$0xf] %vm670, %v668
  %vm753 = vcmask 162944
  %754 = vst.msk [vmem:[#allocation5 + $0x100] sm:$0xff] %vm753, %v681
  %755 = vst.msk [vmem:[#allocation5 + $0x108] sm:$0xff] %vm753, %v683
  %756 = vst.msk [vmem:[#allocation5 + $0x110] sm:$0xff] %vm753, %v685
  %757 = vst.msk [vmem:[#allocation5 + $0x118] sm:$0xff] %vm753, %v687
  %758 = vst.msk [vmem:[#allocation5 + $0x120] sm:$0xff] %vm753, %v689
  %759 = vst.msk [vmem:[#allocation5 + $0x128] sm:$0xff] %vm753, %v691
  %760 = vst.msk [vmem:[#allocation5 + $0x130] sm:$0xff] %vm753, %v693
  %761 = vst.msk [vmem:[#allocation5 + $0x138] sm:$0xff] %vm753, %v695
  %763 = vrot.lane.b32.xlu0 %v668, 64
  %v764 = vpop.permute.xlu0 %763
  %766 = vst.msk [vmem:[#allocation4 + $0x50] sm:$0xf0] %vm717, %v764
  %vm767 = vcmask 195744
  %768 = vst.msk [vmem:[#allocation5 + $0x140] sm:$0xff] %vm767, %v681
  %769 = vst.msk [vmem:[#allocation5 + $0x148] sm:$0xff] %vm767, %v683
  %770 = vst.msk [vmem:[#allocation5 + $0x150] sm:$0xff] %vm767, %v685
  %771 = vst.msk [vmem:[#allocation5 + $0x158] sm:$0xff] %vm767, %v687
  %772 = vst.msk [vmem:[#allocation5 + $0x160] sm:$0xff] %vm767, %v689
  %773 = vst.msk [vmem:[#allocation5 + $0x168] sm:$0xff] %vm767, %v691
  %774 = vst.msk [vmem:[#allocation5 + $0x170] sm:$0xff] %vm767, %v693
  %775 = vst.msk [vmem:[#allocation5 + $0x178] sm:$0xff] %vm767, %v695
  %776 = vst.msk [vmem:[#allocation4 + $0x78] sm:$0xf] %vm670, %v669
  %vm777 = vcmask 228544
  %778 = vst.msk [vmem:[#allocation5 + $0x180] sm:$0xff] %vm777, %v681
  %779 = vst.msk [vmem:[#allocation5 + $0x188] sm:$0xff] %vm777, %v683
  %780 = vst.msk [vmem:[#allocation5 + $0x190] sm:$0xff] %vm777, %v685
  %781 = vst.msk [vmem:[#allocation5 + $0x198] sm:$0xff] %vm777, %v687
  %782 = vst.msk [vmem:[#allocation5 + $0x1a0] sm:$0xff] %vm777, %v689
  %783 = vst.msk [vmem:[#allocation5 + $0x1a8] sm:$0xff] %vm777, %v691
  %784 = vst.msk [vmem:[#allocation5 + $0x1b0] sm:$0xff] %vm777, %v693
  %785 = vst.msk [vmem:[#allocation5 + $0x1b8] sm:$0xff] %vm777, %v695
  %787 = vrot.lane.b32.xlu0 %v669, 64
  %v788 = vpop.permute.xlu0 %787
  %790 = vst.msk [vmem:[#allocation4 + $0x78] sm:$0xf0] %vm717, %v788
  %vm791 = vcmask 261344
  %792 = vst.msk [vmem:[#allocation5 + $0x1c0] sm:$0xff] %vm791, %v681
  %793 = vst.msk [vmem:[#allocation5 + $0x1c8] sm:$0xff] %vm791, %v683
  %794 = vst.msk [vmem:[#allocation5 + $0x1d0] sm:$0xff] %vm791, %v685
  %795 = vst.msk [vmem:[#allocation5 + $0x1d8] sm:$0xff] %vm791, %v687
  %796 = vst.msk [vmem:[#allocation5 + $0x1e0] sm:$0xff] %vm791, %v689
  %797 = vst.msk [vmem:[#allocation5 + $0x1e8] sm:$0xff] %vm791, %v691
  %798 = vst.msk [vmem:[#allocation5 + $0x1f0] sm:$0xff] %vm791, %v693
  %799 = vst.msk [vmem:[#allocation5 + $0x1f8] sm:$0xff] %vm791, %v695
  %v800 = vld [vmem:[#allocation4] sm:$0xff]
  %v801 = vld [vmem:[#allocation4 + $0x8] sm:$0xff]
  %v802 = vld [vmem:[#allocation4 + $0x10] sm:$0xff]
  %v803 = vld [vmem:[#allocation4 + $0x18] sm:$0xff]
  %v804 = vld [vmem:[#allocation4 + $0x20] sm:$0xff]
  %v805 = vld [vmem:[#allocation4 + $0x28] sm:$0xff]
  %v806 = vld [vmem:[#allocation4 + $0x30] sm:$0xff]
  %v807 = vld [vmem:[#allocation4 + $0x38] sm:$0xff]
  %v808 = vld [vmem:[#allocation4 + $0x40] sm:$0xff]
  %v809 = vld [vmem:[#allocation4 + $0x48] sm:$0xff]
  %v810 = vld [vmem:[#allocation4 + $0x50] sm:$0xff]
  %v811 = vld [vmem:[#allocation4 + $0x58] sm:$0xff]
  %v812 = vld [vmem:[#allocation4 + $0x60] sm:$0xff]
  %v813 = vld [vmem:[#allocation4 + $0x68] sm:$0xff]
  %v814 = vld [vmem:[#allocation4 + $0x70] sm:$0xff]
  %v815 = vld [vmem:[#allocation4 + $0x78] sm:$0xff]
  %v817 = vsel %vm415, %v570, 0
  %v820 = vsel %vm415, %v571, 0
  %v823 = vsel %vm415, %v572, 0
  %v826 = vsel %vm415, %v573, 0
  %v829 = vsel %vm415, %v574, 0
  %v832 = vsel %vm415, %v575, 0
  %v835 = vsel %vm415, %v576, 0
  %v838 = vsel %vm415, %v577, 0
  %840 = vmatpush.msra.mxu0 0.0
  %841 = vmatpush.msra.mxu0 0.0
  %842 = vmatpush.msra.mxu0 0.0
  %843 = vmatpush.msra.mxu0 0.0
  %844 = vmatpush.msra.mxu0 0.0
  %845 = vmatpush.msra.mxu0 0.0
  %846 = vmatpush.msra.mxu0 0.0
  %847 = vmatpush.msra.mxu0 0.0
  %848 = vmatpush.msra.mxu0 0.0
  %849 = vmatpush.msra.mxu0 0.0
  %850 = vmatpush.msra.mxu0 0.0
  %851 = vmatpush.msra.mxu0 0.0
  %852 = vmatpush.msra.mxu0 %v812
  %853 = vmatpush.msra.mxu0 %v808
  %854 = vmatpush.msra.mxu0 %v804
  %855 = vmatpush.msra.mxu0 %v800
  %856 = vmatmul.f32.gmra.mxu0 %v817
  %v857 = vpop.f32.mrf.mxu0
  %v858 = vadd.f32 0.0, %v857
  %859 = vmatmul.f32.gmra.mxu0 %v820
  %v860 = vpop.f32.mrf.mxu0
  %v861 = vadd.f32 0.0, %v860
  %862 = vmatmul.f32.gmra.mxu0 %v823
  %v863 = vpop.f32.mrf.mxu0
  %v864 = vadd.f32 0.0, %v863
  %865 = vmatmul.f32.gmra.mxu0 %v826
  %v866 = vpop.f32.mrf.mxu0
  %v867 = vadd.f32 0.0, %v866
  %868 = vmatmul.f32.gmra.mxu0 %v829
  %v869 = vpop.f32.mrf.mxu0
  %v870 = vadd.f32 0.0, %v869
  %871 = vmatmul.f32.gmra.mxu0 %v832
  %v872 = vpop.f32.mrf.mxu0
  %v873 = vadd.f32 0.0, %v872
  %874 = vmatmul.f32.gmra.mxu0 %v835
  %v875 = vpop.f32.mrf.mxu0
  %v876 = vadd.f32 0.0, %v875
  %877 = vmatmul.f32.gmra.mxu0 %v838
  %v878 = vpop.f32.mrf.mxu0
  %v879 = vadd.f32 0.0, %v878
  %880 = vdwg.mxu0
  %881 = vmatpush.msra.mxu0 0.0
  %882 = vmatpush.msra.mxu0 0.0
  %883 = vmatpush.msra.mxu0 0.0
  %884 = vmatpush.msra.mxu0 0.0
  %885 = vmatpush.msra.mxu0 0.0
  %886 = vmatpush.msra.mxu0 0.0
  %887 = vmatpush.msra.mxu0 0.0
  %888 = vmatpush.msra.mxu0 0.0
  %889 = vmatpush.msra.mxu0 0.0
  %890 = vmatpush.msra.mxu0 0.0
  %891 = vmatpush.msra.mxu0 0.0
  %892 = vmatpush.msra.mxu0 0.0
  %893 = vmatpush.msra.mxu0 %v813
  %894 = vmatpush.msra.mxu0 %v809
  %895 = vmatpush.msra.mxu0 %v805
  %896 = vmatpush.msra.mxu0 %v801
  %897 = vmatmul.f32.gmra.mxu0 %v817
  %v898 = vpop.f32.mrf.mxu0
  %v899 = vadd.f32 0.0, %v898
  %900 = vmatmul.f32.gmra.mxu0 %v820
  %v901 = vpop.f32.mrf.mxu0
  %v902 = vadd.f32 0.0, %v901
  %903 = vmatmul.f32.gmra.mxu0 %v823
  %v904 = vpop.f32.mrf.mxu0
  %v905 = vadd.f32 0.0, %v904
  %906 = vmatmul.f32.gmra.mxu0 %v826
  %v907 = vpop.f32.mrf.mxu0
  %v908 = vadd.f32 0.0, %v907
  %909 = vmatmul.f32.gmra.mxu0 %v829
  %v910 = vpop.f32.mrf.mxu0
  %v911 = vadd.f32 0.0, %v910
  %912 = vmatmul.f32.gmra.mxu0 %v832
  %v913 = vpop.f32.mrf.mxu0
  %v914 = vadd.f32 0.0, %v913
  %915 = vmatmul.f32.gmra.mxu0 %v835
  %v916 = vpop.f32.mrf.mxu0
  %v917 = vadd.f32 0.0, %v916
  %918 = vmatmul.f32.gmra.mxu0 %v838
  %v919 = vpop.f32.mrf.mxu0
  %v920 = vadd.f32 0.0, %v919
  %921 = vdwg.mxu0
  %922 = vmatpush.msra.mxu0 0.0
  %923 = vmatpush.msra.mxu0 0.0
  %924 = vmatpush.msra.mxu0 0.0
  %925 = vmatpush.msra.mxu0 0.0
  %926 = vmatpush.msra.mxu0 0.0
  %927 = vmatpush.msra.mxu0 0.0
  %928 = vmatpush.msra.mxu0 0.0
  %929 = vmatpush.msra.mxu0 0.0
  %930 = vmatpush.msra.mxu0 0.0
  %931 = vmatpush.msra.mxu0 0.0
  %932 = vmatpush.msra.mxu0 0.0
  %933 = vmatpush.msra.mxu0 0.0
  %934 = vmatpush.msra.mxu0 %v814
  %935 = vmatpush.msra.mxu0 %v810
  %936 = vmatpush.msra.mxu0 %v806
  %937 = vmatpush.msra.mxu0 %v802
  %938 = vmatmul.f32.gmra.mxu0 %v817
  %v939 = vpop.f32.mrf.mxu0
  %v940 = vadd.f32 0.0, %v939
  %941 = vmatmul.f32.gmra.mxu0 %v820
  %v942 = vpop.f32.mrf.mxu0
  %v943 = vadd.f32 0.0, %v942
  %944 = vmatmul.f32.gmra.mxu0 %v823
  %v945 = vpop.f32.mrf.mxu0
  %v946 = vadd.f32 0.0, %v945
  %947 = vmatmul.f32.gmra.mxu0 %v826
  %v948 = vpop.f32.mrf.mxu0
  %v949 = vadd.f32 0.0, %v948
  %950 = vmatmul.f32.gmra.mxu0 %v829
  %v951 = vpop.f32.mrf.mxu0
  %v952 = vadd.f32 0.0, %v951
  %953 = vmatmul.f32.gmra.mxu0 %v832
  %v954 = vpop.f32.mrf.mxu0
  %v955 = vadd.f32 0.0, %v954
  %956 = vmatmul.f32.gmra.mxu0 %v835
  %v957 = vpop.f32.mrf.mxu0
  %v958 = vadd.f32 0.0, %v957
  %959 = vmatmul.f32.gmra.mxu0 %v838
  %v960 = vpop.f32.mrf.mxu0
  %v961 = vadd.f32 0.0, %v960
  %962 = vdwg.mxu0
  %963 = vmatpush.msra.mxu0 0.0
  %964 = vmatpush.msra.mxu0 0.0
  %965 = vmatpush.msra.mxu0 0.0
  %966 = vmatpush.msra.mxu0 0.0
  %967 = vmatpush.msra.mxu0 0.0
  %968 = vmatpush.msra.mxu0 0.0
  %969 = vmatpush.msra.mxu0 0.0
  %970 = vmatpush.msra.mxu0 0.0
  %971 = vmatpush.msra.mxu0 0.0
  %972 = vmatpush.msra.mxu0 0.0
  %973 = vmatpush.msra.mxu0 0.0
  %974 = vmatpush.msra.mxu0 0.0
  %975 = vmatpush.msra.mxu0 %v815
  %976 = vmatpush.msra.mxu0 %v811
  %977 = vmatpush.msra.mxu0 %v807
  %978 = vmatpush.msra.mxu0 %v803
  %979 = vmatmul.f32.gmra.mxu0 %v817
  %v980 = vpop.f32.mrf.mxu0
  %v981 = vadd.f32 0.0, %v980
  %982 = vmatmul.f32.gmra.mxu0 %v820
  %v983 = vpop.f32.mrf.mxu0
  %v984 = vadd.f32 0.0, %v983
  %985 = vmatmul.f32.gmra.mxu0 %v823
  %v986 = vpop.f32.mrf.mxu0
  %v987 = vadd.f32 0.0, %v986
  %988 = vmatmul.f32.gmra.mxu0 %v826
  %v989 = vpop.f32.mrf.mxu0
  %v990 = vadd.f32 0.0, %v989
  %991 = vmatmul.f32.gmra.mxu0 %v829
  %v992 = vpop.f32.mrf.mxu0
  %v993 = vadd.f32 0.0, %v992
  %994 = vmatmul.f32.gmra.mxu0 %v832
  %v995 = vpop.f32.mrf.mxu0
  %v996 = vadd.f32 0.0, %v995
  %997 = vmatmul.f32.gmra.mxu0 %v835
  %v998 = vpop.f32.mrf.mxu0
  %v999 = vadd.f32 0.0, %v998
  %1000 = vmatmul.f32.gmra.mxu0 %v838
  %v1001 = vpop.f32.mrf.mxu0
  %v1002 = vadd.f32 0.0, %v1001
  %1003 = vdwg.mxu0
  %v1004 = vmax.f32 %v858, %v861
  %v1005 = vmax.f32 %v1004, %v864
  %v1006 = vmax.f32 %v1005, %v867
  %v1007 = vmax.f32 %v1006, %v870
  %v1008 = vmax.f32 %v1007, %v873
  %v1009 = vmax.f32 %v1008, %v876
  %v1010 = vmax.f32 %v1009, %v879
  %v1011 = vrot.slane %v1010, 4
  %v1012 = vmax.f32 %v1010, %v1011
  %v1013 = vrot.slane %v1012, 2
  %v1014 = vmax.f32 %v1012, %v1013
  %v1015 = vrot.slane %v1014, 1
  %v1016 = vmax.f32 %v1014, %v1015
  %v1017 = vmax.f32 %v899, %v902
  %v1018 = vmax.f32 %v1017, %v905
  %v1019 = vmax.f32 %v1018, %v908
  %v1020 = vmax.f32 %v1019, %v911
  %v1021 = vmax.f32 %v1020, %v914
  %v1022 = vmax.f32 %v1021, %v917
  %v1023 = vmax.f32 %v1022, %v920
  %v1024 = vrot.slane %v1023, 4
  %v1025 = vmax.f32 %v1023, %v1024
  %v1026 = vrot.slane %v1025, 2
  %v1027 = vmax.f32 %v1025, %v1026
  %v1028 = vrot.slane %v1027, 1
  %v1029 = vmax.f32 %v1027, %v1028
  %v1030 = vmax.f32 %v940, %v943
  %v1031 = vmax.f32 %v1030, %v946
  %v1032 = vmax.f32 %v1031, %v949
  %v1033 = vmax.f32 %v1032, %v952
  %v1034 = vmax.f32 %v1033, %v955
  %v1035 = vmax.f32 %v1034, %v958
  %v1036 = vmax.f32 %v1035, %v961
  %v1037 = vrot.slane %v1036, 4
  %v1038 = vmax.f32 %v1036, %v1037
  %v1039 = vrot.slane %v1038, 2
  %v1040 = vmax.f32 %v1038, %v1039
  %v1041 = vrot.slane %v1040, 1
  %v1042 = vmax.f32 %v1040, %v1041
  %v1043 = vmax.f32 %v981, %v984
  %v1044 = vmax.f32 %v1043, %v987
  %v1045 = vmax.f32 %v1044, %v990
  %v1046 = vmax.f32 %v1045, %v993
  %v1047 = vmax.f32 %v1046, %v996
  %v1048 = vmax.f32 %v1047, %v999
  %v1049 = vmax.f32 %v1048, %v1002
  %v1050 = vrot.slane %v1049, 4
  %v1051 = vmax.f32 %v1049, %v1050
  %v1052 = vrot.slane %v1051, 2
  %v1053 = vmax.f32 %v1051, %v1052
  %v1054 = vrot.slane %v1053, 1
  %v1055 = vmax.f32 %v1053, %v1054
  %v1056 = vsel %vm272, %v1016, -inf
  %1057 = vmax.xlane.f32.xlu0 %v1056
  %v1058 = vpop.xlane.xlu0 %1057
  %s1059 = vtos %v1058
  %v1060 = vstv %s1059
  %v1061 = vlaneseq
  %vm1062 = vcmp.ge.s32.totalorder %v1061, 0
  %vm1063 = vcmp.lt.s32.totalorder %v1061, 64
  %vm1064 = vmand %vm1062, %vm1063
  %1065 = vst.msk [vmem:[#allocation7] sm:$0x1] %vm1064, %v1060
  %vm1066 = vcmask 1048064
  %v1067 = vsel %vm1066, %v1016, -inf
  %1068 = vmax.xlane.f32.xlu0 %v1067
  %v1069 = vpop.xlane.xlu0 %1068
  %s1070 = vtos %v1069
  %v1071 = vstv %s1070
  %vm1072 = vcmp.ge.s32.totalorder %v1061, 64
  %vm1073 = vcmp.lt.s32.totalorder %v1061, 128
  %vm1074 = vmand %vm1072, %vm1073
  %1075 = vst.msk [vmem:[#allocation7] sm:$0x1] %vm1074, %v1071
  %v1076 = vsel %vm272, %v1029, -inf
  %1077 = vmax.xlane.f32.xlu0 %v1076
  %v1078 = vpop.xlane.xlu0 %1077
  %s1079 = vtos %v1078
  %v1080 = vstv %s1079
  %1081 = vst.msk [vmem:[#allocation7 + $0x1] sm:$0x1] %vm1064, %v1080
  %v1082 = vsel %vm1066, %v1029, -inf
  %1083 = vmax.xlane.f32.xlu0 %v1082
  %v1084 = vpop.xlane.xlu0 %1083
  %s1085 = vtos %v1084
  %v1086 = vstv %s1085
  %1087 = vst.msk [vmem:[#allocation7 + $0x1] sm:$0x1] %vm1074, %v1086
  %v1088 = vsel %vm272, %v1042, -inf
  %1089 = vmax.xlane.f32.xlu0 %v1088
  %v1090 = vpop.xlane.xlu0 %1089
  %s1091 = vtos %v1090
  %v1092 = vstv %s1091
  %1093 = vst.msk [vmem:[#allocation7 + $0x2] sm:$0x1] %vm1064, %v1092
  %v1094 = vsel %vm1066, %v1042, -inf
  %1095 = vmax.xlane.f32.xlu0 %v1094
  %v1096 = vpop.xlane.xlu0 %1095
  %s1097 = vtos %v1096
  %v1098 = vstv %s1097
  %1099 = vst.msk [vmem:[#allocation7 + $0x2] sm:$0x1] %vm1074, %v1098
  %v1100 = vsel %vm272, %v1055, -inf
  %1101 = vmax.xlane.f32.xlu0 %v1100
  %v1102 = vpop.xlane.xlu0 %1101
  %s1103 = vtos %v1102
  %v1104 = vstv %s1103
  %1105 = vst.msk [vmem:[#allocation7 + $0x3] sm:$0x1] %vm1064, %v1104
  %v1106 = vsel %vm1066, %v1055, -inf
  %1107 = vmax.xlane.f32.xlu0 %v1106
  %v1108 = vpop.xlane.xlu0 %1107
  %s1109 = vtos %v1108
  %v1110 = vstv %s1109
  %1111 = vst.msk [vmem:[#allocation7 + $0x3] sm:$0x1] %vm1074, %v1110
  %v1112 = vld [vmem:[#allocation7] sm:$0xf]
  %v1114 = vperm.slane %v1112, 0
  %v1115 = vperm.slane %v1112, 1
  %v1116 = vperm.slane %v1112, 2
  %v1117 = vperm.slane %v1112, 3
  %v1122 = vsub.f32 %v858, %v1114
  %v1123 = vsub.f32 %v899, %v1115
  %v1124 = vsub.f32 %v940, %v1116
  %v1125 = vsub.f32 %v981, %v1117
  %v1126 = vsub.f32 %v861, %v1114
  %v1127 = vsub.f32 %v902, %v1115
  %v1128 = vsub.f32 %v943, %v1116
  %v1129 = vsub.f32 %v984, %v1117
  %v1130 = vsub.f32 %v864, %v1114
  %v1131 = vsub.f32 %v905, %v1115
  %v1132 = vsub.f32 %v946, %v1116
  %v1133 = vsub.f32 %v987, %v1117
  %v1134 = vsub.f32 %v867, %v1114
  %v1135 = vsub.f32 %v908, %v1115
  %v1136 = vsub.f32 %v949, %v1116
  %v1137 = vsub.f32 %v990, %v1117
  %v1138 = vsub.f32 %v870, %v1114
  %v1139 = vsub.f32 %v911, %v1115
  %v1140 = vsub.f32 %v952, %v1116
  %v1141 = vsub.f32 %v993, %v1117
  %v1142 = vsub.f32 %v873, %v1114
  %v1143 = vsub.f32 %v914, %v1115
  %v1144 = vsub.f32 %v955, %v1116
  %v1145 = vsub.f32 %v996, %v1117
  %v1146 = vsub.f32 %v876, %v1114
  %v1147 = vsub.f32 %v917, %v1115
  %v1148 = vsub.f32 %v958, %v1116
  %v1149 = vsub.f32 %v999, %v1117
  %v1150 = vsub.f32 %v879, %v1114
  %v1151 = vsub.f32 %v920, %v1115
  %v1152 = vsub.f32 %v961, %v1116
  %v1153 = vsub.f32 %v1002, %v1117
  %v1154 = vmul.f32 %v1122, 1.442695
  %v1155 = vpow.pop %v1154
  %v1156 = vmul.f32 %v1123, 1.442695
  %v1157 = vpow.pop %v1156
  %v1158 = vmul.f32 %v1124, 1.442695
  %v1159 = vpow.pop %v1158
  %v1160 = vmul.f32 %v1125, 1.442695
  %v1161 = vpow.pop %v1160
  %v1162 = vmul.f32 %v1126, 1.442695
  %v1163 = vpow.pop %v1162
  %v1164 = vmul.f32 %v1127, 1.442695
  %v1165 = vpow.pop %v1164
  %v1166 = vmul.f32 %v1128, 1.442695
  %v1167 = vpow.pop %v1166
  %v1168 = vmul.f32 %v1129, 1.442695
  %v1169 = vpow.pop %v1168
  %v1170 = vmul.f32 %v1130, 1.442695
  %v1171 = vpow.pop %v1170
  %v1172 = vmul.f32 %v1131, 1.442695
  %v1173 = vpow.pop %v1172
  %v1174 = vmul.f32 %v1132, 1.442695
  %v1175 = vpow.pop %v1174
  %v1176 = vmul.f32 %v1133, 1.442695
  %v1177 = vpow.pop %v1176
  %v1178 = vmul.f32 %v1134, 1.442695
  %v1179 = vpow.pop %v1178
  %v1180 = vmul.f32 %v1135, 1.442695
  %v1181 = vpow.pop %v1180
  %v1182 = vmul.f32 %v1136, 1.442695
  %v1183 = vpow.pop %v1182
  %v1184 = vmul.f32 %v1137, 1.442695
  %v1185 = vpow.pop %v1184
  %v1186 = vmul.f32 %v1138, 1.442695
  %v1187 = vpow.pop %v1186
  %v1188 = vmul.f32 %v1139, 1.442695
  %v1189 = vpow.pop %v1188
  %v1190 = vmul.f32 %v1140, 1.442695
  %v1191 = vpow.pop %v1190
  %v1192 = vmul.f32 %v1141, 1.442695
  %v1193 = vpow.pop %v1192
  %v1194 = vmul.f32 %v1142, 1.442695
  %v1195 = vpow.pop %v1194
  %v1196 = vmul.f32 %v1143, 1.442695
  %v1197 = vpow.pop %v1196
  %v1198 = vmul.f32 %v1144, 1.442695
  %v1199 = vpow.pop %v1198
  %v1200 = vmul.f32 %v1145, 1.442695
  %v1201 = vpow.pop %v1200
  %v1202 = vmul.f32 %v1146, 1.442695
  %v1203 = vpow.pop %v1202
  %v1204 = vmul.f32 %v1147, 1.442695
  %v1205 = vpow.pop %v1204
  %v1206 = vmul.f32 %v1148, 1.442695
  %v1207 = vpow.pop %v1206
  %v1208 = vmul.f32 %v1149, 1.442695
  %v1209 = vpow.pop %v1208
  %v1210 = vmul.f32 %v1150, 1.442695
  %v1211 = vpow.pop %v1210
  %v1212 = vmul.f32 %v1151, 1.442695
  %v1213 = vpow.pop %v1212
  %v1214 = vmul.f32 %v1152, 1.442695
  %v1215 = vpow.pop %v1214
  %v1216 = vmul.f32 %v1153, 1.442695
  %v1217 = vpow.pop %v1216
  %v1218 = vadd.f32 %v1155, %v1163
  %v1219 = vadd.f32 %v1218, %v1171
  %v1220 = vadd.f32 %v1219, %v1179
  %v1221 = vadd.f32 %v1220, %v1187
  %v1222 = vadd.f32 %v1221, %v1195
  %v1223 = vadd.f32 %v1222, %v1203
  %v1224 = vadd.f32 %v1223, %v1211
  %v1225 = vrot.slane %v1224, 4
  %v1226 = vadd.f32 %v1224, %v1225
  %v1227 = vrot.slane %v1226, 2
  %v1228 = vadd.f32 %v1226, %v1227
  %v1229 = vrot.slane %v1228, 1
  %v1230 = vadd.f32 %v1228, %v1229
  %v1231 = vadd.f32 %v1157, %v1165
  %v1232 = vadd.f32 %v1231, %v1173
  %v1233 = vadd.f32 %v1232, %v1181
  %v1234 = vadd.f32 %v1233, %v1189
  %v1235 = vadd.f32 %v1234, %v1197
  %v1236 = vadd.f32 %v1235, %v1205
  %v1237 = vadd.f32 %v1236, %v1213
  %v1238 = vrot.slane %v1237, 4
  %v1239 = vadd.f32 %v1237, %v1238
  %v1240 = vrot.slane %v1239, 2
  %v1241 = vadd.f32 %v1239, %v1240
  %v1242 = vrot.slane %v1241, 1
  %v1243 = vadd.f32 %v1241, %v1242
  %v1244 = vadd.f32 %v1159, %v1167
  %v1245 = vadd.f32 %v1244, %v1175
  %v1246 = vadd.f32 %v1245, %v1183
  %v1247 = vadd.f32 %v1246, %v1191
  %v1248 = vadd.f32 %v1247, %v1199
  %v1249 = vadd.f32 %v1248, %v1207
  %v1250 = vadd.f32 %v1249, %v1215
  %v1251 = vrot.slane %v1250, 4
  %v1252 = vadd.f32 %v1250, %v1251
  %v1253 = vrot.slane %v1252, 2
  %v1254 = vadd.f32 %v1252, %v1253
  %v1255 = vrot.slane %v1254, 1
  %v1256 = vadd.f32 %v1254, %v1255
  %v1257 = vadd.f32 %v1161, %v1169
  %v1258 = vadd.f32 %v1257, %v1177
  %v1259 = vadd.f32 %v1258, %v1185
  %v1260 = vadd.f32 %v1259, %v1193
  %v1261 = vadd.f32 %v1260, %v1201
  %v1262 = vadd.f32 %v1261, %v1209
  %v1263 = vadd.f32 %v1262, %v1217
  %v1264 = vrot.slane %v1263, 4
  %v1265 = vadd.f32 %v1263, %v1264
  %v1266 = vrot.slane %v1265, 2
  %v1267 = vadd.f32 %v1265, %v1266
  %v1268 = vrot.slane %v1267, 1
  %v1269 = vadd.f32 %v1267, %v1268
  %vm1270 = vcmask 516096
  %v1271 = vsel %vm1270, %v1230, 0.0
  %1272 = vadd.xlane.f32.xlu0 %v1271
  %v1273 = vpop.xlane.xlu0 %1272
  %v1274 = vrot.slane %v1273, 4
  %v1275 = vadd.f32 %v1273, %v1274
  %v1276 = vrot.slane %v1275, 2
  %v1277 = vadd.f32 %v1275, %v1276
  %v1278 = vrot.slane %v1277, 1
  %v1279 = vadd.f32 %v1277, %v1278
  %s1280 = vtos %v1279
  %v1281 = vstv %s1280
  %vm1282 = vcmask 24576
  %1283 = vst.msk [vmem:[#allocation8] sm:$0x1] %vm1282, %v1281
  %1285 = vrot.lane.b32.xlu0 %v1230, 64
  %v1286 = vpop.permute.xlu0 %1285
  %v1288 = vsel %vm1270, %v1286, 0.0
  %1289 = vadd.xlane.f32.xlu0 %v1288
  %v1290 = vpop.xlane.xlu0 %1289
  %v1291 = vrot.slane %v1290, 4
  %v1292 = vadd.f32 %v1290, %v1291
  %v1293 = vrot.slane %v1292, 2
  %v1294 = vadd.f32 %v1292, %v1293
  %v1295 = vrot.slane %v1294, 1
  %v1296 = vadd.f32 %v1294, %v1295
  %s1297 = vtos %v1296
  %v1298 = vstv %s1297
  %vm1299 = vcmask 57376
  %1300 = vst.msk [vmem:[#allocation8] sm:$0x1] %vm1299, %v1298
  %v1301 = vsel %vm1270, %v1243, 0.0
  %1302 = vadd.xlane.f32.xlu0 %v1301
  %v1303 = vpop.xlane.xlu0 %1302
  %v1304 = vrot.slane %v1303, 4
  %v1305 = vadd.f32 %v1303, %v1304
  %v1306 = vrot.slane %v1305, 2
  %v1307 = vadd.f32 %v1305, %v1306
  %v1308 = vrot.slane %v1307, 1
  %v1309 = vadd.f32 %v1307, %v1308
  %s1310 = vtos %v1309
  %v1311 = vstv %s1310
  %vm1312 = vcmask 90176
  %1313 = vst.msk [vmem:[#allocation8] sm:$0x1] %vm1312, %v1311
  %1315 = vrot.lane.b32.xlu0 %v1243, 64
  %v1316 = vpop.permute.xlu0 %1315
  %v1318 = vsel %vm1270, %v1316, 0.0
  %1319 = vadd.xlane.f32.xlu0 %v1318
  %v1320 = vpop.xlane.xlu0 %1319
  %v1321 = vrot.slane %v1320, 4
  %v1322 = vadd.f32 %v1320, %v1321
  %v1323 = vrot.slane %v1322, 2
  %v1324 = vadd.f32 %v1322, %v1323
  %v1325 = vrot.slane %v1324, 1
  %v1326 = vadd.f32 %v1324, %v1325
  %s1327 = vtos %v1326
  %v1328 = vstv %s1327
  %vm1329 = vcmask 122976
  %1330 = vst.msk [vmem:[#allocation8] sm:$0x1] %vm1329, %v1328
  %v1331 = vsel %vm1270, %v1256, 0.0
  %1332 = vadd.xlane.f32.xlu0 %v1331
  %v1333 = vpop.xlane.xlu0 %1332
  %v1334 = vrot.slane %v1333, 4
  %v1335 = vadd.f32 %v1333, %v1334
  %v1336 = vrot.slane %v1335, 2
  %v1337 = vadd.f32 %v1335, %v1336
  %v1338 = vrot.slane %v1337, 1
  %v1339 = vadd.f32 %v1337, %v1338
  %s1340 = vtos %v1339
  %v1341 = vstv %s1340
  %vm1342 = vcmask 155776
  %1343 = vst.msk [vmem:[#allocation8] sm:$0x1] %vm1342, %v1341
  %1345 = vrot.lane.b32.xlu0 %v1256, 64
  %v1346 = vpop.permute.xlu0 %1345
  %v1348 = vsel %vm1270, %v1346, 0.0
  %1349 = vadd.xlane.f32.xlu0 %v1348
  %v1350 = vpop.xlane.xlu0 %1349
  %v1351 = vrot.slane %v1350, 4
  %v1352 = vadd.f32 %v1350, %v1351
  %v1353 = vrot.slane %v1352, 2
  %v1354 = vadd.f32 %v1352, %v1353
  %v1355 = vrot.slane %v1354, 1
  %v1356 = vadd.f32 %v1354, %v1355
  %s1357 = vtos %v1356
  %v1358 = vstv %s1357
  %vm1359 = vcmask 188576
  %1360 = vst.msk [vmem:[#allocation8] sm:$0x1] %vm1359, %v1358
  %v1361 = vsel %vm1270, %v1269, 0.0
  %1362 = vadd.xlane.f32.xlu0 %v1361
  %v1363 = vpop.xlane.xlu0 %1362
  %v1364 = vrot.slane %v1363, 4
  %v1365 = vadd.f32 %v1363, %v1364
  %v1366 = vrot.slane %v1365, 2
  %v1367 = vadd.f32 %v1365, %v1366
  %v1368 = vrot.slane %v1367, 1
  %v1369 = vadd.f32 %v1367, %v1368
  %s1370 = vtos %v1369
  %v1371 = vstv %s1370
  %vm1372 = vcmask 221376
  %1373 = vst.msk [vmem:[#allocation8] sm:$0x1] %vm1372, %v1371
  %1375 = vrot.lane.b32.xlu0 %v1269, 64
  %v1376 = vpop.permute.xlu0 %1375
  %v1378 = vsel %vm1270, %v1376, 0.0
  %1379 = vadd.xlane.f32.xlu0 %v1378
  %v1380 = vpop.xlane.xlu0 %1379
  %v1381 = vrot.slane %v1380, 4
  %v1382 = vadd.f32 %v1380, %v1381
  %v1383 = vrot.slane %v1382, 2
  %v1384 = vadd.f32 %v1382, %v1383
  %v1385 = vrot.slane %v1384, 1
  %v1386 = vadd.f32 %v1384, %v1385
  %s1387 = vtos %v1386
  %v1388 = vstv %s1387
  %vm1389 = vcmask 254176
  %1390 = vst.msk [vmem:[#allocation8] sm:$0x1] %vm1389, %v1388
  %v1391 = vld [vmem:[#allocation8] sm:$0x1]
  %v1392 = vrcp.pop %v1391
  %v1393 = vld [vmem:[#allocation5] sm:$0xff]
  %v1394 = vld [vmem:[#allocation5 + $0x8] sm:$0xff]
  %v1395 = vld [vmem:[#allocation5 + $0x10] sm:$0xff]
  %v1396 = vld [vmem:[#allocation5 + $0x18] sm:$0xff]
  %v1397 = vld [vmem:[#allocation5 + $0x20] sm:$0xff]
  %v1398 = vld [vmem:[#allocation5 + $0x28] sm:$0xff]
  %v1399 = vld [vmem:[#allocation5 + $0x30] sm:$0xff]
  %v1400 = vld [vmem:[#allocation5 + $0x38] sm:$0xff]
  %v1401 = vld [vmem:[#allocation5 + $0x40] sm:$0xff]
  %v1402 = vld [vmem:[#allocation5 + $0x48] sm:$0xff]
  %v1403 = vld [vmem:[#allocation5 + $0x50] sm:$0xff]
  %v1404 = vld [vmem:[#allocation5 + $0x58] sm:$0xff]
  %v1405 = vld [vmem:[#allocation5 + $0x60] sm:$0xff]
  %v1406 = vld [vmem:[#allocation5 + $0x68] sm:$0xff]
  %v1407 = vld [vmem:[#allocation5 + $0x70] sm:$0xff]
  %v1408 = vld [vmem:[#allocation5 + $0x78] sm:$0xff]
  %v1409 = vld [vmem:[#allocation5 + $0x80] sm:$0xff]
  %v1410 = vld [vmem:[#allocation5 + $0x88] sm:$0xff]
  %v1411 = vld [vmem:[#allocation5 + $0x90] sm:$0xff]
  %v1412 = vld [vmem:[#allocation5 + $0x98] sm:$0xff]
  %v1413 = vld [vmem:[#allocation5 + $0xa0] sm:$0xff]
  %v1414 = vld [vmem:[#allocation5 + $0xa8] sm:$0xff]
  %v1415 = vld [vmem:[#allocation5 + $0xb0] sm:$0xff]
  %v1416 = vld [vmem:[#allocation5 + $0xb8] sm:$0xff]
  %v1417 = vld [vmem:[#allocation5 + $0xc0] sm:$0xff]
  %v1418 = vld [vmem:[#allocation5 + $0xc8] sm:$0xff]
  %v1419 = vld [vmem:[#allocation5 + $0xd0] sm:$0xff]
  %v1420 = vld [vmem:[#allocation5 + $0xd8] sm:$0xff]
  %v1421 = vld [vmem:[#allocation5 + $0xe0] sm:$0xff]
  %v1422 = vld [vmem:[#allocation5 + $0xe8] sm:$0xff]
  %v1423 = vld [vmem:[#allocation5 + $0xf0] sm:$0xff]
  %v1424 = vld [vmem:[#allocation5 + $0xf8] sm:$0xff]
  %v1425 = vld [vmem:[#allocation5 + $0x100] sm:$0xff]
  %v1426 = vld [vmem:[#allocation5 + $0x108] sm:$0xff]
  %v1427 = vld [vmem:[#allocation5 + $0x110] sm:$0xff]
  %v1428 = vld [vmem:[#allocation5 + $0x118] sm:$0xff]
  %v1429 = vld [vmem:[#allocation5 + $0x120] sm:$0xff]
  %v1430 = vld [vmem:[#allocation5 + $0x128] sm:$0xff]
  %v1431 = vld [vmem:[#allocation5 + $0x130] sm:$0xff]
  %v1432 = vld [vmem:[#allocation5 + $0x138] sm:$0xff]
  %v1433 = vld [vmem:[#allocation5 + $0x140] sm:$0xff]
  %v1434 = vld [vmem:[#allocation5 + $0x148] sm:$0xff]
  %v1435 = vld [vmem:[#allocation5 + $0x150] sm:$0xff]
  %v1436 = vld [vmem:[#allocation5 + $0x158] sm:$0xff]
  %v1437 = vld [vmem:[#allocation5 + $0x160] sm:$0xff]
  %v1438 = vld [vmem:[#allocation5 + $0x168] sm:$0xff]
  %v1439 = vld [vmem:[#allocation5 + $0x170] sm:$0xff]
  %v1440 = vld [vmem:[#allocation5 + $0x178] sm:$0xff]
  %v1441 = vld [vmem:[#allocation5 + $0x180] sm:$0xff]
  %v1442 = vld [vmem:[#allocation5 + $0x188] sm:$0xff]
  %v1443 = vld [vmem:[#allocation5 + $0x190] sm:$0xff]
  %v1444 = vld [vmem:[#allocation5 + $0x198] sm:$0xff]
  %v1445 = vld [vmem:[#allocation5 + $0x1a0] sm:$0xff]
  %v1446 = vld [vmem:[#allocation5 + $0x1a8] sm:$0xff]
  %v1447 = vld [vmem:[#allocation5 + $0x1b0] sm:$0xff]
  %v1448 = vld [vmem:[#allocation5 + $0x1b8] sm:$0xff]
  %v1449 = vld [vmem:[#allocation5 + $0x1c0] sm:$0xff]
  %v1450 = vld [vmem:[#allocation5 + $0x1c8] sm:$0xff]
  %v1451 = vld [vmem:[#allocation5 + $0x1d0] sm:$0xff]
  %v1452 = vld [vmem:[#allocation5 + $0x1d8] sm:$0xff]
  %v1453 = vld [vmem:[#allocation5 + $0x1e0] sm:$0xff]
  %v1454 = vld [vmem:[#allocation5 + $0x1e8] sm:$0xff]
  %v1455 = vld [vmem:[#allocation5 + $0x1f0] sm:$0xff]
  %v1456 = vld [vmem:[#allocation5 + $0x1f8] sm:$0xff]
  %1457 = vmatpush.msra.mxu0 %v1408
  %1458 = vmatpush.msra.mxu0 %v1407
  %1459 = vmatpush.msra.mxu0 %v1406
  %1460 = vmatpush.msra.mxu0 %v1405
  %1461 = vmatpush.msra.mxu0 %v1404
  %1462 = vmatpush.msra.mxu0 %v1403
  %1463 = vmatpush.msra.mxu0 %v1402
  %1464 = vmatpush.msra.mxu0 %v1401
  %1465 = vmatpush.msra.mxu0 %v1400
  %1466 = vmatpush.msra.mxu0 %v1399
  %1467 = vmatpush.msra.mxu0 %v1398
  %1468 = vmatpush.msra.mxu0 %v1397
  %1469 = vmatpush.msra.mxu0 %v1396
  %1470 = vmatpush.msra.mxu0 %v1395
  %1471 = vmatpush.msra.mxu0 %v1394
  %1472 = vmatpush.msra.mxu0 %v1393
  %1473 = vmatmul.f32.gmra.mxu0 %v1155
  %v1474 = vpop.f32.mrf.mxu0
  %v1475 = vadd.f32 0.0, %v1474
  %1476 = vmatmul.f32.gmra.mxu0 %v1163
  %v1477 = vpop.f32.mrf.mxu0
  %v1478 = vadd.f32 0.0, %v1477
  %1479 = vmatmul.f32.gmra.mxu0 %v1171
  %v1480 = vpop.f32.mrf.mxu0
  %v1481 = vadd.f32 0.0, %v1480
  %1482 = vmatmul.f32.gmra.mxu0 %v1179
  %v1483 = vpop.f32.mrf.mxu0
  %v1484 = vadd.f32 0.0, %v1483
  %1485 = vmatmul.f32.gmra.mxu0 %v1187
  %v1486 = vpop.f32.mrf.mxu0
  %v1487 = vadd.f32 0.0, %v1486
  %1488 = vmatmul.f32.gmra.mxu0 %v1195
  %v1489 = vpop.f32.mrf.mxu0
  %v1490 = vadd.f32 0.0, %v1489
  %1491 = vmatmul.f32.gmra.mxu0 %v1203
  %v1492 = vpop.f32.mrf.mxu0
  %v1493 = vadd.f32 0.0, %v1492
  %1494 = vmatmul.f32.gmra.mxu0 %v1211
  %v1495 = vpop.f32.mrf.mxu0
  %v1496 = vadd.f32 0.0, %v1495
  %1497 = vdwg.mxu0
  %1498 = vmatpush.msra.mxu0 %v1424
  %1499 = vmatpush.msra.mxu0 %v1423
  %1500 = vmatpush.msra.mxu0 %v1422
  %1501 = vmatpush.msra.mxu0 %v1421
  %1502 = vmatpush.msra.mxu0 %v1420
  %1503 = vmatpush.msra.mxu0 %v1419
  %1504 = vmatpush.msra.mxu0 %v1418
  %1505 = vmatpush.msra.mxu0 %v1417
  %1506 = vmatpush.msra.mxu0 %v1416
  %1507 = vmatpush.msra.mxu0 %v1415
  %1508 = vmatpush.msra.mxu0 %v1414
  %1509 = vmatpush.msra.mxu0 %v1413
  %1510 = vmatpush.msra.mxu0 %v1412
  %1511 = vmatpush.msra.mxu0 %v1411
  %1512 = vmatpush.msra.mxu0 %v1410
  %1513 = vmatpush.msra.mxu0 %v1409
  %1514 = vmatmul.f32.gmra.mxu0 %v1157
  %v1515 = vpop.f32.mrf.mxu0
  %v1516 = vadd.f32 %v1475, %v1515
  %1517 = vmatmul.f32.gmra.mxu0 %v1165
  %v1518 = vpop.f32.mrf.mxu0
  %v1519 = vadd.f32 %v1478, %v1518
  %1520 = vmatmul.f32.gmra.mxu0 %v1173
  %v1521 = vpop.f32.mrf.mxu0
  %v1522 = vadd.f32 %v1481, %v1521
  %1523 = vmatmul.f32.gmra.mxu0 %v1181
  %v1524 = vpop.f32.mrf.mxu0
  %v1525 = vadd.f32 %v1484, %v1524
  %1526 = vmatmul.f32.gmra.mxu0 %v1189
  %v1527 = vpop.f32.mrf.mxu0
  %v1528 = vadd.f32 %v1487, %v1527
  %1529 = vmatmul.f32.gmra.mxu0 %v1197
  %v1530 = vpop.f32.mrf.mxu0
  %v1531 = vadd.f32 %v1490, %v1530
  %1532 = vmatmul.f32.gmra.mxu0 %v1205
  %v1533 = vpop.f32.mrf.mxu0
  %v1534 = vadd.f32 %v1493, %v1533
  %1535 = vmatmul.f32.gmra.mxu0 %v1213
  %v1536 = vpop.f32.mrf.mxu0
  %v1537 = vadd.f32 %v1496, %v1536
  %1538 = vdwg.mxu0
  %1539 = vmatpush.msra.mxu0 %v1440
  %1540 = vmatpush.msra.mxu0 %v1439
  %1541 = vmatpush.msra.mxu0 %v1438
  %1542 = vmatpush.msra.mxu0 %v1437
  %1543 = vmatpush.msra.mxu0 %v1436
  %1544 = vmatpush.msra.mxu0 %v1435
  %1545 = vmatpush.msra.mxu0 %v1434
  %1546 = vmatpush.msra.mxu0 %v1433
  %1547 = vmatpush.msra.mxu0 %v1432
  %1548 = vmatpush.msra.mxu0 %v1431
  %1549 = vmatpush.msra.mxu0 %v1430
  %1550 = vmatpush.msra.mxu0 %v1429
  %1551 = vmatpush.msra.mxu0 %v1428
  %1552 = vmatpush.msra.mxu0 %v1427
  %1553 = vmatpush.msra.mxu0 %v1426
  %1554 = vmatpush.msra.mxu0 %v1425
  %1555 = vmatmul.f32.gmra.mxu0 %v1159
  %v1556 = vpop.f32.mrf.mxu0
  %v1557 = vadd.f32 %v1516, %v1556
  %1558 = vmatmul.f32.gmra.mxu0 %v1167
  %v1559 = vpop.f32.mrf.mxu0
  %v1560 = vadd.f32 %v1519, %v1559
  %1561 = vmatmul.f32.gmra.mxu0 %v1175
  %v1562 = vpop.f32.mrf.mxu0
  %v1563 = vadd.f32 %v1522, %v1562
  %1564 = vmatmul.f32.gmra.mxu0 %v1183
  %v1565 = vpop.f32.mrf.mxu0
  %v1566 = vadd.f32 %v1525, %v1565
  %1567 = vmatmul.f32.gmra.mxu0 %v1191
  %v1568 = vpop.f32.mrf.mxu0
  %v1569 = vadd.f32 %v1528, %v1568
  %1570 = vmatmul.f32.gmra.mxu0 %v1199
  %v1571 = vpop.f32.mrf.mxu0
  %v1572 = vadd.f32 %v1531, %v1571
  %1573 = vmatmul.f32.gmra.mxu0 %v1207
  %v1574 = vpop.f32.mrf.mxu0
  %v1575 = vadd.f32 %v1534, %v1574
  %1576 = vmatmul.f32.gmra.mxu0 %v1215
  %v1577 = vpop.f32.mrf.mxu0
  %v1578 = vadd.f32 %v1537, %v1577
  %1579 = vdwg.mxu0
  %1580 = vmatpush.msra.mxu0 %v1456
  %1581 = vmatpush.msra.mxu0 %v1455
  %1582 = vmatpush.msra.mxu0 %v1454
  %1583 = vmatpush.msra.mxu0 %v1453
  %1584 = vmatpush.msra.mxu0 %v1452
  %1585 = vmatpush.msra.mxu0 %v1451
  %1586 = vmatpush.msra.mxu0 %v1450
  %1587 = vmatpush.msra.mxu0 %v1449
  %1588 = vmatpush.msra.mxu0 %v1448
  %1589 = vmatpush.msra.mxu0 %v1447
  %1590 = vmatpush.msra.mxu0 %v1446
  %1591 = vmatpush.msra.mxu0 %v1445
  %1592 = vmatpush.msra.mxu0 %v1444
  %1593 = vmatpush.msra.mxu0 %v1443
  %1594 = vmatpush.msra.mxu0 %v1442
  %1595 = vmatpush.msra.mxu0 %v1441
  %1596 = vmatmul.f32.gmra.mxu0 %v1161
  %v1597 = vpop.f32.mrf.mxu0
  %v1598 = vadd.f32 %v1557, %v1597
  %1599 = vmatmul.f32.gmra.mxu0 %v1169
  %v1600 = vpop.f32.mrf.mxu0
  %v1601 = vadd.f32 %v1560, %v1600
  %1602 = vmatmul.f32.gmra.mxu0 %v1177
  %v1603 = vpop.f32.mrf.mxu0
  %v1604 = vadd.f32 %v1563, %v1603
  %1605 = vmatmul.f32.gmra.mxu0 %v1185
  %v1606 = vpop.f32.mrf.mxu0
  %v1607 = vadd.f32 %v1566, %v1606
  %1608 = vmatmul.f32.gmra.mxu0 %v1193
  %v1609 = vpop.f32.mrf.mxu0
  %v1610 = vadd.f32 %v1569, %v1609
  %1611 = vmatmul.f32.gmra.mxu0 %v1201
  %v1612 = vpop.f32.mrf.mxu0
  %v1613 = vadd.f32 %v1572, %v1612
  %1614 = vmatmul.f32.gmra.mxu0 %v1209
  %v1615 = vpop.f32.mrf.mxu0
  %v1616 = vadd.f32 %v1575, %v1615
  %1617 = vmatmul.f32.gmra.mxu0 %v1217
  %v1618 = vpop.f32.mrf.mxu0
  %v1619 = vadd.f32 %v1578, %v1618
  %1620 = vdwg.mxu0
  %v1622 = vperm.slane %v1392, 0
  %v1624 = vmul.f32 %v1598, %v1622
  %v1625 = vmul.f32 %v1601, %v1622
  %v1626 = vmul.f32 %v1604, %v1622
  %v1627 = vmul.f32 %v1607, %v1622
  %v1628 = vmul.f32 %v1610, %v1622
  %v1629 = vmul.f32 %v1613, %v1622
  %v1630 = vmul.f32 %v1616, %v1622
  %v1631 = vmul.f32 %v1619, %v1622
  %1632 = vst.msk [vmem:[#allocation6] sm:$0xff] %vm415, %v1624
  %1633 = vst.msk [vmem:[#allocation6 + $0x8] sm:$0xff] %vm415, %v1625
  %1634 = vst.msk [vmem:[#allocation6 + $0x10] sm:$0xff] %vm415, %v1626
  %1635 = vst.msk [vmem:[#allocation6 + $0x18] sm:$0xff] %vm415, %v1627
  %1636 = vst.msk [vmem:[#allocation6 + $0x20] sm:$0xff] %vm415, %v1628
  %1637 = vst.msk [vmem:[#allocation6 + $0x28] sm:$0xff] %vm415, %v1629
  %1638 = vst.msk [vmem:[#allocation6 + $0x30] sm:$0xff] %vm415, %v1630
  %1639 = vst.msk [vmem:[#allocation6 + $0x38] sm:$0xff] %vm415, %v1631
  %v1640 = vld [vmem:[#allocation2 + $0x40] sm:$0xff]
  %v1641 = vld [vmem:[#allocation2 + $0x48] sm:$0xff]
  %v1642 = vld [vmem:[#allocation2 + $0x50] sm:$0xff]
  %v1643 = vld [vmem:[#allocation2 + $0x58] sm:$0xff]
  %v1644 = vld [vmem:[#allocation2 + $0x60] sm:$0xff]
  %v1645 = vld [vmem:[#allocation2 + $0x68] sm:$0xff]
  %v1646 = vld [vmem:[#allocation2 + $0x70] sm:$0xff]
  %v1647 = vld [vmem:[#allocation2 + $0x78] sm:$0xff]
  %v1648 = vld [vmem:[#allocation3] sm:$0xff]
  %v1649 = vld [vmem:[#allocation3 + $0x10] sm:$0xff]
  %v1650 = vld [vmem:[#allocation3 + $0x20] sm:$0xff]
  %v1651 = vld [vmem:[#allocation3 + $0x30] sm:$0xff]
  %v1652 = vsel %vm415, %v1640, 0.0
  %v1653 = vsel %vm415, %v1641, 0.0
  %v1654 = vadd.f32 %v1652, %v1653
  %v1655 = vsel %vm415, %v1642, 0.0
  %v1656 = vadd.f32 %v1654, %v1655
  %v1657 = vsel %vm415, %v1643, 0.0
  %v1658 = vadd.f32 %v1656, %v1657
  %v1659 = vsel %vm415, %v1644, 0.0
  %v1660 = vadd.f32 %v1658, %v1659
  %v1661 = vsel %vm415, %v1645, 0.0
  %v1662 = vadd.f32 %v1660, %v1661
  %v1663 = vsel %vm415, %v1646, 0.0
  %v1664 = vadd.f32 %v1662, %v1663
  %v1665 = vsel %vm415, %v1647, 0.0
  %v1666 = vadd.f32 %v1664, %v1665
  %v1667 = vrot.slane %v1666, 4
  %v1668 = vadd.f32 %v1666, %v1667
  %v1669 = vrot.slane %v1668, 2
  %v1670 = vadd.f32 %v1668, %v1669
  %v1671 = vrot.slane %v1670, 1
  %v1672 = vadd.f32 %v1670, %v1671
  %v1673 = vmul.f32 %v1672, %v519
  %v1674 = vsub.f32 %v1640, %v1673
  %v1675 = vsub.f32 %v1641, %v1673
  %v1676 = vsub.f32 %v1642, %v1673
  %v1677 = vsub.f32 %v1643, %v1673
  %v1678 = vsub.f32 %v1644, %v1673
  %v1679 = vsub.f32 %v1645, %v1673
  %v1680 = vsub.f32 %v1646, %v1673
  %v1681 = vsub.f32 %v1647, %v1673
  %v1682 = vmul.f32 %v1674, %v1674
  %v1683 = vmul.f32 %v1675, %v1675
  %v1684 = vmul.f32 %v1676, %v1676
  %v1685 = vmul.f32 %v1677, %v1677
  %v1686 = vmul.f32 %v1678, %v1678
  %v1687 = vmul.f32 %v1679, %v1679
  %v1688 = vmul.f32 %v1680, %v1680
  %v1689 = vmul.f32 %v1681, %v1681
  %v1690 = vsel %vm415, %v1682, 0.0
  %v1691 = vsel %vm415, %v1683, 0.0
  %v1692 = vadd.f32 %v1690, %v1691
  %v1693 = vsel %vm415, %v1684, 0.0
  %v1694 = vadd.f32 %v1692, %v1693
  %v1695 = vsel %vm415, %v1685, 0.0
  %v1696 = vadd.f32 %v1694, %v1695
  %v1697 = vsel %vm415, %v1686, 0.0
  %v1698 = vadd.f32 %v1696, %v1697
  %v1699 = vsel %vm415, %v1687, 0.0
  %v1700 = vadd.f32 %v1698, %v1699
  %v1701 = vsel %vm415, %v1688, 0.0
  %v1702 = vadd.f32 %v1700, %v1701
  %v1703 = vsel %vm415, %v1689, 0.0
  %v1704 = vadd.f32 %v1702, %v1703
  %v1705 = vrot.slane %v1704, 4
  %v1706 = vadd.f32 %v1704, %v1705
  %v1707 = vrot.slane %v1706, 2
  %v1708 = vadd.f32 %v1706, %v1707
  %v1709 = vrot.slane %v1708, 1
  %v1710 = vadd.f32 %v1708, %v1709
  %v1711 = vmul.f32 %v1710, %v519
  %v1712 = vadd.f32 %v1711, 1e-05
  %v1713 = vrsqrt.pop %v1712
  %v1714 = vmul.f32 %v1713, %v1712
  %v1715 = vmul.f32 %v1714, %v1713
  %v1716 = vmul.f32 0.5, %v1715
  %v1717 = vsub.f32 1.5, %v1716
  %v1718 = vmul.f32 %v1713, %v1717
  %vm1719 = vweird.f32 %v1712
  %vm1720 = vweird.f32 %v1713
  %vm1721 = vmor %vm1719, %vm1720
  %v1722 = vsel %vm1721, %v1713, %v1718
  %v1723 = vmul.f32 %v1674, %v1722
  %v1724 = vmul.f32 %v1675, %v1722
  %v1725 = vmul.f32 %v1676, %v1722
  %v1726 = vmul.f32 %v1677, %v1722
  %v1727 = vmul.f32 %v1678, %v1722
  %v1728 = vmul.f32 %v1679, %v1722
  %v1729 = vmul.f32 %v1680, %v1722
  %v1730 = vmul.f32 %v1681, %v1722
  %1735 = vrot.lane.b32.xlu0 %v1648, 64
  %v1736 = vpop.permute.xlu0 %1735
  %1737 = vrot.lane.b32.xlu0 %v1649, 64
  %v1738 = vpop.permute.xlu0 %1737
  %1739 = vrot.lane.b32.xlu0 %v1650, 64
  %v1740 = vpop.permute.xlu0 %1739
  %1741 = vrot.lane.b32.xlu0 %v1651, 64
  %v1742 = vpop.permute.xlu0 %1741
  %v1747 = vsel %vm272, %v1736, 0.0
  %1748 = vadd.xlane.f32.xlu0 %v1747
  %v1749 = vpop.xlane.xlu0 %1748
  %v1750 = vsel %vm272, %v1738, 0.0
  %1751 = vadd.xlane.f32.xlu0 %v1750
  %v1752 = vpop.xlane.xlu0 %1751
  %v1753 = vsel %vm272, %v1740, 0.0
  %1754 = vadd.xlane.f32.xlu0 %v1753
  %v1755 = vpop.xlane.xlu0 %1754
  %v1756 = vsel %vm272, %v1742, 0.0
  %1757 = vadd.xlane.f32.xlu0 %v1756
  %v1758 = vpop.xlane.xlu0 %1757
  %v1759 = vmul.f32 %v1749, %v519
  %v1760 = vmul.f32 %v1752, %v519
  %v1761 = vmul.f32 %v1755, %v519
  %v1762 = vmul.f32 %v1758, %v519
  %v1763 = vsub.f32 %v1648, %v1759
  %v1764 = vsub.f32 %v1649, %v1760
  %v1765 = vsub.f32 %v1650, %v1761
  %v1766 = vsub.f32 %v1651, %v1762
  %v1767 = vmul.f32 %v1763, %v1763
  %v1768 = vmul.f32 %v1764, %v1764
  %v1769 = vmul.f32 %v1765, %v1765
  %v1770 = vmul.f32 %v1766, %v1766
  %1775 = vrot.lane.b32.xlu0 %v1767, 64
  %v1776 = vpop.permute.xlu0 %1775
  %1777 = vrot.lane.b32.xlu0 %v1768, 64
  %v1778 = vpop.permute.xlu0 %1777
  %1779 = vrot.lane.b32.xlu0 %v1769, 64
  %v1780 = vpop.permute.xlu0 %1779
  %1781 = vrot.lane.b32.xlu0 %v1770, 64
  %v1782 = vpop.permute.xlu0 %1781
  %v1787 = vsel %vm272, %v1776, 0.0
  %1788 = vadd.xlane.f32.xlu0 %v1787
  %v1789 = vpop.xlane.xlu0 %1788
  %v1790 = vsel %vm272, %v1778, 0.0
  %1791 = vadd.xlane.f32.xlu0 %v1790
  %v1792 = vpop.xlane.xlu0 %1791
  %v1793 = vsel %vm272, %v1780, 0.0
  %1794 = vadd.xlane.f32.xlu0 %v1793
  %v1795 = vpop.xlane.xlu0 %1794
  %v1796 = vsel %vm272, %v1782, 0.0
  %1797 = vadd.xlane.f32.xlu0 %v1796
  %v1798 = vpop.xlane.xlu0 %1797
  %v1799 = vmul.f32 %v1789, %v519
  %v1800 = vmul.f32 %v1792, %v519
  %v1801 = vmul.f32 %v1795, %v519
  %v1802 = vmul.f32 %v1798, %v519
  %v1803 = vadd.f32 %v1799, 1e-05
  %v1804 = vadd.f32 %v1800, 1e-05
  %v1805 = vadd.f32 %v1801, 1e-05
  %v1806 = vadd.f32 %v1802, 1e-05
  %v1807 = vrsqrt.pop %v1803
  %v1808 = vmul.f32 %v1807, %v1803
  %v1809 = vmul.f32 %v1808, %v1807
  %v1810 = vmul.f32 0.5, %v1809
  %v1811 = vsub.f32 1.5, %v1810
  %v1812 = vmul.f32 %v1807, %v1811
  %vm1813 = vweird.f32 %v1803
  %vm1814 = vweird.f32 %v1807
  %vm1815 = vmor %vm1813, %vm1814
  %v1816 = vsel %vm1815, %v1807, %v1812
  %v1817 = vrsqrt.pop %v1804
  %v1818 = vmul.f32 %v1817, %v1804
  %v1819 = vmul.f32 %v1818, %v1817
  %v1820 = vmul.f32 0.5, %v1819
  %v1821 = vsub.f32 1.5, %v1820
  %v1822 = vmul.f32 %v1817, %v1821
  %vm1823 = vweird.f32 %v1804
  %vm1824 = vweird.f32 %v1817
  %vm1825 = vmor %vm1823, %vm1824
  %v1826 = vsel %vm1825, %v1817, %v1822
  %v1827 = vrsqrt.pop %v1805
  %v1828 = vmul.f32 %v1827, %v1805
  %v1829 = vmul.f32 %v1828, %v1827
  %v1830 = vmul.f32 0.5, %v1829
  %v1831 = vsub.f32 1.5, %v1830
  %v1832 = vmul.f32 %v1827, %v1831
  %vm1833 = vweird.f32 %v1805
  %vm1834 = vweird.f32 %v1827
  %vm1835 = vmor %vm1833, %vm1834
  %v1836 = vsel %vm1835, %v1827, %v1832
  %v1837 = vrsqrt.pop %v1806
  %v1838 = vmul.f32 %v1837, %v1806
  %v1839 = vmul.f32 %v1838, %v1837
  %v1840 = vmul.f32 0.5, %v1839
  %v1841 = vsub.f32 1.5, %v1840
  %v1842 = vmul.f32 %v1837, %v1841
  %vm1843 = vweird.f32 %v1806
  %vm1844 = vweird.f32 %v1837
  %vm1845 = vmor %vm1843, %vm1844
  %v1846 = vsel %vm1845, %v1837, %v1842
  %v1847 = vmul.f32 %v1763, %v1816
  %v1848 = vmul.f32 %v1764, %v1826
  %v1849 = vmul.f32 %v1765, %v1836
  %v1850 = vmul.f32 %v1766, %v1846
  %v1851 = vmul.f32 %v1847, 0.5
  %v1852 = vmul.f32 %v1848, 0.5
  %v1853 = vmul.f32 %v1849, 0.5
  %v1854 = vmul.f32 %v1850, 0.5
  %1856 = vrot.lane.b32.xlu0 %v1851, 64
  %v1857 = vpop.permute.xlu0 %1856
  %1859 = vst.msk [vmem:[#allocation4] sm:$0xf] %vm670, %v1857
  %1868 = vrot.lane.b32.xlu0 %v1640, 96
  %v1869 = vpop.permute.xlu0 %1868
  %1870 = vrot.lane.b32.xlu0 %v1641, 96
  %v1871 = vpop.permute.xlu0 %1870
  %1872 = vrot.lane.b32.xlu0 %v1642, 96
  %v1873 = vpop.permute.xlu0 %1872
  %1874 = vrot.lane.b32.xlu0 %v1643, 96
  %v1875 = vpop.permute.xlu0 %1874
  %1876 = vrot.lane.b32.xlu0 %v1644, 96
  %v1877 = vpop.permute.xlu0 %1876
  %1878 = vrot.lane.b32.xlu0 %v1645, 96
  %v1879 = vpop.permute.xlu0 %1878
  %1880 = vrot.lane.b32.xlu0 %v1646, 96
  %v1881 = vpop.permute.xlu0 %1880
  %1882 = vrot.lane.b32.xlu0 %v1647, 96
  %v1883 = vpop.permute.xlu0 %1882
  %1892 = vst.msk [vmem:[#allocation5] sm:$0xff] %vm704, %v1869
  %1893 = vst.msk [vmem:[#allocation5 + $0x8] sm:$0xff] %vm704, %v1871
  %1894 = vst.msk [vmem:[#allocation5 + $0x10] sm:$0xff] %vm704, %v1873
  %1895 = vst.msk [vmem:[#allocation5 + $0x18] sm:$0xff] %vm704, %v1875
  %1896 = vst.msk [vmem:[#allocation5 + $0x20] sm:$0xff] %vm704, %v1877
  %1897 = vst.msk [vmem:[#allocation5 + $0x28] sm:$0xff] %vm704, %v1879
  %1898 = vst.msk [vmem:[#allocation5 + $0x30] sm:$0xff] %vm704, %v1881
  %1899 = vst.msk [vmem:[#allocation5 + $0x38] sm:$0xff] %vm704, %v1883
  %1900 = vst.msk [vmem:[#allocation4] sm:$0xf0] %vm717, %v1851
  %1901 = vst.msk [vmem:[#allocation5 + $0x40] sm:$0xff] %vm719, %v1869
  %1902 = vst.msk [vmem:[#allocation5 + $0x48] sm:$0xff] %vm719, %v1871
  %1903 = vst.msk [vmem:[#allocation5 + $0x50] sm:$0xff] %vm719, %v1873
  %1904 = vst.msk [vmem:[#allocation5 + $0x58] sm:$0xff] %vm719, %v1875
  %1905 = vst.msk [vmem:[#allocation5 + $0x60] sm:$0xff] %vm719, %v1877
  %1906 = vst.msk [vmem:[#allocation5 + $0x68] sm:$0xff] %vm719, %v1879
  %1907 = vst.msk [vmem:[#allocation5 + $0x70] sm:$0xff] %vm719, %v1881
  %1908 = vst.msk [vmem:[#allocation5 + $0x78] sm:$0xff] %vm719, %v1883
  %1910 = vrot.lane.b32.xlu0 %v1852, 64
  %v1911 = vpop.permute.xlu0 %1910
  %1913 = vst.msk [vmem:[#allocation4 + $0x28] sm:$0xf] %vm670, %v1911
  %1914 = vst.msk [vmem:[#allocation5 + $0x80] sm:$0xff] %vm729, %v1869
  %1915 = vst.msk [vmem:[#allocation5 + $0x88] sm:$0xff] %vm729, %v1871
  %1916 = vst.msk [vmem:[#allocation5 + $0x90] sm:$0xff] %vm729, %v1873
  %1917 = vst.msk [vmem:[#allocation5 + $0x98] sm:$0xff] %vm729, %v1875
  %1918 = vst.msk [vmem:[#allocation5 + $0xa0] sm:$0xff] %vm729, %v1877
  %1919 = vst.msk [vmem:[#allocation5 + $0xa8] sm:$0xff] %vm729, %v1879
  %1920 = vst.msk [vmem:[#allocation5 + $0xb0] sm:$0xff] %vm729, %v1881
  %1921 = vst.msk [vmem:[#allocation5 + $0xb8] sm:$0xff] %vm729, %v1883
  %1922 = vst.msk [vmem:[#allocation4 + $0x28] sm:$0xf0] %vm717, %v1852
  %1923 = vst.msk [vmem:[#allocation5 + $0xc0] sm:$0xff] %vm743, %v1869
  %1924 = vst.msk [vmem:[#allocation5 + $0xc8] sm:$0xff] %vm743, %v1871
  %1925 = vst.msk [vmem:[#allocation5 + $0xd0] sm:$0xff] %vm743, %v1873
  %1926 = vst.msk [vmem:[#allocation5 + $0xd8] sm:$0xff] %vm743, %v1875
  %1927 = vst.msk [vmem:[#allocation5 + $0xe0] sm:$0xff] %vm743, %v1877
  %1928 = vst.msk [vmem:[#allocation5 + $0xe8] sm:$0xff] %vm743, %v1879
  %1929 = vst.msk [vmem:[#allocation5 + $0xf0] sm:$0xff] %vm743, %v1881
  %1930 = vst.msk [vmem:[#allocation5 + $0xf8] sm:$0xff] %vm743, %v1883
  %1932 = vrot.lane.b32.xlu0 %v1853, 64
  %v1933 = vpop.permute.xlu0 %1932
  %1935 = vst.msk [vmem:[#allocation4 + $0x50] sm:$0xf] %vm670, %v1933
  %1936 = vst.msk [vmem:[#allocation5 + $0x100] sm:$0xff] %vm753, %v1869
  %1937 = vst.msk [vmem:[#allocation5 + $0x108] sm:$0xff] %vm753, %v1871
  %1938 = vst.msk [vmem:[#allocation5 + $0x110] sm:$0xff] %vm753, %v1873
  %1939 = vst.msk [vmem:[#allocation5 + $0x118] sm:$0xff] %vm753, %v1875
  %1940 = vst.msk [vmem:[#allocation5 + $0x120] sm:$0xff] %vm753, %v1877
  %1941 = vst.msk [vmem:[#allocation5 + $0x128] sm:$0xff] %vm753, %v1879
  %1942 = vst.msk [vmem:[#allocation5 + $0x130] sm:$0xff] %vm753, %v1881
  %1943 = vst.msk [vmem:[#allocation5 + $0x138] sm:$0xff] %vm753, %v1883
  %1944 = vst.msk [vmem:[#allocation4 + $0x50] sm:$0xf0] %vm717, %v1853
  %1945 = vst.msk [vmem:[#allocation5 + $0x140] sm:$0xff] %vm767, %v1869
  %1946 = vst.msk [vmem:[#allocation5 + $0x148] sm:$0xff] %vm767, %v1871
  %1947 = vst.msk [vmem:[#allocation5 + $0x150] sm:$0xff] %vm767, %v1873
  %1948 = vst.msk [vmem:[#allocation5 + $0x158] sm:$0xff] %vm767, %v1875
  %1949 = vst.msk [vmem:[#allocation5 + $0x160] sm:$0xff] %vm767, %v1877
  %1950 = vst.msk [vmem:[#allocation5 + $0x168] sm:$0xff] %vm767, %v1879
  %1951 = vst.msk [vmem:[#allocation5 + $0x170] sm:$0xff] %vm767, %v1881
  %1952 = vst.msk [vmem:[#allocation5 + $0x178] sm:$0xff] %vm767, %v1883
  %1954 = vrot.lane.b32.xlu0 %v1854, 64
  %v1955 = vpop.permute.xlu0 %1954
  %1957 = vst.msk [vmem:[#allocation4 + $0x78] sm:$0xf] %vm670, %v1955
  %1958 = vst.msk [vmem:[#allocation5 + $0x180] sm:$0xff] %vm777, %v1869
  %1959 = vst.msk [vmem:[#allocation5 + $0x188] sm:$0xff] %vm777, %v1871
  %1960 = vst.msk [vmem:[#allocation5 + $0x190] sm:$0xff] %vm777, %v1873
  %1961 = vst.msk [vmem:[#allocation5 + $0x198] sm:$0xff] %vm777, %v1875
  %1962 = vst.msk [vmem:[#allocation5 + $0x1a0] sm:$0xff] %vm777, %v1877
  %1963 = vst.msk [vmem:[#allocation5 + $0x1a8] sm:$0xff] %vm777, %v1879
  %1964 = vst.msk [vmem:[#allocation5 + $0x1b0] sm:$0xff] %vm777, %v1881
  %1965 = vst.msk [vmem:[#allocation5 + $0x1b8] sm:$0xff] %vm777, %v1883
  %1966 = vst.msk [vmem:[#allocation4 + $0x78] sm:$0xf0] %vm717, %v1854
  %1967 = vst.msk [vmem:[#allocation5 + $0x1c0] sm:$0xff] %vm791, %v1869
  %1968 = vst.msk [vmem:[#allocation5 + $0x1c8] sm:$0xff] %vm791, %v1871
  %1969 = vst.msk [vmem:[#allocation5 + $0x1d0] sm:$0xff] %vm791, %v1873
  %1970 = vst.msk [vmem:[#allocation5 + $0x1d8] sm:$0xff] %vm791, %v1875
  %1971 = vst.msk [vmem:[#allocation5 + $0x1e0] sm:$0xff] %vm791, %v1877
  %1972 = vst.msk [vmem:[#allocation5 + $0x1e8] sm:$0xff] %vm791, %v1879
  %1973 = vst.msk [vmem:[#allocation5 + $0x1f0] sm:$0xff] %vm791, %v1881
  %1974 = vst.msk [vmem:[#allocation5 + $0x1f8] sm:$0xff] %vm791, %v1883
  %v1975 = vld [vmem:[#allocation4] sm:$0xff]
  %v1976 = vld [vmem:[#allocation4 + $0x8] sm:$0xff]
  %v1977 = vld [vmem:[#allocation4 + $0x10] sm:$0xff]
  %v1978 = vld [vmem:[#allocation4 + $0x18] sm:$0xff]
  %v1979 = vld [vmem:[#allocation4 + $0x20] sm:$0xff]
  %v1980 = vld [vmem:[#allocation4 + $0x28] sm:$0xff]
  %v1981 = vld [vmem:[#allocation4 + $0x30] sm:$0xff]
  %v1982 = vld [vmem:[#allocation4 + $0x38] sm:$0xff]
  %v1983 = vld [vmem:[#allocation4 + $0x40] sm:$0xff]
  %v1984 = vld [vmem:[#allocation4 + $0x48] sm:$0xff]
  %v1985 = vld [vmem:[#allocation4 + $0x50] sm:$0xff]
  %v1986 = vld [vmem:[#allocation4 + $0x58] sm:$0xff]
  %v1987 = vld [vmem:[#allocation4 + $0x60] sm:$0xff]
  %v1988 = vld [vmem:[#allocation4 + $0x68] sm:$0xff]
  %v1989 = vld [vmem:[#allocation4 + $0x70] sm:$0xff]
  %v1990 = vld [vmem:[#allocation4 + $0x78] sm:$0xff]
  %v1992 = vsel %vm415, %v1723, 0
  %v1995 = vsel %vm415, %v1724, 0
  %v1998 = vsel %vm415, %v1725, 0
  %v2001 = vsel %vm415, %v1726, 0
  %v2004 = vsel %vm415, %v1727, 0
  %v2007 = vsel %vm415, %v1728, 0
  %v2010 = vsel %vm415, %v1729, 0
  %v2013 = vsel %vm415, %v1730, 0
  %2015 = vmatpush.msra.mxu0 0.0
  %2016 = vmatpush.msra.mxu0 0.0
  %2017 = vmatpush.msra.mxu0 0.0
  %2018 = vmatpush.msra.mxu0 0.0
  %2019 = vmatpush.msra.mxu0 0.0
  %2020 = vmatpush.msra.mxu0 0.0
  %2021 = vmatpush.msra.mxu0 0.0
  %2022 = vmatpush.msra.mxu0 0.0
  %2023 = vmatpush.msra.mxu0 0.0
  %2024 = vmatpush.msra.mxu0 0.0
  %2025 = vmatpush.msra.mxu0 0.0
  %2026 = vmatpush.msra.mxu0 0.0
  %2027 = vmatpush.msra.mxu0 %v1987
  %2028 = vmatpush.msra.mxu0 %v1983
  %2029 = vmatpush.msra.mxu0 %v1979
  %2030 = vmatpush.msra.mxu0 %v1975
  %2031 = vmatmul.f32.gmra.mxu0 %v1992
  %v2032 = vpop.f32.mrf.mxu0
  %v2033 = vadd.f32 0.0, %v2032
  %2034 = vmatmul.f32.gmra.mxu0 %v1995
  %v2035 = vpop.f32.mrf.mxu0
  %v2036 = vadd.f32 0.0, %v2035
  %2037 = vmatmul.f32.gmra.mxu0 %v1998
  %v2038 = vpop.f32.mrf.mxu0
  %v2039 = vadd.f32 0.0, %v2038
  %2040 = vmatmul.f32.gmra.mxu0 %v2001
  %v2041 = vpop.f32.mrf.mxu0
  %v2042 = vadd.f32 0.0, %v2041
  %2043 = vmatmul.f32.gmra.mxu0 %v2004
  %v2044 = vpop.f32.mrf.mxu0
  %v2045 = vadd.f32 0.0, %v2044
  %2046 = vmatmul.f32.gmra.mxu0 %v2007
  %v2047 = vpop.f32.mrf.mxu0
  %v2048 = vadd.f32 0.0, %v2047
  %2049 = vmatmul.f32.gmra.mxu0 %v2010
  %v2050 = vpop.f32.mrf.mxu0
  %v2051 = vadd.f32 0.0, %v2050
  %2052 = vmatmul.f32.gmra.mxu0 %v2013
  %v2053 = vpop.f32.mrf.mxu0
  %v2054 = vadd.f32 0.0, %v2053
  %2055 = vdwg.mxu0
  %2056 = vmatpush.msra.mxu0 0.0
  %2057 = vmatpush.msra.mxu0 0.0
  %2058 = vmatpush.msra.mxu0 0.0
  %2059 = vmatpush.msra.mxu0 0.0
  %2060 = vmatpush.msra.mxu0 0.0
  %2061 = vmatpush.msra.mxu0 0.0
  %2062 = vmatpush.msra.mxu0 0.0
  %2063 = vmatpush.msra.mxu0 0.0
  %2064 = vmatpush.msra.mxu0 0.0
  %2065 = vmatpush.msra.mxu0 0.0
  %2066 = vmatpush.msra.mxu0 0.0
  %2067 = vmatpush.msra.mxu0 0.0
  %2068 = vmatpush.msra.mxu0 %v1988
  %2069 = vmatpush.msra.mxu0 %v1984
  %2070 = vmatpush.msra.mxu0 %v1980
  %2071 = vmatpush.msra.mxu0 %v1976
  %2072 = vmatmul.f32.gmra.mxu0 %v1992
  %v2073 = vpop.f32.mrf.mxu0
  %v2074 = vadd.f32 0.0, %v2073
  %2075 = vmatmul.f32.gmra.mxu0 %v1995
  %v2076 = vpop.f32.mrf.mxu0
  %v2077 = vadd.f32 0.0, %v2076
  %2078 = vmatmul.f32.gmra.mxu0 %v1998
  %v2079 = vpop.f32.mrf.mxu0
  %v2080 = vadd.f32 0.0, %v2079
  %2081 = vmatmul.f32.gmra.mxu0 %v2001
  %v2082 = vpop.f32.mrf.mxu0
  %v2083 = vadd.f32 0.0, %v2082
  %2084 = vmatmul.f32.gmra.mxu0 %v2004
  %v2085 = vpop.f32.mrf.mxu0
  %v2086 = vadd.f32 0.0, %v2085
  %2087 = vmatmul.f32.gmra.mxu0 %v2007
  %v2088 = vpop.f32.mrf.mxu0
  %v2089 = vadd.f32 0.0, %v2088
  %2090 = vmatmul.f32.gmra.mxu0 %v2010
  %v2091 = vpop.f32.mrf.mxu0
  %v2092 = vadd.f32 0.0, %v2091
  %2093 = vmatmul.f32.gmra.mxu0 %v2013
  %v2094 = vpop.f32.mrf.mxu0
  %v2095 = vadd.f32 0.0, %v2094
  %2096 = vdwg.mxu0
  %2097 = vmatpush.msra.mxu0 0.0
  %2098 = vmatpush.msra.mxu0 0.0
  %2099 = vmatpush.msra.mxu0 0.0
  %2100 = vmatpush.msra.mxu0 0.0
  %2101 = vmatpush.msra.mxu0 0.0
  %2102 = vmatpush.msra.mxu0 0.0
  %2103 = vmatpush.msra.mxu0 0.0
  %2104 = vmatpush.msra.mxu0 0.0
  %2105 = vmatpush.msra.mxu0 0.0
  %2106 = vmatpush.msra.mxu0 0.0
  %2107 = vmatpush.msra.mxu0 0.0
  %2108 = vmatpush.msra.mxu0 0.0
  %2109 = vmatpush.msra.mxu0 %v1989
  %2110 = vmatpush.msra.mxu0 %v1985
  %2111 = vmatpush.msra.mxu0 %v1981
  %2112 = vmatpush.msra.mxu0 %v1977
  %2113 = vmatmul.f32.gmra.mxu0 %v1992
  %v2114 = vpop.f32.mrf.mxu0
  %v2115 = vadd.f32 0.0, %v2114
  %2116 = vmatmul.f32.gmra.mxu0 %v1995
  %v2117 = vpop.f32.mrf.mxu0
  %v2118 = vadd.f32 0.0, %v2117
  %2119 = vmatmul.f32.gmra.mxu0 %v1998
  %v2120 = vpop.f32.mrf.mxu0
  %v2121 = vadd.f32 0.0, %v2120
  %2122 = vmatmul.f32.gmra.mxu0 %v2001
  %v2123 = vpop.f32.mrf.mxu0
  %v2124 = vadd.f32 0.0, %v2123
  %2125 = vmatmul.f32.gmra.mxu0 %v2004
  %v2126 = vpop.f32.mrf.mxu0
  %v2127 = vadd.f32 0.0, %v2126
  %2128 = vmatmul.f32.gmra.mxu0 %v2007
  %v2129 = vpop.f32.mrf.mxu0
  %v2130 = vadd.f32 0.0, %v2129
  %2131 = vmatmul.f32.gmra.mxu0 %v2010
  %v2132 = vpop.f32.mrf.mxu0
  %v2133 = vadd.f32 0.0, %v2132
  %2134 = vmatmul.f32.gmra.mxu0 %v2013
  %v2135 = vpop.f32.mrf.mxu0
  %v2136 = vadd.f32 0.0, %v2135
  %2137 = vdwg.mxu0
  %2138 = vmatpush.msra.mxu0 0.0
  %2139 = vmatpush.msra.mxu0 0.0
  %2140 = vmatpush.msra.mxu0 0.0
  %2141 = vmatpush.msra.mxu0 0.0
  %2142 = vmatpush.msra.mxu0 0.0
  %2143 = vmatpush.msra.mxu0 0.0
  %2144 = vmatpush.msra.mxu0 0.0
  %2145 = vmatpush.msra.mxu0 0.0
  %2146 = vmatpush.msra.mxu0 0.0
  %2147 = vmatpush.msra.mxu0 0.0
  %2148 = vmatpush.msra.mxu0 0.0
  %2149 = vmatpush.msra.mxu0 0.0
  %2150 = vmatpush.msra.mxu0 %v1990
  %2151 = vmatpush.msra.mxu0 %v1986
  %2152 = vmatpush.msra.mxu0 %v1982
  %2153 = vmatpush.msra.mxu0 %v1978
  %2154 = vmatmul.f32.gmra.mxu0 %v1992
  %v2155 = vpop.f32.mrf.mxu0
  %v2156 = vadd.f32 0.0, %v2155
  %2157 = vmatmul.f32.gmra.mxu0 %v1995
  %v2158 = vpop.f32.mrf.mxu0
  %v2159 = vadd.f32 0.0, %v2158
  %2160 = vmatmul.f32.gmra.mxu0 %v1998
  %v2161 = vpop.f32.mrf.mxu0
  %v2162 = vadd.f32 0.0, %v2161
  %2163 = vmatmul.f32.gmra.mxu0 %v2001
  %v2164 = vpop.f32.mrf.mxu0
  %v2165 = vadd.f32 0.0, %v2164
  %2166 = vmatmul.f32.gmra.mxu0 %v2004
  %v2167 = vpop.f32.mrf.mxu0
  %v2168 = vadd.f32 0.0, %v2167
  %2169 = vmatmul.f32.gmra.mxu0 %v2007
  %v2170 = vpop.f32.mrf.mxu0
  %v2171 = vadd.f32 0.0, %v2170
  %2172 = vmatmul.f32.gmra.mxu0 %v2010
  %v2173 = vpop.f32.mrf.mxu0
  %v2174 = vadd.f32 0.0, %v2173
  %2175 = vmatmul.f32.gmra.mxu0 %v2013
  %v2176 = vpop.f32.mrf.mxu0
  %v2177 = vadd.f32 0.0, %v2176
  %2178 = vdwg.mxu0
  %v2179 = vmax.f32 %v2033, %v2036
  %v2180 = vmax.f32 %v2179, %v2039
  %v2181 = vmax.f32 %v2180, %v2042
  %v2182 = vmax.f32 %v2181, %v2045
  %v2183 = vmax.f32 %v2182, %v2048
  %v2184 = vmax.f32 %v2183, %v2051
  %v2185 = vmax.f32 %v2184, %v2054
  %v2186 = vrot.slane %v2185, 4
  %v2187 = vmax.f32 %v2185, %v2186
  %v2188 = vrot.slane %v2187, 2
  %v2189 = vmax.f32 %v2187, %v2188
  %v2190 = vrot.slane %v2189, 1
  %v2191 = vmax.f32 %v2189, %v2190
  %v2192 = vmax.f32 %v2074, %v2077
  %v2193 = vmax.f32 %v2192, %v2080
  %v2194 = vmax.f32 %v2193, %v2083
  %v2195 = vmax.f32 %v2194, %v2086
  %v2196 = vmax.f32 %v2195, %v2089
  %v2197 = vmax.f32 %v2196, %v2092
  %v2198 = vmax.f32 %v2197, %v2095
  %v2199 = vrot.slane %v2198, 4
  %v2200 = vmax.f32 %v2198, %v2199
  %v2201 = vrot.slane %v2200, 2
  %v2202 = vmax.f32 %v2200, %v2201
  %v2203 = vrot.slane %v2202, 1
  %v2204 = vmax.f32 %v2202, %v2203
  %v2205 = vmax.f32 %v2115, %v2118
  %v2206 = vmax.f32 %v2205, %v2121
  %v2207 = vmax.f32 %v2206, %v2124
  %v2208 = vmax.f32 %v2207, %v2127
  %v2209 = vmax.f32 %v2208, %v2130
  %v2210 = vmax.f32 %v2209, %v2133
  %v2211 = vmax.f32 %v2210, %v2136
  %v2212 = vrot.slane %v2211, 4
  %v2213 = vmax.f32 %v2211, %v2212
  %v2214 = vrot.slane %v2213, 2
  %v2215 = vmax.f32 %v2213, %v2214
  %v2216 = vrot.slane %v2215, 1
  %v2217 = vmax.f32 %v2215, %v2216
  %v2218 = vmax.f32 %v2156, %v2159
  %v2219 = vmax.f32 %v2218, %v2162
  %v2220 = vmax.f32 %v2219, %v2165
  %v2221 = vmax.f32 %v2220, %v2168
  %v2222 = vmax.f32 %v2221, %v2171
  %v2223 = vmax.f32 %v2222, %v2174
  %v2224 = vmax.f32 %v2223, %v2177
  %v2225 = vrot.slane %v2224, 4
  %v2226 = vmax.f32 %v2224, %v2225
  %v2227 = vrot.slane %v2226, 2
  %v2228 = vmax.f32 %v2226, %v2227
  %v2229 = vrot.slane %v2228, 1
  %v2230 = vmax.f32 %v2228, %v2229
  %v2231 = vsel %vm272, %v2191, -inf
  %2232 = vmax.xlane.f32.xlu0 %v2231
  %v2233 = vpop.xlane.xlu0 %2232
  %s2234 = vtos %v2233
  %v2235 = vstv %s2234
  %2236 = vst.msk [vmem:[#allocation7] sm:$0x1] %vm1064, %v2235
  %v2237 = vsel %vm1066, %v2191, -inf
  %2238 = vmax.xlane.f32.xlu0 %v2237
  %v2239 = vpop.xlane.xlu0 %2238
  %s2240 = vtos %v2239
  %v2241 = vstv %s2240
  %2242 = vst.msk [vmem:[#allocation7] sm:$0x1] %vm1074, %v2241
  %v2243 = vsel %vm272, %v2204, -inf
  %2244 = vmax.xlane.f32.xlu0 %v2243
  %v2245 = vpop.xlane.xlu0 %2244
  %s2246 = vtos %v2245
  %v2247 = vstv %s2246
  %2248 = vst.msk [vmem:[#allocation7 + $0x1] sm:$0x1] %vm1064, %v2247
  %v2249 = vsel %vm1066, %v2204, -inf
  %2250 = vmax.xlane.f32.xlu0 %v2249
  %v2251 = vpop.xlane.xlu0 %2250
  %s2252 = vtos %v2251
  %v2253 = vstv %s2252
  %2254 = vst.msk [vmem:[#allocation7 + $0x1] sm:$0x1] %vm1074, %v2253
  %v2255 = vsel %vm272, %v2217, -inf
  %2256 = vmax.xlane.f32.xlu0 %v2255
  %v2257 = vpop.xlane.xlu0 %2256
  %s2258 = vtos %v2257
  %v2259 = vstv %s2258
  %2260 = vst.msk [vmem:[#allocation7 + $0x2] sm:$0x1] %vm1064, %v2259
  %v2261 = vsel %vm1066, %v2217, -inf
  %2262 = vmax.xlane.f32.xlu0 %v2261
  %v2263 = vpop.xlane.xlu0 %2262
  %s2264 = vtos %v2263
  %v2265 = vstv %s2264
  %2266 = vst.msk [vmem:[#allocation7 + $0x2] sm:$0x1] %vm1074, %v2265
  %v2267 = vsel %vm272, %v2230, -inf
  %2268 = vmax.xlane.f32.xlu0 %v2267
  %v2269 = vpop.xlane.xlu0 %2268
  %s2270 = vtos %v2269
  %v2271 = vstv %s2270
  %2272 = vst.msk [vmem:[#allocation7 + $0x3] sm:$0x1] %vm1064, %v2271
  %v2273 = vsel %vm1066, %v2230, -inf
  %2274 = vmax.xlane.f32.xlu0 %v2273
  %v2275 = vpop.xlane.xlu0 %2274
  %s2276 = vtos %v2275
  %v2277 = vstv %s2276
  %2278 = vst.msk [vmem:[#allocation7 + $0x3] sm:$0x1] %vm1074, %v2277
  %v2279 = vld [vmem:[#allocation7] sm:$0xf]
  %v2281 = vperm.slane %v2279, 0
  %v2282 = vperm.slane %v2279, 1
  %v2283 = vperm.slane %v2279, 2
  %v2284 = vperm.slane %v2279, 3
  %v2289 = vsub.f32 %v2033, %v2281
  %v2290 = vsub.f32 %v2074, %v2282
  %v2291 = vsub.f32 %v2115, %v2283
  %v2292 = vsub.f32 %v2156, %v2284
  %v2293 = vsub.f32 %v2036, %v2281
  %v2294 = vsub.f32 %v2077, %v2282
  %v2295 = vsub.f32 %v2118, %v2283
  %v2296 = vsub.f32 %v2159, %v2284
  %v2297 = vsub.f32 %v2039, %v2281
  %v2298 = vsub.f32 %v2080, %v2282
  %v2299 = vsub.f32 %v2121, %v2283
  %v2300 = vsub.f32 %v2162, %v2284
  %v2301 = vsub.f32 %v2042, %v2281
  %v2302 = vsub.f32 %v2083, %v2282
  %v2303 = vsub.f32 %v2124, %v2283
  %v2304 = vsub.f32 %v2165, %v2284
  %v2305 = vsub.f32 %v2045, %v2281
  %v2306 = vsub.f32 %v2086, %v2282
  %v2307 = vsub.f32 %v2127, %v2283
  %v2308 = vsub.f32 %v2168, %v2284
  %v2309 = vsub.f32 %v2048, %v2281
  %v2310 = vsub.f32 %v2089, %v2282
  %v2311 = vsub.f32 %v2130, %v2283
  %v2312 = vsub.f32 %v2171, %v2284
  %v2313 = vsub.f32 %v2051, %v2281
  %v2314 = vsub.f32 %v2092, %v2282
  %v2315 = vsub.f32 %v2133, %v2283
  %v2316 = vsub.f32 %v2174, %v2284
  %v2317 = vsub.f32 %v2054, %v2281
  %v2318 = vsub.f32 %v2095, %v2282
  %v2319 = vsub.f32 %v2136, %v2283
  %v2320 = vsub.f32 %v2177, %v2284
  %v2321 = vmul.f32 %v2289, 1.442695
  %v2322 = vpow.pop %v2321
  %v2323 = vmul.f32 %v2290, 1.442695
  %v2324 = vpow.pop %v2323
  %v2325 = vmul.f32 %v2291, 1.442695
  %v2326 = vpow.pop %v2325
  %v2327 = vmul.f32 %v2292, 1.442695
  %v2328 = vpow.pop %v2327
  %v2329 = vmul.f32 %v2293, 1.442695
  %v2330 = vpow.pop %v2329
  %v2331 = vmul.f32 %v2294, 1.442695
  %v2332 = vpow.pop %v2331
  %v2333 = vmul.f32 %v2295, 1.442695
  %v2334 = vpow.pop %v2333
  %v2335 = vmul.f32 %v2296, 1.442695
  %v2336 = vpow.pop %v2335
  %v2337 = vmul.f32 %v2297, 1.442695
  %v2338 = vpow.pop %v2337
  %v2339 = vmul.f32 %v2298, 1.442695
  %v2340 = vpow.pop %v2339
  %v2341 = vmul.f32 %v2299, 1.442695
  %v2342 = vpow.pop %v2341
  %v2343 = vmul.f32 %v2300, 1.442695
  %v2344 = vpow.pop %v2343
  %v2345 = vmul.f32 %v2301, 1.442695
  %v2346 = vpow.pop %v2345
  %v2347 = vmul.f32 %v2302, 1.442695
  %v2348 = vpow.pop %v2347
  %v2349 = vmul.f32 %v2303, 1.442695
  %v2350 = vpow.pop %v2349
  %v2351 = vmul.f32 %v2304, 1.442695
  %v2352 = vpow.pop %v2351
  %v2353 = vmul.f32 %v2305, 1.442695
  %v2354 = vpow.pop %v2353
  %v2355 = vmul.f32 %v2306, 1.442695
  %v2356 = vpow.pop %v2355
  %v2357 = vmul.f32 %v2307, 1.442695
  %v2358 = vpow.pop %v2357
  %v2359 = vmul.f32 %v2308, 1.442695
  %v2360 = vpow.pop %v2359
  %v2361 = vmul.f32 %v2309, 1.442695
  %v2362 = vpow.pop %v2361
  %v2363 = vmul.f32 %v2310, 1.442695
  %v2364 = vpow.pop %v2363
  %v2365 = vmul.f32 %v2311, 1.442695
  %v2366 = vpow.pop %v2365
  %v2367 = vmul.f32 %v2312, 1.442695
  %v2368 = vpow.pop %v2367
  %v2369 = vmul.f32 %v2313, 1.442695
  %v2370 = vpow.pop %v2369
  %v2371 = vmul.f32 %v2314, 1.442695
  %v2372 = vpow.pop %v2371
  %v2373 = vmul.f32 %v2315, 1.442695
  %v2374 = vpow.pop %v2373
  %v2375 = vmul.f32 %v2316, 1.442695
  %v2376 = vpow.pop %v2375
  %v2377 = vmul.f32 %v2317, 1.442695
  %v2378 = vpow.pop %v2377
  %v2379 = vmul.f32 %v2318, 1.442695
  %v2380 = vpow.pop %v2379
  %v2381 = vmul.f32 %v2319, 1.442695
  %v2382 = vpow.pop %v2381
  %v2383 = vmul.f32 %v2320, 1.442695
  %v2384 = vpow.pop %v2383
  %v2385 = vadd.f32 %v2322, %v2330
  %v2386 = vadd.f32 %v2385, %v2338
  %v2387 = vadd.f32 %v2386, %v2346
  %v2388 = vadd.f32 %v2387, %v2354
  %v2389 = vadd.f32 %v2388, %v2362
  %v2390 = vadd.f32 %v2389, %v2370
  %v2391 = vadd.f32 %v2390, %v2378
  %v2392 = vrot.slane %v2391, 4
  %v2393 = vadd.f32 %v2391, %v2392
  %v2394 = vrot.slane %v2393, 2
  %v2395 = vadd.f32 %v2393, %v2394
  %v2396 = vrot.slane %v2395, 1
  %v2397 = vadd.f32 %v2395, %v2396
  %v2398 = vadd.f32 %v2324, %v2332
  %v2399 = vadd.f32 %v2398, %v2340
  %v2400 = vadd.f32 %v2399, %v2348
  %v2401 = vadd.f32 %v2400, %v2356
  %v2402 = vadd.f32 %v2401, %v2364
  %v2403 = vadd.f32 %v2402, %v2372
  %v2404 = vadd.f32 %v2403, %v2380
  %v2405 = vrot.slane %v2404, 4
  %v2406 = vadd.f32 %v2404, %v2405
  %v2407 = vrot.slane %v2406, 2
  %v2408 = vadd.f32 %v2406, %v2407
  %v2409 = vrot.slane %v2408, 1
  %v2410 = vadd.f32 %v2408, %v2409
  %v2411 = vadd.f32 %v2326, %v2334
  %v2412 = vadd.f32 %v2411, %v2342
  %v2413 = vadd.f32 %v2412, %v2350
  %v2414 = vadd.f32 %v2413, %v2358
  %v2415 = vadd.f32 %v2414, %v2366
  %v2416 = vadd.f32 %v2415, %v2374
  %v2417 = vadd.f32 %v2416, %v2382
  %v2418 = vrot.slane %v2417, 4
  %v2419 = vadd.f32 %v2417, %v2418
  %v2420 = vrot.slane %v2419, 2
  %v2421 = vadd.f32 %v2419, %v2420
  %v2422 = vrot.slane %v2421, 1
  %v2423 = vadd.f32 %v2421, %v2422
  %v2424 = vadd.f32 %v2328, %v2336
  %v2425 = vadd.f32 %v2424, %v2344
  %v2426 = vadd.f32 %v2425, %v2352
  %v2427 = vadd.f32 %v2426, %v2360
  %v2428 = vadd.f32 %v2427, %v2368
  %v2429 = vadd.f32 %v2428, %v2376
  %v2430 = vadd.f32 %v2429, %v2384
  %v2431 = vrot.slane %v2430, 4
  %v2432 = vadd.f32 %v2430, %v2431
  %v2433 = vrot.slane %v2432, 2
  %v2434 = vadd.f32 %v2432, %v2433
  %v2435 = vrot.slane %v2434, 1
  %v2436 = vadd.f32 %v2434, %v2435
  %v2437 = vsel %vm1270, %v2397, 0.0
  %2438 = vadd.xlane.f32.xlu0 %v2437
  %v2439 = vpop.xlane.xlu0 %2438
  %v2440 = vrot.slane %v2439, 4
  %v2441 = vadd.f32 %v2439, %v2440
  %v2442 = vrot.slane %v2441, 2
  %v2443 = vadd.f32 %v2441, %v2442
  %v2444 = vrot.slane %v2443, 1
  %v2445 = vadd.f32 %v2443, %v2444
  %s2446 = vtos %v2445
  %v2447 = vstv %s2446
  %2448 = vst.msk [vmem:[#allocation8] sm:$0x1] %vm1282, %v2447
  %2450 = vrot.lane.b32.xlu0 %v2397, 64
  %v2451 = vpop.permute.xlu0 %2450
  %v2453 = vsel %vm1270, %v2451, 0.0
  %2454 = vadd.xlane.f32.xlu0 %v2453
  %v2455 = vpop.xlane.xlu0 %2454
  %v2456 = vrot.slane %v2455, 4
  %v2457 = vadd.f32 %v2455, %v2456
  %v2458 = vrot.slane %v2457, 2
  %v2459 = vadd.f32 %v2457, %v2458
  %v2460 = vrot.slane %v2459, 1
  %v2461 = vadd.f32 %v2459, %v2460
  %s2462 = vtos %v2461
  %v2463 = vstv %s2462
  %2464 = vst.msk [vmem:[#allocation8] sm:$0x1] %vm1299, %v2463
  %v2465 = vsel %vm1270, %v2410, 0.0
  %2466 = vadd.xlane.f32.xlu0 %v2465
  %v2467 = vpop.xlane.xlu0 %2466
  %v2468 = vrot.slane %v2467, 4
  %v2469 = vadd.f32 %v2467, %v2468
  %v2470 = vrot.slane %v2469, 2
  %v2471 = vadd.f32 %v2469, %v2470
  %v2472 = vrot.slane %v2471, 1
  %v2473 = vadd.f32 %v2471, %v2472
  %s2474 = vtos %v2473
  %v2475 = vstv %s2474
  %2476 = vst.msk [vmem:[#allocation8] sm:$0x1] %vm1312, %v2475
  %2478 = vrot.lane.b32.xlu0 %v2410, 64
  %v2479 = vpop.permute.xlu0 %2478
  %v2481 = vsel %vm1270, %v2479, 0.0
  %2482 = vadd.xlane.f32.xlu0 %v2481
  %v2483 = vpop.xlane.xlu0 %2482
  %v2484 = vrot.slane %v2483, 4
  %v2485 = vadd.f32 %v2483, %v2484
  %v2486 = vrot.slane %v2485, 2
  %v2487 = vadd.f32 %v2485, %v2486
  %v2488 = vrot.slane %v2487, 1
  %v2489 = vadd.f32 %v2487, %v2488
  %s2490 = vtos %v2489
  %v2491 = vstv %s2490
  %2492 = vst.msk [vmem:[#allocation8] sm:$0x1] %vm1329, %v2491
  %v2493 = vsel %vm1270, %v2423, 0.0
  %2494 = vadd.xlane.f32.xlu0 %v2493
  %v2495 = vpop.xlane.xlu0 %2494
  %v2496 = vrot.slane %v2495, 4
  %v2497 = vadd.f32 %v2495, %v2496
  %v2498 = vrot.slane %v2497, 2
  %v2499 = vadd.f32 %v2497, %v2498
  %v2500 = vrot.slane %v2499, 1
  %v2501 = vadd.f32 %v2499, %v2500
  %s2502 = vtos %v2501
  %v2503 = vstv %s2502
  %2504 = vst.msk [vmem:[#allocation8] sm:$0x1] %vm1342, %v2503
  %2506 = vrot.lane.b32.xlu0 %v2423, 64
  %v2507 = vpop.permute.xlu0 %2506
  %v2509 = vsel %vm1270, %v2507, 0.0
  %2510 = vadd.xlane.f32.xlu0 %v2509
  %v2511 = vpop.xlane.xlu0 %2510
  %v2512 = vrot.slane %v2511, 4
  %v2513 = vadd.f32 %v2511, %v2512
  %v2514 = vrot.slane %v2513, 2
  %v2515 = vadd.f32 %v2513, %v2514
  %v2516 = vrot.slane %v2515, 1
  %v2517 = vadd.f32 %v2515, %v2516
  %s2518 = vtos %v2517
  %v2519 = vstv %s2518
  %2520 = vst.msk [vmem:[#allocation8] sm:$0x1] %vm1359, %v2519
  %v2521 = vsel %vm1270, %v2436, 0.0
  %2522 = vadd.xlane.f32.xlu0 %v2521
  %v2523 = vpop.xlane.xlu0 %2522
  %v2524 = vrot.slane %v2523, 4
  %v2525 = vadd.f32 %v2523, %v2524
  %v2526 = vrot.slane %v2525, 2
  %v2527 = vadd.f32 %v2525, %v2526
  %v2528 = vrot.slane %v2527, 1
  %v2529 = vadd.f32 %v2527, %v2528
  %s2530 = vtos %v2529
  %v2531 = vstv %s2530
  %2532 = vst.msk [vmem:[#allocation8] sm:$0x1] %vm1372, %v2531
  %2534 = vrot.lane.b32.xlu0 %v2436, 64
  %v2535 = vpop.permute.xlu0 %2534
  %v2537 = vsel %vm1270, %v2535, 0.0
  %2538 = vadd.xlane.f32.xlu0 %v2537
  %v2539 = vpop.xlane.xlu0 %2538
  %v2540 = vrot.slane %v2539, 4
  %v2541 = vadd.f32 %v2539, %v2540
  %v2542 = vrot.slane %v2541, 2
  %v2543 = vadd.f32 %v2541, %v2542
  %v2544 = vrot.slane %v2543, 1
  %v2545 = vadd.f32 %v2543, %v2544
  %s2546 = vtos %v2545
  %v2547 = vstv %s2546
  %2548 = vst.msk [vmem:[#allocation8] sm:$0x1] %vm1389, %v2547
  %v2549 = vld [vmem:[#allocation8] sm:$0x1]
  %v2550 = vrcp.pop %v2549
  %v2551 = vld [vmem:[#allocation5] sm:$0xff]
  %v2552 = vld [vmem:[#allocation5 + $0x8] sm:$0xff]
  %v2553 = vld [vmem:[#allocation5 + $0x10] sm:$0xff]
  %v2554 = vld [vmem:[#allocation5 + $0x18] sm:$0xff]
  %v2555 = vld [vmem:[#allocation5 + $0x20] sm:$0xff]
  %v2556 = vld [vmem:[#allocation5 + $0x28] sm:$0xff]
  %v2557 = vld [vmem:[#allocation5 + $0x30] sm:$0xff]
  %v2558 = vld [vmem:[#allocation5 + $0x38] sm:$0xff]
  %v2559 = vld [vmem:[#allocation5 + $0x40] sm:$0xff]
  %v2560 = vld [vmem:[#allocation5 + $0x48] sm:$0xff]
  %v2561 = vld [vmem:[#allocation5 + $0x50] sm:$0xff]
  %v2562 = vld [vmem:[#allocation5 + $0x58] sm:$0xff]
  %v2563 = vld [vmem:[#allocation5 + $0x60] sm:$0xff]
  %v2564 = vld [vmem:[#allocation5 + $0x68] sm:$0xff]
  %v2565 = vld [vmem:[#allocation5 + $0x70] sm:$0xff]
  %v2566 = vld [vmem:[#allocation5 + $0x78] sm:$0xff]
  %v2567 = vld [vmem:[#allocation5 + $0x80] sm:$0xff]
  %v2568 = vld [vmem:[#allocation5 + $0x88] sm:$0xff]
  %v2569 = vld [vmem:[#allocation5 + $0x90] sm:$0xff]
  %v2570 = vld [vmem:[#allocation5 + $0x98] sm:$0xff]
  %v2571 = vld [vmem:[#allocation5 + $0xa0] sm:$0xff]
  %v2572 = vld [vmem:[#allocation5 + $0xa8] sm:$0xff]
  %v2573 = vld [vmem:[#allocation5 + $0xb0] sm:$0xff]
  %v2574 = vld [vmem:[#allocation5 + $0xb8] sm:$0xff]
  %v2575 = vld [vmem:[#allocation5 + $0xc0] sm:$0xff]
  %v2576 = vld [vmem:[#allocation5 + $0xc8] sm:$0xff]
  %v2577 = vld [vmem:[#allocation5 + $0xd0] sm:$0xff]
  %v2578 = vld [vmem:[#allocation5 + $0xd8] sm:$0xff]
  %v2579 = vld [vmem:[#allocation5 + $0xe0] sm:$0xff]
  %v2580 = vld [vmem:[#allocation5 + $0xe8] sm:$0xff]
  %v2581 = vld [vmem:[#allocation5 + $0xf0] sm:$0xff]
  %v2582 = vld [vmem:[#allocation5 + $0xf8] sm:$0xff]
  %v2583 = vld [vmem:[#allocation5 + $0x100] sm:$0xff]
  %v2584 = vld [vmem:[#allocation5 + $0x108] sm:$0xff]
  %v2585 = vld [vmem:[#allocation5 + $0x110] sm:$0xff]
  %v2586 = vld [vmem:[#allocation5 + $0x118] sm:$0xff]
  %v2587 = vld [vmem:[#allocation5 + $0x120] sm:$0xff]
  %v2588 = vld [vmem:[#allocation5 + $0x128] sm:$0xff]
  %v2589 = vld [vmem:[#allocation5 + $0x130] sm:$0xff]
  %v2590 = vld [vmem:[#allocation5 + $0x138] sm:$0xff]
  %v2591 = vld [vmem:[#allocation5 + $0x140] sm:$0xff]
  %v2592 = vld [vmem:[#allocation5 + $0x148] sm:$0xff]
  %v2593 = vld [vmem:[#allocation5 + $0x150] sm:$0xff]
  %v2594 = vld [vmem:[#allocation5 + $0x158] sm:$0xff]
  %v2595 = vld [vmem:[#allocation5 + $0x160] sm:$0xff]
  %v2596 = vld [vmem:[#allocation5 + $0x168] sm:$0xff]
  %v2597 = vld [vmem:[#allocation5 + $0x170] sm:$0xff]
  %v2598 = vld [vmem:[#allocation5 + $0x178] sm:$0xff]
  %v2599 = vld [vmem:[#allocation5 + $0x180] sm:$0xff]
  %v2600 = vld [vmem:[#allocation5 + $0x188] sm:$0xff]
  %v2601 = vld [vmem:[#allocation5 + $0x190] sm:$0xff]
  %v2602 = vld [vmem:[#allocation5 + $0x198] sm:$0xff]
  %v2603 = vld [vmem:[#allocation5 + $0x1a0] sm:$0xff]
  %v2604 = vld [vmem:[#allocation5 + $0x1a8] sm:$0xff]
  %v2605 = vld [vmem:[#allocation5 + $0x1b0] sm:$0xff]
  %v2606 = vld [vmem:[#allocation5 + $0x1b8] sm:$0xff]
  %v2607 = vld [vmem:[#allocation5 + $0x1c0] sm:$0xff]
  %v2608 = vld [vmem:[#allocation5 + $0x1c8] sm:$0xff]
  %v2609 = vld [vmem:[#allocation5 + $0x1d0] sm:$0xff]
  %v2610 = vld [vmem:[#allocation5 + $0x1d8] sm:$0xff]
  %v2611 = vld [vmem:[#allocation5 + $0x1e0] sm:$0xff]
  %v2612 = vld [vmem:[#allocation5 + $0x1e8] sm:$0xff]
  %v2613 = vld [vmem:[#allocation5 + $0x1f0] sm:$0xff]
  %v2614 = vld [vmem:[#allocation5 + $0x1f8] sm:$0xff]
  %2615 = vmatpush.msra.mxu0 %v2566
  %2616 = vmatpush.msra.mxu0 %v2565
  %2617 = vmatpush.msra.mxu0 %v2564
  %2618 = vmatpush.msra.mxu0 %v2563
  %2619 = vmatpush.msra.mxu0 %v2562
  %2620 = vmatpush.msra.mxu0 %v2561
  %2621 = vmatpush.msra.mxu0 %v2560
  %2622 = vmatpush.msra.mxu0 %v2559
  %2623 = vmatpush.msra.mxu0 %v2558
  %2624 = vmatpush.msra.mxu0 %v2557
  %2625 = vmatpush.msra.mxu0 %v2556
  %2626 = vmatpush.msra.mxu0 %v2555
  %2627 = vmatpush.msra.mxu0 %v2554
  %2628 = vmatpush.msra.mxu0 %v2553
  %2629 = vmatpush.msra.mxu0 %v2552
  %2630 = vmatpush.msra.mxu0 %v2551
  %2631 = vmatmul.f32.gmra.mxu0 %v2322
  %v2632 = vpop.f32.mrf.mxu0
  %v2633 = vadd.f32 0.0, %v2632
  %2634 = vmatmul.f32.gmra.mxu0 %v2330
  %v2635 = vpop.f32.mrf.mxu0
  %v2636 = vadd.f32 0.0, %v2635
  %2637 = vmatmul.f32.gmra.mxu0 %v2338
  %v2638 = vpop.f32.mrf.mxu0
  %v2639 = vadd.f32 0.0, %v2638
  %2640 = vmatmul.f32.gmra.mxu0 %v2346
  %v2641 = vpop.f32.mrf.mxu0
  %v2642 = vadd.f32 0.0, %v2641
  %2643 = vmatmul.f32.gmra.mxu0 %v2354
  %v2644 = vpop.f32.mrf.mxu0
  %v2645 = vadd.f32 0.0, %v2644
  %2646 = vmatmul.f32.gmra.mxu0 %v2362
  %v2647 = vpop.f32.mrf.mxu0
  %v2648 = vadd.f32 0.0, %v2647
  %2649 = vmatmul.f32.gmra.mxu0 %v2370
  %v2650 = vpop.f32.mrf.mxu0
  %v2651 = vadd.f32 0.0, %v2650
  %2652 = vmatmul.f32.gmra.mxu0 %v2378
  %v2653 = vpop.f32.mrf.mxu0
  %v2654 = vadd.f32 0.0, %v2653
  %2655 = vdwg.mxu0
  %2656 = vmatpush.msra.mxu0 %v2582
  %2657 = vmatpush.msra.mxu0 %v2581
  %2658 = vmatpush.msra.mxu0 %v2580
  %2659 = vmatpush.msra.mxu0 %v2579
  %2660 = vmatpush.msra.mxu0 %v2578
  %2661 = vmatpush.msra.mxu0 %v2577
  %2662 = vmatpush.msra.mxu0 %v2576
  %2663 = vmatpush.msra.mxu0 %v2575
  %2664 = vmatpush.msra.mxu0 %v2574
  %2665 = vmatpush.msra.mxu0 %v2573
  %2666 = vmatpush.msra.mxu0 %v2572
  %2667 = vmatpush.msra.mxu0 %v2571
  %2668 = vmatpush.msra.mxu0 %v2570
  %2669 = vmatpush.msra.mxu0 %v2569
  %2670 = vmatpush.msra.mxu0 %v2568
  %2671 = vmatpush.msra.mxu0 %v2567
  %2672 = vmatmul.f32.gmra.mxu0 %v2324
  %v2673 = vpop.f32.mrf.mxu0
  %v2674 = vadd.f32 %v2633, %v2673
  %2675 = vmatmul.f32.gmra.mxu0 %v2332
  %v2676 = vpop.f32.mrf.mxu0
  %v2677 = vadd.f32 %v2636, %v2676
  %2678 = vmatmul.f32.gmra.mxu0 %v2340
  %v2679 = vpop.f32.mrf.mxu0
  %v2680 = vadd.f32 %v2639, %v2679
  %2681 = vmatmul.f32.gmra.mxu0 %v2348
  %v2682 = vpop.f32.mrf.mxu0
  %v2683 = vadd.f32 %v2642, %v2682
  %2684 = vmatmul.f32.gmra.mxu0 %v2356
  %v2685 = vpop.f32.mrf.mxu0
  %v2686 = vadd.f32 %v2645, %v2685
  %2687 = vmatmul.f32.gmra.mxu0 %v2364
  %v2688 = vpop.f32.mrf.mxu0
  %v2689 = vadd.f32 %v2648, %v2688
  %2690 = vmatmul.f32.gmra.mxu0 %v2372
  %v2691 = vpop.f32.mrf.mxu0
  %v2692 = vadd.f32 %v2651, %v2691
  %2693 = vmatmul.f32.gmra.mxu0 %v2380
  %v2694 = vpop.f32.mrf.mxu0
  %v2695 = vadd.f32 %v2654, %v2694
  %2696 = vdwg.mxu0
  %2697 = vmatpush.msra.mxu0 %v2598
  %2698 = vmatpush.msra.mxu0 %v2597
  %2699 = vmatpush.msra.mxu0 %v2596
  %2700 = vmatpush.msra.mxu0 %v2595
  %2701 = vmatpush.msra.mxu0 %v2594
  %2702 = vmatpush.msra.mxu0 %v2593
  %2703 = vmatpush.msra.mxu0 %v2592
  %2704 = vmatpush.msra.mxu0 %v2591
  %2705 = vmatpush.msra.mxu0 %v2590
  %2706 = vmatpush.msra.mxu0 %v2589
  %2707 = vmatpush.msra.mxu0 %v2588
  %2708 = vmatpush.msra.mxu0 %v2587
  %2709 = vmatpush.msra.mxu0 %v2586
  %2710 = vmatpush.msra.mxu0 %v2585
  %2711 = vmatpush.msra.mxu0 %v2584
  %2712 = vmatpush.msra.mxu0 %v2583
  %2713 = vmatmul.f32.gmra.mxu0 %v2326
  %v2714 = vpop.f32.mrf.mxu0
  %v2715 = vadd.f32 %v2674, %v2714
  %2716 = vmatmul.f32.gmra.mxu0 %v2334
  %v2717 = vpop.f32.mrf.mxu0
  %v2718 = vadd.f32 %v2677, %v2717
  %2719 = vmatmul.f32.gmra.mxu0 %v2342
  %v2720 = vpop.f32.mrf.mxu0
  %v2721 = vadd.f32 %v2680, %v2720
  %2722 = vmatmul.f32.gmra.mxu0 %v2350
  %v2723 = vpop.f32.mrf.mxu0
  %v2724 = vadd.f32 %v2683, %v2723
  %2725 = vmatmul.f32.gmra.mxu0 %v2358
  %v2726 = vpop.f32.mrf.mxu0
  %v2727 = vadd.f32 %v2686, %v2726
  %2728 = vmatmul.f32.gmra.mxu0 %v2366
  %v2729 = vpop.f32.mrf.mxu0
  %v2730 = vadd.f32 %v2689, %v2729
  %2731 = vmatmul.f32.gmra.mxu0 %v2374
  %v2732 = vpop.f32.mrf.mxu0
  %v2733 = vadd.f32 %v2692, %v2732
  %2734 = vmatmul.f32.gmra.mxu0 %v2382
  %v2735 = vpop.f32.mrf.mxu0
  %v2736 = vadd.f32 %v2695, %v2735
  %2737 = vdwg.mxu0
  %2738 = vmatpush.msra.mxu0 %v2614
  %2739 = vmatpush.msra.mxu0 %v2613
  %2740 = vmatpush.msra.mxu0 %v2612
  %2741 = vmatpush.msra.mxu0 %v2611
  %2742 = vmatpush.msra.mxu0 %v2610
  %2743 = vmatpush.msra.mxu0 %v2609
  %2744 = vmatpush.msra.mxu0 %v2608
  %2745 = vmatpush.msra.mxu0 %v2607
  %2746 = vmatpush.msra.mxu0 %v2606
  %2747 = vmatpush.msra.mxu0 %v2605
  %2748 = vmatpush.msra.mxu0 %v2604
  %2749 = vmatpush.msra.mxu0 %v2603
  %2750 = vmatpush.msra.mxu0 %v2602
  %2751 = vmatpush.msra.mxu0 %v2601
  %2752 = vmatpush.msra.mxu0 %v2600
  %2753 = vmatpush.msra.mxu0 %v2599
  %2754 = vmatmul.f32.gmra.mxu0 %v2328
  %v2755 = vpop.f32.mrf.mxu0
  %v2756 = vadd.f32 %v2715, %v2755
  %2757 = vmatmul.f32.gmra.mxu0 %v2336
  %v2758 = vpop.f32.mrf.mxu0
  %v2759 = vadd.f32 %v2718, %v2758
  %2760 = vmatmul.f32.gmra.mxu0 %v2344
  %v2761 = vpop.f32.mrf.mxu0
  %v2762 = vadd.f32 %v2721, %v2761
  %2763 = vmatmul.f32.gmra.mxu0 %v2352
  %v2764 = vpop.f32.mrf.mxu0
  %v2765 = vadd.f32 %v2724, %v2764
  %2766 = vmatmul.f32.gmra.mxu0 %v2360
  %v2767 = vpop.f32.mrf.mxu0
  %v2768 = vadd.f32 %v2727, %v2767
  %2769 = vmatmul.f32.gmra.mxu0 %v2368
  %v2770 = vpop.f32.mrf.mxu0
  %v2771 = vadd.f32 %v2730, %v2770
  %2772 = vmatmul.f32.gmra.mxu0 %v2376
  %v2773 = vpop.f32.mrf.mxu0
  %v2774 = vadd.f32 %v2733, %v2773
  %2775 = vmatmul.f32.gmra.mxu0 %v2384
  %v2776 = vpop.f32.mrf.mxu0
  %v2777 = vadd.f32 %v2736, %v2776
  %2778 = vdwg.mxu0
  %v2780 = vperm.slane %v2550, 0
  %v2782 = vmul.f32 %v2756, %v2780
  %v2783 = vmul.f32 %v2759, %v2780
  %v2784 = vmul.f32 %v2762, %v2780
  %v2785 = vmul.f32 %v2765, %v2780
  %v2786 = vmul.f32 %v2768, %v2780
  %v2787 = vmul.f32 %v2771, %v2780
  %v2788 = vmul.f32 %v2774, %v2780
  %v2789 = vmul.f32 %v2777, %v2780
  %2798 = vrot.lane.b32.xlu0 %v2782, 32
  %v2799 = vpop.permute.xlu0 %2798
  %2800 = vrot.lane.b32.xlu0 %v2783, 32
  %v2801 = vpop.permute.xlu0 %2800
  %2802 = vrot.lane.b32.xlu0 %v2784, 32
  %v2803 = vpop.permute.xlu0 %2802
  %2804 = vrot.lane.b32.xlu0 %v2785, 32
  %v2805 = vpop.permute.xlu0 %2804
  %2806 = vrot.lane.b32.xlu0 %v2786, 32
  %v2807 = vpop.permute.xlu0 %2806
  %2808 = vrot.lane.b32.xlu0 %v2787, 32
  %v2809 = vpop.permute.xlu0 %2808
  %2810 = vrot.lane.b32.xlu0 %v2788, 32
  %v2811 = vpop.permute.xlu0 %2810
  %2812 = vrot.lane.b32.xlu0 %v2789, 32
  %v2813 = vpop.permute.xlu0 %2812
  %vm2822 = vcmask 523520
  %2823 = vst.msk [vmem:[#allocation6] sm:$0xff] %vm2822, %v2799
  %2824 = vst.msk [vmem:[#allocation6 + $0x8] sm:$0xff] %vm2822, %v2801
  %2825 = vst.msk [vmem:[#allocation6 + $0x10] sm:$0xff] %vm2822, %v2803
  %2826 = vst.msk [vmem:[#allocation6 + $0x18] sm:$0xff] %vm2822, %v2805
  %2827 = vst.msk [vmem:[#allocation6 + $0x20] sm:$0xff] %vm2822, %v2807
  %2828 = vst.msk [vmem:[#allocation6 + $0x28] sm:$0xff] %vm2822, %v2809
  %2829 = vst.msk [vmem:[#allocation6 + $0x30] sm:$0xff] %vm2822, %v2811
  %2830 = vst.msk [vmem:[#allocation6 + $0x38] sm:$0xff] %vm2822, %v2813
  %v2831 = vld [vmem:[#allocation2 + $0x80] sm:$0xff]
  %v2832 = vld [vmem:[#allocation2 + $0x88] sm:$0xff]
  %v2833 = vld [vmem:[#allocation2 + $0x90] sm:$0xff]
  %v2834 = vld [vmem:[#allocation2 + $0x98] sm:$0xff]
  %v2835 = vld [vmem:[#allocation2 + $0xa0] sm:$0xff]
  %v2836 = vld [vmem:[#allocation2 + $0xa8] sm:$0xff]
  %v2837 = vld [vmem:[#allocation2 + $0xb0] sm:$0xff]
  %v2838 = vld [vmem:[#allocation2 + $0xb8] sm:$0xff]
  %v2839 = vld [vmem:[#allocation3 + $0x8] sm:$0xff]
  %v2840 = vld [vmem:[#allocation3 + $0x18] sm:$0xff]
  %v2841 = vld [vmem:[#allocation3 + $0x28] sm:$0xff]
  %v2842 = vld [vmem:[#allocation3 + $0x38] sm:$0xff]
  %v2843 = vsel %vm415, %v2831, 0.0
  %v2844 = vsel %vm415, %v2832, 0.0
  %v2845 = vadd.f32 %v2843, %v2844
  %v2846 = vsel %vm415, %v2833, 0.0
  %v2847 = vadd.f32 %v2845, %v2846
  %v2848 = vsel %vm415, %v2834, 0.0
  %v2849 = vadd.f32 %v2847, %v2848
  %v2850 = vsel %vm415, %v2835, 0.0
  %v2851 = vadd.f32 %v2849, %v2850
  %v2852 = vsel %vm415, %v2836, 0.0
  %v2853 = vadd.f32 %v2851, %v2852
  %v2854 = vsel %vm415, %v2837, 0.0
  %v2855 = vadd.f32 %v2853, %v2854
  %v2856 = vsel %vm415, %v2838, 0.0
  %v2857 = vadd.f32 %v2855, %v2856
  %v2858 = vrot.slane %v2857, 4
  %v2859 = vadd.f32 %v2857, %v2858
  %v2860 = vrot.slane %v2859, 2
  %v2861 = vadd.f32 %v2859, %v2860
  %v2862 = vrot.slane %v2861, 1
  %v2863 = vadd.f32 %v2861, %v2862
  %v2864 = vmul.f32 %v2863, %v519
  %v2865 = vsub.f32 %v2831, %v2864
  %v2866 = vsub.f32 %v2832, %v2864
  %v2867 = vsub.f32 %v2833, %v2864
  %v2868 = vsub.f32 %v2834, %v2864
  %v2869 = vsub.f32 %v2835, %v2864
  %v2870 = vsub.f32 %v2836, %v2864
  %v2871 = vsub.f32 %v2837, %v2864
  %v2872 = vsub.f32 %v2838, %v2864
  %v2873 = vmul.f32 %v2865, %v2865
  %v2874 = vmul.f32 %v2866, %v2866
  %v2875 = vmul.f32 %v2867, %v2867
  %v2876 = vmul.f32 %v2868, %v2868
  %v2877 = vmul.f32 %v2869, %v2869
  %v2878 = vmul.f32 %v2870, %v2870
  %v2879 = vmul.f32 %v2871, %v2871
  %v2880 = vmul.f32 %v2872, %v2872
  %v2881 = vsel %vm415, %v2873, 0.0
  %v2882 = vsel %vm415, %v2874, 0.0
  %v2883 = vadd.f32 %v2881, %v2882
  %v2884 = vsel %vm415, %v2875, 0.0
  %v2885 = vadd.f32 %v2883, %v2884
  %v2886 = vsel %vm415, %v2876, 0.0
  %v2887 = vadd.f32 %v2885, %v2886
  %v2888 = vsel %vm415, %v2877, 0.0
  %v2889 = vadd.f32 %v2887, %v2888
  %v2890 = vsel %vm415, %v2878, 0.0
  %v2891 = vadd.f32 %v2889, %v2890
  %v2892 = vsel %vm415, %v2879, 0.0
  %v2893 = vadd.f32 %v2891, %v2892
  %v2894 = vsel %vm415, %v2880, 0.0
  %v2895 = vadd.f32 %v2893, %v2894
  %v2896 = vrot.slane %v2895, 4
  %v2897 = vadd.f32 %v2895, %v2896
  %v2898 = vrot.slane %v2897, 2
  %v2899 = vadd.f32 %v2897, %v2898
  %v2900 = vrot.slane %v2899, 1
  %v2901 = vadd.f32 %v2899, %v2900
  %v2902 = vmul.f32 %v2901, %v519
  %v2903 = vadd.f32 %v2902, 1e-05
  %v2904 = vrsqrt.pop %v2903
  %v2905 = vmul.f32 %v2904, %v2903
  %v2906 = vmul.f32 %v2905, %v2904
  %v2907 = vmul.f32 0.5, %v2906
  %v2908 = vsub.f32 1.5, %v2907
  %v2909 = vmul.f32 %v2904, %v2908
  %vm2910 = vweird.f32 %v2903
  %vm2911 = vweird.f32 %v2904
  %vm2912 = vmor %vm2910, %vm2911
  %v2913 = vsel %vm2912, %v2904, %v2909
  %v2914 = vmul.f32 %v2865, %v2913
  %v2915 = vmul.f32 %v2866, %v2913
  %v2916 = vmul.f32 %v2867, %v2913
  %v2917 = vmul.f32 %v2868, %v2913
  %v2918 = vmul.f32 %v2869, %v2913
  %v2919 = vmul.f32 %v2870, %v2913
  %v2920 = vmul.f32 %v2871, %v2913
  %v2921 = vmul.f32 %v2872, %v2913
  %v2922 = vsel %vm272, %v2839, 0.0
  %2923 = vadd.xlane.f32.xlu0 %v2922
  %v2924 = vpop.xlane.xlu0 %2923
  %v2925 = vsel %vm272, %v2840, 0.0
  %2926 = vadd.xlane.f32.xlu0 %v2925
  %v2927 = vpop.xlane.xlu0 %2926
  %v2928 = vsel %vm272, %v2841, 0.0
  %2929 = vadd.xlane.f32.xlu0 %v2928
  %v2930 = vpop.xlane.xlu0 %2929
  %v2931 = vsel %vm272, %v2842, 0.0
  %2932 = vadd.xlane.f32.xlu0 %v2931
  %v2933 = vpop.xlane.xlu0 %2932
  %v2934 = vmul.f32 %v2924, %v519
  %v2935 = vmul.f32 %v2927, %v519
  %v2936 = vmul.f32 %v2930, %v519
  %v2937 = vmul.f32 %v2933, %v519
  %v2938 = vsub.f32 %v2839, %v2934
  %v2939 = vsub.f32 %v2840, %v2935
  %v2940 = vsub.f32 %v2841, %v2936
  %v2941 = vsub.f32 %v2842, %v2937
  %v2942 = vmul.f32 %v2938, %v2938
  %v2943 = vmul.f32 %v2939, %v2939
  %v2944 = vmul.f32 %v2940, %v2940
  %v2945 = vmul.f32 %v2941, %v2941
  %v2946 = vsel %vm272, %v2942, 0.0
  %2947 = vadd.xlane.f32.xlu0 %v2946
  %v2948 = vpop.xlane.xlu0 %2947
  %v2949 = vsel %vm272, %v2943, 0.0
  %2950 = vadd.xlane.f32.xlu0 %v2949
  %v2951 = vpop.xlane.xlu0 %2950
  %v2952 = vsel %vm272, %v2944, 0.0
  %2953 = vadd.xlane.f32.xlu0 %v2952
  %v2954 = vpop.xlane.xlu0 %2953
  %v2955 = vsel %vm272, %v2945, 0.0
  %2956 = vadd.xlane.f32.xlu0 %v2955
  %v2957 = vpop.xlane.xlu0 %2956
  %v2958 = vmul.f32 %v2948, %v519
  %v2959 = vmul.f32 %v2951, %v519
  %v2960 = vmul.f32 %v2954, %v519
  %v2961 = vmul.f32 %v2957, %v519
  %v2962 = vadd.f32 %v2958, 1e-05
  %v2963 = vadd.f32 %v2959, 1e-05
  %v2964 = vadd.f32 %v2960, 1e-05
  %v2965 = vadd.f32 %v2961, 1e-05
  %v2966 = vrsqrt.pop %v2962
  %v2967 = vmul.f32 %v2966, %v2962
  %v2968 = vmul.f32 %v2967, %v2966
  %v2969 = vmul.f32 0.5, %v2968
  %v2970 = vsub.f32 1.5, %v2969
  %v2971 = vmul.f32 %v2966, %v2970
  %vm2972 = vweird.f32 %v2962
  %vm2973 = vweird.f32 %v2966
  %vm2974 = vmor %vm2972, %vm2973
  %v2975 = vsel %vm2974, %v2966, %v2971
  %v2976 = vrsqrt.pop %v2963
  %v2977 = vmul.f32 %v2976, %v2963
  %v2978 = vmul.f32 %v2977, %v2976
  %v2979 = vmul.f32 0.5, %v2978
  %v2980 = vsub.f32 1.5, %v2979
  %v2981 = vmul.f32 %v2976, %v2980
  %vm2982 = vweird.f32 %v2963
  %vm2983 = vweird.f32 %v2976
  %vm2984 = vmor %vm2982, %vm2983
  %v2985 = vsel %vm2984, %v2976, %v2981
  %v2986 = vrsqrt.pop %v2964
  %v2987 = vmul.f32 %v2986, %v2964
  %v2988 = vmul.f32 %v2987, %v2986
  %v2989 = vmul.f32 0.5, %v2988
  %v2990 = vsub.f32 1.5, %v2989
  %v2991 = vmul.f32 %v2986, %v2990
  %vm2992 = vweird.f32 %v2964
  %vm2993 = vweird.f32 %v2986
  %vm2994 = vmor %vm2992, %vm2993
  %v2995 = vsel %vm2994, %v2986, %v2991
  %v2996 = vrsqrt.pop %v2965
  %v2997 = vmul.f32 %v2996, %v2965
  %v2998 = vmul.f32 %v2997, %v2996
  %v2999 = vmul.f32 0.5, %v2998
  %v3000 = vsub.f32 1.5, %v2999
  %v3001 = vmul.f32 %v2996, %v3000
  %vm3002 = vweird.f32 %v2965
  %vm3003 = vweird.f32 %v2996
  %vm3004 = vmor %vm3002, %vm3003
  %v3005 = vsel %vm3004, %v2996, %v3001
  %v3006 = vmul.f32 %v2938, %v2975
  %v3007 = vmul.f32 %v2939, %v2985
  %v3008 = vmul.f32 %v2940, %v2995
  %v3009 = vmul.f32 %v2941, %v3005
  %v3010 = vmul.f32 %v3006, 0.5
  %v3011 = vmul.f32 %v3007, 0.5
  %v3012 = vmul.f32 %v3008, 0.5
  %v3013 = vmul.f32 %v3009, 0.5
  %3014 = vst.msk [vmem:[#allocation4] sm:$0xf] %vm670, %v3010
  %3023 = vrot.lane.b32.xlu0 %v2831, 96
  %v3024 = vpop.permute.xlu0 %3023
  %3025 = vrot.lane.b32.xlu0 %v2832, 96
  %v3026 = vpop.permute.xlu0 %3025
  %3027 = vrot.lane.b32.xlu0 %v2833, 96
  %v3028 = vpop.permute.xlu0 %3027
  %3029 = vrot.lane.b32.xlu0 %v2834, 96
  %v3030 = vpop.permute.xlu0 %3029
  %3031 = vrot.lane.b32.xlu0 %v2835, 96
  %v3032 = vpop.permute.xlu0 %3031
  %3033 = vrot.lane.b32.xlu0 %v2836, 96
  %v3034 = vpop.permute.xlu0 %3033
  %3035 = vrot.lane.b32.xlu0 %v2837, 96
  %v3036 = vpop.permute.xlu0 %3035
  %3037 = vrot.lane.b32.xlu0 %v2838, 96
  %v3038 = vpop.permute.xlu0 %3037
  %3047 = vst.msk [vmem:[#allocation5] sm:$0xff] %vm704, %v3024
  %3048 = vst.msk [vmem:[#allocation5 + $0x8] sm:$0xff] %vm704, %v3026
  %3049 = vst.msk [vmem:[#allocation5 + $0x10] sm:$0xff] %vm704, %v3028
  %3050 = vst.msk [vmem:[#allocation5 + $0x18] sm:$0xff] %vm704, %v3030
  %3051 = vst.msk [vmem:[#allocation5 + $0x20] sm:$0xff] %vm704, %v3032
  %3052 = vst.msk [vmem:[#allocation5 + $0x28] sm:$0xff] %vm704, %v3034
  %3053 = vst.msk [vmem:[#allocation5 + $0x30] sm:$0xff] %vm704, %v3036
  %3054 = vst.msk [vmem:[#allocation5 + $0x38] sm:$0xff] %vm704, %v3038
  %3056 = vrot.lane.b32.xlu0 %v3010, 64
  %v3057 = vpop.permute.xlu0 %3056
  %3059 = vst.msk [vmem:[#allocation4] sm:$0xf0] %vm717, %v3057
  %3060 = vst.msk [vmem:[#allocation5 + $0x40] sm:$0xff] %vm719, %v3024
  %3061 = vst.msk [vmem:[#allocation5 + $0x48] sm:$0xff] %vm719, %v3026
  %3062 = vst.msk [vmem:[#allocation5 + $0x50] sm:$0xff] %vm719, %v3028
  %3063 = vst.msk [vmem:[#allocation5 + $0x58] sm:$0xff] %vm719, %v3030
  %3064 = vst.msk [vmem:[#allocation5 + $0x60] sm:$0xff] %vm719, %v3032
  %3065 = vst.msk [vmem:[#allocation5 + $0x68] sm:$0xff] %vm719, %v3034
  %3066 = vst.msk [vmem:[#allocation5 + $0x70] sm:$0xff] %vm719, %v3036
  %3067 = vst.msk [vmem:[#allocation5 + $0x78] sm:$0xff] %vm719, %v3038
  %3068 = vst.msk [vmem:[#allocation4 + $0x28] sm:$0xf] %vm670, %v3011
  %3069 = vst.msk [vmem:[#allocation5 + $0x80] sm:$0xff] %vm729, %v3024
  %3070 = vst.msk [vmem:[#allocation5 + $0x88] sm:$0xff] %vm729, %v3026
  %3071 = vst.msk [vmem:[#allocation5 + $0x90] sm:$0xff] %vm729, %v3028
  %3072 = vst.msk [vmem:[#allocation5 + $0x98] sm:$0xff] %vm729, %v3030
  %3073 = vst.msk [vmem:[#allocation5 + $0xa0] sm:$0xff] %vm729, %v3032
  %3074 = vst.msk [vmem:[#allocation5 + $0xa8] sm:$0xff] %vm729, %v3034
  %3075 = vst.msk [vmem:[#allocation5 + $0xb0] sm:$0xff] %vm729, %v3036
  %3076 = vst.msk [vmem:[#allocation5 + $0xb8] sm:$0xff] %vm729, %v3038
  %3078 = vrot.lane.b32.xlu0 %v3011, 64
  %v3079 = vpop.permute.xlu0 %3078
  %3081 = vst.msk [vmem:[#allocation4 + $0x28] sm:$0xf0] %vm717, %v3079
  %3082 = vst.msk [vmem:[#allocation5 + $0xc0] sm:$0xff] %vm743, %v3024
  %3083 = vst.msk [vmem:[#allocation5 + $0xc8] sm:$0xff] %vm743, %v3026
  %3084 = vst.msk [vmem:[#allocation5 + $0xd0] sm:$0xff] %vm743, %v3028
  %3085 = vst.msk [vmem:[#allocation5 + $0xd8] sm:$0xff] %vm743, %v3030
  %3086 = vst.msk [vmem:[#allocation5 + $0xe0] sm:$0xff] %vm743, %v3032
  %3087 = vst.msk [vmem:[#allocation5 + $0xe8] sm:$0xff] %vm743, %v3034
  %3088 = vst.msk [vmem:[#allocation5 + $0xf0] sm:$0xff] %vm743, %v3036
  %3089 = vst.msk [vmem:[#allocation5 + $0xf8] sm:$0xff] %vm743, %v3038
  %3090 = vst.msk [vmem:[#allocation4 + $0x50] sm:$0xf] %vm670, %v3012
  %3091 = vst.msk [vmem:[#allocation5 + $0x100] sm:$0xff] %vm753, %v3024
  %3092 = vst.msk [vmem:[#allocation5 + $0x108] sm:$0xff] %vm753, %v3026
  %3093 = vst.msk [vmem:[#allocation5 + $0x110] sm:$0xff] %vm753, %v3028
  %3094 = vst.msk [vmem:[#allocation5 + $0x118] sm:$0xff] %vm753, %v3030
  %3095 = vst.msk [vmem:[#allocation5 + $0x120] sm:$0xff] %vm753, %v3032
  %3096 = vst.msk [vmem:[#allocation5 + $0x128] sm:$0xff] %vm753, %v3034
  %3097 = vst.msk [vmem:[#allocation5 + $0x130] sm:$0xff] %vm753, %v3036
  %3098 = vst.msk [vmem:[#allocation5 + $0x138] sm:$0xff] %vm753, %v3038
  %3100 = vrot.lane.b32.xlu0 %v3012, 64
  %v3101 = vpop.permute.xlu0 %3100
  %3103 = vst.msk [vmem:[#allocation4 + $0x50] sm:$0xf0] %vm717, %v3101
  %3104 = vst.msk [vmem:[#allocation5 + $0x140] sm:$0xff] %vm767, %v3024
  %3105 = vst.msk [vmem:[#allocation5 + $0x148] sm:$0xff] %vm767, %v3026
  %3106 = vst.msk [vmem:[#allocation5 + $0x150] sm:$0xff] %vm767, %v3028
  %3107 = vst.msk [vmem:[#allocation5 + $0x158] sm:$0xff] %vm767, %v3030
  %3108 = vst.msk [vmem:[#allocation5 + $0x160] sm:$0xff] %vm767, %v3032
  %3109 = vst.msk [vmem:[#allocation5 + $0x168] sm:$0xff] %vm767, %v3034
  %3110 = vst.msk [vmem:[#allocation5 + $0x170] sm:$0xff] %vm767, %v3036
  %3111 = vst.msk [vmem:[#allocation5 + $0x178] sm:$0xff] %vm767, %v3038
  %3112 = vst.msk [vmem:[#allocation4 + $0x78] sm:$0xf] %vm670, %v3013
  %3113 = vst.msk [vmem:[#allocation5 + $0x180] sm:$0xff] %vm777, %v3024
  %3114 = vst.msk [vmem:[#allocation5 + $0x188] sm:$0xff] %vm777, %v3026
  %3115 = vst.msk [vmem:[#allocation5 + $0x190] sm:$0xff] %vm777, %v3028
  %3116 = vst.msk [vmem:[#allocation5 + $0x198] sm:$0xff] %vm777, %v3030
  %3117 = vst.msk [vmem:[#allocation5 + $0x1a0] sm:$0xff] %vm777, %v3032
  %3118 = vst.msk [vmem:[#allocation5 + $0x1a8] sm:$0xff] %vm777, %v3034
  %3119 = vst.msk [vmem:[#allocation5 + $0x1b0] sm:$0xff] %vm777, %v3036
  %3120 = vst.msk [vmem:[#allocation5 + $0x1b8] sm:$0xff] %vm777, %v3038
  %3122 = vrot.lane.b32.xlu0 %v3013, 64
  %v3123 = vpop.permute.xlu0 %3122
  %3125 = vst.msk [vmem:[#allocation4 + $0x78] sm:$0xf0] %vm717, %v3123
  %3126 = vst.msk [vmem:[#allocation5 + $0x1c0] sm:$0xff] %vm791, %v3024
  %3127 = vst.msk [vmem:[#allocation5 + $0x1c8] sm:$0xff] %vm791, %v3026
  %3128 = vst.msk [vmem:[#allocation5 + $0x1d0] sm:$0xff] %vm791, %v3028
  %3129 = vst.msk [vmem:[#allocation5 + $0x1d8] sm:$0xff] %vm791, %v3030
  %3130 = vst.msk [vmem:[#allocation5 + $0x1e0] sm:$0xff] %vm791, %v3032
  %3131 = vst.msk [vmem:[#allocation5 + $0x1e8] sm:$0xff] %vm791, %v3034
  %3132 = vst.msk [vmem:[#allocation5 + $0x1f0] sm:$0xff] %vm791, %v3036
  %3133 = vst.msk [vmem:[#allocation5 + $0x1f8] sm:$0xff] %vm791, %v3038
  %v3134 = vld [vmem:[#allocation4] sm:$0xff]
  %v3135 = vld [vmem:[#allocation4 + $0x8] sm:$0xff]
  %v3136 = vld [vmem:[#allocation4 + $0x10] sm:$0xff]
  %v3137 = vld [vmem:[#allocation4 + $0x18] sm:$0xff]
  %v3138 = vld [vmem:[#allocation4 + $0x20] sm:$0xff]
  %v3139 = vld [vmem:[#allocation4 + $0x28] sm:$0xff]
  %v3140 = vld [vmem:[#allocation4 + $0x30] sm:$0xff]
  %v3141 = vld [vmem:[#allocation4 + $0x38] sm:$0xff]
  %v3142 = vld [vmem:[#allocation4 + $0x40] sm:$0xff]
  %v3143 = vld [vmem:[#allocation4 + $0x48] sm:$0xff]
  %v3144 = vld [vmem:[#allocation4 + $0x50] sm:$0xff]
  %v3145 = vld [vmem:[#allocation4 + $0x58] sm:$0xff]
  %v3146 = vld [vmem:[#allocation4 + $0x60] sm:$0xff]
  %v3147 = vld [vmem:[#allocation4 + $0x68] sm:$0xff]
  %v3148 = vld [vmem:[#allocation4 + $0x70] sm:$0xff]
  %v3149 = vld [vmem:[#allocation4 + $0x78] sm:$0xff]
  %v3151 = vsel %vm415, %v2914, 0
  %v3154 = vsel %vm415, %v2915, 0
  %v3157 = vsel %vm415, %v2916, 0
  %v3160 = vsel %vm415, %v2917, 0
  %v3163 = vsel %vm415, %v2918, 0
  %v3166 = vsel %vm415, %v2919, 0
  %v3169 = vsel %vm415, %v2920, 0
  %v3172 = vsel %vm415, %v2921, 0
  %3174 = vmatpush.msra.mxu0 0.0
  %3175 = vmatpush.msra.mxu0 0.0
  %3176 = vmatpush.msra.mxu0 0.0
  %3177 = vmatpush.msra.mxu0 0.0
  %3178 = vmatpush.msra.mxu0 0.0
  %3179 = vmatpush.msra.mxu0 0.0
  %3180 = vmatpush.msra.mxu0 0.0
  %3181 = vmatpush.msra.mxu0 0.0
  %3182 = vmatpush.msra.mxu0 0.0
  %3183 = vmatpush.msra.mxu0 0.0
  %3184 = vmatpush.msra.mxu0 0.0
  %3185 = vmatpush.msra.mxu0 0.0
  %3186 = vmatpush.msra.mxu0 %v3146
  %3187 = vmatpush.msra.mxu0 %v3142
  %3188 = vmatpush.msra.mxu0 %v3138
  %3189 = vmatpush.msra.mxu0 %v3134
  %3190 = vmatmul.f32.gmra.mxu0 %v3151
  %v3191 = vpop.f32.mrf.mxu0
  %v3192 = vadd.f32 0.0, %v3191
  %3193 = vmatmul.f32.gmra.mxu0 %v3154
  %v3194 = vpop.f32.mrf.mxu0
  %v3195 = vadd.f32 0.0, %v3194
  %3196 = vmatmul.f32.gmra.mxu0 %v3157
  %v3197 = vpop.f32.mrf.mxu0
  %v3198 = vadd.f32 0.0, %v3197
  %3199 = vmatmul.f32.gmra.mxu0 %v3160
  %v3200 = vpop.f32.mrf.mxu0
  %v3201 = vadd.f32 0.0, %v3200
  %3202 = vmatmul.f32.gmra.mxu0 %v3163
  %v3203 = vpop.f32.mrf.mxu0
  %v3204 = vadd.f32 0.0, %v3203
  %3205 = vmatmul.f32.gmra.mxu0 %v3166
  %v3206 = vpop.f32.mrf.mxu0
  %v3207 = vadd.f32 0.0, %v3206
  %3208 = vmatmul.f32.gmra.mxu0 %v3169
  %v3209 = vpop.f32.mrf.mxu0
  %v3210 = vadd.f32 0.0, %v3209
  %3211 = vmatmul.f32.gmra.mxu0 %v3172
  %v3212 = vpop.f32.mrf.mxu0
  %v3213 = vadd.f32 0.0, %v3212
  %3214 = vdwg.mxu0
  %3215 = vmatpush.msra.mxu0 0.0
  %3216 = vmatpush.msra.mxu0 0.0
  %3217 = vmatpush.msra.mxu0 0.0
  %3218 = vmatpush.msra.mxu0 0.0
  %3219 = vmatpush.msra.mxu0 0.0
  %3220 = vmatpush.msra.mxu0 0.0
  %3221 = vmatpush.msra.mxu0 0.0
  %3222 = vmatpush.msra.mxu0 0.0
  %3223 = vmatpush.msra.mxu0 0.0
  %3224 = vmatpush.msra.mxu0 0.0
  %3225 = vmatpush.msra.mxu0 0.0
  %3226 = vmatpush.msra.mxu0 0.0
  %3227 = vmatpush.msra.mxu0 %v3147
  %3228 = vmatpush.msra.mxu0 %v3143
  %3229 = vmatpush.msra.mxu0 %v3139
  %3230 = vmatpush.msra.mxu0 %v3135
  %3231 = vmatmul.f32.gmra.mxu0 %v3151
  %v3232 = vpop.f32.mrf.mxu0
  %v3233 = vadd.f32 0.0, %v3232
  %3234 = vmatmul.f32.gmra.mxu0 %v3154
  %v3235 = vpop.f32.mrf.mxu0
  %v3236 = vadd.f32 0.0, %v3235
  %3237 = vmatmul.f32.gmra.mxu0 %v3157
  %v3238 = vpop.f32.mrf.mxu0
  %v3239 = vadd.f32 0.0, %v3238
  %3240 = vmatmul.f32.gmra.mxu0 %v3160
  %v3241 = vpop.f32.mrf.mxu0
  %v3242 = vadd.f32 0.0, %v3241
  %3243 = vmatmul.f32.gmra.mxu0 %v3163
  %v3244 = vpop.f32.mrf.mxu0
  %v3245 = vadd.f32 0.0, %v3244
  %3246 = vmatmul.f32.gmra.mxu0 %v3166
  %v3247 = vpop.f32.mrf.mxu0
  %v3248 = vadd.f32 0.0, %v3247
  %3249 = vmatmul.f32.gmra.mxu0 %v3169
  %v3250 = vpop.f32.mrf.mxu0
  %v3251 = vadd.f32 0.0, %v3250
  %3252 = vmatmul.f32.gmra.mxu0 %v3172
  %v3253 = vpop.f32.mrf.mxu0
  %v3254 = vadd.f32 0.0, %v3253
  %3255 = vdwg.mxu0
  %3256 = vmatpush.msra.mxu0 0.0
  %3257 = vmatpush.msra.mxu0 0.0
  %3258 = vmatpush.msra.mxu0 0.0
  %3259 = vmatpush.msra.mxu0 0.0
  %3260 = vmatpush.msra.mxu0 0.0
  %3261 = vmatpush.msra.mxu0 0.0
  %3262 = vmatpush.msra.mxu0 0.0
  %3263 = vmatpush.msra.mxu0 0.0
  %3264 = vmatpush.msra.mxu0 0.0
  %3265 = vmatpush.msra.mxu0 0.0
  %3266 = vmatpush.msra.mxu0 0.0
  %3267 = vmatpush.msra.mxu0 0.0
  %3268 = vmatpush.msra.mxu0 %v3148
  %3269 = vmatpush.msra.mxu0 %v3144
  %3270 = vmatpush.msra.mxu0 %v3140
  %3271 = vmatpush.msra.mxu0 %v3136
  %3272 = vmatmul.f32.gmra.mxu0 %v3151
  %v3273 = vpop.f32.mrf.mxu0
  %v3274 = vadd.f32 0.0, %v3273
  %3275 = vmatmul.f32.gmra.mxu0 %v3154
  %v3276 = vpop.f32.mrf.mxu0
  %v3277 = vadd.f32 0.0, %v3276
  %3278 = vmatmul.f32.gmra.mxu0 %v3157
  %v3279 = vpop.f32.mrf.mxu0
  %v3280 = vadd.f32 0.0, %v3279
  %3281 = vmatmul.f32.gmra.mxu0 %v3160
  %v3282 = vpop.f32.mrf.mxu0
  %v3283 = vadd.f32 0.0, %v3282
  %3284 = vmatmul.f32.gmra.mxu0 %v3163
  %v3285 = vpop.f32.mrf.mxu0
  %v3286 = vadd.f32 0.0, %v3285
  %3287 = vmatmul.f32.gmra.mxu0 %v3166
  %v3288 = vpop.f32.mrf.mxu0
  %v3289 = vadd.f32 0.0, %v3288
  %3290 = vmatmul.f32.gmra.mxu0 %v3169
  %v3291 = vpop.f32.mrf.mxu0
  %v3292 = vadd.f32 0.0, %v3291
  %3293 = vmatmul.f32.gmra.mxu0 %v3172
  %v3294 = vpop.f32.mrf.mxu0
  %v3295 = vadd.f32 0.0, %v3294
  %3296 = vdwg.mxu0
  %3297 = vmatpush.msra.mxu0 0.0
  %3298 = vmatpush.msra.mxu0 0.0
  %3299 = vmatpush.msra.mxu0 0.0
  %3300 = vmatpush.msra.mxu0 0.0
  %3301 = vmatpush.msra.mxu0 0.0
  %3302 = vmatpush.msra.mxu0 0.0
  %3303 = vmatpush.msra.mxu0 0.0
  %3304 = vmatpush.msra.mxu0 0.0
  %3305 = vmatpush.msra.mxu0 0.0
  %3306 = vmatpush.msra.mxu0 0.0
  %3307 = vmatpush.msra.mxu0 0.0
  %3308 = vmatpush.msra.mxu0 0.0
  %3309 = vmatpush.msra.mxu0 %v3149
  %3310 = vmatpush.msra.mxu0 %v3145
  %3311 = vmatpush.msra.mxu0 %v3141
  %3312 = vmatpush.msra.mxu0 %v3137
  %3313 = vmatmul.f32.gmra.mxu0 %v3151
  %v3314 = vpop.f32.mrf.mxu0
  %v3315 = vadd.f32 0.0, %v3314
  %3316 = vmatmul.f32.gmra.mxu0 %v3154
  %v3317 = vpop.f32.mrf.mxu0
  %v3318 = vadd.f32 0.0, %v3317
  %3319 = vmatmul.f32.gmra.mxu0 %v3157
  %v3320 = vpop.f32.mrf.mxu0
  %v3321 = vadd.f32 0.0, %v3320
  %3322 = vmatmul.f32.gmra.mxu0 %v3160
  %v3323 = vpop.f32.mrf.mxu0
  %v3324 = vadd.f32 0.0, %v3323
  %3325 = vmatmul.f32.gmra.mxu0 %v3163
  %v3326 = vpop.f32.mrf.mxu0
  %v3327 = vadd.f32 0.0, %v3326
  %3328 = vmatmul.f32.gmra.mxu0 %v3166
  %v3329 = vpop.f32.mrf.mxu0
  %v3330 = vadd.f32 0.0, %v3329
  %3331 = vmatmul.f32.gmra.mxu0 %v3169
  %v3332 = vpop.f32.mrf.mxu0
  %v3333 = vadd.f32 0.0, %v3332
  %3334 = vmatmul.f32.gmra.mxu0 %v3172
  %v3335 = vpop.f32.mrf.mxu0
  %v3336 = vadd.f32 0.0, %v3335
  %3337 = vdwg.mxu0
  %v3338 = vmax.f32 %v3192, %v3195
  %v3339 = vmax.f32 %v3338, %v3198
  %v3340 = vmax.f32 %v3339, %v3201
  %v3341 = vmax.f32 %v3340, %v3204
  %v3342 = vmax.f32 %v3341, %v3207
  %v3343 = vmax.f32 %v3342, %v3210
  %v3344 = vmax.f32 %v3343, %v3213
  %v3345 = vrot.slane %v3344, 4
  %v3346 = vmax.f32 %v3344, %v3345
  %v3347 = vrot.slane %v3346, 2
  %v3348 = vmax.f32 %v3346, %v3347
  %v3349 = vrot.slane %v3348, 1
  %v3350 = vmax.f32 %v3348, %v3349
  %v3351 = vmax.f32 %v3233, %v3236
  %v3352 = vmax.f32 %v3351, %v3239
  %v3353 = vmax.f32 %v3352, %v3242
  %v3354 = vmax.f32 %v3353, %v3245
  %v3355 = vmax.f32 %v3354, %v3248
  %v3356 = vmax.f32 %v3355, %v3251
  %v3357 = vmax.f32 %v3356, %v3254
  %v3358 = vrot.slane %v3357, 4
  %v3359 = vmax.f32 %v3357, %v3358
  %v3360 = vrot.slane %v3359, 2
  %v3361 = vmax.f32 %v3359, %v3360
  %v3362 = vrot.slane %v3361, 1
  %v3363 = vmax.f32 %v3361, %v3362
  %v3364 = vmax.f32 %v3274, %v3277
  %v3365 = vmax.f32 %v3364, %v3280
  %v3366 = vmax.f32 %v3365, %v3283
  %v3367 = vmax.f32 %v3366, %v3286
  %v3368 = vmax.f32 %v3367, %v3289
  %v3369 = vmax.f32 %v3368, %v3292
  %v3370 = vmax.f32 %v3369, %v3295
  %v3371 = vrot.slane %v3370, 4
  %v3372 = vmax.f32 %v3370, %v3371
  %v3373 = vrot.slane %v3372, 2
  %v3374 = vmax.f32 %v3372, %v3373
  %v3375 = vrot.slane %v3374, 1
  %v3376 = vmax.f32 %v3374, %v3375
  %v3377 = vmax.f32 %v3315, %v3318
  %v3378 = vmax.f32 %v3377, %v3321
  %v3379 = vmax.f32 %v3378, %v3324
  %v3380 = vmax.f32 %v3379, %v3327
  %v3381 = vmax.f32 %v3380, %v3330
  %v3382 = vmax.f32 %v3381, %v3333
  %v3383 = vmax.f32 %v3382, %v3336
  %v3384 = vrot.slane %v3383, 4
  %v3385 = vmax.f32 %v3383, %v3384
  %v3386 = vrot.slane %v3385, 2
  %v3387 = vmax.f32 %v3385, %v3386
  %v3388 = vrot.slane %v3387, 1
  %v3389 = vmax.f32 %v3387, %v3388
  %v3390 = vsel %vm272, %v3350, -inf
  %3391 = vmax.xlane.f32.xlu0 %v3390
  %v3392 = vpop.xlane.xlu0 %3391
  %s3393 = vtos %v3392
  %v3394 = vstv %s3393
  %3395 = vst.msk [vmem:[#allocation7] sm:$0x1] %vm1064, %v3394
  %v3396 = vsel %vm1066, %v3350, -inf
  %3397 = vmax.xlane.f32.xlu0 %v3396
  %v3398 = vpop.xlane.xlu0 %3397
  %s3399 = vtos %v3398
  %v3400 = vstv %s3399
  %3401 = vst.msk [vmem:[#allocation7] sm:$0x1] %vm1074, %v3400
  %v3402 = vsel %vm272, %v3363, -inf
  %3403 = vmax.xlane.f32.xlu0 %v3402
  %v3404 = vpop.xlane.xlu0 %3403
  %s3405 = vtos %v3404
  %v3406 = vstv %s3405
  %3407 = vst.msk [vmem:[#allocation7 + $0x1] sm:$0x1] %vm1064, %v3406
  %v3408 = vsel %vm1066, %v3363, -inf
  %3409 = vmax.xlane.f32.xlu0 %v3408
  %v3410 = vpop.xlane.xlu0 %3409
  %s3411 = vtos %v3410
  %v3412 = vstv %s3411
  %3413 = vst.msk [vmem:[#allocation7 + $0x1] sm:$0x1] %vm1074, %v3412
  %v3414 = vsel %vm272, %v3376, -inf
  %3415 = vmax.xlane.f32.xlu0 %v3414
  %v3416 = vpop.xlane.xlu0 %3415
  %s3417 = vtos %v3416
  %v3418 = vstv %s3417
  %3419 = vst.msk [vmem:[#allocation7 + $0x2] sm:$0x1] %vm1064, %v3418
  %v3420 = vsel %vm1066, %v3376, -inf
  %3421 = vmax.xlane.f32.xlu0 %v3420
  %v3422 = vpop.xlane.xlu0 %3421
  %s3423 = vtos %v3422
  %v3424 = vstv %s3423
  %3425 = vst.msk [vmem:[#allocation7 + $0x2] sm:$0x1] %vm1074, %v3424
  %v3426 = vsel %vm272, %v3389, -inf
  %3427 = vmax.xlane.f32.xlu0 %v3426
  %v3428 = vpop.xlane.xlu0 %3427
  %s3429 = vtos %v3428
  %v3430 = vstv %s3429
  %3431 = vst.msk [vmem:[#allocation7 + $0x3] sm:$0x1] %vm1064, %v3430
  %v3432 = vsel %vm1066, %v3389, -inf
  %3433 = vmax.xlane.f32.xlu0 %v3432
  %v3434 = vpop.xlane.xlu0 %3433
  %s3435 = vtos %v3434
  %v3436 = vstv %s3435
  %3437 = vst.msk [vmem:[#allocation7 + $0x3] sm:$0x1] %vm1074, %v3436
  %v3438 = vld [vmem:[#allocation7] sm:$0xf]
  %v3440 = vperm.slane %v3438, 0
  %v3441 = vperm.slane %v3438, 1
  %v3442 = vperm.slane %v3438, 2
  %v3443 = vperm.slane %v3438, 3
  %v3448 = vsub.f32 %v3192, %v3440
  %v3449 = vsub.f32 %v3233, %v3441
  %v3450 = vsub.f32 %v3274, %v3442
  %v3451 = vsub.f32 %v3315, %v3443
  %v3452 = vsub.f32 %v3195, %v3440
  %v3453 = vsub.f32 %v3236, %v3441
  %v3454 = vsub.f32 %v3277, %v3442
  %v3455 = vsub.f32 %v3318, %v3443
  %v3456 = vsub.f32 %v3198, %v3440
  %v3457 = vsub.f32 %v3239, %v3441
  %v3458 = vsub.f32 %v3280, %v3442
  %v3459 = vsub.f32 %v3321, %v3443
  %v3460 = vsub.f32 %v3201, %v3440
  %v3461 = vsub.f32 %v3242, %v3441
  %v3462 = vsub.f32 %v3283, %v3442
  %v3463 = vsub.f32 %v3324, %v3443
  %v3464 = vsub.f32 %v3204, %v3440
  %v3465 = vsub.f32 %v3245, %v3441
  %v3466 = vsub.f32 %v3286, %v3442
  %v3467 = vsub.f32 %v3327, %v3443
  %v3468 = vsub.f32 %v3207, %v3440
  %v3469 = vsub.f32 %v3248, %v3441
  %v3470 = vsub.f32 %v3289, %v3442
  %v3471 = vsub.f32 %v3330, %v3443
  %v3472 = vsub.f32 %v3210, %v3440
  %v3473 = vsub.f32 %v3251, %v3441
  %v3474 = vsub.f32 %v3292, %v3442
  %v3475 = vsub.f32 %v3333, %v3443
  %v3476 = vsub.f32 %v3213, %v3440
  %v3477 = vsub.f32 %v3254, %v3441
  %v3478 = vsub.f32 %v3295, %v3442
  %v3479 = vsub.f32 %v3336, %v3443
  %v3480 = vmul.f32 %v3448, 1.442695
  %v3481 = vpow.pop %v3480
  %v3482 = vmul.f32 %v3449, 1.442695
  %v3483 = vpow.pop %v3482
  %v3484 = vmul.f32 %v3450, 1.442695
  %v3485 = vpow.pop %v3484
  %v3486 = vmul.f32 %v3451, 1.442695
  %v3487 = vpow.pop %v3486
  %v3488 = vmul.f32 %v3452, 1.442695
  %v3489 = vpow.pop %v3488
  %v3490 = vmul.f32 %v3453, 1.442695
  %v3491 = vpow.pop %v3490
  %v3492 = vmul.f32 %v3454, 1.442695
  %v3493 = vpow.pop %v3492
  %v3494 = vmul.f32 %v3455, 1.442695
  %v3495 = vpow.pop %v3494
  %v3496 = vmul.f32 %v3456, 1.442695
  %v3497 = vpow.pop %v3496
  %v3498 = vmul.f32 %v3457, 1.442695
  %v3499 = vpow.pop %v3498
  %v3500 = vmul.f32 %v3458, 1.442695
  %v3501 = vpow.pop %v3500
  %v3502 = vmul.f32 %v3459, 1.442695
  %v3503 = vpow.pop %v3502
  %v3504 = vmul.f32 %v3460, 1.442695
  %v3505 = vpow.pop %v3504
  %v3506 = vmul.f32 %v3461, 1.442695
  %v3507 = vpow.pop %v3506
  %v3508 = vmul.f32 %v3462, 1.442695
  %v3509 = vpow.pop %v3508
  %v3510 = vmul.f32 %v3463, 1.442695
  %v3511 = vpow.pop %v3510
  %v3512 = vmul.f32 %v3464, 1.442695
  %v3513 = vpow.pop %v3512
  %v3514 = vmul.f32 %v3465, 1.442695
  %v3515 = vpow.pop %v3514
  %v3516 = vmul.f32 %v3466, 1.442695
  %v3517 = vpow.pop %v3516
  %v3518 = vmul.f32 %v3467, 1.442695
  %v3519 = vpow.pop %v3518
  %v3520 = vmul.f32 %v3468, 1.442695
  %v3521 = vpow.pop %v3520
  %v3522 = vmul.f32 %v3469, 1.442695
  %v3523 = vpow.pop %v3522
  %v3524 = vmul.f32 %v3470, 1.442695
  %v3525 = vpow.pop %v3524
  %v3526 = vmul.f32 %v3471, 1.442695
  %v3527 = vpow.pop %v3526
  %v3528 = vmul.f32 %v3472, 1.442695
  %v3529 = vpow.pop %v3528
  %v3530 = vmul.f32 %v3473, 1.442695
  %v3531 = vpow.pop %v3530
  %v3532 = vmul.f32 %v3474, 1.442695
  %v3533 = vpow.pop %v3532
  %v3534 = vmul.f32 %v3475, 1.442695
  %v3535 = vpow.pop %v3534
  %v3536 = vmul.f32 %v3476, 1.442695
  %v3537 = vpow.pop %v3536
  %v3538 = vmul.f32 %v3477, 1.442695
  %v3539 = vpow.pop %v3538
  %v3540 = vmul.f32 %v3478, 1.442695
  %v3541 = vpow.pop %v3540
  %v3542 = vmul.f32 %v3479, 1.442695
  %v3543 = vpow.pop %v3542
  %v3544 = vadd.f32 %v3481, %v3489
  %v3545 = vadd.f32 %v3544, %v3497
  %v3546 = vadd.f32 %v3545, %v3505
  %v3547 = vadd.f32 %v3546, %v3513
  %v3548 = vadd.f32 %v3547, %v3521
  %v3549 = vadd.f32 %v3548, %v3529
  %v3550 = vadd.f32 %v3549, %v3537
  %v3551 = vrot.slane %v3550, 4
  %v3552 = vadd.f32 %v3550, %v3551
  %v3553 = vrot.slane %v3552, 2
  %v3554 = vadd.f32 %v3552, %v3553
  %v3555 = vrot.slane %v3554, 1
  %v3556 = vadd.f32 %v3554, %v3555
  %v3557 = vadd.f32 %v3483, %v3491
  %v3558 = vadd.f32 %v3557, %v3499
  %v3559 = vadd.f32 %v3558, %v3507
  %v3560 = vadd.f32 %v3559, %v3515
  %v3561 = vadd.f32 %v3560, %v3523
  %v3562 = vadd.f32 %v3561, %v3531
  %v3563 = vadd.f32 %v3562, %v3539
  %v3564 = vrot.slane %v3563, 4
  %v3565 = vadd.f32 %v3563, %v3564
  %v3566 = vrot.slane %v3565, 2
  %v3567 = vadd.f32 %v3565, %v3566
  %v3568 = vrot.slane %v3567, 1
  %v3569 = vadd.f32 %v3567, %v3568
  %v3570 = vadd.f32 %v3485, %v3493
  %v3571 = vadd.f32 %v3570, %v3501
  %v3572 = vadd.f32 %v3571, %v3509
  %v3573 = vadd.f32 %v3572, %v3517
  %v3574 = vadd.f32 %v3573, %v3525
  %v3575 = vadd.f32 %v3574, %v3533
  %v3576 = vadd.f32 %v3575, %v3541
  %v3577 = vrot.slane %v3576, 4
  %v3578 = vadd.f32 %v3576, %v3577
  %v3579 = vrot.slane %v3578, 2
  %v3580 = vadd.f32 %v3578, %v3579
  %v3581 = vrot.slane %v3580, 1
  %v3582 = vadd.f32 %v3580, %v3581
  %v3583 = vadd.f32 %v3487, %v3495
  %v3584 = vadd.f32 %v3583, %v3503
  %v3585 = vadd.f32 %v3584, %v3511
  %v3586 = vadd.f32 %v3585, %v3519
  %v3587 = vadd.f32 %v3586, %v3527
  %v3588 = vadd.f32 %v3587, %v3535
  %v3589 = vadd.f32 %v3588, %v3543
  %v3590 = vrot.slane %v3589, 4
  %v3591 = vadd.f32 %v3589, %v3590
  %v3592 = vrot.slane %v3591, 2
  %v3593 = vadd.f32 %v3591, %v3592
  %v3594 = vrot.slane %v3593, 1
  %v3595 = vadd.f32 %v3593, %v3594
  %v3596 = vsel %vm1270, %v3556, 0.0
  %3597 = vadd.xlane.f32.xlu0 %v3596
  %v3598 = vpop.xlane.xlu0 %3597
  %v3599 = vrot.slane %v3598, 4
  %v3600 = vadd.f32 %v3598, %v3599
  %v3601 = vrot.slane %v3600, 2
  %v3602 = vadd.f32 %v3600, %v3601
  %v3603 = vrot.slane %v3602, 1
  %v3604 = vadd.f32 %v3602, %v3603
  %s3605 = vtos %v3604
  %v3606 = vstv %s3605
  %3607 = vst.msk [vmem:[#allocation8] sm:$0x1] %vm1282, %v3606
  %3609 = vrot.lane.b32.xlu0 %v3556, 64
  %v3610 = vpop.permute.xlu0 %3609
  %v3612 = vsel %vm1270, %v3610, 0.0
  %3613 = vadd.xlane.f32.xlu0 %v3612
  %v3614 = vpop.xlane.xlu0 %3613
  %v3615 = vrot.slane %v3614, 4
  %v3616 = vadd.f32 %v3614, %v3615
  %v3617 = vrot.slane %v3616, 2
  %v3618 = vadd.f32 %v3616, %v3617
  %v3619 = vrot.slane %v3618, 1
  %v3620 = vadd.f32 %v3618, %v3619
  %s3621 = vtos %v3620
  %v3622 = vstv %s3621
  %3623 = vst.msk [vmem:[#allocation8] sm:$0x1] %vm1299, %v3622
  %v3624 = vsel %vm1270, %v3569, 0.0
  %3625 = vadd.xlane.f32.xlu0 %v3624
  %v3626 = vpop.xlane.xlu0 %3625
  %v3627 = vrot.slane %v3626, 4
  %v3628 = vadd.f32 %v3626, %v3627
  %v3629 = vrot.slane %v3628, 2
  %v3630 = vadd.f32 %v3628, %v3629
  %v3631 = vrot.slane %v3630, 1
  %v3632 = vadd.f32 %v3630, %v3631
  %s3633 = vtos %v3632
  %v3634 = vstv %s3633
  %3635 = vst.msk [vmem:[#allocation8] sm:$0x1] %vm1312, %v3634
  %3637 = vrot.lane.b32.xlu0 %v3569, 64
  %v3638 = vpop.permute.xlu0 %3637
  %v3640 = vsel %vm1270, %v3638, 0.0
  %3641 = vadd.xlane.f32.xlu0 %v3640
  %v3642 = vpop.xlane.xlu0 %3641
  %v3643 = vrot.slane %v3642, 4
  %v3644 = vadd.f32 %v3642, %v3643
  %v3645 = vrot.slane %v3644, 2
  %v3646 = vadd.f32 %v3644, %v3645
  %v3647 = vrot.slane %v3646, 1
  %v3648 = vadd.f32 %v3646, %v3647
  %s3649 = vtos %v3648
  %v3650 = vstv %s3649
  %3651 = vst.msk [vmem:[#allocation8] sm:$0x1] %vm1329, %v3650
  %v3652 = vsel %vm1270, %v3582, 0.0
  %3653 = vadd.xlane.f32.xlu0 %v3652
  %v3654 = vpop.xlane.xlu0 %3653
  %v3655 = vrot.slane %v3654, 4
  %v3656 = vadd.f32 %v3654, %v3655
  %v3657 = vrot.slane %v3656, 2
  %v3658 = vadd.f32 %v3656, %v3657
  %v3659 = vrot.slane %v3658, 1
  %v3660 = vadd.f32 %v3658, %v3659
  %s3661 = vtos %v3660
  %v3662 = vstv %s3661
  %3663 = vst.msk [vmem:[#allocation8] sm:$0x1] %vm1342, %v3662
  %3665 = vrot.lane.b32.xlu0 %v3582, 64
  %v3666 = vpop.permute.xlu0 %3665
  %v3668 = vsel %vm1270, %v3666, 0.0
  %3669 = vadd.xlane.f32.xlu0 %v3668
  %v3670 = vpop.xlane.xlu0 %3669
  %v3671 = vrot.slane %v3670, 4
  %v3672 = vadd.f32 %v3670, %v3671
  %v3673 = vrot.slane %v3672, 2
  %v3674 = vadd.f32 %v3672, %v3673
  %v3675 = vrot.slane %v3674, 1
  %v3676 = vadd.f32 %v3674, %v3675
  %s3677 = vtos %v3676
  %v3678 = vstv %s3677
  %3679 = vst.msk [vmem:[#allocation8] sm:$0x1] %vm1359, %v3678
  %v3680 = vsel %vm1270, %v3595, 0.0
  %3681 = vadd.xlane.f32.xlu0 %v3680
  %v3682 = vpop.xlane.xlu0 %3681
  %v3683 = vrot.slane %v3682, 4
  %v3684 = vadd.f32 %v3682, %v3683
  %v3685 = vrot.slane %v3684, 2
  %v3686 = vadd.f32 %v3684, %v3685
  %v3687 = vrot.slane %v3686, 1
  %v3688 = vadd.f32 %v3686, %v3687
  %s3689 = vtos %v3688
  %v3690 = vstv %s3689
  %3691 = vst.msk [vmem:[#allocation8] sm:$0x1] %vm1372, %v3690
  %3693 = vrot.lane.b32.xlu0 %v3595, 64
  %v3694 = vpop.permute.xlu0 %3693
  %v3696 = vsel %vm1270, %v3694, 0.0
  %3697 = vadd.xlane.f32.xlu0 %v3696
  %v3698 = vpop.xlane.xlu0 %3697
  %v3699 = vrot.slane %v3698, 4
  %v3700 = vadd.f32 %v3698, %v3699
  %v3701 = vrot.slane %v3700, 2
  %v3702 = vadd.f32 %v3700, %v3701
  %v3703 = vrot.slane %v3702, 1
  %v3704 = vadd.f32 %v3702, %v3703
  %s3705 = vtos %v3704
  %v3706 = vstv %s3705
  %3707 = vst.msk [vmem:[#allocation8] sm:$0x1] %vm1389, %v3706
  %v3708 = vld [vmem:[#allocation8] sm:$0x1]
  %v3709 = vrcp.pop %v3708
  %v3710 = vld [vmem:[#allocation5] sm:$0xff]
  %v3711 = vld [vmem:[#allocation5 + $0x8] sm:$0xff]
  %v3712 = vld [vmem:[#allocation5 + $0x10] sm:$0xff]
  %v3713 = vld [vmem:[#allocation5 + $0x18] sm:$0xff]
  %v3714 = vld [vmem:[#allocation5 + $0x20] sm:$0xff]
  %v3715 = vld [vmem:[#allocation5 + $0x28] sm:$0xff]
  %v3716 = vld [vmem:[#allocation5 + $0x30] sm:$0xff]
  %v3717 = vld [vmem:[#allocation5 + $0x38] sm:$0xff]
  %v3718 = vld [vmem:[#allocation5 + $0x40] sm:$0xff]
  %v3719 = vld [vmem:[#allocation5 + $0x48] sm:$0xff]
  %v3720 = vld [vmem:[#allocation5 + $0x50] sm:$0xff]
  %v3721 = vld [vmem:[#allocation5 + $0x58] sm:$0xff]
  %v3722 = vld [vmem:[#allocation5 + $0x60] sm:$0xff]
  %v3723 = vld [vmem:[#allocation5 + $0x68] sm:$0xff]
  %v3724 = vld [vmem:[#allocation5 + $0x70] sm:$0xff]
  %v3725 = vld [vmem:[#allocation5 + $0x78] sm:$0xff]
  %v3726 = vld [vmem:[#allocation5 + $0x80] sm:$0xff]
  %v3727 = vld [vmem:[#allocation5 + $0x88] sm:$0xff]
  %v3728 = vld [vmem:[#allocation5 + $0x90] sm:$0xff]
  %v3729 = vld [vmem:[#allocation5 + $0x98] sm:$0xff]
  %v3730 = vld [vmem:[#allocation5 + $0xa0] sm:$0xff]
  %v3731 = vld [vmem:[#allocation5 + $0xa8] sm:$0xff]
  %v3732 = vld [vmem:[#allocation5 + $0xb0] sm:$0xff]
  %v3733 = vld [vmem:[#allocation5 + $0xb8] sm:$0xff]
  %v3734 = vld [vmem:[#allocation5 + $0xc0] sm:$0xff]
  %v3735 = vld [vmem:[#allocation5 + $0xc8] sm:$0xff]
  %v3736 = vld [vmem:[#allocation5 + $0xd0] sm:$0xff]
  %v3737 = vld [vmem:[#allocation5 + $0xd8] sm:$0xff]
  %v3738 = vld [vmem:[#allocation5 + $0xe0] sm:$0xff]
  %v3739 = vld [vmem:[#allocation5 + $0xe8] sm:$0xff]
  %v3740 = vld [vmem:[#allocation5 + $0xf0] sm:$0xff]
  %v3741 = vld [vmem:[#allocation5 + $0xf8] sm:$0xff]
  %v3742 = vld [vmem:[#allocation5 + $0x100] sm:$0xff]
  %v3743 = vld [vmem:[#allocation5 + $0x108] sm:$0xff]
  %v3744 = vld [vmem:[#allocation5 + $0x110] sm:$0xff]
  %v3745 = vld [vmem:[#allocation5 + $0x118] sm:$0xff]
  %v3746 = vld [vmem:[#allocation5 + $0x120] sm:$0xff]
  %v3747 = vld [vmem:[#allocation5 + $0x128] sm:$0xff]
  %v3748 = vld [vmem:[#allocation5 + $0x130] sm:$0xff]
  %v3749 = vld [vmem:[#allocation5 + $0x138] sm:$0xff]
  %v3750 = vld [vmem:[#allocation5 + $0x140] sm:$0xff]
  %v3751 = vld [vmem:[#allocation5 + $0x148] sm:$0xff]
  %v3752 = vld [vmem:[#allocation5 + $0x150] sm:$0xff]
  %v3753 = vld [vmem:[#allocation5 + $0x158] sm:$0xff]
  %v3754 = vld [vmem:[#allocation5 + $0x160] sm:$0xff]
  %v3755 = vld [vmem:[#allocation5 + $0x168] sm:$0xff]
  %v3756 = vld [vmem:[#allocation5 + $0x170] sm:$0xff]
  %v3757 = vld [vmem:[#allocation5 + $0x178] sm:$0xff]
  %v3758 = vld [vmem:[#allocation5 + $0x180] sm:$0xff]
  %v3759 = vld [vmem:[#allocation5 + $0x188] sm:$0xff]
  %v3760 = vld [vmem:[#allocation5 + $0x190] sm:$0xff]
  %v3761 = vld [vmem:[#allocation5 + $0x198] sm:$0xff]
  %v3762 = vld [vmem:[#allocation5 + $0x1a0] sm:$0xff]
  %v3763 = vld [vmem:[#allocation5 + $0x1a8] sm:$0xff]
  %v3764 = vld [vmem:[#allocation5 + $0x1b0] sm:$0xff]
  %v3765 = vld [vmem:[#allocation5 + $0x1b8] sm:$0xff]
  %v3766 = vld [vmem:[#allocation5 + $0x1c0] sm:$0xff]
  %v3767 = vld [vmem:[#allocation5 + $0x1c8] sm:$0xff]
  %v3768 = vld [vmem:[#allocation5 + $0x1d0] sm:$0xff]
  %v3769 = vld [vmem:[#allocation5 + $0x1d8] sm:$0xff]
  %v3770 = vld [vmem:[#allocation5 + $0x1e0] sm:$0xff]
  %v3771 = vld [vmem:[#allocation5 + $0x1e8] sm:$0xff]
  %v3772 = vld [vmem:[#allocation5 + $0x1f0] sm:$0xff]
  %v3773 = vld [vmem:[#allocation5 + $0x1f8] sm:$0xff]
  %3774 = vmatpush.msra.mxu0 %v3725
  %3775 = vmatpush.msra.mxu0 %v3724
  %3776 = vmatpush.msra.mxu0 %v3723
  %3777 = vmatpush.msra.mxu0 %v3722
  %3778 = vmatpush.msra.mxu0 %v3721
  %3779 = vmatpush.msra.mxu0 %v3720
  %3780 = vmatpush.msra.mxu0 %v3719
  %3781 = vmatpush.msra.mxu0 %v3718
  %3782 = vmatpush.msra.mxu0 %v3717
  %3783 = vmatpush.msra.mxu0 %v3716
  %3784 = vmatpush.msra.mxu0 %v3715
  %3785 = vmatpush.msra.mxu0 %v3714
  %3786 = vmatpush.msra.mxu0 %v3713
  %3787 = vmatpush.msra.mxu0 %v3712
  %3788 = vmatpush.msra.mxu0 %v3711
  %3789 = vmatpush.msra.mxu0 %v3710
  %3790 = vmatmul.f32.gmra.mxu0 %v3481
  %v3791 = vpop.f32.mrf.mxu0
  %v3792 = vadd.f32 0.0, %v3791
  %3793 = vmatmul.f32.gmra.mxu0 %v3489
  %v3794 = vpop.f32.mrf.mxu0
  %v3795 = vadd.f32 0.0, %v3794
  %3796 = vmatmul.f32.gmra.mxu0 %v3497
  %v3797 = vpop.f32.mrf.mxu0
  %v3798 = vadd.f32 0.0, %v3797
  %3799 = vmatmul.f32.gmra.mxu0 %v3505
  %v3800 = vpop.f32.mrf.mxu0
  %v3801 = vadd.f32 0.0, %v3800
  %3802 = vmatmul.f32.gmra.mxu0 %v3513
  %v3803 = vpop.f32.mrf.mxu0
  %v3804 = vadd.f32 0.0, %v3803
  %3805 = vmatmul.f32.gmra.mxu0 %v3521
  %v3806 = vpop.f32.mrf.mxu0
  %v3807 = vadd.f32 0.0, %v3806
  %3808 = vmatmul.f32.gmra.mxu0 %v3529
  %v3809 = vpop.f32.mrf.mxu0
  %v3810 = vadd.f32 0.0, %v3809
  %3811 = vmatmul.f32.gmra.mxu0 %v3537
  %v3812 = vpop.f32.mrf.mxu0
  %v3813 = vadd.f32 0.0, %v3812
  %3814 = vdwg.mxu0
  %3815 = vmatpush.msra.mxu0 %v3741
  %3816 = vmatpush.msra.mxu0 %v3740
  %3817 = vmatpush.msra.mxu0 %v3739
  %3818 = vmatpush.msra.mxu0 %v3738
  %3819 = vmatpush.msra.mxu0 %v3737
  %3820 = vmatpush.msra.mxu0 %v3736
  %3821 = vmatpush.msra.mxu0 %v3735
  %3822 = vmatpush.msra.mxu0 %v3734
  %3823 = vmatpush.msra.mxu0 %v3733
  %3824 = vmatpush.msra.mxu0 %v3732
  %3825 = vmatpush.msra.mxu0 %v3731
  %3826 = vmatpush.msra.mxu0 %v3730
  %3827 = vmatpush.msra.mxu0 %v3729
  %3828 = vmatpush.msra.mxu0 %v3728
  %3829 = vmatpush.msra.mxu0 %v3727
  %3830 = vmatpush.msra.mxu0 %v3726
  %3831 = vmatmul.f32.gmra.mxu0 %v3483
  %v3832 = vpop.f32.mrf.mxu0
  %v3833 = vadd.f32 %v3792, %v3832
  %3834 = vmatmul.f32.gmra.mxu0 %v3491
  %v3835 = vpop.f32.mrf.mxu0
  %v3836 = vadd.f32 %v3795, %v3835
  %3837 = vmatmul.f32.gmra.mxu0 %v3499
  %v3838 = vpop.f32.mrf.mxu0
  %v3839 = vadd.f32 %v3798, %v3838
  %3840 = vmatmul.f32.gmra.mxu0 %v3507
  %v3841 = vpop.f32.mrf.mxu0
  %v3842 = vadd.f32 %v3801, %v3841
  %3843 = vmatmul.f32.gmra.mxu0 %v3515
  %v3844 = vpop.f32.mrf.mxu0
  %v3845 = vadd.f32 %v3804, %v3844
  %3846 = vmatmul.f32.gmra.mxu0 %v3523
  %v3847 = vpop.f32.mrf.mxu0
  %v3848 = vadd.f32 %v3807, %v3847
  %3849 = vmatmul.f32.gmra.mxu0 %v3531
  %v3850 = vpop.f32.mrf.mxu0
  %v3851 = vadd.f32 %v3810, %v3850
  %3852 = vmatmul.f32.gmra.mxu0 %v3539
  %v3853 = vpop.f32.mrf.mxu0
  %v3854 = vadd.f32 %v3813, %v3853
  %3855 = vdwg.mxu0
  %3856 = vmatpush.msra.mxu0 %v3757
  %3857 = vmatpush.msra.mxu0 %v3756
  %3858 = vmatpush.msra.mxu0 %v3755
  %3859 = vmatpush.msra.mxu0 %v3754
  %3860 = vmatpush.msra.mxu0 %v3753
  %3861 = vmatpush.msra.mxu0 %v3752
  %3862 = vmatpush.msra.mxu0 %v3751
  %3863 = vmatpush.msra.mxu0 %v3750
  %3864 = vmatpush.msra.mxu0 %v3749
  %3865 = vmatpush.msra.mxu0 %v3748
  %3866 = vmatpush.msra.mxu0 %v3747
  %3867 = vmatpush.msra.mxu0 %v3746
  %3868 = vmatpush.msra.mxu0 %v3745
  %3869 = vmatpush.msra.mxu0 %v3744
  %3870 = vmatpush.msra.mxu0 %v3743
  %3871 = vmatpush.msra.mxu0 %v3742
  %3872 = vmatmul.f32.gmra.mxu0 %v3485
  %v3873 = vpop.f32.mrf.mxu0
  %v3874 = vadd.f32 %v3833, %v3873
  %3875 = vmatmul.f32.gmra.mxu0 %v3493
  %v3876 = vpop.f32.mrf.mxu0
  %v3877 = vadd.f32 %v3836, %v3876
  %3878 = vmatmul.f32.gmra.mxu0 %v3501
  %v3879 = vpop.f32.mrf.mxu0
  %v3880 = vadd.f32 %v3839, %v3879
  %3881 = vmatmul.f32.gmra.mxu0 %v3509
  %v3882 = vpop.f32.mrf.mxu0
  %v3883 = vadd.f32 %v3842, %v3882
  %3884 = vmatmul.f32.gmra.mxu0 %v3517
  %v3885 = vpop.f32.mrf.mxu0
  %v3886 = vadd.f32 %v3845, %v3885
  %3887 = vmatmul.f32.gmra.mxu0 %v3525
  %v3888 = vpop.f32.mrf.mxu0
  %v3889 = vadd.f32 %v3848, %v3888
  %3890 = vmatmul.f32.gmra.mxu0 %v3533
  %v3891 = vpop.f32.mrf.mxu0
  %v3892 = vadd.f32 %v3851, %v3891
  %3893 = vmatmul.f32.gmra.mxu0 %v3541
  %v3894 = vpop.f32.mrf.mxu0
  %v3895 = vadd.f32 %v3854, %v3894
  %3896 = vdwg.mxu0
  %3897 = vmatpush.msra.mxu0 %v3773
  %3898 = vmatpush.msra.mxu0 %v3772
  %3899 = vmatpush.msra.mxu0 %v3771
  %3900 = vmatpush.msra.mxu0 %v3770
  %3901 = vmatpush.msra.mxu0 %v3769
  %3902 = vmatpush.msra.mxu0 %v3768
  %3903 = vmatpush.msra.mxu0 %v3767
  %3904 = vmatpush.msra.mxu0 %v3766
  %3905 = vmatpush.msra.mxu0 %v3765
  %3906 = vmatpush.msra.mxu0 %v3764
  %3907 = vmatpush.msra.mxu0 %v3763
  %3908 = vmatpush.msra.mxu0 %v3762
  %3909 = vmatpush.msra.mxu0 %v3761
  %3910 = vmatpush.msra.mxu0 %v3760
  %3911 = vmatpush.msra.mxu0 %v3759
  %3912 = vmatpush.msra.mxu0 %v3758
  %3913 = vmatmul.f32.gmra.mxu0 %v3487
  %v3914 = vpop.f32.mrf.mxu0
  %v3915 = vadd.f32 %v3874, %v3914
  %3916 = vmatmul.f32.gmra.mxu0 %v3495
  %v3917 = vpop.f32.mrf.mxu0
  %v3918 = vadd.f32 %v3877, %v3917
  %3919 = vmatmul.f32.gmra.mxu0 %v3503
  %v3920 = vpop.f32.mrf.mxu0
  %v3921 = vadd.f32 %v3880, %v3920
  %3922 = vmatmul.f32.gmra.mxu0 %v3511
  %v3923 = vpop.f32.mrf.mxu0
  %v3924 = vadd.f32 %v3883, %v3923
  %3925 = vmatmul.f32.gmra.mxu0 %v3519
  %v3926 = vpop.f32.mrf.mxu0
  %v3927 = vadd.f32 %v3886, %v3926
  %3928 = vmatmul.f32.gmra.mxu0 %v3527
  %v3929 = vpop.f32.mrf.mxu0
  %v3930 = vadd.f32 %v3889, %v3929
  %3931 = vmatmul.f32.gmra.mxu0 %v3535
  %v3932 = vpop.f32.mrf.mxu0
  %v3933 = vadd.f32 %v3892, %v3932
  %3934 = vmatmul.f32.gmra.mxu0 %v3543
  %v3935 = vpop.f32.mrf.mxu0
  %v3936 = vadd.f32 %v3895, %v3935
  %3937 = vdwg.mxu0
  %v3939 = vperm.slane %v3709, 0
  %v3941 = vmul.f32 %v3915, %v3939
  %v3942 = vmul.f32 %v3918, %v3939
  %v3943 = vmul.f32 %v3921, %v3939
  %v3944 = vmul.f32 %v3924, %v3939
  %v3945 = vmul.f32 %v3927, %v3939
  %v3946 = vmul.f32 %v3930, %v3939
  %v3947 = vmul.f32 %v3933, %v3939
  %v3948 = vmul.f32 %v3936, %v3939
  %3957 = vrot.lane.b32.xlu0 %v3941, 64
  %v3958 = vpop.permute.xlu0 %3957
  %3959 = vrot.lane.b32.xlu0 %v3942, 64
  %v3960 = vpop.permute.xlu0 %3959
  %3961 = vrot.lane.b32.xlu0 %v3943, 64
  %v3962 = vpop.permute.xlu0 %3961
  %3963 = vrot.lane.b32.xlu0 %v3944, 64
  %v3964 = vpop.permute.xlu0 %3963
  %3965 = vrot.lane.b32.xlu0 %v3945, 64
  %v3966 = vpop.permute.xlu0 %3965
  %3967 = vrot.lane.b32.xlu0 %v3946, 64
  %v3968 = vpop.permute.xlu0 %3967
  %3969 = vrot.lane.b32.xlu0 %v3947, 64
  %v3970 = vpop.permute.xlu0 %3969
  %3971 = vrot.lane.b32.xlu0 %v3948, 64
  %v3972 = vpop.permute.xlu0 %3971
  %vm3981 = vcmask 785920
  %3982 = vst.msk [vmem:[#allocation6] sm:$0xff] %vm3981, %v3958
  %3983 = vst.msk [vmem:[#allocation6 + $0x8] sm:$0xff] %vm3981, %v3960
  %3984 = vst.msk [vmem:[#allocation6 + $0x10] sm:$0xff] %vm3981, %v3962
  %3985 = vst.msk [vmem:[#allocation6 + $0x18] sm:$0xff] %vm3981, %v3964
  %3986 = vst.msk [vmem:[#allocation6 + $0x20] sm:$0xff] %vm3981, %v3966
  %3987 = vst.msk [vmem:[#allocation6 + $0x28] sm:$0xff] %vm3981, %v3968
  %3988 = vst.msk [vmem:[#allocation6 + $0x30] sm:$0xff] %vm3981, %v3970
  %3989 = vst.msk [vmem:[#allocation6 + $0x38] sm:$0xff] %vm3981, %v3972
  %v3990 = vld [vmem:[#allocation2 + $0xc0] sm:$0xff]
  %v3991 = vld [vmem:[#allocation2 + $0xc8] sm:$0xff]
  %v3992 = vld [vmem:[#allocation2 + $0xd0] sm:$0xff]
  %v3993 = vld [vmem:[#allocation2 + $0xd8] sm:$0xff]
  %v3994 = vld [vmem:[#allocation2 + $0xe0] sm:$0xff]
  %v3995 = vld [vmem:[#allocation2 + $0xe8] sm:$0xff]
  %v3996 = vld [vmem:[#allocation2 + $0xf0] sm:$0xff]
  %v3997 = vld [vmem:[#allocation2 + $0xf8] sm:$0xff]
  %v3998 = vld [vmem:[#allocation3 + $0x8] sm:$0xff]
  %v3999 = vld [vmem:[#allocation3 + $0x18] sm:$0xff]
  %v4000 = vld [vmem:[#allocation3 + $0x28] sm:$0xff]
  %v4001 = vld [vmem:[#allocation3 + $0x38] sm:$0xff]
  %v4002 = vsel %vm415, %v3990, 0.0
  %v4003 = vsel %vm415, %v3991, 0.0
  %v4004 = vadd.f32 %v4002, %v4003
  %v4005 = vsel %vm415, %v3992, 0.0
  %v4006 = vadd.f32 %v4004, %v4005
  %v4007 = vsel %vm415, %v3993, 0.0
  %v4008 = vadd.f32 %v4006, %v4007
  %v4009 = vsel %vm415, %v3994, 0.0
  %v4010 = vadd.f32 %v4008, %v4009
  %v4011 = vsel %vm415, %v3995, 0.0
  %v4012 = vadd.f32 %v4010, %v4011
  %v4013 = vsel %vm415, %v3996, 0.0
  %v4014 = vadd.f32 %v4012, %v4013
  %v4015 = vsel %vm415, %v3997, 0.0
  %v4016 = vadd.f32 %v4014, %v4015
  %v4017 = vrot.slane %v4016, 4
  %v4018 = vadd.f32 %v4016, %v4017
  %v4019 = vrot.slane %v4018, 2
  %v4020 = vadd.f32 %v4018, %v4019
  %v4021 = vrot.slane %v4020, 1
  %v4022 = vadd.f32 %v4020, %v4021
  %v4023 = vmul.f32 %v4022, %v519
  %v4024 = vsub.f32 %v3990, %v4023
  %v4025 = vsub.f32 %v3991, %v4023
  %v4026 = vsub.f32 %v3992, %v4023
  %v4027 = vsub.f32 %v3993, %v4023
  %v4028 = vsub.f32 %v3994, %v4023
  %v4029 = vsub.f32 %v3995, %v4023
  %v4030 = vsub.f32 %v3996, %v4023
  %v4031 = vsub.f32 %v3997, %v4023
  %v4032 = vmul.f32 %v4024, %v4024
  %v4033 = vmul.f32 %v4025, %v4025
  %v4034 = vmul.f32 %v4026, %v4026
  %v4035 = vmul.f32 %v4027, %v4027
  %v4036 = vmul.f32 %v4028, %v4028
  %v4037 = vmul.f32 %v4029, %v4029
  %v4038 = vmul.f32 %v4030, %v4030
  %v4039 = vmul.f32 %v4031, %v4031
  %v4040 = vsel %vm415, %v4032, 0.0
  %v4041 = vsel %vm415, %v4033, 0.0
  %v4042 = vadd.f32 %v4040, %v4041
  %v4043 = vsel %vm415, %v4034, 0.0
  %v4044 = vadd.f32 %v4042, %v4043
  %v4045 = vsel %vm415, %v4035, 0.0
  %v4046 = vadd.f32 %v4044, %v4045
  %v4047 = vsel %vm415, %v4036, 0.0
  %v4048 = vadd.f32 %v4046, %v4047
  %v4049 = vsel %vm415, %v4037, 0.0
  %v4050 = vadd.f32 %v4048, %v4049
  %v4051 = vsel %vm415, %v4038, 0.0
  %v4052 = vadd.f32 %v4050, %v4051
  %v4053 = vsel %vm415, %v4039, 0.0
  %v4054 = vadd.f32 %v4052, %v4053
  %v4055 = vrot.slane %v4054, 4
  %v4056 = vadd.f32 %v4054, %v4055
  %v4057 = vrot.slane %v4056, 2
  %v4058 = vadd.f32 %v4056, %v4057
  %v4059 = vrot.slane %v4058, 1
  %v4060 = vadd.f32 %v4058, %v4059
  %v4061 = vmul.f32 %v4060, %v519
  %v4062 = vadd.f32 %v4061, 1e-05
  %v4063 = vrsqrt.pop %v4062
  %v4064 = vmul.f32 %v4063, %v4062
  %v4065 = vmul.f32 %v4064, %v4063
  %v4066 = vmul.f32 0.5, %v4065
  %v4067 = vsub.f32 1.5, %v4066
  %v4068 = vmul.f32 %v4063, %v4067
  %vm4069 = vweird.f32 %v4062
  %vm4070 = vweird.f32 %v4063
  %vm4071 = vmor %vm4069, %vm4070
  %v4072 = vsel %vm4071, %v4063, %v4068
  %v4073 = vmul.f32 %v4024, %v4072
  %v4074 = vmul.f32 %v4025, %v4072
  %v4075 = vmul.f32 %v4026, %v4072
  %v4076 = vmul.f32 %v4027, %v4072
  %v4077 = vmul.f32 %v4028, %v4072
  %v4078 = vmul.f32 %v4029, %v4072
  %v4079 = vmul.f32 %v4030, %v4072
  %v4080 = vmul.f32 %v4031, %v4072
  %4085 = vrot.lane.b32.xlu0 %v3998, 64
  %v4086 = vpop.permute.xlu0 %4085
  %4087 = vrot.lane.b32.xlu0 %v3999, 64
  %v4088 = vpop.permute.xlu0 %4087
  %4089 = vrot.lane.b32.xlu0 %v4000, 64
  %v4090 = vpop.permute.xlu0 %4089
  %4091 = vrot.lane.b32.xlu0 %v4001, 64
  %v4092 = vpop.permute.xlu0 %4091
  %v4097 = vsel %vm272, %v4086, 0.0
  %4098 = vadd.xlane.f32.xlu0 %v4097
  %v4099 = vpop.xlane.xlu0 %4098
  %v4100 = vsel %vm272, %v4088, 0.0
  %4101 = vadd.xlane.f32.xlu0 %v4100
  %v4102 = vpop.xlane.xlu0 %4101
  %v4103 = vsel %vm272, %v4090, 0.0
  %4104 = vadd.xlane.f32.xlu0 %v4103
  %v4105 = vpop.xlane.xlu0 %4104
  %v4106 = vsel %vm272, %v4092, 0.0
  %4107 = vadd.xlane.f32.xlu0 %v4106
  %v4108 = vpop.xlane.xlu0 %4107
  %v4109 = vmul.f32 %v4099, %v519
  %v4110 = vmul.f32 %v4102, %v519
  %v4111 = vmul.f32 %v4105, %v519
  %v4112 = vmul.f32 %v4108, %v519
  %v4113 = vsub.f32 %v3998, %v4109
  %v4114 = vsub.f32 %v3999, %v4110
  %v4115 = vsub.f32 %v4000, %v4111
  %v4116 = vsub.f32 %v4001, %v4112
  %v4117 = vmul.f32 %v4113, %v4113
  %v4118 = vmul.f32 %v4114, %v4114
  %v4119 = vmul.f32 %v4115, %v4115
  %v4120 = vmul.f32 %v4116, %v4116
  %4125 = vrot.lane.b32.xlu0 %v4117, 64
  %v4126 = vpop.permute.xlu0 %4125
  %4127 = vrot.lane.b32.xlu0 %v4118, 64
  %v4128 = vpop.permute.xlu0 %4127
  %4129 = vrot.lane.b32.xlu0 %v4119, 64
  %v4130 = vpop.permute.xlu0 %4129
  %4131 = vrot.lane.b32.xlu0 %v4120, 64
  %v4132 = vpop.permute.xlu0 %4131
  %v4137 = vsel %vm272, %v4126, 0.0
  %4138 = vadd.xlane.f32.xlu0 %v4137
  %v4139 = vpop.xlane.xlu0 %4138
  %v4140 = vsel %vm272, %v4128, 0.0
  %4141 = vadd.xlane.f32.xlu0 %v4140
  %v4142 = vpop.xlane.xlu0 %4141
  %v4143 = vsel %vm272, %v4130, 0.0
  %4144 = vadd.xlane.f32.xlu0 %v4143
  %v4145 = vpop.xlane.xlu0 %4144
  %v4146 = vsel %vm272, %v4132, 0.0
  %4147 = vadd.xlane.f32.xlu0 %v4146
  %v4148 = vpop.xlane.xlu0 %4147
  %v4149 = vmul.f32 %v4139, %v519
  %v4150 = vmul.f32 %v4142, %v519
  %v4151 = vmul.f32 %v4145, %v519
  %v4152 = vmul.f32 %v4148, %v519
  %v4153 = vadd.f32 %v4149, 1e-05
  %v4154 = vadd.f32 %v4150, 1e-05
  %v4155 = vadd.f32 %v4151, 1e-05
  %v4156 = vadd.f32 %v4152, 1e-05
  %v4157 = vrsqrt.pop %v4153
  %v4158 = vmul.f32 %v4157, %v4153
  %v4159 = vmul.f32 %v4158, %v4157
  %v4160 = vmul.f32 0.5, %v4159
  %v4161 = vsub.f32 1.5, %v4160
  %v4162 = vmul.f32 %v4157, %v4161
  %vm4163 = vweird.f32 %v4153
  %vm4164 = vweird.f32 %v4157
  %vm4165 = vmor %vm4163, %vm4164
  %v4166 = vsel %vm4165, %v4157, %v4162
  %v4167 = vrsqrt.pop %v4154
  %v4168 = vmul.f32 %v4167, %v4154
  %v4169 = vmul.f32 %v4168, %v4167
  %v4170 = vmul.f32 0.5, %v4169
  %v4171 = vsub.f32 1.5, %v4170
  %v4172 = vmul.f32 %v4167, %v4171
  %vm4173 = vweird.f32 %v4154
  %vm4174 = vweird.f32 %v4167
  %vm4175 = vmor %vm4173, %vm4174
  %v4176 = vsel %vm4175, %v4167, %v4172
  %v4177 = vrsqrt.pop %v4155
  %v4178 = vmul.f32 %v4177, %v4155
  %v4179 = vmul.f32 %v4178, %v4177
  %v4180 = vmul.f32 0.5, %v4179
  %v4181 = vsub.f32 1.5, %v4180
  %v4182 = vmul.f32 %v4177, %v4181
  %vm4183 = vweird.f32 %v4155
  %vm4184 = vweird.f32 %v4177
  %vm4185 = vmor %vm4183, %vm4184
  %v4186 = vsel %vm4185, %v4177, %v4182
  %v4187 = vrsqrt.pop %v4156
  %v4188 = vmul.f32 %v4187, %v4156
  %v4189 = vmul.f32 %v4188, %v4187
  %v4190 = vmul.f32 0.5, %v4189
  %v4191 = vsub.f32 1.5, %v4190
  %v4192 = vmul.f32 %v4187, %v4191
  %vm4193 = vweird.f32 %v4156
  %vm4194 = vweird.f32 %v4187
  %vm4195 = vmor %vm4193, %vm4194
  %v4196 = vsel %vm4195, %v4187, %v4192
  %v4197 = vmul.f32 %v4113, %v4166
  %v4198 = vmul.f32 %v4114, %v4176
  %v4199 = vmul.f32 %v4115, %v4186
  %v4200 = vmul.f32 %v4116, %v4196
  %v4201 = vmul.f32 %v4197, 0.5
  %v4202 = vmul.f32 %v4198, 0.5
  %v4203 = vmul.f32 %v4199, 0.5
  %v4204 = vmul.f32 %v4200, 0.5
  %4206 = vrot.lane.b32.xlu0 %v4201, 64
  %v4207 = vpop.permute.xlu0 %4206
  %4209 = vst.msk [vmem:[#allocation4] sm:$0xf] %vm670, %v4207
  %4218 = vrot.lane.b32.xlu0 %v3990, 96
  %v4219 = vpop.permute.xlu0 %4218
  %4220 = vrot.lane.b32.xlu0 %v3991, 96
  %v4221 = vpop.permute.xlu0 %4220
  %4222 = vrot.lane.b32.xlu0 %v3992, 96
  %v4223 = vpop.permute.xlu0 %4222
  %4224 = vrot.lane.b32.xlu0 %v3993, 96
  %v4225 = vpop.permute.xlu0 %4224
  %4226 = vrot.lane.b32.xlu0 %v3994, 96
  %v4227 = vpop.permute.xlu0 %4226
  %4228 = vrot.lane.b32.xlu0 %v3995, 96
  %v4229 = vpop.permute.xlu0 %4228
  %4230 = vrot.lane.b32.xlu0 %v3996, 96
  %v4231 = vpop.permute.xlu0 %4230
  %4232 = vrot.lane.b32.xlu0 %v3997, 96
  %v4233 = vpop.permute.xlu0 %4232
  %4242 = vst.msk [vmem:[#allocation5] sm:$0xff] %vm704, %v4219
  %4243 = vst.msk [vmem:[#allocation5 + $0x8] sm:$0xff] %vm704, %v4221
  %4244 = vst.msk [vmem:[#allocation5 + $0x10] sm:$0xff] %vm704, %v4223
  %4245 = vst.msk [vmem:[#allocation5 + $0x18] sm:$0xff] %vm704, %v4225
  %4246 = vst.msk [vmem:[#allocation5 + $0x20] sm:$0xff] %vm704, %v4227
  %4247 = vst.msk [vmem:[#allocation5 + $0x28] sm:$0xff] %vm704, %v4229
  %4248 = vst.msk [vmem:[#allocation5 + $0x30] sm:$0xff] %vm704, %v4231
  %4249 = vst.msk [vmem:[#allocation5 + $0x38] sm:$0xff] %vm704, %v4233
  %4250 = vst.msk [vmem:[#allocation4] sm:$0xf0] %vm717, %v4201
  %4251 = vst.msk [vmem:[#allocation5 + $0x40] sm:$0xff] %vm719, %v4219
  %4252 = vst.msk [vmem:[#allocation5 + $0x48] sm:$0xff] %vm719, %v4221
  %4253 = vst.msk [vmem:[#allocation5 + $0x50] sm:$0xff] %vm719, %v4223
  %4254 = vst.msk [vmem:[#allocation5 + $0x58] sm:$0xff] %vm719, %v4225
  %4255 = vst.msk [vmem:[#allocation5 + $0x60] sm:$0xff] %vm719, %v4227
  %4256 = vst.msk [vmem:[#allocation5 + $0x68] sm:$0xff] %vm719, %v4229
  %4257 = vst.msk [vmem:[#allocation5 + $0x70] sm:$0xff] %vm719, %v4231
  %4258 = vst.msk [vmem:[#allocation5 + $0x78] sm:$0xff] %vm719, %v4233
  %4260 = vrot.lane.b32.xlu0 %v4202, 64
  %v4261 = vpop.permute.xlu0 %4260
  %4263 = vst.msk [vmem:[#allocation4 + $0x28] sm:$0xf] %vm670, %v4261
  %4264 = vst.msk [vmem:[#allocation5 + $0x80] sm:$0xff] %vm729, %v4219
  %4265 = vst.msk [vmem:[#allocation5 + $0x88] sm:$0xff] %vm729, %v4221
  %4266 = vst.msk [vmem:[#allocation5 + $0x90] sm:$0xff] %vm729, %v4223
  %4267 = vst.msk [vmem:[#allocation5 + $0x98] sm:$0xff] %vm729, %v4225
  %4268 = vst.msk [vmem:[#allocation5 + $0xa0] sm:$0xff] %vm729, %v4227
  %4269 = vst.msk [vmem:[#allocation5 + $0xa8] sm:$0xff] %vm729, %v4229
  %4270 = vst.msk [vmem:[#allocation5 + $0xb0] sm:$0xff] %vm729, %v4231
  %4271 = vst.msk [vmem:[#allocation5 + $0xb8] sm:$0xff] %vm729, %v4233
  %4272 = vst.msk [vmem:[#allocation4 + $0x28] sm:$0xf0] %vm717, %v4202
  %4273 = vst.msk [vmem:[#allocation5 + $0xc0] sm:$0xff] %vm743, %v4219
  %4274 = vst.msk [vmem:[#allocation5 + $0xc8] sm:$0xff] %vm743, %v4221
  %4275 = vst.msk [vmem:[#allocation5 + $0xd0] sm:$0xff] %vm743, %v4223
  %4276 = vst.msk [vmem:[#allocation5 + $0xd8] sm:$0xff] %vm743, %v4225
  %4277 = vst.msk [vmem:[#allocation5 + $0xe0] sm:$0xff] %vm743, %v4227
  %4278 = vst.msk [vmem:[#allocation5 + $0xe8] sm:$0xff] %vm743, %v4229
  %4279 = vst.msk [vmem:[#allocation5 + $0xf0] sm:$0xff] %vm743, %v4231
  %4280 = vst.msk [vmem:[#allocation5 + $0xf8] sm:$0xff] %vm743, %v4233
  %4282 = vrot.lane.b32.xlu0 %v4203, 64
  %v4283 = vpop.permute.xlu0 %4282
  %4285 = vst.msk [vmem:[#allocation4 + $0x50] sm:$0xf] %vm670, %v4283
  %4286 = vst.msk [vmem:[#allocation5 + $0x100] sm:$0xff] %vm753, %v4219
  %4287 = vst.msk [vmem:[#allocation5 + $0x108] sm:$0xff] %vm753, %v4221
  %4288 = vst.msk [vmem:[#allocation5 + $0x110] sm:$0xff] %vm753, %v4223
  %4289 = vst.msk [vmem:[#allocation5 + $0x118] sm:$0xff] %vm753, %v4225
  %4290 = vst.msk [vmem:[#allocation5 + $0x120] sm:$0xff] %vm753, %v4227
  %4291 = vst.msk [vmem:[#allocation5 + $0x128] sm:$0xff] %vm753, %v4229
  %4292 = vst.msk [vmem:[#allocation5 + $0x130] sm:$0xff] %vm753, %v4231
  %4293 = vst.msk [vmem:[#allocation5 + $0x138] sm:$0xff] %vm753, %v4233
  %4294 = vst.msk [vmem:[#allocation4 + $0x50] sm:$0xf0] %vm717, %v4203
  %4295 = vst.msk [vmem:[#allocation5 + $0x140] sm:$0xff] %vm767, %v4219
  %4296 = vst.msk [vmem:[#allocation5 + $0x148] sm:$0xff] %vm767, %v4221
  %4297 = vst.msk [vmem:[#allocation5 + $0x150] sm:$0xff] %vm767, %v4223
  %4298 = vst.msk [vmem:[#allocation5 + $0x158] sm:$0xff] %vm767, %v4225
  %4299 = vst.msk [vmem:[#allocation5 + $0x160] sm:$0xff] %vm767, %v4227
  %4300 = vst.msk [vmem:[#allocation5 + $0x168] sm:$0xff] %vm767, %v4229
  %4301 = vst.msk [vmem:[#allocation5 + $0x170] sm:$0xff] %vm767, %v4231
  %4302 = vst.msk [vmem:[#allocation5 + $0x178] sm:$0xff] %vm767, %v4233
  %4304 = vrot.lane.b32.xlu0 %v4204, 64
  %v4305 = vpop.permute.xlu0 %4304
  %4307 = vst.msk [vmem:[#allocation4 + $0x78] sm:$0xf] %vm670, %v4305
  %4308 = vst.msk [vmem:[#allocation5 + $0x180] sm:$0xff] %vm777, %v4219
  %4309 = vst.msk [vmem:[#allocation5 + $0x188] sm:$0xff] %vm777, %v4221
  %4310 = vst.msk [vmem:[#allocation5 + $0x190] sm:$0xff] %vm777, %v4223
  %4311 = vst.msk [vmem:[#allocation5 + $0x198] sm:$0xff] %vm777, %v4225
  %4312 = vst.msk [vmem:[#allocation5 + $0x1a0] sm:$0xff] %vm777, %v4227
  %4313 = vst.msk [vmem:[#allocation5 + $0x1a8] sm:$0xff] %vm777, %v4229
  %4314 = vst.msk [vmem:[#allocation5 + $0x1b0] sm:$0xff] %vm777, %v4231
  %4315 = vst.msk [vmem:[#allocation5 + $0x1b8] sm:$0xff] %vm777, %v4233
  %4316 = vst.msk [vmem:[#allocation4 + $0x78] sm:$0xf0] %vm717, %v4204
  %4317 = vst.msk [vmem:[#allocation5 + $0x1c0] sm:$0xff] %vm791, %v4219
  %4318 = vst.msk [vmem:[#allocation5 + $0x1c8] sm:$0xff] %vm791, %v4221
  %4319 = vst.msk [vmem:[#allocation5 + $0x1d0] sm:$0xff] %vm791, %v4223
  %4320 = vst.msk [vmem:[#allocation5 + $0x1d8] sm:$0xff] %vm791, %v4225
  %4321 = vst.msk [vmem:[#allocation5 + $0x1e0] sm:$0xff] %vm791, %v4227
  %4322 = vst.msk [vmem:[#allocation5 + $0x1e8] sm:$0xff] %vm791, %v4229
  %4323 = vst.msk [vmem:[#allocation5 + $0x1f0] sm:$0xff] %vm791, %v4231
  %4324 = vst.msk [vmem:[#allocation5 + $0x1f8] sm:$0xff] %vm791, %v4233
  %v4325 = vld [vmem:[#allocation4] sm:$0xff]
  %v4326 = vld [vmem:[#allocation4 + $0x8] sm:$0xff]
  %v4327 = vld [vmem:[#allocation4 + $0x10] sm:$0xff]
  %v4328 = vld [vmem:[#allocation4 + $0x18] sm:$0xff]
  %v4329 = vld [vmem:[#allocation4 + $0x20] sm:$0xff]
  %v4330 = vld [vmem:[#allocation4 + $0x28] sm:$0xff]
  %v4331 = vld [vmem:[#allocation4 + $0x30] sm:$0xff]
  %v4332 = vld [vmem:[#allocation4 + $0x38] sm:$0xff]
  %v4333 = vld [vmem:[#allocation4 + $0x40] sm:$0xff]
  %v4334 = vld [vmem:[#allocation4 + $0x48] sm:$0xff]
  %v4335 = vld [vmem:[#allocation4 + $0x50] sm:$0xff]
  %v4336 = vld [vmem:[#allocation4 + $0x58] sm:$0xff]
  %v4337 = vld [vmem:[#allocation4 + $0x60] sm:$0xff]
  %v4338 = vld [vmem:[#allocation4 + $0x68] sm:$0xff]
  %v4339 = vld [vmem:[#allocation4 + $0x70] sm:$0xff]
  %v4340 = vld [vmem:[#allocation4 + $0x78] sm:$0xff]
  %v4342 = vsel %vm415, %v4073, 0
  %v4345 = vsel %vm415, %v4074, 0
  %v4348 = vsel %vm415, %v4075, 0
  %v4351 = vsel %vm415, %v4076, 0
  %v4354 = vsel %vm415, %v4077, 0
  %v4357 = vsel %vm415, %v4078, 0
  %v4360 = vsel %vm415, %v4079, 0
  %v4363 = vsel %vm415, %v4080, 0
  %4365 = vmatpush.msra.mxu0 0.0
  %4366 = vmatpush.msra.mxu0 0.0
  %4367 = vmatpush.msra.mxu0 0.0
  %4368 = vmatpush.msra.mxu0 0.0
  %4369 = vmatpush.msra.mxu0 0.0
  %4370 = vmatpush.msra.mxu0 0.0
  %4371 = vmatpush.msra.mxu0 0.0
  %4372 = vmatpush.msra.mxu0 0.0
  %4373 = vmatpush.msra.mxu0 0.0
  %4374 = vmatpush.msra.mxu0 0.0
  %4375 = vmatpush.msra.mxu0 0.0
  %4376 = vmatpush.msra.mxu0 0.0
  %4377 = vmatpush.msra.mxu0 %v4337
  %4378 = vmatpush.msra.mxu0 %v4333
  %4379 = vmatpush.msra.mxu0 %v4329
  %4380 = vmatpush.msra.mxu0 %v4325
  %4381 = vmatmul.f32.gmra.mxu0 %v4342
  %v4382 = vpop.f32.mrf.mxu0
  %v4383 = vadd.f32 0.0, %v4382
  %4384 = vmatmul.f32.gmra.mxu0 %v4345
  %v4385 = vpop.f32.mrf.mxu0
  %v4386 = vadd.f32 0.0, %v4385
  %4387 = vmatmul.f32.gmra.mxu0 %v4348
  %v4388 = vpop.f32.mrf.mxu0
  %v4389 = vadd.f32 0.0, %v4388
  %4390 = vmatmul.f32.gmra.mxu0 %v4351
  %v4391 = vpop.f32.mrf.mxu0
  %v4392 = vadd.f32 0.0, %v4391
  %4393 = vmatmul.f32.gmra.mxu0 %v4354
  %v4394 = vpop.f32.mrf.mxu0
  %v4395 = vadd.f32 0.0, %v4394
  %4396 = vmatmul.f32.gmra.mxu0 %v4357
  %v4397 = vpop.f32.mrf.mxu0
  %v4398 = vadd.f32 0.0, %v4397
  %4399 = vmatmul.f32.gmra.mxu0 %v4360
  %v4400 = vpop.f32.mrf.mxu0
  %v4401 = vadd.f32 0.0, %v4400
  %4402 = vmatmul.f32.gmra.mxu0 %v4363
  %v4403 = vpop.f32.mrf.mxu0
  %v4404 = vadd.f32 0.0, %v4403
  %4405 = vdwg.mxu0
  %4406 = vmatpush.msra.mxu0 0.0
  %4407 = vmatpush.msra.mxu0 0.0
  %4408 = vmatpush.msra.mxu0 0.0
  %4409 = vmatpush.msra.mxu0 0.0
  %4410 = vmatpush.msra.mxu0 0.0
  %4411 = vmatpush.msra.mxu0 0.0
  %4412 = vmatpush.msra.mxu0 0.0
  %4413 = vmatpush.msra.mxu0 0.0
  %4414 = vmatpush.msra.mxu0 0.0
  %4415 = vmatpush.msra.mxu0 0.0
  %4416 = vmatpush.msra.mxu0 0.0
  %4417 = vmatpush.msra.mxu0 0.0
  %4418 = vmatpush.msra.mxu0 %v4338
  %4419 = vmatpush.msra.mxu0 %v4334
  %4420 = vmatpush.msra.mxu0 %v4330
  %4421 = vmatpush.msra.mxu0 %v4326
  %4422 = vmatmul.f32.gmra.mxu0 %v4342
  %v4423 = vpop.f32.mrf.mxu0
  %v4424 = vadd.f32 0.0, %v4423
  %4425 = vmatmul.f32.gmra.mxu0 %v4345
  %v4426 = vpop.f32.mrf.mxu0
  %v4427 = vadd.f32 0.0, %v4426
  %4428 = vmatmul.f32.gmra.mxu0 %v4348
  %v4429 = vpop.f32.mrf.mxu0
  %v4430 = vadd.f32 0.0, %v4429
  %4431 = vmatmul.f32.gmra.mxu0 %v4351
  %v4432 = vpop.f32.mrf.mxu0
  %v4433 = vadd.f32 0.0, %v4432
  %4434 = vmatmul.f32.gmra.mxu0 %v4354
  %v4435 = vpop.f32.mrf.mxu0
  %v4436 = vadd.f32 0.0, %v4435
  %4437 = vmatmul.f32.gmra.mxu0 %v4357
  %v4438 = vpop.f32.mrf.mxu0
  %v4439 = vadd.f32 0.0, %v4438
  %4440 = vmatmul.f32.gmra.mxu0 %v4360
  %v4441 = vpop.f32.mrf.mxu0
  %v4442 = vadd.f32 0.0, %v4441
  %4443 = vmatmul.f32.gmra.mxu0 %v4363
  %v4444 = vpop.f32.mrf.mxu0
  %v4445 = vadd.f32 0.0, %v4444
  %4446 = vdwg.mxu0
  %4447 = vmatpush.msra.mxu0 0.0
  %4448 = vmatpush.msra.mxu0 0.0
  %4449 = vmatpush.msra.mxu0 0.0
  %4450 = vmatpush.msra.mxu0 0.0
  %4451 = vmatpush.msra.mxu0 0.0
  %4452 = vmatpush.msra.mxu0 0.0
  %4453 = vmatpush.msra.mxu0 0.0
  %4454 = vmatpush.msra.mxu0 0.0
  %4455 = vmatpush.msra.mxu0 0.0
  %4456 = vmatpush.msra.mxu0 0.0
  %4457 = vmatpush.msra.mxu0 0.0
  %4458 = vmatpush.msra.mxu0 0.0
  %4459 = vmatpush.msra.mxu0 %v4339
  %4460 = vmatpush.msra.mxu0 %v4335
  %4461 = vmatpush.msra.mxu0 %v4331
  %4462 = vmatpush.msra.mxu0 %v4327
  %4463 = vmatmul.f32.gmra.mxu0 %v4342
  %v4464 = vpop.f32.mrf.mxu0
  %v4465 = vadd.f32 0.0, %v4464
  %4466 = vmatmul.f32.gmra.mxu0 %v4345
  %v4467 = vpop.f32.mrf.mxu0
  %v4468 = vadd.f32 0.0, %v4467
  %4469 = vmatmul.f32.gmra.mxu0 %v4348
  %v4470 = vpop.f32.mrf.mxu0
  %v4471 = vadd.f32 0.0, %v4470
  %4472 = vmatmul.f32.gmra.mxu0 %v4351
  %v4473 = vpop.f32.mrf.mxu0
  %v4474 = vadd.f32 0.0, %v4473
  %4475 = vmatmul.f32.gmra.mxu0 %v4354
  %v4476 = vpop.f32.mrf.mxu0
  %v4477 = vadd.f32 0.0, %v4476
  %4478 = vmatmul.f32.gmra.mxu0 %v4357
  %v4479 = vpop.f32.mrf.mxu0
  %v4480 = vadd.f32 0.0, %v4479
  %4481 = vmatmul.f32.gmra.mxu0 %v4360
  %v4482 = vpop.f32.mrf.mxu0
  %v4483 = vadd.f32 0.0, %v4482
  %4484 = vmatmul.f32.gmra.mxu0 %v4363
  %v4485 = vpop.f32.mrf.mxu0
  %v4486 = vadd.f32 0.0, %v4485
  %4487 = vdwg.mxu0
  %4488 = vmatpush.msra.mxu0 0.0
  %4489 = vmatpush.msra.mxu0 0.0
  %4490 = vmatpush.msra.mxu0 0.0
  %4491 = vmatpush.msra.mxu0 0.0
  %4492 = vmatpush.msra.mxu0 0.0
  %4493 = vmatpush.msra.mxu0 0.0
  %4494 = vmatpush.msra.mxu0 0.0
  %4495 = vmatpush.msra.mxu0 0.0
  %4496 = vmatpush.msra.mxu0 0.0
  %4497 = vmatpush.msra.mxu0 0.0
  %4498 = vmatpush.msra.mxu0 0.0
  %4499 = vmatpush.msra.mxu0 0.0
  %4500 = vmatpush.msra.mxu0 %v4340
  %4501 = vmatpush.msra.mxu0 %v4336
  %4502 = vmatpush.msra.mxu0 %v4332
  %4503 = vmatpush.msra.mxu0 %v4328
  %4504 = vmatmul.f32.gmra.mxu0 %v4342
  %v4505 = vpop.f32.mrf.mxu0
  %v4506 = vadd.f32 0.0, %v4505
  %4507 = vmatmul.f32.gmra.mxu0 %v4345
  %v4508 = vpop.f32.mrf.mxu0
  %v4509 = vadd.f32 0.0, %v4508
  %4510 = vmatmul.f32.gmra.mxu0 %v4348
  %v4511 = vpop.f32.mrf.mxu0
  %v4512 = vadd.f32 0.0, %v4511
  %4513 = vmatmul.f32.gmra.mxu0 %v4351
  %v4514 = vpop.f32.mrf.mxu0
  %v4515 = vadd.f32 0.0, %v4514
  %4516 = vmatmul.f32.gmra.mxu0 %v4354
  %v4517 = vpop.f32.mrf.mxu0
  %v4518 = vadd.f32 0.0, %v4517
  %4519 = vmatmul.f32.gmra.mxu0 %v4357
  %v4520 = vpop.f32.mrf.mxu0
  %v4521 = vadd.f32 0.0, %v4520
  %4522 = vmatmul.f32.gmra.mxu0 %v4360
  %v4523 = vpop.f32.mrf.mxu0
  %v4524 = vadd.f32 0.0, %v4523
  %4525 = vmatmul.f32.gmra.mxu0 %v4363
  %v4526 = vpop.f32.mrf.mxu0
  %v4527 = vadd.f32 0.0, %v4526
  %4528 = vdwg.mxu0
  %v4529 = vmax.f32 %v4383, %v4386
  %v4530 = vmax.f32 %v4529, %v4389
  %v4531 = vmax.f32 %v4530, %v4392
  %v4532 = vmax.f32 %v4531, %v4395
  %v4533 = vmax.f32 %v4532, %v4398
  %v4534 = vmax.f32 %v4533, %v4401
  %v4535 = vmax.f32 %v4534, %v4404
  %v4536 = vrot.slane %v4535, 4
  %v4537 = vmax.f32 %v4535, %v4536
  %v4538 = vrot.slane %v4537, 2
  %v4539 = vmax.f32 %v4537, %v4538
  %v4540 = vrot.slane %v4539, 1
  %v4541 = vmax.f32 %v4539, %v4540
  %v4542 = vmax.f32 %v4424, %v4427
  %v4543 = vmax.f32 %v4542, %v4430
  %v4544 = vmax.f32 %v4543, %v4433
  %v4545 = vmax.f32 %v4544, %v4436
  %v4546 = vmax.f32 %v4545, %v4439
  %v4547 = vmax.f32 %v4546, %v4442
  %v4548 = vmax.f32 %v4547, %v4445
  %v4549 = vrot.slane %v4548, 4
  %v4550 = vmax.f32 %v4548, %v4549
  %v4551 = vrot.slane %v4550, 2
  %v4552 = vmax.f32 %v4550, %v4551
  %v4553 = vrot.slane %v4552, 1
  %v4554 = vmax.f32 %v4552, %v4553
  %v4555 = vmax.f32 %v4465, %v4468
  %v4556 = vmax.f32 %v4555, %v4471
  %v4557 = vmax.f32 %v4556, %v4474
  %v4558 = vmax.f32 %v4557, %v4477
  %v4559 = vmax.f32 %v4558, %v4480
  %v4560 = vmax.f32 %v4559, %v4483
  %v4561 = vmax.f32 %v4560, %v4486
  %v4562 = vrot.slane %v4561, 4
  %v4563 = vmax.f32 %v4561, %v4562
  %v4564 = vrot.slane %v4563, 2
  %v4565 = vmax.f32 %v4563, %v4564
  %v4566 = vrot.slane %v4565, 1
  %v4567 = vmax.f32 %v4565, %v4566
  %v4568 = vmax.f32 %v4506, %v4509
  %v4569 = vmax.f32 %v4568, %v4512
  %v4570 = vmax.f32 %v4569, %v4515
  %v4571 = vmax.f32 %v4570, %v4518
  %v4572 = vmax.f32 %v4571, %v4521
  %v4573 = vmax.f32 %v4572, %v4524
  %v4574 = vmax.f32 %v4573, %v4527
  %v4575 = vrot.slane %v4574, 4
  %v4576 = vmax.f32 %v4574, %v4575
  %v4577 = vrot.slane %v4576, 2
  %v4578 = vmax.f32 %v4576, %v4577
  %v4579 = vrot.slane %v4578, 1
  %v4580 = vmax.f32 %v4578, %v4579
  %v4581 = vsel %vm272, %v4541, -inf
  %4582 = vmax.xlane.f32.xlu0 %v4581
  %v4583 = vpop.xlane.xlu0 %4582
  %s4584 = vtos %v4583
  %v4585 = vstv %s4584
  %4586 = vst.msk [vmem:[#allocation7] sm:$0x1] %vm1064, %v4585
  %v4587 = vsel %vm1066, %v4541, -inf
  %4588 = vmax.xlane.f32.xlu0 %v4587
  %v4589 = vpop.xlane.xlu0 %4588
  %s4590 = vtos %v4589
  %v4591 = vstv %s4590
  %4592 = vst.msk [vmem:[#allocation7] sm:$0x1] %vm1074, %v4591
  %v4593 = vsel %vm272, %v4554, -inf
  %4594 = vmax.xlane.f32.xlu0 %v4593
  %v4595 = vpop.xlane.xlu0 %4594
  %s4596 = vtos %v4595
  %v4597 = vstv %s4596
  %4598 = vst.msk [vmem:[#allocation7 + $0x1] sm:$0x1] %vm1064, %v4597
  %v4599 = vsel %vm1066, %v4554, -inf
  %4600 = vmax.xlane.f32.xlu0 %v4599
  %v4601 = vpop.xlane.xlu0 %4600
  %s4602 = vtos %v4601
  %v4603 = vstv %s4602
  %4604 = vst.msk [vmem:[#allocation7 + $0x1] sm:$0x1] %vm1074, %v4603
  %v4605 = vsel %vm272, %v4567, -inf
  %4606 = vmax.xlane.f32.xlu0 %v4605
  %v4607 = vpop.xlane.xlu0 %4606
  %s4608 = vtos %v4607
  %v4609 = vstv %s4608
  %4610 = vst.msk [vmem:[#allocation7 + $0x2] sm:$0x1] %vm1064, %v4609
  %v4611 = vsel %vm1066, %v4567, -inf
  %4612 = vmax.xlane.f32.xlu0 %v4611
  %v4613 = vpop.xlane.xlu0 %4612
  %s4614 = vtos %v4613
  %v4615 = vstv %s4614
  %4616 = vst.msk [vmem:[#allocation7 + $0x2] sm:$0x1] %vm1074, %v4615
  %v4617 = vsel %vm272, %v4580, -inf
  %4618 = vmax.xlane.f32.xlu0 %v4617
  %v4619 = vpop.xlane.xlu0 %4618
  %s4620 = vtos %v4619
  %v4621 = vstv %s4620
  %4622 = vst.msk [vmem:[#allocation7 + $0x3] sm:$0x1] %vm1064, %v4621
  %v4623 = vsel %vm1066, %v4580, -inf
  %4624 = vmax.xlane.f32.xlu0 %v4623
  %v4625 = vpop.xlane.xlu0 %4624
  %s4626 = vtos %v4625
  %v4627 = vstv %s4626
  %4628 = vst.msk [vmem:[#allocation7 + $0x3] sm:$0x1] %vm1074, %v4627
  %v4629 = vld [vmem:[#allocation7] sm:$0xf]
  %v4631 = vperm.slane %v4629, 0
  %v4632 = vperm.slane %v4629, 1
  %v4633 = vperm.slane %v4629, 2
  %v4634 = vperm.slane %v4629, 3
  %v4639 = vsub.f32 %v4383, %v4631
  %v4640 = vsub.f32 %v4424, %v4632
  %v4641 = vsub.f32 %v4465, %v4633
  %v4642 = vsub.f32 %v4506, %v4634
  %v4643 = vsub.f32 %v4386, %v4631
  %v4644 = vsub.f32 %v4427, %v4632
  %v4645 = vsub.f32 %v4468, %v4633
  %v4646 = vsub.f32 %v4509, %v4634
  %v4647 = vsub.f32 %v4389, %v4631
  %v4648 = vsub.f32 %v4430, %v4632
  %v4649 = vsub.f32 %v4471, %v4633
  %v4650 = vsub.f32 %v4512, %v4634
  %v4651 = vsub.f32 %v4392, %v4631
  %v4652 = vsub.f32 %v4433, %v4632
  %v4653 = vsub.f32 %v4474, %v4633
  %v4654 = vsub.f32 %v4515, %v4634
  %v4655 = vsub.f32 %v4395, %v4631
  %v4656 = vsub.f32 %v4436, %v4632
  %v4657 = vsub.f32 %v4477, %v4633
  %v4658 = vsub.f32 %v4518, %v4634
  %v4659 = vsub.f32 %v4398, %v4631
  %v4660 = vsub.f32 %v4439, %v4632
  %v4661 = vsub.f32 %v4480, %v4633
  %v4662 = vsub.f32 %v4521, %v4634
  %v4663 = vsub.f32 %v4401, %v4631
  %v4664 = vsub.f32 %v4442, %v4632
  %v4665 = vsub.f32 %v4483, %v4633
  %v4666 = vsub.f32 %v4524, %v4634
  %v4667 = vsub.f32 %v4404, %v4631
  %v4668 = vsub.f32 %v4445, %v4632
  %v4669 = vsub.f32 %v4486, %v4633
  %v4670 = vsub.f32 %v4527, %v4634
  %v4671 = vmul.f32 %v4639, 1.442695
  %v4672 = vpow.pop %v4671
  %v4673 = vmul.f32 %v4640, 1.442695
  %v4674 = vpow.pop %v4673
  %v4675 = vmul.f32 %v4641, 1.442695
  %v4676 = vpow.pop %v4675
  %v4677 = vmul.f32 %v4642, 1.442695
  %v4678 = vpow.pop %v4677
  %v4679 = vmul.f32 %v4643, 1.442695
  %v4680 = vpow.pop %v4679
  %v4681 = vmul.f32 %v4644, 1.442695
  %v4682 = vpow.pop %v4681
  %v4683 = vmul.f32 %v4645, 1.442695
  %v4684 = vpow.pop %v4683
  %v4685 = vmul.f32 %v4646, 1.442695
  %v4686 = vpow.pop %v4685
  %v4687 = vmul.f32 %v4647, 1.442695
  %v4688 = vpow.pop %v4687
  %v4689 = vmul.f32 %v4648, 1.442695
  %v4690 = vpow.pop %v4689
  %v4691 = vmul.f32 %v4649, 1.442695
  %v4692 = vpow.pop %v4691
  %v4693 = vmul.f32 %v4650, 1.442695
  %v4694 = vpow.pop %v4693
  %v4695 = vmul.f32 %v4651, 1.442695
  %v4696 = vpow.pop %v4695
  %v4697 = vmul.f32 %v4652, 1.442695
  %v4698 = vpow.pop %v4697
  %v4699 = vmul.f32 %v4653, 1.442695
  %v4700 = vpow.pop %v4699
  %v4701 = vmul.f32 %v4654, 1.442695
  %v4702 = vpow.pop %v4701
  %v4703 = vmul.f32 %v4655, 1.442695
  %v4704 = vpow.pop %v4703
  %v4705 = vmul.f32 %v4656, 1.442695
  %v4706 = vpow.pop %v4705
  %v4707 = vmul.f32 %v4657, 1.442695
  %v4708 = vpow.pop %v4707
  %v4709 = vmul.f32 %v4658, 1.442695
  %v4710 = vpow.pop %v4709
  %v4711 = vmul.f32 %v4659, 1.442695
  %v4712 = vpow.pop %v4711
  %v4713 = vmul.f32 %v4660, 1.442695
  %v4714 = vpow.pop %v4713
  %v4715 = vmul.f32 %v4661, 1.442695
  %v4716 = vpow.pop %v4715
  %v4717 = vmul.f32 %v4662, 1.442695
  %v4718 = vpow.pop %v4717
  %v4719 = vmul.f32 %v4663, 1.442695
  %v4720 = vpow.pop %v4719
  %v4721 = vmul.f32 %v4664, 1.442695
  %v4722 = vpow.pop %v4721
  %v4723 = vmul.f32 %v4665, 1.442695
  %v4724 = vpow.pop %v4723
  %v4725 = vmul.f32 %v4666, 1.442695
  %v4726 = vpow.pop %v4725
  %v4727 = vmul.f32 %v4667, 1.442695
  %v4728 = vpow.pop %v4727
  %v4729 = vmul.f32 %v4668, 1.442695
  %v4730 = vpow.pop %v4729
  %v4731 = vmul.f32 %v4669, 1.442695
  %v4732 = vpow.pop %v4731
  %v4733 = vmul.f32 %v4670, 1.442695
  %v4734 = vpow.pop %v4733
  %v4735 = vadd.f32 %v4672, %v4680
  %v4736 = vadd.f32 %v4735, %v4688
  %v4737 = vadd.f32 %v4736, %v4696
  %v4738 = vadd.f32 %v4737, %v4704
  %v4739 = vadd.f32 %v4738, %v4712
  %v4740 = vadd.f32 %v4739, %v4720
  %v4741 = vadd.f32 %v4740, %v4728
  %v4742 = vrot.slane %v4741, 4
  %v4743 = vadd.f32 %v4741, %v4742
  %v4744 = vrot.slane %v4743, 2
  %v4745 = vadd.f32 %v4743, %v4744
  %v4746 = vrot.slane %v4745, 1
  %v4747 = vadd.f32 %v4745, %v4746
  %v4748 = vadd.f32 %v4674, %v4682
  %v4749 = vadd.f32 %v4748, %v4690
  %v4750 = vadd.f32 %v4749, %v4698
  %v4751 = vadd.f32 %v4750, %v4706
  %v4752 = vadd.f32 %v4751, %v4714
  %v4753 = vadd.f32 %v4752, %v4722
  %v4754 = vadd.f32 %v4753, %v4730
  %v4755 = vrot.slane %v4754, 4
  %v4756 = vadd.f32 %v4754, %v4755
  %v4757 = vrot.slane %v4756, 2
  %v4758 = vadd.f32 %v4756, %v4757
  %v4759 = vrot.slane %v4758, 1
  %v4760 = vadd.f32 %v4758, %v4759
  %v4761 = vadd.f32 %v4676, %v4684
  %v4762 = vadd.f32 %v4761, %v4692
  %v4763 = vadd.f32 %v4762, %v4700
  %v4764 = vadd.f32 %v4763, %v4708
  %v4765 = vadd.f32 %v4764, %v4716
  %v4766 = vadd.f32 %v4765, %v4724
  %v4767 = vadd.f32 %v4766, %v4732
  %v4768 = vrot.slane %v4767, 4
  %v4769 = vadd.f32 %v4767, %v4768
  %v4770 = vrot.slane %v4769, 2
  %v4771 = vadd.f32 %v4769, %v4770
  %v4772 = vrot.slane %v4771, 1
  %v4773 = vadd.f32 %v4771, %v4772
  %v4774 = vadd.f32 %v4678, %v4686
  %v4775 = vadd.f32 %v4774, %v4694
  %v4776 = vadd.f32 %v4775, %v4702
  %v4777 = vadd.f32 %v4776, %v4710
  %v4778 = vadd.f32 %v4777, %v4718
  %v4779 = vadd.f32 %v4778, %v4726
  %v4780 = vadd.f32 %v4779, %v4734
  %v4781 = vrot.slane %v4780, 4
  %v4782 = vadd.f32 %v4780, %v4781
  %v4783 = vrot.slane %v4782, 2
  %v4784 = vadd.f32 %v4782, %v4783
  %v4785 = vrot.slane %v4784, 1
  %v4786 = vadd.f32 %v4784, %v4785
  %v4787 = vsel %vm1270, %v4747, 0.0
  %4788 = vadd.xlane.f32.xlu0 %v4787
  %v4789 = vpop.xlane.xlu0 %4788
  %v4790 = vrot.slane %v4789, 4
  %v4791 = vadd.f32 %v4789, %v4790
  %v4792 = vrot.slane %v4791, 2
  %v4793 = vadd.f32 %v4791, %v4792
  %v4794 = vrot.slane %v4793, 1
  %v4795 = vadd.f32 %v4793, %v4794
  %s4796 = vtos %v4795
  %v4797 = vstv %s4796
  %4798 = vst.msk [vmem:[#allocation8] sm:$0x1] %vm1282, %v4797
  %4800 = vrot.lane.b32.xlu0 %v4747, 64
  %v4801 = vpop.permute.xlu0 %4800
  %v4803 = vsel %vm1270, %v4801, 0.0
  %4804 = vadd.xlane.f32.xlu0 %v4803
  %v4805 = vpop.xlane.xlu0 %4804
  %v4806 = vrot.slane %v4805, 4
  %v4807 = vadd.f32 %v4805, %v4806
  %v4808 = vrot.slane %v4807, 2
  %v4809 = vadd.f32 %v4807, %v4808
  %v4810 = vrot.slane %v4809, 1
  %v4811 = vadd.f32 %v4809, %v4810
  %s4812 = vtos %v4811
  %v4813 = vstv %s4812
  %4814 = vst.msk [vmem:[#allocation8] sm:$0x1] %vm1299, %v4813
  %v4815 = vsel %vm1270, %v4760, 0.0
  %4816 = vadd.xlane.f32.xlu0 %v4815
  %v4817 = vpop.xlane.xlu0 %4816
  %v4818 = vrot.slane %v4817, 4
  %v4819 = vadd.f32 %v4817, %v4818
  %v4820 = vrot.slane %v4819, 2
  %v4821 = vadd.f32 %v4819, %v4820
  %v4822 = vrot.slane %v4821, 1
  %v4823 = vadd.f32 %v4821, %v4822
  %s4824 = vtos %v4823
  %v4825 = vstv %s4824
  %4826 = vst.msk [vmem:[#allocation8] sm:$0x1] %vm1312, %v4825
  %4828 = vrot.lane.b32.xlu0 %v4760, 64
  %v4829 = vpop.permute.xlu0 %4828
  %v4831 = vsel %vm1270, %v4829, 0.0
  %4832 = vadd.xlane.f32.xlu0 %v4831
  %v4833 = vpop.xlane.xlu0 %4832
  %v4834 = vrot.slane %v4833, 4
  %v4835 = vadd.f32 %v4833, %v4834
  %v4836 = vrot.slane %v4835, 2
  %v4837 = vadd.f32 %v4835, %v4836
  %v4838 = vrot.slane %v4837, 1
  %v4839 = vadd.f32 %v4837, %v4838
  %s4840 = vtos %v4839
  %v4841 = vstv %s4840
  %4842 = vst.msk [vmem:[#allocation8] sm:$0x1] %vm1329, %v4841
  %v4843 = vsel %vm1270, %v4773, 0.0
  %4844 = vadd.xlane.f32.xlu0 %v4843
  %v4845 = vpop.xlane.xlu0 %4844
  %v4846 = vrot.slane %v4845, 4
  %v4847 = vadd.f32 %v4845, %v4846
  %v4848 = vrot.slane %v4847, 2
  %v4849 = vadd.f32 %v4847, %v4848
  %v4850 = vrot.slane %v4849, 1
  %v4851 = vadd.f32 %v4849, %v4850
  %s4852 = vtos %v4851
  %v4853 = vstv %s4852
  %4854 = vst.msk [vmem:[#allocation8] sm:$0x1] %vm1342, %v4853
  %4856 = vrot.lane.b32.xlu0 %v4773, 64
  %v4857 = vpop.permute.xlu0 %4856
  %v4859 = vsel %vm1270, %v4857, 0.0
  %4860 = vadd.xlane.f32.xlu0 %v4859
  %v4861 = vpop.xlane.xlu0 %4860
  %v4862 = vrot.slane %v4861, 4
  %v4863 = vadd.f32 %v4861, %v4862
  %v4864 = vrot.slane %v4863, 2
  %v4865 = vadd.f32 %v4863, %v4864
  %v4866 = vrot.slane %v4865, 1
  %v4867 = vadd.f32 %v4865, %v4866
  %s4868 = vtos %v4867
  %v4869 = vstv %s4868
  %4870 = vst.msk [vmem:[#allocation8] sm:$0x1] %vm1359, %v4869
  %v4871 = vsel %vm1270, %v4786, 0.0
  %4872 = vadd.xlane.f32.xlu0 %v4871
  %v4873 = vpop.xlane.xlu0 %4872
  %v4874 = vrot.slane %v4873, 4
  %v4875 = vadd.f32 %v4873, %v4874
  %v4876 = vrot.slane %v4875, 2
  %v4877 = vadd.f32 %v4875, %v4876
  %v4878 = vrot.slane %v4877, 1
  %v4879 = vadd.f32 %v4877, %v4878
  %s4880 = vtos %v4879
  %v4881 = vstv %s4880
  %4882 = vst.msk [vmem:[#allocation8] sm:$0x1] %vm1372, %v4881
  %4884 = vrot.lane.b32.xlu0 %v4786, 64
  %v4885 = vpop.permute.xlu0 %4884
  %v4887 = vsel %vm1270, %v4885, 0.0
  %4888 = vadd.xlane.f32.xlu0 %v4887
  %v4889 = vpop.xlane.xlu0 %4888
  %v4890 = vrot.slane %v4889, 4
  %v4891 = vadd.f32 %v4889, %v4890
  %v4892 = vrot.slane %v4891, 2
  %v4893 = vadd.f32 %v4891, %v4892
  %v4894 = vrot.slane %v4893, 1
  %v4895 = vadd.f32 %v4893, %v4894
  %s4896 = vtos %v4895
  %v4897 = vstv %s4896
  %4898 = vst.msk [vmem:[#allocation8] sm:$0x1] %vm1389, %v4897
  %v4899 = vld [vmem:[#allocation8] sm:$0x1]
  %v4900 = vrcp.pop %v4899
  %v4901 = vld [vmem:[#allocation5] sm:$0xff]
  %v4902 = vld [vmem:[#allocation5 + $0x8] sm:$0xff]
  %v4903 = vld [vmem:[#allocation5 + $0x10] sm:$0xff]
  %v4904 = vld [vmem:[#allocation5 + $0x18] sm:$0xff]
  %v4905 = vld [vmem:[#allocation5 + $0x20] sm:$0xff]
  %v4906 = vld [vmem:[#allocation5 + $0x28] sm:$0xff]
  %v4907 = vld [vmem:[#allocation5 + $0x30] sm:$0xff]
  %v4908 = vld [vmem:[#allocation5 + $0x38] sm:$0xff]
  %v4909 = vld [vmem:[#allocation5 + $0x40] sm:$0xff]
  %v4910 = vld [vmem:[#allocation5 + $0x48] sm:$0xff]
  %v4911 = vld [vmem:[#allocation5 + $0x50] sm:$0xff]
  %v4912 = vld [vmem:[#allocation5 + $0x58] sm:$0xff]
  %v4913 = vld [vmem:[#allocation5 + $0x60] sm:$0xff]
  %v4914 = vld [vmem:[#allocation5 + $0x68] sm:$0xff]
  %v4915 = vld [vmem:[#allocation5 + $0x70] sm:$0xff]
  %v4916 = vld [vmem:[#allocation5 + $0x78] sm:$0xff]
  %v4917 = vld [vmem:[#allocation5 + $0x80] sm:$0xff]
  %v4918 = vld [vmem:[#allocation5 + $0x88] sm:$0xff]
  %v4919 = vld [vmem:[#allocation5 + $0x90] sm:$0xff]
  %v4920 = vld [vmem:[#allocation5 + $0x98] sm:$0xff]
  %v4921 = vld [vmem:[#allocation5 + $0xa0] sm:$0xff]
  %v4922 = vld [vmem:[#allocation5 + $0xa8] sm:$0xff]
  %v4923 = vld [vmem:[#allocation5 + $0xb0] sm:$0xff]
  %v4924 = vld [vmem:[#allocation5 + $0xb8] sm:$0xff]
  %v4925 = vld [vmem:[#allocation5 + $0xc0] sm:$0xff]
  %v4926 = vld [vmem:[#allocation5 + $0xc8] sm:$0xff]
  %v4927 = vld [vmem:[#allocation5 + $0xd0] sm:$0xff]
  %v4928 = vld [vmem:[#allocation5 + $0xd8] sm:$0xff]
  %v4929 = vld [vmem:[#allocation5 + $0xe0] sm:$0xff]
  %v4930 = vld [vmem:[#allocation5 + $0xe8] sm:$0xff]
  %v4931 = vld [vmem:[#allocation5 + $0xf0] sm:$0xff]
  %v4932 = vld [vmem:[#allocation5 + $0xf8] sm:$0xff]
  %v4933 = vld [vmem:[#allocation5 + $0x100] sm:$0xff]
  %v4934 = vld [vmem:[#allocation5 + $0x108] sm:$0xff]
  %v4935 = vld [vmem:[#allocation5 + $0x110] sm:$0xff]
  %v4936 = vld [vmem:[#allocation5 + $0x118] sm:$0xff]
  %v4937 = vld [vmem:[#allocation5 + $0x120] sm:$0xff]
  %v4938 = vld [vmem:[#allocation5 + $0x128] sm:$0xff]
  %v4939 = vld [vmem:[#allocation5 + $0x130] sm:$0xff]
  %v4940 = vld [vmem:[#allocation5 + $0x138] sm:$0xff]
  %v4941 = vld [vmem:[#allocation5 + $0x140] sm:$0xff]
  %v4942 = vld [vmem:[#allocation5 + $0x148] sm:$0xff]
  %v4943 = vld [vmem:[#allocation5 + $0x150] sm:$0xff]
  %v4944 = vld [vmem:[#allocation5 + $0x158] sm:$0xff]
  %v4945 = vld [vmem:[#allocation5 + $0x160] sm:$0xff]
  %v4946 = vld [vmem:[#allocation5 + $0x168] sm:$0xff]
  %v4947 = vld [vmem:[#allocation5 + $0x170] sm:$0xff]
  %v4948 = vld [vmem:[#allocation5 + $0x178] sm:$0xff]
  %v4949 = vld [vmem:[#allocation5 + $0x180] sm:$0xff]
  %v4950 = vld [vmem:[#allocation5 + $0x188] sm:$0xff]
  %v4951 = vld [vmem:[#allocation5 + $0x190] sm:$0xff]
  %v4952 = vld [vmem:[#allocation5 + $0x198] sm:$0xff]
  %v4953 = vld [vmem:[#allocation5 + $0x1a0] sm:$0xff]
  %v4954 = vld [vmem:[#allocation5 + $0x1a8] sm:$0xff]
  %v4955 = vld [vmem:[#allocation5 + $0x1b0] sm:$0xff]
  %v4956 = vld [vmem:[#allocation5 + $0x1b8] sm:$0xff]
  %v4957 = vld [vmem:[#allocation5 + $0x1c0] sm:$0xff]
  %v4958 = vld [vmem:[#allocation5 + $0x1c8] sm:$0xff]
  %v4959 = vld [vmem:[#allocation5 + $0x1d0] sm:$0xff]
  %v4960 = vld [vmem:[#allocation5 + $0x1d8] sm:$0xff]
  %v4961 = vld [vmem:[#allocation5 + $0x1e0] sm:$0xff]
  %v4962 = vld [vmem:[#allocation5 + $0x1e8] sm:$0xff]
  %v4963 = vld [vmem:[#allocation5 + $0x1f0] sm:$0xff]
  %v4964 = vld [vmem:[#allocation5 + $0x1f8] sm:$0xff]
  %4965 = vmatpush.msra.mxu0 %v4916
  %4966 = vmatpush.msra.mxu0 %v4915
  %4967 = vmatpush.msra.mxu0 %v4914
  %4968 = vmatpush.msra.mxu0 %v4913
  %4969 = vmatpush.msra.mxu0 %v4912
  %4970 = vmatpush.msra.mxu0 %v4911
  %4971 = vmatpush.msra.mxu0 %v4910
  %4972 = vmatpush.msra.mxu0 %v4909
  %4973 = vmatpush.msra.mxu0 %v4908
  %4974 = vmatpush.msra.mxu0 %v4907
  %4975 = vmatpush.msra.mxu0 %v4906
  %4976 = vmatpush.msra.mxu0 %v4905
  %4977 = vmatpush.msra.mxu0 %v4904
  %4978 = vmatpush.msra.mxu0 %v4903
  %4979 = vmatpush.msra.mxu0 %v4902
  %4980 = vmatpush.msra.mxu0 %v4901
  %4981 = vmatmul.f32.gmra.mxu0 %v4672
  %v4982 = vpop.f32.mrf.mxu0
  %v4983 = vadd.f32 0.0, %v4982
  %4984 = vmatmul.f32.gmra.mxu0 %v4680
  %v4985 = vpop.f32.mrf.mxu0
  %v4986 = vadd.f32 0.0, %v4985
  %4987 = vmatmul.f32.gmra.mxu0 %v4688
  %v4988 = vpop.f32.mrf.mxu0
  %v4989 = vadd.f32 0.0, %v4988
  %4990 = vmatmul.f32.gmra.mxu0 %v4696
  %v4991 = vpop.f32.mrf.mxu0
  %v4992 = vadd.f32 0.0, %v4991
  %4993 = vmatmul.f32.gmra.mxu0 %v4704
  %v4994 = vpop.f32.mrf.mxu0
  %v4995 = vadd.f32 0.0, %v4994
  %4996 = vmatmul.f32.gmra.mxu0 %v4712
  %v4997 = vpop.f32.mrf.mxu0
  %v4998 = vadd.f32 0.0, %v4997
  %4999 = vmatmul.f32.gmra.mxu0 %v4720
  %v5000 = vpop.f32.mrf.mxu0
  %v5001 = vadd.f32 0.0, %v5000
  %5002 = vmatmul.f32.gmra.mxu0 %v4728
  %v5003 = vpop.f32.mrf.mxu0
  %v5004 = vadd.f32 0.0, %v5003
  %5005 = vdwg.mxu0
  %5006 = vmatpush.msra.mxu0 %v4932
  %5007 = vmatpush.msra.mxu0 %v4931
  %5008 = vmatpush.msra.mxu0 %v4930
  %5009 = vmatpush.msra.mxu0 %v4929
  %5010 = vmatpush.msra.mxu0 %v4928
  %5011 = vmatpush.msra.mxu0 %v4927
  %5012 = vmatpush.msra.mxu0 %v4926
  %5013 = vmatpush.msra.mxu0 %v4925
  %5014 = vmatpush.msra.mxu0 %v4924
  %5015 = vmatpush.msra.mxu0 %v4923
  %5016 = vmatpush.msra.mxu0 %v4922
  %5017 = vmatpush.msra.mxu0 %v4921
  %5018 = vmatpush.msra.mxu0 %v4920
  %5019 = vmatpush.msra.mxu0 %v4919
  %5020 = vmatpush.msra.mxu0 %v4918
  %5021 = vmatpush.msra.mxu0 %v4917
  %5022 = vmatmul.f32.gmra.mxu0 %v4674
  %v5023 = vpop.f32.mrf.mxu0
  %v5024 = vadd.f32 %v4983, %v5023
  %5025 = vmatmul.f32.gmra.mxu0 %v4682
  %v5026 = vpop.f32.mrf.mxu0
  %v5027 = vadd.f32 %v4986, %v5026
  %5028 = vmatmul.f32.gmra.mxu0 %v4690
  %v5029 = vpop.f32.mrf.mxu0
  %v5030 = vadd.f32 %v4989, %v5029
  %5031 = vmatmul.f32.gmra.mxu0 %v4698
  %v5032 = vpop.f32.mrf.mxu0
  %v5033 = vadd.f32 %v4992, %v5032
  %5034 = vmatmul.f32.gmra.mxu0 %v4706
  %v5035 = vpop.f32.mrf.mxu0
  %v5036 = vadd.f32 %v4995, %v5035
  %5037 = vmatmul.f32.gmra.mxu0 %v4714
  %v5038 = vpop.f32.mrf.mxu0
  %v5039 = vadd.f32 %v4998, %v5038
  %5040 = vmatmul.f32.gmra.mxu0 %v4722
  %v5041 = vpop.f32.mrf.mxu0
  %v5042 = vadd.f32 %v5001, %v5041
  %5043 = vmatmul.f32.gmra.mxu0 %v4730
  %v5044 = vpop.f32.mrf.mxu0
  %v5045 = vadd.f32 %v5004, %v5044
  %5046 = vdwg.mxu0
  %5047 = vmatpush.msra.mxu0 %v4948
  %5048 = vmatpush.msra.mxu0 %v4947
  %5049 = vmatpush.msra.mxu0 %v4946
  %5050 = vmatpush.msra.mxu0 %v4945
  %5051 = vmatpush.msra.mxu0 %v4944
  %5052 = vmatpush.msra.mxu0 %v4943
  %5053 = vmatpush.msra.mxu0 %v4942
  %5054 = vmatpush.msra.mxu0 %v4941
  %5055 = vmatpush.msra.mxu0 %v4940
  %5056 = vmatpush.msra.mxu0 %v4939
  %5057 = vmatpush.msra.mxu0 %v4938
  %5058 = vmatpush.msra.mxu0 %v4937
  %5059 = vmatpush.msra.mxu0 %v4936
  %5060 = vmatpush.msra.mxu0 %v4935
  %5061 = vmatpush.msra.mxu0 %v4934
  %5062 = vmatpush.msra.mxu0 %v4933
  %5063 = vmatmul.f32.gmra.mxu0 %v4676
  %v5064 = vpop.f32.mrf.mxu0
  %v5065 = vadd.f32 %v5024, %v5064
  %5066 = vmatmul.f32.gmra.mxu0 %v4684
  %v5067 = vpop.f32.mrf.mxu0
  %v5068 = vadd.f32 %v5027, %v5067
  %5069 = vmatmul.f32.gmra.mxu0 %v4692
  %v5070 = vpop.f32.mrf.mxu0
  %v5071 = vadd.f32 %v5030, %v5070
  %5072 = vmatmul.f32.gmra.mxu0 %v4700
  %v5073 = vpop.f32.mrf.mxu0
  %v5074 = vadd.f32 %v5033, %v5073
  %5075 = vmatmul.f32.gmra.mxu0 %v4708
  %v5076 = vpop.f32.mrf.mxu0
  %v5077 = vadd.f32 %v5036, %v5076
  %5078 = vmatmul.f32.gmra.mxu0 %v4716
  %v5079 = vpop.f32.mrf.mxu0
  %v5080 = vadd.f32 %v5039, %v5079
  %5081 = vmatmul.f32.gmra.mxu0 %v4724
  %v5082 = vpop.f32.mrf.mxu0
  %v5083 = vadd.f32 %v5042, %v5082
  %5084 = vmatmul.f32.gmra.mxu0 %v4732
  %v5085 = vpop.f32.mrf.mxu0
  %v5086 = vadd.f32 %v5045, %v5085
  %5087 = vdwg.mxu0
  %5088 = vmatpush.msra.mxu0 %v4964
  %5089 = vmatpush.msra.mxu0 %v4963
  %5090 = vmatpush.msra.mxu0 %v4962
  %5091 = vmatpush.msra.mxu0 %v4961
  %5092 = vmatpush.msra.mxu0 %v4960
  %5093 = vmatpush.msra.mxu0 %v4959
  %5094 = vmatpush.msra.mxu0 %v4958
  %5095 = vmatpush.msra.mxu0 %v4957
  %5096 = vmatpush.msra.mxu0 %v4956
  %5097 = vmatpush.msra.mxu0 %v4955
  %5098 = vmatpush.msra.mxu0 %v4954
  %5099 = vmatpush.msra.mxu0 %v4953
  %5100 = vmatpush.msra.mxu0 %v4952
  %5101 = vmatpush.msra.mxu0 %v4951
  %5102 = vmatpush.msra.mxu0 %v4950
  %5103 = vmatpush.msra.mxu0 %v4949
  %5104 = vmatmul.f32.gmra.mxu0 %v4678
  %v5105 = vpop.f32.mrf.mxu0
  %v5106 = vadd.f32 %v5065, %v5105
  %5107 = vmatmul.f32.gmra.mxu0 %v4686
  %v5108 = vpop.f32.mrf.mxu0
  %v5109 = vadd.f32 %v5068, %v5108
  %5110 = vmatmul.f32.gmra.mxu0 %v4694
  %v5111 = vpop.f32.mrf.mxu0
  %v5112 = vadd.f32 %v5071, %v5111
  %5113 = vmatmul.f32.gmra.mxu0 %v4702
  %v5114 = vpop.f32.mrf.mxu0
  %v5115 = vadd.f32 %v5074, %v5114
  %5116 = vmatmul.f32.gmra.mxu0 %v4710
  %v5117 = vpop.f32.mrf.mxu0
  %v5118 = vadd.f32 %v5077, %v5117
  %5119 = vmatmul.f32.gmra.mxu0 %v4718
  %v5120 = vpop.f32.mrf.mxu0
  %v5121 = vadd.f32 %v5080, %v5120
  %5122 = vmatmul.f32.gmra.mxu0 %v4726
  %v5123 = vpop.f32.mrf.mxu0
  %v5124 = vadd.f32 %v5083, %v5123
  %5125 = vmatmul.f32.gmra.mxu0 %v4734
  %v5126 = vpop.f32.mrf.mxu0
  %v5127 = vadd.f32 %v5086, %v5126
  %5128 = vdwg.mxu0
  %v5130 = vperm.slane %v4900, 0
  %v5132 = vmul.f32 %v5106, %v5130
  %v5133 = vmul.f32 %v5109, %v5130
  %v5134 = vmul.f32 %v5112, %v5130
  %v5135 = vmul.f32 %v5115, %v5130
  %v5136 = vmul.f32 %v5118, %v5130
  %v5137 = vmul.f32 %v5121, %v5130
  %v5138 = vmul.f32 %v5124, %v5130
  %v5139 = vmul.f32 %v5127, %v5130
  %5148 = vrot.lane.b32.xlu0 %v5132, 96
  %v5149 = vpop.permute.xlu0 %5148
  %5150 = vrot.lane.b32.xlu0 %v5133, 96
  %v5151 = vpop.permute.xlu0 %5150
  %5152 = vrot.lane.b32.xlu0 %v5134, 96
  %v5153 = vpop.permute.xlu0 %5152
  %5154 = vrot.lane.b32.xlu0 %v5135, 96
  %v5155 = vpop.permute.xlu0 %5154
  %5156 = vrot.lane.b32.xlu0 %v5136, 96
  %v5157 = vpop.permute.xlu0 %5156
  %5158 = vrot.lane.b32.xlu0 %v5137, 96
  %v5159 = vpop.permute.xlu0 %5158
  %5160 = vrot.lane.b32.xlu0 %v5138, 96
  %v5161 = vpop.permute.xlu0 %5160
  %5162 = vrot.lane.b32.xlu0 %v5139, 96
  %v5163 = vpop.permute.xlu0 %5162
  %vm5172 = vcmask 1048320
  %5173 = vst.msk [vmem:[#allocation6] sm:$0xff] %vm5172, %v5149
  %5174 = vst.msk [vmem:[#allocation6 + $0x8] sm:$0xff] %vm5172, %v5151
  %5175 = vst.msk [vmem:[#allocation6 + $0x10] sm:$0xff] %vm5172, %v5153
  %5176 = vst.msk [vmem:[#allocation6 + $0x18] sm:$0xff] %vm5172, %v5155
  %5177 = vst.msk [vmem:[#allocation6 + $0x20] sm:$0xff] %vm5172, %v5157
  %5178 = vst.msk [vmem:[#allocation6 + $0x28] sm:$0xff] %vm5172, %v5159
  %5179 = vst.msk [vmem:[#allocation6 + $0x30] sm:$0xff] %vm5172, %v5161
  %5180 = vst.msk [vmem:[#allocation6 + $0x38] sm:$0xff] %vm5172, %v5163
  %v5181 = vld [vmem:[#allocation6] sm:$0xff]
  %v5182 = vld [vmem:[#allocation6 + $0x8] sm:$0xff]
  %v5183 = vld [vmem:[#allocation6 + $0x10] sm:$0xff]
  %v5184 = vld [vmem:[#allocation6 + $0x18] sm:$0xff]
  %v5185 = vld [vmem:[#allocation6 + $0x20] sm:$0xff]
  %v5186 = vld [vmem:[#allocation6 + $0x28] sm:$0xff]
  %v5187 = vld [vmem:[#allocation6 + $0x30] sm:$0xff]
  %v5188 = vld [vmem:[#allocation6 + $0x38] sm:$0xff]
  %v5189 = vld [vmem:[%s4] sm:$0xff]
  %v5190 = vld [vmem:[%s4 + $0x8] sm:$0xff]
  %v5191 = vld [vmem:[%s4 + $0x10] sm:$0xff]
  %v5192 = vld [vmem:[%s4 + $0x18] sm:$0xff]
  %v5193 = vld [vmem:[%s4 + $0x20] sm:$0xff]
  %v5194 = vld [vmem:[%s4 + $0x28] sm:$0xff]
  %v5195 = vld [vmem:[%s4 + $0x30] sm:$0xff]
  %v5196 = vld [vmem:[%s4 + $0x38] sm:$0xff]
  %v5197 = vld [vmem:[%s4 + $0x40] sm:$0xff]
  %v5198 = vld [vmem:[%s4 + $0x48] sm:$0xff]
  %v5199 = vld [vmem:[%s4 + $0x50] sm:$0xff]
  %v5200 = vld [vmem:[%s4 + $0x58] sm:$0xff]
  %v5201 = vld [vmem:[%s4 + $0x60] sm:$0xff]
  %v5202 = vld [vmem:[%s4 + $0x68] sm:$0xff]
  %v5203 = vld [vmem:[%s4 + $0x70] sm:$0xff]
  %v5204 = vld [vmem:[%s4 + $0x78] sm:$0xff]
  %v5205 = vld [vmem:[%s5] sm:$0x1]
  %v5207 = vperm.slane %v5205, 0
  %5209 = vmatpush.msra.mxu0 %v5204
  %5210 = vmatpush.msra.mxu0 %v5203
  %5211 = vmatpush.msra.mxu0 %v5202
  %5212 = vmatpush.msra.mxu0 %v5201
  %5213 = vmatpush.msra.mxu0 %v5200
  %5214 = vmatpush.msra.mxu0 %v5199
  %5215 = vmatpush.msra.mxu0 %v5198
  %5216 = vmatpush.msra.mxu0 %v5197
  %5217 = vmatpush.msra.mxu0 %v5196
  %5218 = vmatpush.msra.mxu0 %v5195
  %5219 = vmatpush.msra.mxu0 %v5194
  %5220 = vmatpush.msra.mxu0 %v5193
  %5221 = vmatpush.msra.mxu0 %v5192
  %5222 = vmatpush.msra.mxu0 %v5191
  %5223 = vmatpush.msra.mxu0 %v5190
  %5224 = vmatpush.msra.mxu0 %v5189
  %5225 = vmatmul.f32.gmra.mxu0 %v5181
  %v5226 = vpop.f32.mrf.mxu0
  %v5227 = vadd.f32 %v5207, %v5226
  %5228 = vmatmul.f32.gmra.mxu0 %v5182
  %v5229 = vpop.f32.mrf.mxu0
  %v5230 = vadd.f32 %v5207, %v5229
  %5231 = vmatmul.f32.gmra.mxu0 %v5183
  %v5232 = vpop.f32.mrf.mxu0
  %v5233 = vadd.f32 %v5207, %v5232
  %5234 = vmatmul.f32.gmra.mxu0 %v5184
  %v5235 = vpop.f32.mrf.mxu0
  %v5236 = vadd.f32 %v5207, %v5235
  %5237 = vmatmul.f32.gmra.mxu0 %v5185
  %v5238 = vpop.f32.mrf.mxu0
  %v5239 = vadd.f32 %v5207, %v5238
  %5240 = vmatmul.f32.gmra.mxu0 %v5186
  %v5241 = vpop.f32.mrf.mxu0
  %v5242 = vadd.f32 %v5207, %v5241
  %5243 = vmatmul.f32.gmra.mxu0 %v5187
  %v5244 = vpop.f32.mrf.mxu0
  %v5245 = vadd.f32 %v5207, %v5244
  %5246 = vmatmul.f32.gmra.mxu0 %v5188
  %v5247 = vpop.f32.mrf.mxu0
  %v5248 = vadd.f32 %v5207, %v5247
  %5249 = vdwg.mxu0
  %vm5250 = vcmask 130048
  %5251 = vst.msk [vmem:[%s6] sm:$0xff] %vm5250, %v5227
  %5252 = vst.msk [vmem:[%s6 + $0x8] sm:$0xff] %vm5250, %v5230
  %5253 = vst.msk [vmem:[%s6 + $0x10] sm:$0xff] %vm5250, %v5233
  %5254 = vst.msk [vmem:[%s6 + $0x18] sm:$0xff] %vm5250, %v5236
  %5255 = vst.msk [vmem:[%s6 + $0x20] sm:$0xff] %vm5250, %v5239
  %5256 = vst.msk [vmem:[%s6 + $0x28] sm:$0xff] %vm5250, %v5242
  %5257 = vst.msk [vmem:[%s6 + $0x30] sm:$0xff] %vm5250, %v5245
  %5258 = vst.msk [vmem:[%s6 + $0x38] sm:$0xff] %vm5250, %v5248
  // Predicated region
  $region26: #{downsampled_multihead_attention_2d.1} parent=0 // pred_check
    _
  $region27: #{downsampled_multihead_attention_2d.1} parent=0 // pred_check_branch
    %5260 = sbr.rel (0) target = $region29
  $region28: #{downsampled_multihead_attention_2d.1} parent=0 // pred_region
    _
  $region29: #{downsampled_multihead_attention_2d.1} parent=0 // pred_fallthru
    _
  // Predicated region
  $region30: #{downsampled_multihead_attention_2d.1} parent=0 // pred_check
    _
  $region31: #{downsampled_multihead_attention_2d.1} parent=0 // pred_check_branch
    %5262 = sbr.rel (0) target = $region33
  $region32: #{downsampled_multihead_attention_2d.1} parent=0 // pred_region
    _
  $region33: #{downsampled_multihead_attention_2d.1} parent=0 // pred_fallthru
    _

</llo_original>
